<compile_context>
chip_gen: v7x
topology: tpu7x:2x2x1
jax: 0.10.0
libtpu: 0.0.40
codegen_flags: <defaults>
</compile_context>

<pallas_src>
import math
import jax
import jax.numpy as jnp
from jax.experimental import pallas as pl
from jax.experimental.pallas import tpu as pltpu

# ---- model hyperparameters (from the PyTorch module) -----------------------
INPUT_SIZE = 12          # len(feature_columns)
D_MODEL = 128
NHEAD = 8
HEAD_DIM = D_MODEL // NHEAD
NUM_LAYERS = 2
DIM_FF = 2048            # nn.TransformerEncoderLayer default dim_feedforward
PRED_H = 90              # prediction_horizon
PRED_PAD = 128           # lane-padded head output width (sliced to 90 outside)
LN_EPS = 1e-5

# rows of the packed per-layer vector tile (L, 8, D_MODEL)
_BO, _G1, _BE1, _B2, _G2, _BE2 = 0, 1, 2, 3, 4, 5


def _layernorm(x, g, b):
    mu = jnp.mean(x, axis=-1, keepdims=True)
    xc = x - mu
    var = jnp.mean(xc * xc, axis=-1, keepdims=True)
    return xc * jax.lax.rsqrt(var + LN_EPS) * g + b


# ---------------------------------------------------------------------------
# Positional encoding (host/trace-side constant)
# ---------------------------------------------------------------------------
def positional_encoding(seq_len, d_model):
    pos = jnp.arange(seq_len, dtype=jnp.float32)[:, None]
    div = jnp.exp(jnp.arange(0, d_model, 2, dtype=jnp.float32)
                  * (-math.log(10000.0) / d_model))
    pe = jnp.zeros((seq_len, d_model), jnp.float32)
    pe = pe.at[:, 0::2].set(jnp.sin(pos * div))
    pe = pe.at[:, 1::2].set(jnp.cos(pos * div))
    return pe


# ---------------------------------------------------------------------------
# Parameter construction (deterministic, synthetic), pre-packed for the kernel:
#   * sqrt(d_model) folded into input_fc weight AND bias (forward does
#     (x@W+b)*sqrt(d_model) -> both terms are scaled).
#   * per-head projection weights stored transposed as (L, H, HEAD_DIM, D) bf16
#     (lane-dense, no in-kernel relayout), 1/sqrt(HEAD_DIM) folded into q.
#   * k-bias dropped / v-bias folded into out-proj bias (exact, see header).
#   * small per-layer vectors packed into one (L, 8, D) f32 tile.
#   * final fc lane-padded 90 -> 128.
# ---------------------------------------------------------------------------
def init_params(key):
    def uni(k, shape, r=0.1):
        return jax.random.uniform(k, shape, jnp.float32, -r, r)

    keys = iter(jax.random.split(key, 64))
    sqrt_d = math.sqrt(D_MODEL)
    scale = 1.0 / math.sqrt(HEAD_DIM)

    p = {
        "w_in": uni(next(keys), (INPUT_SIZE, D_MODEL)) * sqrt_d,   # scale folded
        "b_in": uni(next(keys), (D_MODEL,)) * sqrt_d,              # scale folded
    }
    w_fc = uni(next(keys), (D_MODEL, PRED_H))
    b_fc = uni(next(keys), (PRED_H,))
    p["w_fc"] = jnp.pad(w_fc, ((0, 0), (0, PRED_PAD - PRED_H))).astype(jnp.bfloat16)
    p["b_fc"] = jnp.pad(b_fc, (0, PRED_PAD - PRED_H))[None, :]     # (1, 128) f32

    wq_l, wk_l, wv_l, bq_l, wo_l, bvec_l, w1_l, bf1_l, w2_l = ([] for _ in range(9))
    zeros_d = jnp.zeros((D_MODEL,), jnp.float32)
    for _ in range(NUM_LAYERS):
        wqkv = uni(next(keys), (D_MODEL, 3 * D_MODEL))     # x @ wqkv layout
        bqkv = uni(next(keys), (3 * D_MODEL,))
        wo   = uni(next(keys), (D_MODEL, D_MODEL))
        bo   = uni(next(keys), (D_MODEL,))
        w1   = uni(next(keys), (D_MODEL, DIM_FF))
        b1   = uni(next(keys), (DIM_FF,))
        w2   = uni(next(keys), (DIM_FF, D_MODEL))
        b2   = uni(next(keys), (D_MODEL,))
        g1, be1 = jnp.ones((D_MODEL,), jnp.float32), jnp.zeros((D_MODEL,), jnp.float32)
        g2, be2 = jnp.ones((D_MODEL,), jnp.float32), jnp.zeros((D_MODEL,), jnp.float32)

        # per-head, transposed (lane-dense) projections; q gets 1/sqrt(Dh)
        def split_heads_t(w):   # (D, D) -> (H, Dh, D) with w_t[h,e,d] = w[d, h*Dh+e]
            return w.reshape(D_MODEL, NHEAD, HEAD_DIM).transpose(1, 2, 0)

        wq = split_heads_t(wqkv[:, 0 * D_MODEL:1 * D_MODEL]) * scale
        wk = split_heads_t(wqkv[:, 1 * D_MODEL:2 * D_MODEL])
        wv = split_heads_t(wqkv[:, 2 * D_MODEL:3 * D_MODEL])
        bq = bqkv[0 * D_MODEL:1 * D_MODEL].reshape(NHEAD, HEAD_DIM) * scale
        # k-bias: adds a per-query constant to each score row -> softmax-invariant (dropped)
        bv = bqkv[2 * D_MODEL:3 * D_MODEL]
        # attention rows sum to 1 => v-bias contributes the constant bv@Wo to the output
        bo_eff = bo + bv @ wo
        wo_h = wo.reshape(NHEAD, HEAD_DIM, D_MODEL)        # rows are head-major

        wq_l.append(wq.astype(jnp.bfloat16))
        wk_l.append(wk.astype(jnp.bfloat16))
        wv_l.append(wv.astype(jnp.bfloat16))
        wo_l.append(wo_h.astype(jnp.bfloat16))
        bq_l.append(bq)
        bvec_l.append(jnp.stack([bo_eff, g1, be1, b2, g2, be2, zeros_d, zeros_d]))
        w1_l.append(w1.astype(jnp.bfloat16))
        bf1_l.append(b1[None, :])
        w2_l.append(w2.astype(jnp.bfloat16))

    p["wq"] = jnp.stack(wq_l)        # (L, H, Dh, D) bf16
    p["wk"] = jnp.stack(wk_l)
    p["wv"] = jnp.stack(wv_l)
    p["wo"] = jnp.stack(wo_l)        # (L, H, Dh, D) bf16
    p["bq"] = jnp.stack(bq_l)        # (L, H, Dh) f32
    p["bvec"] = jnp.stack(bvec_l)    # (L, 8, D) f32
    p["w1"] = jnp.stack(w1_l)        # (L, D, FF) bf16
    p["bf1"] = jnp.stack(bf1_l)      # (L, 1, FF) f32
    p["w2"] = jnp.stack(w2_l)        # (L, FF, D) bf16
    return p


# ---------------------------------------------------------------------------
# Forward: one pallas_call, grid over layers (weight DMA pipelined under compute)
# ---------------------------------------------------------------------------
@jax.jit
def transformer_forward(src, params):
    B, S, F = src.shape
    N = B * S
    x2d = src.reshape(N, F)

    # input_fc bias (scale pre-folded) + positional encoding, tiled over batch
    pe = positional_encoding(S, D_MODEL)
    bpe = jnp.tile(params["b_in"][None, :] + pe, (B, 1))               # (N, D)

    # additive attention mask: 0 within a sequence, -1e9 across sequences, so
    # one (N, N) softmax == B independent (S, S) softmaxes. Scores stay f32 and
    # are max-shifted before exp; the diagonal block is never masked -> no NaN.
    bid = jnp.arange(N, dtype=jnp.int32) // S
    mask = jnp.where(bid[:, None] == bid[None, :], 0.0, -1e9).astype(jnp.float32)

    # q-bias pre-broadcast over rows (tiny, avoids an in-kernel sublane broadcast)
    bq_b = jnp.broadcast_to(params["bq"][:, :, None, :],
                            (NUM_LAYERS, NHEAD, N, HEAD_DIM))           # (L,H,N,Dh)

    def kernel(x_ref, w_in_ref, bpe_ref, mask_ref,
               wq_ref, wk_ref, wv_ref, bq_ref, wo_ref, bvec_ref,
               w1_ref, bf1_ref, w2_ref, wfc_ref, bfc_ref,
               o_ref, h_scr):
        l = pl.program_id(0)

        # ---- layer-0 prologue: embedding = (x @ W_in + b_in)*sqrt(d) + PE ----
        @pl.when(l == 0)
        def _():
            h_scr[...] = jnp.dot(x_ref[...], w_in_ref[...],
                                 preferred_element_type=jnp.float32) + bpe_ref[...]

        h = h_scr[...]                                           # (N, D) f32
        hb = jnp.broadcast_to(h.astype(jnp.bfloat16)[None], (NHEAD,) + h.shape)

        vec = bvec_ref[0]                                        # (8, D) f32
        bo  = vec[_BO:_BO + 1]
        g1  = vec[_G1:_G1 + 1]
        be1 = vec[_BE1:_BE1 + 1]
        b2  = vec[_B2:_B2 + 1]
        g2  = vec[_G2:_G2 + 1]
        be2 = vec[_BE2:_BE2 + 1]

        # ---- multi-head self-attention (heads batched, post-norm) ----
        q = jnp.einsum('hnd,hed->hne', hb, wq_ref[0],
                       preferred_element_type=jnp.float32) + bq_ref[0]   # (H,N,Dh)
        k = jnp.einsum('hnd,hed->hne', hb, wk_ref[0],
                       preferred_element_type=jnp.float32)
        v = jnp.einsum('hnd,hed->hne', hb, wv_ref[0],
                       preferred_element_type=jnp.float32)
        s = jnp.einsum('hqe,hke->hqk', q, k,
                       preferred_element_type=jnp.float32) + mask_ref[...][None]
        s = s - jnp.max(s, axis=-1, keepdims=True)
        p = jnp.exp(s)
        p = p * pl.reciprocal(jnp.sum(p, axis=-1, keepdims=True), approx=True)
        ctx = jnp.einsum('hqk,hke->hqe', p, v,
                         preferred_element_type=jnp.float32)             # (H,N,Dh)
        # head merge folded into W_o: sum_h ctx_h @ Wo_h  (+ bo_eff = b_o + b_v@Wo)
        attn = jnp.einsum('hqe,hem->hqm', ctx.astype(jnp.bfloat16), wo_ref[0],
                          preferred_element_type=jnp.float32).sum(axis=0) + bo
        h = _layernorm(h + attn, g1, be1)

        # ---- feed-forward: relu(x W1 + b1) W2 + b2 ----
        f = jnp.dot(h.astype(jnp.bfloat16), w1_ref[0],
                    preferred_element_type=jnp.float32) + bf1_ref[0]
        f = jnp.maximum(f, 0.0)
        f = jnp.dot(f.astype(jnp.bfloat16), w2_ref[0],
                    preferred_element_type=jnp.float32) + b2
        h = _layernorm(h + f, g2, be2)

        h_scr[...] = h

        # ---- last-layer epilogue: fc on all N rows (lane-dense output) ----
        # TODO(synk): nn.Dropout(p=0.1) before fc is identity at inference.
        @pl.when(l == NUM_LAYERS - 1)
        def _():
            o_ref[...] = jnp.dot(h.astype(jnp.bfloat16), wfc_ref[...],
                                 preferred_element_type=jnp.float32) + bfc_ref[...]

    grid_spec = pltpu.PrefetchScalarGridSpec(
        num_scalar_prefetch=0,
        grid=(NUM_LAYERS,),
        in_specs=[
            pl.BlockSpec((N, F), lambda l: (0, 0)),                       # x2d
            pl.BlockSpec((F, D_MODEL), lambda l: (0, 0)),                 # w_in
            pl.BlockSpec((N, D_MODEL), lambda l: (0, 0)),                 # bpe
            pl.BlockSpec((N, N), lambda l: (0, 0)),                       # mask
            pl.BlockSpec((1, NHEAD, HEAD_DIM, D_MODEL), lambda l: (l, 0, 0, 0)),  # wq
            pl.BlockSpec((1, NHEAD, HEAD_DIM, D_MODEL), lambda l: (l, 0, 0, 0)),  # wk
            pl.BlockSpec((1, NHEAD, HEAD_DIM, D_MODEL), lambda l: (l, 0, 0, 0)),  # wv
            pl.BlockSpec((1, NHEAD, N, HEAD_DIM), lambda l: (l, 0, 0, 0)),        # bq
            pl.BlockSpec((1, NHEAD, HEAD_DIM, D_MODEL), lambda l: (l, 0, 0, 0)),  # wo
            pl.BlockSpec((1, 8, D_MODEL), lambda l: (l, 0, 0)),           # bvec
            pl.BlockSpec((1, D_MODEL, DIM_FF), lambda l: (l, 0, 0)),      # w1
            pl.BlockSpec((1, 1, DIM_FF), lambda l: (l, 0, 0)),            # bf1
            pl.BlockSpec((1, DIM_FF, D_MODEL), lambda l: (l, 0, 0)),      # w2
            pl.BlockSpec((D_MODEL, PRED_PAD), lambda l: (0, 0)),          # w_fc
            pl.BlockSpec((1, PRED_PAD), lambda l: (0, 0)),                # b_fc
        ],
        out_specs=pl.BlockSpec((N, PRED_PAD), lambda l: (0, 0)),
        scratch_shapes=[pltpu.VMEM((N, D_MODEL), jnp.float32)],           # resident h
    )

    out_pad = pl.pallas_call(
        kernel,
        out_shape=jax.ShapeDtypeStruct((N, PRED_PAD), jnp.float32),
        grid_spec=grid_spec,
        compiler_params=pltpu.CompilerParams(
            dimension_semantics=("arbitrary",),           # sequential layer axis
            vmem_limit_bytes=16 << 20),
    )(x2d, params["w_in"], bpe, mask,
      params["wq"], params["wk"], params["wv"], bq_b, params["wo"], params["bvec"],
      params["w1"], params["bf1"], params["w2"], params["w_fc"], params["b_fc"])

    # last time step of each sequence, first PRED_H lanes
    return out_pad.reshape(B, S, PRED_PAD)[:, S - 1, :PRED_H]


if __name__ == "__main__":
    B, S = 2, 8
    key = jax.random.PRNGKey(0)
    kx, kp = jax.random.split(key)
    src = jax.random.normal(kx, (B, S, INPUT_SIZE), jnp.float32)
    params = init_params(kp)

    out = transformer_forward(src, params)
    jax.block_until_ready(out)
    assert out.shape == (B, PRED_H) and out.dtype == jnp.float32
    print("KERNEL_OK")
</pallas_src>

<mosaic_0001>
module attributes {stable_mosaic.version = 11 : i64} {
  func.func @kernel(%arg0: i32, %arg1: memref<16x12xf32, #tpu.memory_space<vmem>>, %arg2: memref<12x128xf32, #tpu.memory_space<vmem>>, %arg3: memref<16x128xf32, #tpu.memory_space<vmem>>, %arg4: memref<16x16xf32, #tpu.memory_space<vmem>>, %arg5: memref<1x8x16x128xbf16, #tpu.memory_space<vmem>>, %arg6: memref<1x8x16x128xbf16, #tpu.memory_space<vmem>>, %arg7: memref<1x8x16x128xbf16, #tpu.memory_space<vmem>>, %arg8: memref<1x8x16x16xf32, #tpu.memory_space<vmem>>, %arg9: memref<1x8x16x128xbf16, #tpu.memory_space<vmem>>, %arg10: memref<1x8x128xf32, #tpu.memory_space<vmem>>, %arg11: memref<1x128x2048xbf16, #tpu.memory_space<vmem>>, %arg12: memref<1x1x2048xf32, #tpu.memory_space<vmem>>, %arg13: memref<1x2048x128xbf16, #tpu.memory_space<vmem>>, %arg14: memref<128x128xbf16, #tpu.memory_space<vmem>>, %arg15: memref<1x128xf32, #tpu.memory_space<vmem>>, %arg16: memref<16x128xf32, #tpu.memory_space<vmem>>, %arg17: memref<16x128xf32, #tpu.memory_space<vmem>>) attributes {dimension_semantics = [#tpu.dimension_semantics<arbitrary>], iteration_bounds = array<i64: 2>, scalar_prefetch = 0 : i64, scratch_operands = 1 : i64, tpu.core_type = #tpu.core_type<tc>, window_params = [{pipeline_mode = #tpu.pipeline_mode<synchronous>, transform_indices = @transform_0, window_bounds = array<i64: 16, 12>}, {pipeline_mode = #tpu.pipeline_mode<synchronous>, transform_indices = @transform_1, window_bounds = array<i64: 12, 128>}, {pipeline_mode = #tpu.pipeline_mode<synchronous>, transform_indices = @transform_2, window_bounds = array<i64: 16, 128>}, {pipeline_mode = #tpu.pipeline_mode<synchronous>, transform_indices = @transform_3, window_bounds = array<i64: 16, 16>}, {transform_indices = @transform_4, window_bounds = array<i64: 1, 8, 16, 128>}, {transform_indices = @transform_5, window_bounds = array<i64: 1, 8, 16, 128>}, {transform_indices = @transform_6, window_bounds = array<i64: 1, 8, 16, 128>}, {transform_indices = @transform_7, window_bounds = array<i64: 1, 8, 16, 16>}, {transform_indices = @transform_8, window_bounds = array<i64: 1, 8, 16, 128>}, {transform_indices = @transform_9, window_bounds = array<i64: 1, 8, 128>}, {transform_indices = @transform_10, window_bounds = array<i64: 1, 128, 2048>}, {transform_indices = @transform_11, window_bounds = array<i64: 1, 1, 2048>}, {transform_indices = @transform_12, window_bounds = array<i64: 1, 2048, 128>}, {pipeline_mode = #tpu.pipeline_mode<synchronous>, transform_indices = @transform_13, window_bounds = array<i64: 128, 128>}, {pipeline_mode = #tpu.pipeline_mode<synchronous>, transform_indices = @transform_14, window_bounds = array<i64: 1, 128>}, {pipeline_mode = #tpu.pipeline_mode<synchronous>, transform_indices = @transform_15, window_bounds = array<i64: 16, 128>}]} {
    %c0_i32 = arith.constant 0 : i32
    %0 = arith.cmpi eq, %arg0, %c0_i32 : i32
    %1 = arith.extui %0 : i1 to i32
    %c0_i32_0 = arith.constant 0 : i32
    %2 = arith.cmpi ne, %1, %c0_i32_0 : i32
    scf.if %2 {
      %c0_60 = arith.constant 0 : index
      %c0_61 = arith.constant 0 : index
      %113 = vector.load %arg1[%c0_60, %c0_61] : memref<16x12xf32, #tpu.memory_space<vmem>>, vector<16x12xf32>
      %c0_62 = arith.constant 0 : index
      %c0_63 = arith.constant 0 : index
      %114 = vector.load %arg2[%c0_62, %c0_63] : memref<12x128xf32, #tpu.memory_space<vmem>>, vector<12x128xf32>
      %cst_64 = arith.constant dense<0.000000e+00> : vector<16x128xf32>
      %115 = tpu.matmul %113, %114, %cst_64 {dimension_numbers = #tpu.dot_dimension_numbers<[1], [0], [0], [1], [0, 0, 1, 1], [], []>} : vector<16x12xf32>, vector<12x128xf32>, vector<16x128xf32> -> vector<16x128xf32>
      %c0_65 = arith.constant 0 : index
      %c0_66 = arith.constant 0 : index
      %116 = vector.load %arg3[%c0_65, %c0_66] : memref<16x128xf32, #tpu.memory_space<vmem>>, vector<16x128xf32>
      %117 = arith.addf %115, %116 : vector<16x128xf32>
      %c0_67 = arith.constant 0 : index
      %c0_68 = arith.constant 0 : index
      %118 = vector.load %arg17[%c0_67, %c0_68] : memref<16x128xf32, #tpu.memory_space<vmem>>, vector<16x128xf32>
      tpu.vector_store %arg17[%c0_67, %c0_68], %117 {strides = array<i32>} : memref<16x128xf32, #tpu.memory_space<vmem>>, vector<16x128xf32>,
    } else {
    }
    %c0 = arith.constant 0 : index
    %c0_1 = arith.constant 0 : index
    %3 = vector.load %arg17[%c0, %c0_1] : memref<16x128xf32, #tpu.memory_space<vmem>>, vector<16x128xf32>
    %4 = arith.truncf %3 : vector<16x128xf32> to vector<16x128xbf16>
    %5 = vector.shape_cast %4 : vector<16x128xbf16> to vector<1x16x128xbf16>
    %6 = vector.shape_cast %5 : vector<1x16x128xbf16> to vector<1x16x128xbf16>
    %7 = vector.broadcast %6 : vector<1x16x128xbf16> to vector<8x16x128xbf16>
    %c0_2 = arith.constant 0 : index
    %c0_3 = arith.constant 0 : index
    %c0_4 = arith.constant 0 : index
    %8 = vector.load %arg10[%c0_2, %c0_3, %c0_4] : memref<1x8x128xf32, #tpu.memory_space<vmem>>, vector<1x8x128xf32>
    %9 = vector.shape_cast %8 : vector<1x8x128xf32> to vector<8x128xf32>
    %10 = vector.extract_strided_slice %9 {offsets = [0, 0], sizes = [1, 128], strides = [1, 1]} : vector<8x128xf32> to vector<1x128xf32>
    %11 = vector.extract_strided_slice %9 {offsets = [1, 0], sizes = [1, 128], strides = [1, 1]} : vector<8x128xf32> to vector<1x128xf32>
    %12 = vector.extract_strided_slice %9 {offsets = [2, 0], sizes = [1, 128], strides = [1, 1]} : vector<8x128xf32> to vector<1x128xf32>
    %13 = vector.extract_strided_slice %9 {offsets = [3, 0], sizes = [1, 128], strides = [1, 1]} : vector<8x128xf32> to vector<1x128xf32>
    %14 = vector.extract_strided_slice %9 {offsets = [4, 0], sizes = [1, 128], strides = [1, 1]} : vector<8x128xf32> to vector<1x128xf32>
    %15 = vector.extract_strided_slice %9 {offsets = [5, 0], sizes = [1, 128], strides = [1, 1]} : vector<8x128xf32> to vector<1x128xf32>
    %c0_5 = arith.constant 0 : index
    %c0_6 = arith.constant 0 : index
    %c0_7 = arith.constant 0 : index
    %c0_8 = arith.constant 0 : index
    %16 = vector.load %arg5[%c0_5, %c0_6, %c0_7, %c0_8] : memref<1x8x16x128xbf16, #tpu.memory_space<vmem>>, vector<1x8x16x128xbf16>
    %17 = vector.shape_cast %16 : vector<1x8x16x128xbf16> to vector<8x16x128xbf16>
    "tpu.trace_start"() <{level = 10 : i32, message = "hnd,hed->hne"}> : () -> ()
    %cst = arith.constant dense<0.000000e+00> : vector<8x16x16xf32>
    %18 = tpu.matmul %7, %17, %cst {dimension_numbers = #tpu.dot_dimension_numbers<[2], [2], [1], [1], [0, 0, 0, 1, 1, 1], [0], [0]>} : vector<8x16x128xbf16>, vector<8x16x128xbf16>, vector<8x16x16xf32> -> vector<8x16x16xf32>
    "tpu.trace_stop"() : () -> ()
    %c0_9 = arith.constant 0 : index
    %c0_10 = arith.constant 0 : index
    %c0_11 = arith.constant 0 : index
    %c0_12 = arith.constant 0 : index
    %19 = vector.load %arg8[%c0_9, %c0_10, %c0_11, %c0_12] : memref<1x8x16x16xf32, #tpu.memory_space<vmem>>, vector<1x8x16x16xf32>
    %20 = vector.shape_cast %19 : vector<1x8x16x16xf32> to vector<8x16x16xf32>
    %21 = arith.addf %18, %20 : vector<8x16x16xf32>
    %c0_13 = arith.constant 0 : index
    %c0_14 = arith.constant 0 : index
    %c0_15 = arith.constant 0 : index
    %c0_16 = arith.constant 0 : index
    %22 = vector.load %arg6[%c0_13, %c0_14, %c0_15, %c0_16] : memref<1x8x16x128xbf16, #tpu.memory_space<vmem>>, vector<1x8x16x128xbf16>
    %23 = vector.shape_cast %22 : vector<1x8x16x128xbf16> to vector<8x16x128xbf16>
    "tpu.trace_start"() <{level = 10 : i32, message = "hnd,hed->hne"}> : () -> ()
    %cst_17 = arith.constant dense<0.000000e+00> : vector<8x16x16xf32>
    %24 = tpu.matmul %7, %23, %cst_17 {dimension_numbers = #tpu.dot_dimension_numbers<[2], [2], [1], [1], [0, 0, 0, 1, 1, 1], [0], [0]>} : vector<8x16x128xbf16>, vector<8x16x128xbf16>, vector<8x16x16xf32> -> vector<8x16x16xf32>
    "tpu.trace_stop"() : () -> ()
    %c0_18 = arith.constant 0 : index
    %c0_19 = arith.constant 0 : index
    %c0_20 = arith.constant 0 : index
    %c0_21 = arith.constant 0 : index
    %25 = vector.load %arg7[%c0_18, %c0_19, %c0_20, %c0_21] : memref<1x8x16x128xbf16, #tpu.memory_space<vmem>>, vector<1x8x16x128xbf16>
    %26 = vector.shape_cast %25 : vector<1x8x16x128xbf16> to vector<8x16x128xbf16>
    "tpu.trace_start"() <{level = 10 : i32, message = "hnd,hed->hne"}> : () -> ()
    %cst_22 = arith.constant dense<0.000000e+00> : vector<8x16x16xf32>
    %27 = tpu.matmul %7, %26, %cst_22 {dimension_numbers = #tpu.dot_dimension_numbers<[2], [2], [1], [1], [0, 0, 0, 1, 1, 1], [0], [0]>} : vector<8x16x128xbf16>, vector<8x16x128xbf16>, vector<8x16x16xf32> -> vector<8x16x16xf32>
    "tpu.trace_stop"() : () -> ()
    "tpu.trace_start"() <{level = 10 : i32, message = "hqe,hke->hqk"}> : () -> ()
    %cst_23 = arith.constant dense<0.000000e+00> : vector<8x16x16xf32>
    %28 = tpu.matmul %21, %24, %cst_23 {dimension_numbers = #tpu.dot_dimension_numbers<[2], [2], [1], [1], [0, 0, 0, 1, 1, 1], [0], [0]>} : vector<8x16x16xf32>, vector<8x16x16xf32>, vector<8x16x16xf32> -> vector<8x16x16xf32>
    "tpu.trace_stop"() : () -> ()
    %c0_24 = arith.constant 0 : index
    %c0_25 = arith.constant 0 : index
    %29 = vector.load %arg4[%c0_24, %c0_25] : memref<16x16xf32, #tpu.memory_space<vmem>>, vector<16x16xf32>
    %30 = vector.shape_cast %29 : vector<16x16xf32> to vector<1x16x16xf32>
    %31 = vector.broadcast %30 : vector<1x16x16xf32> to vector<8x16x16xf32>
    %32 = arith.addf %28, %31 : vector<8x16x16xf32>
    %cst_26 = arith.constant dense<0xFF800000> : vector<8x16xf32>
    %33 = vector.multi_reduction <maximumf>, %32, %cst_26 [2] : vector<8x16x16xf32> to vector<8x16xf32>
    %34 = vector.shape_cast %33 : vector<8x16xf32> to vector<8x16x1xf32>
    %35 = vector.broadcast %34 : vector<8x16x1xf32> to vector<8x16x16xf32>
    %36 = arith.subf %32, %35 : vector<8x16x16xf32>
    %37 = math.exp %36 : vector<8x16x16xf32>
    %cst_27 = arith.constant dense<0.000000e+00> : vector<8x16xf32>
    %38 = vector.multi_reduction <add>, %37, %cst_27 [2] : vector<8x16x16xf32> to vector<8x16xf32>
    %39 = vector.shape_cast %38 : vector<8x16xf32> to vector<8x16x1xf32>
    %40 = tpu.reciprocal %39 {approx = true} : vector<8x16x1xf32> -> vector<8x16x1xf32>
    %41 = vector.broadcast %40 : vector<8x16x1xf32> to vector<8x16x16xf32>
    %42 = arith.mulf %37, %41 : vector<8x16x16xf32>
    "tpu.trace_start"() <{level = 10 : i32, message = "hqk,hke->hqe"}> : () -> ()
    %cst_28 = arith.constant dense<0.000000e+00> : vector<8x16x16xf32>
    %43 = tpu.matmul %42, %27, %cst_28 {dimension_numbers = #tpu.dot_dimension_numbers<[2], [1], [1], [2], [0, 0, 0, 1, 1, 2], [0], [0]>} : vector<8x16x16xf32>, vector<8x16x16xf32>, vector<8x16x16xf32> -> vector<8x16x16xf32>
    "tpu.trace_stop"() : () -> ()
    %44 = arith.truncf %43 : vector<8x16x16xf32> to vector<8x16x16xbf16>
    %c0_29 = arith.constant 0 : index
    %c0_30 = arith.constant 0 : index
    %c0_31 = arith.constant 0 : index
    %c0_32 = arith.constant 0 : index
    %45 = vector.load %arg9[%c0_29, %c0_30, %c0_31, %c0_32] : memref<1x8x16x128xbf16, #tpu.memory_space<vmem>>, vector<1x8x16x128xbf16>
    %46 = vector.shape_cast %45 : vector<1x8x16x128xbf16> to vector<8x16x128xbf16>
    "tpu.trace_start"() <{level = 10 : i32, message = "hqe,hem->hqm"}> : () -> ()
    %cst_33 = arith.constant dense<0.000000e+00> : vector<8x16x128xf32>
    %47 = tpu.matmul %44, %46, %cst_33 {dimension_numbers = #tpu.dot_dimension_numbers<[2], [1], [1], [2], [0, 0, 0, 1, 1, 2], [0], [0]>} : vector<8x16x16xbf16>, vector<8x16x128xbf16>, vector<8x16x128xf32> -> vector<8x16x128xf32>
    "tpu.trace_stop"() : () -> ()
    %cst_34 = arith.constant dense<0.000000e+00> : vector<16x128xf32>
    %48 = vector.multi_reduction <add>, %47, %cst_34 [0] : vector<8x16x128xf32> to vector<16x128xf32>
    %49 = vector.broadcast %10 : vector<1x128xf32> to vector<16x128xf32>
    %50 = arith.addf %48, %49 : vector<16x128xf32>
    %51 = arith.addf %3, %50 : vector<16x128xf32>
    %cst_35 = arith.constant dense<0.000000e+00> : vector<16xf32>
    %52 = vector.multi_reduction <add>, %51, %cst_35 [1] : vector<16x128xf32> to vector<16xf32>
    %53 = vector.shape_cast %52 : vector<16xf32> to vector<16x1xf32>
    %cst_36 = arith.constant 1.280000e+02 : f32
    %54 = vector.broadcast %cst_36 : f32 to vector<16x1xf32>
    %55 = arith.divf %53, %54 : vector<16x1xf32>
    %56 = vector.broadcast %55 : vector<16x1xf32> to vector<16x128xf32>
    %57 = arith.subf %51, %56 : vector<16x128xf32>
    %58 = arith.mulf %57, %57 : vector<16x128xf32>
    %cst_37 = arith.constant dense<0.000000e+00> : vector<16xf32>
    %59 = vector.multi_reduction <add>, %58, %cst_37 [1] : vector<16x128xf32> to vector<16xf32>
    %60 = vector.shape_cast %59 : vector<16xf32> to vector<16x1xf32>
    %cst_38 = arith.constant 1.280000e+02 : f32
    %61 = vector.broadcast %cst_38 : f32 to vector<16x1xf32>
    %62 = arith.divf %60, %61 : vector<16x1xf32>
    %cst_39 = arith.constant 9.99999974E-6 : f32
    %63 = vector.broadcast %cst_39 : f32 to vector<16x1xf32>
    %64 = arith.addf %62, %63 : vector<16x1xf32>
    %65 = math.rsqrt %64 : vector<16x1xf32>
    %66 = vector.broadcast %65 : vector<16x1xf32> to vector<16x128xf32>
    %67 = arith.mulf %57, %66 : vector<16x128xf32>
    %68 = vector.broadcast %11 : vector<1x128xf32> to vector<16x128xf32>
    %69 = arith.mulf %67, %68 : vector<16x128xf32>
    %70 = vector.broadcast %12 : vector<1x128xf32> to vector<16x128xf32>
    %71 = arith.addf %69, %70 : vector<16x128xf32>
    %72 = arith.truncf %71 : vector<16x128xf32> to vector<16x128xbf16>
    %c0_40 = arith.constant 0 : index
    %c0_41 = arith.constant 0 : index
    %c0_42 = arith.constant 0 : index
    %73 = vector.load %arg11[%c0_40, %c0_41, %c0_42] : memref<1x128x2048xbf16, #tpu.memory_space<vmem>>, vector<1x128x2048xbf16>
    %74 = vector.shape_cast %73 : vector<1x128x2048xbf16> to vector<128x2048xbf16>
    %cst_43 = arith.constant dense<0.000000e+00> : vector<16x2048xf32>
    %75 = tpu.matmul %72, %74, %cst_43 {dimension_numbers = #tpu.dot_dimension_numbers<[1], [0], [0], [1], [0, 0, 1, 1], [], []>} : vector<16x128xbf16>, vector<128x2048xbf16>, vector<16x2048xf32> -> vector<16x2048xf32>
    %c0_44 = arith.constant 0 : index
    %c0_45 = arith.constant 0 : index
    %c0_46 = arith.constant 0 : index
    %76 = vector.load %arg12[%c0_44, %c0_45, %c0_46] : memref<1x1x2048xf32, #tpu.memory_space<vmem>>, vector<1x1x2048xf32>
    %77 = vector.shape_cast %76 : vector<1x1x2048xf32> to vector<1x2048xf32>
    %78 = vector.broadcast %77 : vector<1x2048xf32> to vector<16x2048xf32>
    %79 = arith.addf %75, %78 : vector<16x2048xf32>
    %cst_47 = arith.constant 0.000000e+00 : f32
    %80 = vector.broadcast %cst_47 : f32 to vector<16x2048xf32>
    %81 = arith.maximumf %79, %80 : vector<16x2048xf32>
    %82 = arith.truncf %81 : vector<16x2048xf32> to vector<16x2048xbf16>
    %c0_48 = arith.constant 0 : index
    %c0_49 = arith.constant 0 : index
    %c0_50 = arith.constant 0 : index
    %83 = vector.load %arg13[%c0_48, %c0_49, %c0_50] : memref<1x2048x128xbf16, #tpu.memory_space<vmem>>, vector<1x2048x128xbf16>
    %84 = vector.shape_cast %83 : vector<1x2048x128xbf16> to vector<2048x128xbf16>
    %cst_51 = arith.constant dense<0.000000e+00> : vector<16x128xf32>
    %85 = tpu.matmul %82, %84, %cst_51 {dimension_numbers = #tpu.dot_dimension_numbers<[1], [0], [0], [1], [0, 0, 1, 1], [], []>} : vector<16x2048xbf16>, vector<2048x128xbf16>, vector<16x128xf32> -> vector<16x128xf32>
    %86 = vector.broadcast %13 : vector<1x128xf32> to vector<16x128xf32>
    %87 = arith.addf %85, %86 : vector<16x128xf32>
    %88 = arith.addf %71, %87 : vector<16x128xf32>
    %cst_52 = arith.constant dense<0.000000e+00> : vector<16xf32>
    %89 = vector.multi_reduction <add>, %88, %cst_52 [1] : vector<16x128xf32> to vector<16xf32>
    %90 = vector.shape_cast %89 : vector<16xf32> to vector<16x1xf32>
    %cst_53 = arith.constant 1.280000e+02 : f32
    %91 = vector.broadcast %cst_53 : f32 to vector<16x1xf32>
    %92 = arith.divf %90, %91 : vector<16x1xf32>
    %93 = vector.broadcast %92 : vector<16x1xf32> to vector<16x128xf32>
    %94 = arith.subf %88, %93 : vector<16x128xf32>
    %95 = arith.mulf %94, %94 : vector<16x128xf32>
    %cst_54 = arith.constant dense<0.000000e+00> : vector<16xf32>
    %96 = vector.multi_reduction <add>, %95, %cst_54 [1] : vector<16x128xf32> to vector<16xf32>
    %97 = vector.shape_cast %96 : vector<16xf32> to vector<16x1xf32>
    %cst_55 = arith.constant 1.280000e+02 : f32
    %98 = vector.broadcast %cst_55 : f32 to vector<16x1xf32>
    %99 = arith.divf %97, %98 : vector<16x1xf32>
    %cst_56 = arith.constant 9.99999974E-6 : f32
    %100 = vector.broadcast %cst_56 : f32 to vector<16x1xf32>
    %101 = arith.addf %99, %100 : vector<16x1xf32>
    %102 = math.rsqrt %101 : vector<16x1xf32>
    %103 = vector.broadcast %102 : vector<16x1xf32> to vector<16x128xf32>
    %104 = arith.mulf %94, %103 : vector<16x128xf32>
    %105 = vector.broadcast %14 : vector<1x128xf32> to vector<16x128xf32>
    %106 = arith.mulf %104, %105 : vector<16x128xf32>
    %107 = vector.broadcast %15 : vector<1x128xf32> to vector<16x128xf32>
    %108 = arith.addf %106, %107 : vector<16x128xf32>
    %c0_57 = arith.constant 0 : index
    %c0_58 = arith.constant 0 : index
    %109 = vector.load %arg17[%c0_57, %c0_58] : memref<16x128xf32, #tpu.memory_space<vmem>>, vector<16x128xf32>
    tpu.vector_store %arg17[%c0_57, %c0_58], %108 {strides = array<i32>} : memref<16x128xf32, #tpu.memory_space<vmem>>, vector<16x128xf32>,
    %c1_i32 = arith.constant 1 : i32
    %110 = arith.cmpi eq, %arg0, %c1_i32 : i32
    %111 = arith.extui %110 : i1 to i32
    %c0_i32_59 = arith.constant 0 : i32
    %112 = arith.cmpi ne, %111, %c0_i32_59 : i32
    scf.if %112 {
      %113 = arith.truncf %108 : vector<16x128xf32> to vector<16x128xbf16>
      %c0_60 = arith.constant 0 : index
      %c0_61 = arith.constant 0 : index
      %114 = vector.load %arg14[%c0_60, %c0_61] : memref<128x128xbf16, #tpu.memory_space<vmem>>, vector<128x128xbf16>
      %cst_62 = arith.constant dense<0.000000e+00> : vector<16x128xf32>
      %115 = tpu.matmul %113, %114, %cst_62 {dimension_numbers = #tpu.dot_dimension_numbers<[1], [0], [0], [1], [0, 0, 1, 1], [], []>} : vector<16x128xbf16>, vector<128x128xbf16>, vector<16x128xf32> -> vector<16x128xf32>
      %c0_63 = arith.constant 0 : index
      %c0_64 = arith.constant 0 : index
      %116 = vector.load %arg15[%c0_63, %c0_64] : memref<1x128xf32, #tpu.memory_space<vmem>>, vector<1x128xf32>
      %117 = vector.broadcast %116 : vector<1x128xf32> to vector<16x128xf32>
      %118 = arith.addf %115, %117 : vector<16x128xf32>
      %c0_65 = arith.constant 0 : index
      %c0_66 = arith.constant 0 : index
      %119 = vector.load %arg16[%c0_65, %c0_66] : memref<16x128xf32, #tpu.memory_space<vmem>>, vector<16x128xf32>
      tpu.vector_store %arg16[%c0_65, %c0_66], %118 {strides = array<i32>} : memref<16x128xf32, #tpu.memory_space<vmem>>, vector<16x128xf32>,
    } else {
    }
    return
  }
  func.func @transform_0(%arg0: i32) -> (i32, i32) {
    %c0_i32 = arith.constant 0 : i32
    %c0_i32_0 = arith.constant 0 : i32
    %c0_i32_1 = arith.constant 0 : i32
    return %c0_i32, %c0_i32_0 : i32, i32
  }
  func.func @transform_1(%arg0: i32) -> (i32, i32) {
    %c0_i32 = arith.constant 0 : i32
    %c0_i32_0 = arith.constant 0 : i32
    %c0_i32_1 = arith.constant 0 : i32
    return %c0_i32, %c0_i32_0 : i32, i32
  }
  func.func @transform_2(%arg0: i32) -> (i32, i32) {
    %c0_i32 = arith.constant 0 : i32
    %c0_i32_0 = arith.constant 0 : i32
    %c0_i32_1 = arith.constant 0 : i32
    return %c0_i32, %c0_i32_0 : i32, i32
  }
  func.func @transform_3(%arg0: i32) -> (i32, i32) {
    %c0_i32 = arith.constant 0 : i32
    %c0_i32_0 = arith.constant 0 : i32
    %c0_i32_1 = arith.constant 0 : i32
    return %c0_i32, %c0_i32_0 : i32, i32
  }
  func.func @transform_4(%arg0: i32) -> (i32, i32, i32, i32) {
    %c0_i32 = arith.constant 0 : i32
    %c0_i32_0 = arith.constant 0 : i32
    %c0_i32_1 = arith.constant 0 : i32
    %c0_i32_2 = arith.constant 0 : i32
    return %arg0, %c0_i32, %c0_i32_0, %c0_i32_1 : i32, i32, i32, i32
  }
  func.func @transform_5(%arg0: i32) -> (i32, i32, i32, i32) {
    %c0_i32 = arith.constant 0 : i32
    %c0_i32_0 = arith.constant 0 : i32
    %c0_i32_1 = arith.constant 0 : i32
    %c0_i32_2 = arith.constant 0 : i32
    return %arg0, %c0_i32, %c0_i32_0, %c0_i32_1 : i32, i32, i32, i32
  }
  func.func @transform_6(%arg0: i32) -> (i32, i32, i32, i32) {
    %c0_i32 = arith.constant 0 : i32
    %c0_i32_0 = arith.constant 0 : i32
    %c0_i32_1 = arith.constant 0 : i32
    %c0_i32_2 = arith.constant 0 : i32
    return %arg0, %c0_i32, %c0_i32_0, %c0_i32_1 : i32, i32, i32, i32
  }
  func.func @transform_7(%arg0: i32) -> (i32, i32, i32, i32) {
    %c0_i32 = arith.constant 0 : i32
    %c0_i32_0 = arith.constant 0 : i32
    %c0_i32_1 = arith.constant 0 : i32
    %c0_i32_2 = arith.constant 0 : i32
    return %arg0, %c0_i32, %c0_i32_0, %c0_i32_1 : i32, i32, i32, i32
  }
  func.func @transform_8(%arg0: i32) -> (i32, i32, i32, i32) {
    %c0_i32 = arith.constant 0 : i32
    %c0_i32_0 = arith.constant 0 : i32
    %c0_i32_1 = arith.constant 0 : i32
    %c0_i32_2 = arith.constant 0 : i32
    return %arg0, %c0_i32, %c0_i32_0, %c0_i32_1 : i32, i32, i32, i32
  }
  func.func @transform_9(%arg0: i32) -> (i32, i32, i32) {
    %c0_i32 = arith.constant 0 : i32
    %c0_i32_0 = arith.constant 0 : i32
    %c0_i32_1 = arith.constant 0 : i32
    return %arg0, %c0_i32, %c0_i32_0 : i32, i32, i32
  }
  func.func @transform_10(%arg0: i32) -> (i32, i32, i32) {
    %c0_i32 = arith.constant 0 : i32
    %c0_i32_0 = arith.constant 0 : i32
    %c0_i32_1 = arith.constant 0 : i32
    return %arg0, %c0_i32, %c0_i32_0 : i32, i32, i32
  }
  func.func @transform_11(%arg0: i32) -> (i32, i32, i32) {
    %c0_i32 = arith.constant 0 : i32
    %c0_i32_0 = arith.constant 0 : i32
    %c0_i32_1 = arith.constant 0 : i32
    return %arg0, %c0_i32, %c0_i32_0 : i32, i32, i32
  }
  func.func @transform_12(%arg0: i32) -> (i32, i32, i32) {
    %c0_i32 = arith.constant 0 : i32
    %c0_i32_0 = arith.constant 0 : i32
    %c0_i32_1 = arith.constant 0 : i32
    return %arg0, %c0_i32, %c0_i32_0 : i32, i32, i32
  }
  func.func @transform_13(%arg0: i32) -> (i32, i32) {
    %c0_i32 = arith.constant 0 : i32
    %c0_i32_0 = arith.constant 0 : i32
    %c0_i32_1 = arith.constant 0 : i32
    return %c0_i32, %c0_i32_0 : i32, i32
  }
  func.func @transform_14(%arg0: i32) -> (i32, i32) {
    %c0_i32 = arith.constant 0 : i32
    %c0_i32_0 = arith.constant 0 : i32
    %c0_i32_1 = arith.constant 0 : i32
    return %c0_i32, %c0_i32_0 : i32, i32
  }
  func.func @transform_15(%arg0: i32) -> (i32, i32) {
    %c0_i32 = arith.constant 0 : i32
    %c0_i32_0 = arith.constant 0 : i32
    %c0_i32_1 = arith.constant 0 : i32
    return %c0_i32, %c0_i32_0 : i32, i32
  }
}

</mosaic_0001>

<llo_original>
// kernel: transformer_forward.1
$region0: #{transformer_forward.1}
  #allocation0 [shape = 'u32[]', space=smem, size = 0x4, offset = 0x4, fixed_abs, tag = 'smem constant byte address 0x4 - core index']
  #allocation1 [shape = 'u32[144,128]{1,0:T(1,128)}', space=vmem, size = 0x12000, scoped, tag = 'internal scratch']
  #allocation2 [shape = 'f32[16,128]{1,0:T(8,128)}', space=vmem, size = 0x2000, scoped, tag = 'scratch operand']
  %s0 = inlined_call_operand.vmem [shape: f32[16,12], index: 0, kind: input, shape index: {}]
  %s1 = inlined_call_operand.vmem [shape: f32[12,128], index: 1, kind: input, shape index: {}]
  %s2 = inlined_call_operand.vmem [shape: f32[16,128], index: 2, kind: input, shape index: {}]
  %s3 = inlined_call_operand.vmem [shape: f32[16,16], index: 3, kind: input, shape index: {}]
  %s4 = inlined_call_operand.vmem [shape: bf16[2,8,16,128], index: 4, kind: input, shape index: {}]
  %s5 = inlined_call_operand.vmem [shape: bf16[2,8,16,128], index: 5, kind: input, shape index: {}]
  %s6 = inlined_call_operand.vmem [shape: bf16[2,8,16,128], index: 6, kind: input, shape index: {}]
  %s7 = inlined_call_operand.vmem [shape: f32[2,8,16,16], index: 7, kind: input, shape index: {}]
  %s8 = inlined_call_operand.vmem [shape: bf16[2,8,16,128], index: 8, kind: input, shape index: {}]
  %s9 = inlined_call_operand.vmem [shape: f32[2,8,128], index: 9, kind: input, shape index: {}]
  %s10 = inlined_call_operand.hbm [shape: bf16[2,128,2048], index: 10, kind: input, shape index: {}]
  %s11 = inlined_call_operand.vmem [shape: f32[2,1,2048], index: 11, kind: input, shape index: {}]
  %s12 = inlined_call_operand.hbm [shape: bf16[2,2048,128], index: 12, kind: input, shape index: {}]
  %s13 = inlined_call_operand.vmem [shape: bf16[128,128], index: 13, kind: input, shape index: {}]
  %s14 = inlined_call_operand.vmem [shape: f32[1,128], index: 14, kind: input, shape index: {}]
  %s15 = inlined_call_operand.vmem [shape: f32[16,128], index: 15, kind: output, shape index: {}]
  %s16 = sld [smem:[#allocation0]]
  $region109: #{transformer_forward.1} parent=0
    _
  %s18 = ssub.s32 1, %s16
  %s19 = scalar_select 0, %s18, %s16
  $region1: #{transformer_forward.1} parent=0
    #allocation3 [shape = 'u8[1048576]{0}', space=vmem, size = 0x100000, scoped, tag = 'input window, operand 10']
    #allocation4 [shape = 's32[2]{0}', space=sflag, size = 0x8, scoped, tag = 'scoped memory for transformer_forward.1']
    #allocation5 [shape = 'u8[1048576]{0}', space=vmem, size = 0x100000, scoped, tag = 'input window, operand 12']
    #allocation6 [shape = 's32[2]{0}', space=sflag, size = 0x8, scoped, tag = 'scoped memory for transformer_forward.1']
    %20 = vsyncpa [#allocation4], 0
    %s21 = scalar_lea.sflag [#allocation4], 1
    %22 = vsyncpa %s21, 0
    %23 = vsyncpa [#allocation6], 0
    %s24 = scalar_lea.sflag [#allocation6], 1
    %25 = vsyncpa %s24, 0
    loop: start=0, step=1, limit=4
    $region2: #{transformer_forward.1} parent=1 // loop_pre_header
      _
    $region3: #{transformer_forward.1} parent=1 // loop_header
      %s27 = sphi 0, %s31
      %p28 = scmp.ge.s32.totalorder %s27, 4
      %s35 = sphi 0, %s35
      %s37 = sphi 0, %s35
      %s38 = sphi 0, %s37
      %s52 = sphi 0, %s38
      %s56 = sphi 0, %s56
      %s58 = sphi 0, %s56
      %s59 = sphi 0, %s58
      %s73 = sphi 0, %s59
      %s77 = sphi 0, %s77
      %s79 = sphi 0, %s77
      %s80 = sphi 0, %s79
      %s94 = sphi 0, %s80
      %s98 = sphi 0, %s98
      %s100 = sphi 0, %s98
      %s101 = sphi 0, %s100
      %s115 = sphi 0, %s101
      %s121 = sphi 0, %s123
      %s124 = sphi 0, %s121
      %s125 = sphi 0, %s124
      %s141 = sphi 0, %s125
      %s147 = sphi 0, %s149
      %s150 = sphi 0, %s147
      %s151 = sphi 0, %s150
      %s167 = sphi 0, %s151
      %s173 = sphi 0, %s175
      %s176 = sphi 0, %s173
      %s177 = sphi 0, %s176
      %s193 = sphi 0, %s177
      %s199 = sphi 0, %s201
      %s202 = sphi 0, %s199
      %s203 = sphi 0, %s202
      %s219 = sphi 0, %s203
      %s225 = sphi 0, %s227
      %s228 = sphi 0, %s225
      %s229 = sphi 0, %s228
      %s245 = sphi 0, %s229
      %s251 = sphi 0, %s253
      %s254 = sphi 0, %s251
      %s255 = sphi 0, %s254
      %s271 = sphi 0, %s255
      %s277 = sphi 0, %s279
      %s280 = sphi 0, %s277
      %s281 = sphi 0, %s280
      %s297 = sphi 0, %s281
      %s303 = sphi 0, %s305
      %s306 = sphi 0, %s303
      %s307 = sphi 0, %s306
      %s323 = sphi 0, %s307
      %s329 = sphi 0, %s331
      %s332 = sphi 0, %s329
      %s333 = sphi 0, %s332
      %s349 = sphi 0, %s333
      %s353 = sphi 0, %s353
      %s355 = sphi 0, %s353
      %s356 = sphi 0, %s355
      %s370 = sphi 0, %s356
      %s374 = sphi 0, %s374
      %s376 = sphi 0, %s374
      %s377 = sphi 0, %s376
      %s391 = sphi 0, %s377
      %s395 = sphi 0, %s395
      %s397 = sphi 0, %s395
      %s398 = sphi 0, %s397
      %s412 = sphi 0, %s398
    $region4: #{transformer_forward.1} parent=1 // loop_header_branch
      %30 = sbr.rel (%p28) target = $region8
    $region5: #{transformer_forward.1} parent=1 // loop_body
      %s32 = ssub.s32 %s27, 1
      %s33 = ssub.s32 %s27, 2
      %s34 = sadd.s32 %s27, 1
      %s36 = sadd.s32 %s35, 1
      %p39 = scmp.eq.s32.totalorder %s27, 1
      %p40 = scmp.ne.s32.totalorder %s35, %s37
      %p41 = scmp.eq.s32.totalorder %s27, 0
      %p42 = por %p40, %p41
      %p43 = scmp.ne.s32.totalorder %s35, %s37
      %p44 = scmp.eq.s32.totalorder %s32, 1
      %p45 = por %p43, %p44
      %p46 = scmp.ne.s32.totalorder %s37, %s38
      %p47 = scmp.eq.s32.totalorder %s32, 0
      %p48 = por %p46, %p47
      %p49 = scmp.ne.s32.totalorder %s37, %s38
      %p50 = scmp.eq.s32.totalorder %s33, 1
      %p51 = por %p49, %p50
      %p53 = scmp.ne.s32.totalorder %s38, %s52
      %p54 = scmp.eq.s32.totalorder %s33, 0
      %p55 = por %p53, %p54
      %s57 = sadd.s32 %s56, 1
      %p60 = scmp.eq.s32.totalorder %s27, 1
      %p61 = scmp.ne.s32.totalorder %s56, %s58
      %p62 = scmp.eq.s32.totalorder %s27, 0
      %p63 = por %p61, %p62
      %p64 = scmp.ne.s32.totalorder %s56, %s58
      %p65 = scmp.eq.s32.totalorder %s32, 1
      %p66 = por %p64, %p65
      %p67 = scmp.ne.s32.totalorder %s58, %s59
      %p68 = scmp.eq.s32.totalorder %s32, 0
      %p69 = por %p67, %p68
      %p70 = scmp.ne.s32.totalorder %s58, %s59
      %p71 = scmp.eq.s32.totalorder %s33, 1
      %p72 = por %p70, %p71
      %p74 = scmp.ne.s32.totalorder %s59, %s73
      %p75 = scmp.eq.s32.totalorder %s33, 0
      %p76 = por %p74, %p75
      %s78 = sadd.s32 %s77, 1
      %p81 = scmp.eq.s32.totalorder %s27, 1
      %p82 = scmp.ne.s32.totalorder %s77, %s79
      %p83 = scmp.eq.s32.totalorder %s27, 0
      %p84 = por %p82, %p83
      %p85 = scmp.ne.s32.totalorder %s77, %s79
      %p86 = scmp.eq.s32.totalorder %s32, 1
      %p87 = por %p85, %p86
      %p88 = scmp.ne.s32.totalorder %s79, %s80
      %p89 = scmp.eq.s32.totalorder %s32, 0
      %p90 = por %p88, %p89
      %p91 = scmp.ne.s32.totalorder %s79, %s80
      %p92 = scmp.eq.s32.totalorder %s33, 1
      %p93 = por %p91, %p92
      %p95 = scmp.ne.s32.totalorder %s80, %s94
      %p96 = scmp.eq.s32.totalorder %s33, 0
      %p97 = por %p95, %p96
      %s99 = sadd.s32 %s98, 1
      %p102 = scmp.eq.s32.totalorder %s27, 1
      %p103 = scmp.ne.s32.totalorder %s98, %s100
      %p104 = scmp.eq.s32.totalorder %s27, 0
      %p105 = por %p103, %p104
      %p106 = scmp.ne.s32.totalorder %s98, %s100
      %p107 = scmp.eq.s32.totalorder %s32, 1
      %p108 = por %p106, %p107
      %p109 = scmp.ne.s32.totalorder %s100, %s101
      %p110 = scmp.eq.s32.totalorder %s32, 0
      %p111 = por %p109, %p110
      %p112 = scmp.ne.s32.totalorder %s100, %s101
      %p113 = scmp.eq.s32.totalorder %s33, 1
      %p114 = por %p112, %p113
      %p116 = scmp.ne.s32.totalorder %s101, %s115
      %p117 = scmp.eq.s32.totalorder %s33, 0
      %p118 = por %p116, %p117
      %s119 = ssub.s32 %s27, %s34
      %p120 = scmp.eq.s32.totalorder %s119, 0
      %s122 = sadd.s32 %s121, 1
      %s123 = scalar_select %p120, %s121, %s122
      %p126 = pneg %p120
      %p127 = scmp.eq.s32.totalorder %s27, 1
      %p128 = por %p126, %p127
      %p129 = scmp.ne.s32.totalorder %s121, %s124
      %p130 = scmp.eq.s32.totalorder %s27, 0
      %p131 = por %p129, %p130
      %p132 = scmp.ne.s32.totalorder %s121, %s124
      %p133 = scmp.eq.s32.totalorder %s32, 1
      %p134 = por %p132, %p133
      %p135 = scmp.ne.s32.totalorder %s124, %s125
      %p136 = scmp.eq.s32.totalorder %s32, 0
      %p137 = por %p135, %p136
      %p138 = scmp.ne.s32.totalorder %s124, %s125
      %p139 = scmp.eq.s32.totalorder %s33, 1
      %p140 = por %p138, %p139
      %p142 = scmp.ne.s32.totalorder %s125, %s141
      %p143 = scmp.eq.s32.totalorder %s33, 0
      %p144 = por %p142, %p143
      %s145 = ssub.s32 %s27, %s34
      %p146 = scmp.eq.s32.totalorder %s145, 0
      %s148 = sadd.s32 %s147, 1
      %s149 = scalar_select %p146, %s147, %s148
      %p152 = pneg %p146
      %p153 = scmp.eq.s32.totalorder %s27, 1
      %p154 = por %p152, %p153
      %p155 = scmp.ne.s32.totalorder %s147, %s150
      %p156 = scmp.eq.s32.totalorder %s27, 0
      %p157 = por %p155, %p156
      %p158 = scmp.ne.s32.totalorder %s147, %s150
      %p159 = scmp.eq.s32.totalorder %s32, 1
      %p160 = por %p158, %p159
      %p161 = scmp.ne.s32.totalorder %s150, %s151
      %p162 = scmp.eq.s32.totalorder %s32, 0
      %p163 = por %p161, %p162
      %p164 = scmp.ne.s32.totalorder %s150, %s151
      %p165 = scmp.eq.s32.totalorder %s33, 1
      %p166 = por %p164, %p165
      %p168 = scmp.ne.s32.totalorder %s151, %s167
      %p169 = scmp.eq.s32.totalorder %s33, 0
      %p170 = por %p168, %p169
      %s171 = ssub.s32 %s27, %s34
      %p172 = scmp.eq.s32.totalorder %s171, 0
      %s174 = sadd.s32 %s173, 1
      %s175 = scalar_select %p172, %s173, %s174
      %p178 = pneg %p172
      %p179 = scmp.eq.s32.totalorder %s27, 1
      %p180 = por %p178, %p179
      %p181 = scmp.ne.s32.totalorder %s173, %s176
      %p182 = scmp.eq.s32.totalorder %s27, 0
      %p183 = por %p181, %p182
      %p184 = scmp.ne.s32.totalorder %s173, %s176
      %p185 = scmp.eq.s32.totalorder %s32, 1
      %p186 = por %p184, %p185
      %p187 = scmp.ne.s32.totalorder %s176, %s177
      %p188 = scmp.eq.s32.totalorder %s32, 0
      %p189 = por %p187, %p188
      %p190 = scmp.ne.s32.totalorder %s176, %s177
      %p191 = scmp.eq.s32.totalorder %s33, 1
      %p192 = por %p190, %p191
      %p194 = scmp.ne.s32.totalorder %s177, %s193
      %p195 = scmp.eq.s32.totalorder %s33, 0
      %p196 = por %p194, %p195
      %s197 = ssub.s32 %s27, %s34
      %p198 = scmp.eq.s32.totalorder %s197, 0
      %s200 = sadd.s32 %s199, 1
      %s201 = scalar_select %p198, %s199, %s200
      %p204 = pneg %p198
      %p205 = scmp.eq.s32.totalorder %s27, 1
      %p206 = por %p204, %p205
      %p207 = scmp.ne.s32.totalorder %s199, %s202
      %p208 = scmp.eq.s32.totalorder %s27, 0
      %p209 = por %p207, %p208
      %p210 = scmp.ne.s32.totalorder %s199, %s202
      %p211 = scmp.eq.s32.totalorder %s32, 1
      %p212 = por %p210, %p211
      %p213 = scmp.ne.s32.totalorder %s202, %s203
      %p214 = scmp.eq.s32.totalorder %s32, 0
      %p215 = por %p213, %p214
      %p216 = scmp.ne.s32.totalorder %s202, %s203
      %p217 = scmp.eq.s32.totalorder %s33, 1
      %p218 = por %p216, %p217
      %p220 = scmp.ne.s32.totalorder %s203, %s219
      %p221 = scmp.eq.s32.totalorder %s33, 0
      %p222 = por %p220, %p221
      %s223 = ssub.s32 %s27, %s34
      %p224 = scmp.eq.s32.totalorder %s223, 0
      %s226 = sadd.s32 %s225, 1
      %s227 = scalar_select %p224, %s225, %s226
      %p230 = pneg %p224
      %p231 = scmp.eq.s32.totalorder %s27, 1
      %p232 = por %p230, %p231
      %p233 = scmp.ne.s32.totalorder %s225, %s228
      %p234 = scmp.eq.s32.totalorder %s27, 0
      %p235 = por %p233, %p234
      %p236 = scmp.ne.s32.totalorder %s225, %s228
      %p237 = scmp.eq.s32.totalorder %s32, 1
      %p238 = por %p236, %p237
      %p239 = scmp.ne.s32.totalorder %s228, %s229
      %p240 = scmp.eq.s32.totalorder %s32, 0
      %p241 = por %p239, %p240
      %p242 = scmp.ne.s32.totalorder %s228, %s229
      %p243 = scmp.eq.s32.totalorder %s33, 1
      %p244 = por %p242, %p243
      %p246 = scmp.ne.s32.totalorder %s229, %s245
      %p247 = scmp.eq.s32.totalorder %s33, 0
      %p248 = por %p246, %p247
      %s249 = ssub.s32 %s27, %s34
      %p250 = scmp.eq.s32.totalorder %s249, 0
      %s252 = sadd.s32 %s251, 1
      %s253 = scalar_select %p250, %s251, %s252
      %p256 = pneg %p250
      %p257 = scmp.eq.s32.totalorder %s27, 1
      %p258 = por %p256, %p257
      %p259 = scmp.ne.s32.totalorder %s251, %s254
      %p260 = scmp.eq.s32.totalorder %s27, 0
      %p261 = por %p259, %p260
      %p262 = scmp.ne.s32.totalorder %s251, %s254
      %p263 = scmp.eq.s32.totalorder %s32, 1
      %p264 = por %p262, %p263
      %p265 = scmp.ne.s32.totalorder %s254, %s255
      %p266 = scmp.eq.s32.totalorder %s32, 0
      %p267 = por %p265, %p266
      %p268 = scmp.ne.s32.totalorder %s254, %s255
      %p269 = scmp.eq.s32.totalorder %s33, 1
      %p270 = por %p268, %p269
      %p272 = scmp.ne.s32.totalorder %s255, %s271
      %p273 = scmp.eq.s32.totalorder %s33, 0
      %p274 = por %p272, %p273
      %s275 = ssub.s32 %s27, %s34
      %p276 = scmp.eq.s32.totalorder %s275, 0
      %s278 = sadd.s32 %s277, 1
      %s279 = scalar_select %p276, %s277, %s278
      %p282 = pneg %p276
      %p283 = scmp.eq.s32.totalorder %s27, 1
      %p284 = por %p282, %p283
      %p285 = scmp.ne.s32.totalorder %s277, %s280
      %p286 = scmp.eq.s32.totalorder %s27, 0
      %p287 = por %p285, %p286
      %p288 = scmp.ne.s32.totalorder %s277, %s280
      %p289 = scmp.eq.s32.totalorder %s32, 1
      %p290 = por %p288, %p289
      %p291 = scmp.ne.s32.totalorder %s280, %s281
      %p292 = scmp.eq.s32.totalorder %s32, 0
      %p293 = por %p291, %p292
      %p294 = scmp.ne.s32.totalorder %s280, %s281
      %p295 = scmp.eq.s32.totalorder %s33, 1
      %p296 = por %p294, %p295
      %p298 = scmp.ne.s32.totalorder %s281, %s297
      %p299 = scmp.eq.s32.totalorder %s33, 0
      %p300 = por %p298, %p299
      %s301 = ssub.s32 %s27, %s34
      %p302 = scmp.eq.s32.totalorder %s301, 0
      %s304 = sadd.s32 %s303, 1
      %s305 = scalar_select %p302, %s303, %s304
      %p308 = pneg %p302
      %p309 = scmp.eq.s32.totalorder %s27, 1
      %p310 = por %p308, %p309
      %p311 = scmp.ne.s32.totalorder %s303, %s306
      %p312 = scmp.eq.s32.totalorder %s27, 0
      %p313 = por %p311, %p312
      %p314 = scmp.ne.s32.totalorder %s303, %s306
      %p315 = scmp.eq.s32.totalorder %s32, 1
      %p316 = por %p314, %p315
      %p317 = scmp.ne.s32.totalorder %s306, %s307
      %p318 = scmp.eq.s32.totalorder %s32, 0
      %p319 = por %p317, %p318
      %p320 = scmp.ne.s32.totalorder %s306, %s307
      %p321 = scmp.eq.s32.totalorder %s33, 1
      %p322 = por %p320, %p321
      %p324 = scmp.ne.s32.totalorder %s307, %s323
      %p325 = scmp.eq.s32.totalorder %s33, 0
      %p326 = por %p324, %p325
      %s327 = ssub.s32 %s27, %s34
      %p328 = scmp.eq.s32.totalorder %s327, 0
      %s330 = sadd.s32 %s329, 1
      %s331 = scalar_select %p328, %s329, %s330
      %p334 = pneg %p328
      %p335 = scmp.eq.s32.totalorder %s27, 1
      %p336 = por %p334, %p335
      %p337 = scmp.ne.s32.totalorder %s329, %s332
      %p338 = scmp.eq.s32.totalorder %s27, 0
      %p339 = por %p337, %p338
      %p340 = scmp.ne.s32.totalorder %s329, %s332
      %p341 = scmp.eq.s32.totalorder %s32, 1
      %p342 = por %p340, %p341
      %p343 = scmp.ne.s32.totalorder %s332, %s333
      %p344 = scmp.eq.s32.totalorder %s32, 0
      %p345 = por %p343, %p344
      %p346 = scmp.ne.s32.totalorder %s332, %s333
      %p347 = scmp.eq.s32.totalorder %s33, 1
      %p348 = por %p346, %p347
      %p350 = scmp.ne.s32.totalorder %s333, %s349
      %p351 = scmp.eq.s32.totalorder %s33, 0
      %p352 = por %p350, %p351
      %s354 = sadd.s32 %s353, 1
      %p357 = scmp.eq.s32.totalorder %s27, 1
      %p358 = scmp.ne.s32.totalorder %s353, %s355
      %p359 = scmp.eq.s32.totalorder %s27, 0
      %p360 = por %p358, %p359
      %p361 = scmp.ne.s32.totalorder %s353, %s355
      %p362 = scmp.eq.s32.totalorder %s32, 1
      %p363 = por %p361, %p362
      %p364 = scmp.ne.s32.totalorder %s355, %s356
      %p365 = scmp.eq.s32.totalorder %s32, 0
      %p366 = por %p364, %p365
      %p367 = scmp.ne.s32.totalorder %s355, %s356
      %p368 = scmp.eq.s32.totalorder %s33, 1
      %p369 = por %p367, %p368
      %p371 = scmp.ne.s32.totalorder %s356, %s370
      %p372 = scmp.eq.s32.totalorder %s33, 0
      %p373 = por %p371, %p372
      %s375 = sadd.s32 %s374, 1
      %p378 = scmp.eq.s32.totalorder %s27, 1
      %p379 = scmp.ne.s32.totalorder %s374, %s376
      %p380 = scmp.eq.s32.totalorder %s27, 0
      %p381 = por %p379, %p380
      %p382 = scmp.ne.s32.totalorder %s374, %s376
      %p383 = scmp.eq.s32.totalorder %s32, 1
      %p384 = por %p382, %p383
      %p385 = scmp.ne.s32.totalorder %s376, %s377
      %p386 = scmp.eq.s32.totalorder %s32, 0
      %p387 = por %p385, %p386
      %p388 = scmp.ne.s32.totalorder %s376, %s377
      %p389 = scmp.eq.s32.totalorder %s33, 1
      %p390 = por %p388, %p389
      %p392 = scmp.ne.s32.totalorder %s377, %s391
      %p393 = scmp.eq.s32.totalorder %s33, 0
      %p394 = por %p392, %p393
      %s396 = sadd.s32 %s395, 1
      %p399 = scmp.eq.s32.totalorder %s27, 1
      %p400 = scmp.ne.s32.totalorder %s395, %s397
      %p401 = scmp.eq.s32.totalorder %s27, 0
      %p402 = por %p400, %p401
      %p403 = scmp.ne.s32.totalorder %s395, %s397
      %p404 = scmp.eq.s32.totalorder %s32, 1
      %p405 = por %p403, %p404
      %p406 = scmp.ne.s32.totalorder %s397, %s398
      %p407 = scmp.eq.s32.totalorder %s32, 0
      %p408 = por %p406, %p407
      %p409 = scmp.ne.s32.totalorder %s397, %s398
      %p410 = scmp.eq.s32.totalorder %s33, 1
      %p411 = por %p409, %p410
      %p413 = scmp.ne.s32.totalorder %s398, %s412
      %p414 = scmp.eq.s32.totalorder %s33, 0
      %p415 = por %p413, %p414
      %p416 = scmp.le.s32.totalorder 1, %s27
      %p417 = scmp.lt.s32.totalorder %s27, 3
      %p418 = pnand %p416, %p417
      %p419 = pneg %p418
      // Predicated region
      $region9: #{transformer_forward.1} parent=5 // pred_check
        _
      $region10: #{transformer_forward.1} parent=5 // pred_check_branch
        %421 = sbr.rel (%p418) target = $region12
      $region11: #{transformer_forward.1} parent=5 // pred_region
        %s422 = ssub.s32 %s27, 1
        // Predicated region
        $region13: #{transformer_forward.1} parent=11 // pred_check
          %p423 = pneg %p48
        $region14: #{transformer_forward.1} parent=11 // pred_check_branch
          %425 = sbr.rel (%p423) target = $region16
        $region15: #{transformer_forward.1} parent=11 // pred_region
          _
        $region16: #{transformer_forward.1} parent=11 // pred_fallthru
          _
        // Predicated region
        $region17: #{transformer_forward.1} parent=11 // pred_check
          %p426 = pneg %p69
        $region18: #{transformer_forward.1} parent=11 // pred_check_branch
          %428 = sbr.rel (%p426) target = $region20
        $region19: #{transformer_forward.1} parent=11 // pred_region
          _
        $region20: #{transformer_forward.1} parent=11 // pred_fallthru
          _
        // Predicated region
        $region21: #{transformer_forward.1} parent=11 // pred_check
          %p429 = pneg %p90
        $region22: #{transformer_forward.1} parent=11 // pred_check_branch
          %431 = sbr.rel (%p429) target = $region24
        $region23: #{transformer_forward.1} parent=11 // pred_region
          _
        $region24: #{transformer_forward.1} parent=11 // pred_fallthru
          _
        // Predicated region
        $region25: #{transformer_forward.1} parent=11 // pred_check
          %p432 = pneg %p111
        $region26: #{transformer_forward.1} parent=11 // pred_check_branch
          %434 = sbr.rel (%p432) target = $region28
        $region27: #{transformer_forward.1} parent=11 // pred_region
          _
        $region28: #{transformer_forward.1} parent=11 // pred_fallthru
          _
        // Predicated region
        $region29: #{transformer_forward.1} parent=11 // pred_check
          %p435 = pneg %p366
        $region30: #{transformer_forward.1} parent=11 // pred_check_branch
          %437 = sbr.rel (%p435) target = $region32
        $region31: #{transformer_forward.1} parent=11 // pred_region
          _
        $region32: #{transformer_forward.1} parent=11 // pred_fallthru
          _
        // Predicated region
        $region33: #{transformer_forward.1} parent=11 // pred_check
          %p438 = pneg %p387
        $region34: #{transformer_forward.1} parent=11 // pred_check_branch
          %440 = sbr.rel (%p438) target = $region36
        $region35: #{transformer_forward.1} parent=11 // pred_region
          _
        $region36: #{transformer_forward.1} parent=11 // pred_fallthru
          _
      $region12: #{transformer_forward.1} parent=5 // pred_fallthru
        _
      %p441 = scmp.lt.s32.totalorder %s27, 2
      // Predicated region
      $region37: #{transformer_forward.1} parent=5 // pred_check
        %p442 = pneg %p441
      $region38: #{transformer_forward.1} parent=5 // pred_check_branch
        %444 = sbr.rel (%p442) target = $region40
      $region39: #{transformer_forward.1} parent=5 // pred_region
        // Predicated region
        $region41: #{transformer_forward.1} parent=39 // pred_check
          %p445 = pneg %p131
        $region42: #{transformer_forward.1} parent=39 // pred_check_branch
          %447 = sbr.rel (%p445) target = $region44
        $region43: #{transformer_forward.1} parent=39 // pred_region
          %p448 = scmp.lt.s32.totalorder %s27, 1
          %s449 = scalar_select %p448, %s27, 1
          %s450 = smul.addr %s449, 16
          %s451 = smul.addr %s450, 4
          %s452 = scalar_lea.vmem %s4, %s451
        $region44: #{transformer_forward.1} parent=39 // pred_fallthru
          _
        // Predicated region
        $region45: #{transformer_forward.1} parent=39 // pred_check
          %p453 = pneg %p157
        $region46: #{transformer_forward.1} parent=39 // pred_check_branch
          %455 = sbr.rel (%p453) target = $region48
        $region47: #{transformer_forward.1} parent=39 // pred_region
          %p456 = scmp.lt.s32.totalorder %s27, 1
          %s457 = scalar_select %p456, %s27, 1
          %s458 = smul.addr %s457, 16
          %s459 = smul.addr %s458, 4
          %s460 = scalar_lea.vmem %s5, %s459
        $region48: #{transformer_forward.1} parent=39 // pred_fallthru
          _
        // Predicated region
        $region49: #{transformer_forward.1} parent=39 // pred_check
          %p461 = pneg %p183
        $region50: #{transformer_forward.1} parent=39 // pred_check_branch
          %463 = sbr.rel (%p461) target = $region52
        $region51: #{transformer_forward.1} parent=39 // pred_region
          %p464 = scmp.lt.s32.totalorder %s27, 1
          %s465 = scalar_select %p464, %s27, 1
          %s466 = smul.addr %s465, 16
          %s467 = smul.addr %s466, 4
          %s468 = scalar_lea.vmem %s6, %s467
        $region52: #{transformer_forward.1} parent=39 // pred_fallthru
          _
        // Predicated region
        $region53: #{transformer_forward.1} parent=39 // pred_check
          %p469 = pneg %p209
        $region54: #{transformer_forward.1} parent=39 // pred_check_branch
          %471 = sbr.rel (%p469) target = $region56
        $region55: #{transformer_forward.1} parent=39 // pred_region
          %p472 = scmp.lt.s32.totalorder %s27, 1
          %s473 = scalar_select %p472, %s27, 1
          %s474 = smul.addr %s473, 16
          %s475 = smul.addr %s474, 8
          %s476 = scalar_lea.vmem %s7, %s475
        $region56: #{transformer_forward.1} parent=39 // pred_fallthru
          _
        // Predicated region
        $region57: #{transformer_forward.1} parent=39 // pred_check
          %p477 = pneg %p235
        $region58: #{transformer_forward.1} parent=39 // pred_check_branch
          %479 = sbr.rel (%p477) target = $region60
        $region59: #{transformer_forward.1} parent=39 // pred_region
          %p480 = scmp.lt.s32.totalorder %s27, 1
          %s481 = scalar_select %p480, %s27, 1
          %s482 = smul.addr %s481, 16
          %s483 = smul.addr %s482, 4
          %s484 = scalar_lea.vmem %s8, %s483
        $region60: #{transformer_forward.1} parent=39 // pred_fallthru
          _
        // Predicated region
        $region61: #{transformer_forward.1} parent=39 // pred_check
          %p485 = pneg %p261
        $region62: #{transformer_forward.1} parent=39 // pred_check_branch
          %487 = sbr.rel (%p485) target = $region64
        $region63: #{transformer_forward.1} parent=39 // pred_region
          %p488 = scmp.lt.s32.totalorder %s27, 1
          %s489 = scalar_select %p488, %s27, 1
          %s490 = smul.addr %s489, 8
          %s491 = scalar_lea.vmem %s9, %s490
        $region64: #{transformer_forward.1} parent=39 // pred_fallthru
          _
        // Predicated region
        $region65: #{transformer_forward.1} parent=39 // pred_check
          %p492 = pneg %p287
        $region66: #{transformer_forward.1} parent=39 // pred_check_branch
          %494 = sbr.rel (%p492) target = $region68
        $region67: #{transformer_forward.1} parent=39 // pred_region
          %s495 = sand.u32 %s277, 1
          %s496 = scalar_lea.sflag [#allocation4], %s495
          %s497 = sand.u32 %s277, 1
          %s498 = smul.addr %s497, 1024
          %s499 = scalar_lea.vmem [#allocation3], %s498
          %s501 = ssub.s32 16384, 16384
          %502 = vsyncadd %s496, %s501
          %s503 = smul.addr %s27, 256
          %s504 = smul.addr %s503, 64
          %s505 = scalar_lea.hbm %s10, %s504
          %s506 = sshll.u32 %s499, 4
          %s507 = int_to_ptr.vmem [resolvable:$true] %s506
          %512 = dma.hbm_to_vmem [thread:$0]  %s505, 16384, %s507, %s496, 1024, 1024, 64
        $region68: #{transformer_forward.1} parent=39 // pred_fallthru
          _
        // Predicated region
        $region69: #{transformer_forward.1} parent=39 // pred_check
          %p513 = pneg %p313
        $region70: #{transformer_forward.1} parent=39 // pred_check_branch
          %515 = sbr.rel (%p513) target = $region72
        $region71: #{transformer_forward.1} parent=39 // pred_region
          %p516 = scmp.lt.s32.totalorder %s27, 1
          %s517 = scalar_select %p516, %s27, 1
          %s518 = smul.addr %s517, 16
          %s519 = scalar_lea.vmem %s11, %s518
        $region72: #{transformer_forward.1} parent=39 // pred_fallthru
          _
        // Predicated region
        $region73: #{transformer_forward.1} parent=39 // pred_check
          %p520 = pneg %p339
        $region74: #{transformer_forward.1} parent=39 // pred_check_branch
          %522 = sbr.rel (%p520) target = $region76
        $region75: #{transformer_forward.1} parent=39 // pred_region
          %s523 = sand.u32 %s329, 1
          %s524 = scalar_lea.sflag [#allocation6], %s523
          %s525 = sand.u32 %s329, 1
          %s526 = smul.addr %s525, 1024
          %s527 = scalar_lea.vmem [#allocation5], %s526
          %s529 = ssub.s32 16384, 16384
          %530 = vsyncadd %s524, %s529
          %s531 = smul.addr %s27, 256
          %s532 = smul.addr %s531, 64
          %s533 = scalar_lea.hbm %s12, %s532
          %s534 = sshll.u32 %s527, 4
          %s535 = int_to_ptr.vmem [resolvable:$true] %s534
          %540 = dma.hbm_to_vmem [thread:$0]  %s533, 16384, %s535, %s524, 64, 64, 4
        $region76: #{transformer_forward.1} parent=39 // pred_fallthru
          _
      $region40: #{transformer_forward.1} parent=5 // pred_fallthru
        _
      %p541 = scmp.le.s32.totalorder 1, %s27
      %p542 = scmp.lt.s32.totalorder %s27, 3
      %p543 = pnand %p541, %p542
      %p544 = pneg %p543
      // Predicated region
      $region77: #{transformer_forward.1} parent=5 // pred_check
        _
      $region78: #{transformer_forward.1} parent=5 // pred_check_branch
        %546 = sbr.rel (%p543) target = $region80
      $region79: #{transformer_forward.1} parent=5 // pred_region
        %s547 = ssub.s32 %s27, 1
        %s548 = sand.u32 %s280, 1
        %s549 = scalar_lea.sflag [#allocation4], %s548
        %s550 = sand.u32 %s280, 1
        %s551 = smul.addr %s550, 1024
        %s552 = scalar_lea.vmem [#allocation3], %s551
        // Predicated region
        $region81: #{transformer_forward.1} parent=79 // pred_check
          %p553 = pneg %p293
        $region82: #{transformer_forward.1} parent=79 // pred_check_branch
          %555 = sbr.rel (%p553) target = $region84
        $region83: #{transformer_forward.1} parent=79 // pred_region
          %556 = dma.done %s549, 16384
        $region84: #{transformer_forward.1} parent=79 // pred_fallthru
          _
        %s557 = sand.u32 %s332, 1
        %s558 = scalar_lea.sflag [#allocation6], %s557
        %s559 = sand.u32 %s332, 1
        %s560 = smul.addr %s559, 1024
        %s561 = scalar_lea.vmem [#allocation5], %s560
        // Predicated region
        $region85: #{transformer_forward.1} parent=79 // pred_check
          %p562 = pneg %p345
        $region86: #{transformer_forward.1} parent=79 // pred_check_branch
          %564 = sbr.rel (%p562) target = $region88
        $region87: #{transformer_forward.1} parent=79 // pred_region
          %565 = dma.done %s558, 16384
        $region88: #{transformer_forward.1} parent=79 // pred_fallthru
          _
        %p566 = pneg %p48
        %p567 = pneg %p45
        %p568 = pneg %p69
        %p569 = pneg %p66
        %p570 = pneg %p90
        %p571 = pneg %p87
        %p572 = pneg %p111
        %p573 = pneg %p108
        %p574 = scmp.lt.s32.totalorder %s32, 1
        %s575 = scalar_select %p574, %s32, 1
        %s576 = smul.addr %s575, 16
        %s577 = smul.addr %s576, 4
        %s578 = scalar_lea.vmem %s4, %s577
        %p579 = pneg %p137
        %p580 = pneg %p134
        %p581 = scmp.lt.s32.totalorder %s32, 1
        %s582 = scalar_select %p581, %s32, 1
        %s583 = smul.addr %s582, 16
        %s584 = smul.addr %s583, 4
        %s585 = scalar_lea.vmem %s5, %s584
        %p586 = pneg %p163
        %p587 = pneg %p160
        %p588 = scmp.lt.s32.totalorder %s32, 1
        %s589 = scalar_select %p588, %s32, 1
        %s590 = smul.addr %s589, 16
        %s591 = smul.addr %s590, 4
        %s592 = scalar_lea.vmem %s6, %s591
        %p593 = pneg %p189
        %p594 = pneg %p186
        %p595 = scmp.lt.s32.totalorder %s32, 1
        %s596 = scalar_select %p595, %s32, 1
        %s597 = smul.addr %s596, 16
        %s598 = smul.addr %s597, 8
        %s599 = scalar_lea.vmem %s7, %s598
        %p600 = pneg %p215
        %p601 = pneg %p212
        %p602 = scmp.lt.s32.totalorder %s32, 1
        %s603 = scalar_select %p602, %s32, 1
        %s604 = smul.addr %s603, 16
        %s605 = smul.addr %s604, 4
        %s606 = scalar_lea.vmem %s8, %s605
        %p607 = pneg %p241
        %p608 = pneg %p238
        %p609 = scmp.lt.s32.totalorder %s32, 1
        %s610 = scalar_select %p609, %s32, 1
        %s611 = smul.addr %s610, 8
        %s612 = scalar_lea.vmem %s9, %s611
        %p613 = pneg %p267
        %p614 = pneg %p264
        %s615 = sand.u32 %s280, 1
        %s616 = scalar_lea.sflag [#allocation4], %s615
        %s617 = sand.u32 %s280, 1
        %s618 = smul.addr %s617, 1024
        %s619 = scalar_lea.vmem [#allocation3], %s618
        %p620 = pneg %p293
        %p621 = pneg %p290
        %p622 = scmp.lt.s32.totalorder %s32, 1
        %s623 = scalar_select %p622, %s32, 1
        %s624 = smul.addr %s623, 16
        %s625 = scalar_lea.vmem %s11, %s624
        %p626 = pneg %p319
        %p627 = pneg %p316
        %s628 = sand.u32 %s332, 1
        %s629 = scalar_lea.sflag [#allocation6], %s628
        %s630 = sand.u32 %s332, 1
        %s631 = smul.addr %s630, 1024
        %s632 = scalar_lea.vmem [#allocation5], %s631
        %p633 = pneg %p345
        %p634 = pneg %p342
        %p635 = pneg %p366
        %p636 = pneg %p363
        %p637 = pneg %p387
        %p638 = pneg %p384
        %p639 = pneg %p408
        %p640 = pneg %p405
        %p641 = scmp.lt.s32.totalorder %s32, 1
        %s642 = scalar_select %p641, %s32, 1
        %s643 = smul.addr %s642, 16
        %s644 = smul.addr %s643, 4
        %s645 = scalar_lea.vmem %s4, %s644
        %p646 = scmp.lt.s32.totalorder %s32, 1
        %s647 = scalar_select %p646, %s32, 1
        %s648 = smul.addr %s647, 16
        %s649 = smul.addr %s648, 4
        %s650 = scalar_lea.vmem %s5, %s649
        %p651 = scmp.lt.s32.totalorder %s32, 1
        %s652 = scalar_select %p651, %s32, 1
        %s653 = smul.addr %s652, 16
        %s654 = smul.addr %s653, 4
        %s655 = scalar_lea.vmem %s6, %s654
        %p656 = scmp.lt.s32.totalorder %s32, 1
        %s657 = scalar_select %p656, %s32, 1
        %s658 = smul.addr %s657, 16
        %s659 = smul.addr %s658, 8
        %s660 = scalar_lea.vmem %s7, %s659
        %p661 = scmp.lt.s32.totalorder %s32, 1
        %s662 = scalar_select %p661, %s32, 1
        %s663 = smul.addr %s662, 16
        %s664 = smul.addr %s663, 4
        %s665 = scalar_lea.vmem %s8, %s664
        %p666 = scmp.lt.s32.totalorder %s32, 1
        %s667 = scalar_select %p666, %s32, 1
        %s668 = smul.addr %s667, 8
        %s669 = scalar_lea.vmem %s9, %s668
        %p670 = scmp.lt.s32.totalorder %s32, 1
        %s671 = scalar_select %p670, %s32, 1
        %s672 = smul.addr %s671, 16
        %s673 = scalar_lea.vmem %s11, %s672
        %p675 = scmp.eq.s32.totalorder %s32, 0
        // Predicated region
        $region89: #{transformer_forward.1} parent=79 // pred_check
          %p676 = pneg %p675
        $region90: #{transformer_forward.1} parent=79 // pred_check_branch
          %678 = sbr.rel (%p676) target = $region92
        $region91: #{transformer_forward.1} parent=79 // pred_region
          %v679 = vld [vmem:[%s0] sm:$0xff]
          %v680 = vld [vmem:[%s0 + $0x8] sm:$0xff]
          %v681 = vld [vmem:[%s1] sm:$0xff]
          %v682 = vld [vmem:[%s1 + $0x8] sm:$0xf]
          %v683 = vld [vmem:[%s2] sm:$0xff]
          %v684 = vld [vmem:[%s2 + $0x8] sm:$0xff]
          %vm685 = vcmask 97280
          %v687 = vsel %vm685, %v679, 0
          %v690 = vsel %vm685, %v680, 0
          %vm692 = vcmask 1043456
          %v694 = vsel %vm692, %v682, 0
          %696 = vmatprep.subr.mxu0 0.0
          %697 = vmatpush1.msra.mxu0 %v681
          %698 = vmatprep.subr.mxu0 0.0
          %699 = vmatpush1.msra.mxu0 %v694
          %700 = vmatprep.subr.mxu0 0.0
          %701 = vmatpush1.msra.mxu0 0.0
          %702 = vmatprep.subr.mxu0 0.0
          %703 = vmatpush1.msra.mxu0 0.0
          %704 = vmatprep.subr.mxu0 0.0
          %705 = vmatpush1.msra.mxu0 0.0
          %706 = vmatprep.subr.mxu0 0.0
          %707 = vmatpush1.msra.mxu0 0.0
          %708 = vmatprep.subr.mxu0 0.0
          %709 = vmatpush1.msra.mxu0 0.0
          %710 = vmatprep.subr.mxu0 0.0
          %711 = vmatpush1.msra.mxu0 0.0
          %712 = vmatprep.subr.mxu0 0.0
          %713 = vmatpush1.msra.mxu0 0.0
          %714 = vmatprep.subr.mxu0 0.0
          %715 = vmatpush1.msra.mxu0 0.0
          %716 = vmatprep.subr.mxu0 0.0
          %717 = vmatpush1.msra.mxu0 0.0
          %718 = vmatprep.subr.mxu0 0.0
          %719 = vmatpush1.msra.mxu0 0.0
          %720 = vmatprep.subr.mxu0 0.0
          %721 = vmatpush1.msra.mxu0 0.0
          %722 = vmatprep.subr.mxu0 0.0
          %723 = vmatpush1.msra.mxu0 0.0
          %724 = vmatprep.subr.mxu0 0.0
          %725 = vmatpush1.msra.mxu0 0.0
          %726 = vmatprep.subr.mxu0 0.0
          %727 = vmatpush1.msra.mxu0 0.0
          %728 = vmatprep.subr.mxu0 0.0
          %729 = vmatpush1.msra.mxu0 0.0
          %730 = vmatprep.subr.mxu0 0.0
          %731 = vmatpush1.msra.mxu0 0.0
          %732 = vmatprep.subr.mxu0 0.0
          %733 = vmatpush1.msra.mxu0 0.0
          %734 = vmatprep.subr.mxu0 0.0
          %735 = vmatpush1.msra.mxu0 0.0
          %736 = vmatprep.subr.mxu0 0.0
          %737 = vmatpush1.msra.mxu0 0.0
          %738 = vmatprep.subr.mxu0 0.0
          %739 = vmatpush1.msra.mxu0 0.0
          %740 = vmatprep.subr.mxu0 0.0
          %741 = vmatpush1.msra.mxu0 0.0
          %742 = vmatprep.subr.mxu0 0.0
          %743 = vmatpush1.msra.mxu0 0.0
          %744 = vmatprep.subr.mxu0 0.0
          %745 = vmatpush1.msra.mxu0 0.0
          %746 = vmatprep.subr.mxu0 0.0
          %747 = vmatpush1.msra.mxu0 0.0
          %748 = vmatprep.subr.mxu0 0.0
          %749 = vmatpush1.msra.mxu0 0.0
          %750 = vmatprep.subr.mxu0 0.0
          %751 = vmatpush1.msra.mxu0 0.0
          %752 = vmatprep.subr.mxu0 0.0
          %753 = vmatpush1.msra.mxu0 0.0
          %754 = vmatprep.subr.mxu0 0.0
          %755 = vmatpush1.msra.mxu0 0.0
          %756 = vmatprep.subr.mxu0 0.0
          %757 = vmatpush1.msra.mxu0 0.0
          %758 = vmatprep.subr.mxu0 0.0
          %759 = vmatpush1.msra.mxu0 0.0
          %760 = vmatprep.mubr.f32.mxu0 0.0
          %761 = vmatmul.mubr.f32.gmra.mrb[0].mxu0 %v687
          %v762 = vpop.f32.mrb[0].mxu0
          %v763 = vadd.f32 %v683, %v762
          %v764 = vpop.f32.mrb[0].mxu0
          %765 = vmatprep.mubr.f32.mxu0 0.0
          %766 = vmatmul.mubr.f32.gmra.mrb[0].mxu0 %v690
          %v767 = vpop.f32.mrb[0].mxu0
          %v768 = vadd.f32 %v684, %v767
          %v769 = vpop.f32.mrb[0].mxu0
          %770 = vdwg.mxu0
          %771 = vst [vmem:[#allocation2] sm:$0xff] %v763
          %772 = vst [vmem:[#allocation2 + $0x8] sm:$0xff] %v768
        $region92: #{transformer_forward.1} parent=79 // pred_fallthru
          _
        %v773 = vld [vmem:[#allocation2] sm:$0xff]
        %v774 = vld [vmem:[#allocation2 + $0x8] sm:$0xff]
        %v775 = vpack.c.bf16 %v774, %v773
        %v776 = vld [vmem:[%s669] sm:$0xff]
        %v777 = vld [vmem:[%s645] sm:$0xf]
        %v778 = vld [vmem:[%s645 + $0x4] sm:$0xf]
        %v779 = vld [vmem:[%s645 + $0x8] sm:$0xf]
        %v780 = vld [vmem:[%s645 + $0xc] sm:$0xf]
        %v781 = vld [vmem:[%s645 + $0x10] sm:$0xf]
        %v782 = vld [vmem:[%s645 + $0x14] sm:$0xf]
        %v783 = vld [vmem:[%s645 + $0x18] sm:$0xf]
        %v784 = vld [vmem:[%s645 + $0x1c] sm:$0xf]
        %v785 = vld [vmem:[%s645 + $0x20] sm:$0xf]
        %v786 = vld [vmem:[%s645 + $0x24] sm:$0xf]
        %v787 = vld [vmem:[%s645 + $0x28] sm:$0xf]
        %v788 = vld [vmem:[%s645 + $0x2c] sm:$0xf]
        %v789 = vld [vmem:[%s645 + $0x30] sm:$0xf]
        %v790 = vld [vmem:[%s645 + $0x34] sm:$0xf]
        %v791 = vld [vmem:[%s645 + $0x38] sm:$0xf]
        %v792 = vld [vmem:[%s645 + $0x3c] sm:$0xf]
        %v793 = vld [vmem:[%s660] sm:$0xff]
        %v794 = vld [vmem:[%s660 + $0x8] sm:$0xff]
        %v795 = vld [vmem:[%s660 + $0x10] sm:$0xff]
        %v796 = vld [vmem:[%s660 + $0x18] sm:$0xff]
        %v797 = vld [vmem:[%s660 + $0x20] sm:$0xff]
        %v798 = vld [vmem:[%s660 + $0x28] sm:$0xff]
        %v799 = vld [vmem:[%s660 + $0x30] sm:$0xff]
        %v800 = vld [vmem:[%s660 + $0x38] sm:$0xff]
        %v801 = vld [vmem:[%s660 + $0x40] sm:$0xff]
        %v802 = vld [vmem:[%s660 + $0x48] sm:$0xff]
        %v803 = vld [vmem:[%s660 + $0x50] sm:$0xff]
        %v804 = vld [vmem:[%s660 + $0x58] sm:$0xff]
        %v805 = vld [vmem:[%s660 + $0x60] sm:$0xff]
        %v806 = vld [vmem:[%s660 + $0x68] sm:$0xff]
        %v807 = vld [vmem:[%s660 + $0x70] sm:$0xff]
        %v808 = vld [vmem:[%s660 + $0x78] sm:$0xff]
        %v811 = vunpack.c.l.b16 %v777
        %v812 = vunpack.c.l.b16 %v778
        %v813 = vpack.c.b16 %v812, %v811
        %815 = vmatprep.subr.bf16.mxu0 0
        %816 = vmatpush1.bf16.xpose.msra.mxu0 %v813
        %817 = vmatprep.subr.bf16.mxu0 0
        %818 = vmatpush1.bf16.xpose.msra.mxu0 0
        %819 = vmatprep.subr.bf16.mxu0 0
        %820 = vmatpush1.bf16.xpose.msra.mxu0 0
        %821 = vmatprep.subr.bf16.mxu0 0
        %822 = vmatpush1.bf16.xpose.msra.mxu0 0
        %823 = vmatprep.subr.bf16.mxu0 0
        %824 = vmatpush1.bf16.xpose.msra.mxu0 0
        %825 = vmatprep.subr.bf16.mxu0 0
        %826 = vmatpush1.bf16.xpose.msra.mxu0 0
        %827 = vmatprep.subr.bf16.mxu0 0
        %828 = vmatpush1.bf16.xpose.msra.mxu0 0
        %829 = vmatprep.subr.bf16.mxu0 0
        %830 = vmatpush1.bf16.xpose.msra.mxu0 0
        %831 = vmatprep.subr.bf16.mxu0 0
        %832 = vmatpush1.bf16.xpose.msra.mxu0 0
        %833 = vmatprep.subr.bf16.mxu0 0
        %834 = vmatpush1.bf16.xpose.msra.mxu0 0
        %835 = vmatprep.subr.bf16.mxu0 0
        %836 = vmatpush1.bf16.xpose.msra.mxu0 0
        %837 = vmatprep.subr.bf16.mxu0 0
        %838 = vmatpush1.bf16.xpose.msra.mxu0 0
        %839 = vmatprep.subr.bf16.mxu0 0
        %840 = vmatpush1.bf16.xpose.msra.mxu0 0
        %841 = vmatprep.subr.bf16.mxu0 0
        %842 = vmatpush1.bf16.xpose.msra.mxu0 0
        %843 = vmatprep.subr.bf16.mxu0 0
        %844 = vmatpush1.bf16.xpose.msra.mxu0 0
        %845 = vmatprep.subr.bf16.mxu0 0
        %846 = vmatpush1.bf16.xpose.msra.mxu0 0
        %847 = vmatprep.mubr.bf16.mxu0 0
        %848 = vmatmul.mubr.bf16.gmra.mrb[0].mxu0 %v775
        %v849 = vpop.f32.mrb[0].mxu0
        %v850 = vadd.f32 %v793, %v849
        %v851 = vpop.f32.mrb[0].mxu0
        %v852 = vpop.f32.mrb[0].mxu0
        %v853 = vadd.f32 %v794, %v852
        %v854 = vpop.f32.mrb[0].mxu0
        %855 = vdwg.mxu0
        %v858 = vunpack.c.l.b16 %v779
        %v859 = vunpack.c.l.b16 %v780
        %v860 = vpack.c.b16 %v859, %v858
        %862 = vmatprep.subr.bf16.mxu0 0
        %863 = vmatpush1.bf16.xpose.msra.mxu0 %v860
        %864 = vmatprep.subr.bf16.mxu0 0
        %865 = vmatpush1.bf16.xpose.msra.mxu0 0
        %866 = vmatprep.subr.bf16.mxu0 0
        %867 = vmatpush1.bf16.xpose.msra.mxu0 0
        %868 = vmatprep.subr.bf16.mxu0 0
        %869 = vmatpush1.bf16.xpose.msra.mxu0 0
        %870 = vmatprep.subr.bf16.mxu0 0
        %871 = vmatpush1.bf16.xpose.msra.mxu0 0
        %872 = vmatprep.subr.bf16.mxu0 0
        %873 = vmatpush1.bf16.xpose.msra.mxu0 0
        %874 = vmatprep.subr.bf16.mxu0 0
        %875 = vmatpush1.bf16.xpose.msra.mxu0 0
        %876 = vmatprep.subr.bf16.mxu0 0
        %877 = vmatpush1.bf16.xpose.msra.mxu0 0
        %878 = vmatprep.subr.bf16.mxu0 0
        %879 = vmatpush1.bf16.xpose.msra.mxu0 0
        %880 = vmatprep.subr.bf16.mxu0 0
        %881 = vmatpush1.bf16.xpose.msra.mxu0 0
        %882 = vmatprep.subr.bf16.mxu0 0
        %883 = vmatpush1.bf16.xpose.msra.mxu0 0
        %884 = vmatprep.subr.bf16.mxu0 0
        %885 = vmatpush1.bf16.xpose.msra.mxu0 0
        %886 = vmatprep.subr.bf16.mxu0 0
        %887 = vmatpush1.bf16.xpose.msra.mxu0 0
        %888 = vmatprep.subr.bf16.mxu0 0
        %889 = vmatpush1.bf16.xpose.msra.mxu0 0
        %890 = vmatprep.subr.bf16.mxu0 0
        %891 = vmatpush1.bf16.xpose.msra.mxu0 0
        %892 = vmatprep.subr.bf16.mxu0 0
        %893 = vmatpush1.bf16.xpose.msra.mxu0 0
        %894 = vmatprep.mubr.bf16.mxu0 0
        %895 = vmatmul.mubr.bf16.gmra.mrb[0].mxu0 %v775
        %v896 = vpop.f32.mrb[0].mxu0
        %v897 = vadd.f32 %v795, %v896
        %v898 = vpop.f32.mrb[0].mxu0
        %v899 = vpop.f32.mrb[0].mxu0
        %v900 = vadd.f32 %v796, %v899
        %v901 = vpop.f32.mrb[0].mxu0
        %902 = vdwg.mxu0
        %v905 = vunpack.c.l.b16 %v781
        %v906 = vunpack.c.l.b16 %v782
        %v907 = vpack.c.b16 %v906, %v905
        %909 = vmatprep.subr.bf16.mxu0 0
        %910 = vmatpush1.bf16.xpose.msra.mxu0 %v907
        %911 = vmatprep.subr.bf16.mxu0 0
        %912 = vmatpush1.bf16.xpose.msra.mxu0 0
        %913 = vmatprep.subr.bf16.mxu0 0
        %914 = vmatpush1.bf16.xpose.msra.mxu0 0
        %915 = vmatprep.subr.bf16.mxu0 0
        %916 = vmatpush1.bf16.xpose.msra.mxu0 0
        %917 = vmatprep.subr.bf16.mxu0 0
        %918 = vmatpush1.bf16.xpose.msra.mxu0 0
        %919 = vmatprep.subr.bf16.mxu0 0
        %920 = vmatpush1.bf16.xpose.msra.mxu0 0
        %921 = vmatprep.subr.bf16.mxu0 0
        %922 = vmatpush1.bf16.xpose.msra.mxu0 0
        %923 = vmatprep.subr.bf16.mxu0 0
        %924 = vmatpush1.bf16.xpose.msra.mxu0 0
        %925 = vmatprep.subr.bf16.mxu0 0
        %926 = vmatpush1.bf16.xpose.msra.mxu0 0
        %927 = vmatprep.subr.bf16.mxu0 0
        %928 = vmatpush1.bf16.xpose.msra.mxu0 0
        %929 = vmatprep.subr.bf16.mxu0 0
        %930 = vmatpush1.bf16.xpose.msra.mxu0 0
        %931 = vmatprep.subr.bf16.mxu0 0
        %932 = vmatpush1.bf16.xpose.msra.mxu0 0
        %933 = vmatprep.subr.bf16.mxu0 0
        %934 = vmatpush1.bf16.xpose.msra.mxu0 0
        %935 = vmatprep.subr.bf16.mxu0 0
        %936 = vmatpush1.bf16.xpose.msra.mxu0 0
        %937 = vmatprep.subr.bf16.mxu0 0
        %938 = vmatpush1.bf16.xpose.msra.mxu0 0
        %939 = vmatprep.subr.bf16.mxu0 0
        %940 = vmatpush1.bf16.xpose.msra.mxu0 0
        %941 = vmatprep.mubr.bf16.mxu0 0
        %942 = vmatmul.mubr.bf16.gmra.mrb[0].mxu0 %v775
        %v943 = vpop.f32.mrb[0].mxu0
        %v944 = vadd.f32 %v797, %v943
        %v945 = vpop.f32.mrb[0].mxu0
        %v946 = vpop.f32.mrb[0].mxu0
        %v947 = vadd.f32 %v798, %v946
        %v948 = vpop.f32.mrb[0].mxu0
        %949 = vdwg.mxu0
        %v952 = vunpack.c.l.b16 %v783
        %v953 = vunpack.c.l.b16 %v784
        %v954 = vpack.c.b16 %v953, %v952
        %956 = vmatprep.subr.bf16.mxu0 0
        %957 = vmatpush1.bf16.xpose.msra.mxu0 %v954
        %958 = vmatprep.subr.bf16.mxu0 0
        %959 = vmatpush1.bf16.xpose.msra.mxu0 0
        %960 = vmatprep.subr.bf16.mxu0 0
        %961 = vmatpush1.bf16.xpose.msra.mxu0 0
        %962 = vmatprep.subr.bf16.mxu0 0
        %963 = vmatpush1.bf16.xpose.msra.mxu0 0
        %964 = vmatprep.subr.bf16.mxu0 0
        %965 = vmatpush1.bf16.xpose.msra.mxu0 0
        %966 = vmatprep.subr.bf16.mxu0 0
        %967 = vmatpush1.bf16.xpose.msra.mxu0 0
        %968 = vmatprep.subr.bf16.mxu0 0
        %969 = vmatpush1.bf16.xpose.msra.mxu0 0
        %970 = vmatprep.subr.bf16.mxu0 0
        %971 = vmatpush1.bf16.xpose.msra.mxu0 0
        %972 = vmatprep.subr.bf16.mxu0 0
        %973 = vmatpush1.bf16.xpose.msra.mxu0 0
        %974 = vmatprep.subr.bf16.mxu0 0
        %975 = vmatpush1.bf16.xpose.msra.mxu0 0
        %976 = vmatprep.subr.bf16.mxu0 0
        %977 = vmatpush1.bf16.xpose.msra.mxu0 0
        %978 = vmatprep.subr.bf16.mxu0 0
        %979 = vmatpush1.bf16.xpose.msra.mxu0 0
        %980 = vmatprep.subr.bf16.mxu0 0
        %981 = vmatpush1.bf16.xpose.msra.mxu0 0
        %982 = vmatprep.subr.bf16.mxu0 0
        %983 = vmatpush1.bf16.xpose.msra.mxu0 0
        %984 = vmatprep.subr.bf16.mxu0 0
        %985 = vmatpush1.bf16.xpose.msra.mxu0 0
        %986 = vmatprep.subr.bf16.mxu0 0
        %987 = vmatpush1.bf16.xpose.msra.mxu0 0
        %988 = vmatprep.mubr.bf16.mxu0 0
        %989 = vmatmul.mubr.bf16.gmra.mrb[0].mxu0 %v775
        %v990 = vpop.f32.mrb[0].mxu0
        %v991 = vadd.f32 %v799, %v990
        %v992 = vpop.f32.mrb[0].mxu0
        %v993 = vpop.f32.mrb[0].mxu0
        %v994 = vadd.f32 %v800, %v993
        %v995 = vpop.f32.mrb[0].mxu0
        %996 = vdwg.mxu0
        %v999 = vunpack.c.l.b16 %v785
        %v1000 = vunpack.c.l.b16 %v786
        %v1001 = vpack.c.b16 %v1000, %v999
        %1003 = vmatprep.subr.bf16.mxu0 0
        %1004 = vmatpush1.bf16.xpose.msra.mxu0 %v1001
        %1005 = vmatprep.subr.bf16.mxu0 0
        %1006 = vmatpush1.bf16.xpose.msra.mxu0 0
        %1007 = vmatprep.subr.bf16.mxu0 0
        %1008 = vmatpush1.bf16.xpose.msra.mxu0 0
        %1009 = vmatprep.subr.bf16.mxu0 0
        %1010 = vmatpush1.bf16.xpose.msra.mxu0 0
        %1011 = vmatprep.subr.bf16.mxu0 0
        %1012 = vmatpush1.bf16.xpose.msra.mxu0 0
        %1013 = vmatprep.subr.bf16.mxu0 0
        %1014 = vmatpush1.bf16.xpose.msra.mxu0 0
        %1015 = vmatprep.subr.bf16.mxu0 0
        %1016 = vmatpush1.bf16.xpose.msra.mxu0 0
        %1017 = vmatprep.subr.bf16.mxu0 0
        %1018 = vmatpush1.bf16.xpose.msra.mxu0 0
        %1019 = vmatprep.subr.bf16.mxu0 0
        %1020 = vmatpush1.bf16.xpose.msra.mxu0 0
        %1021 = vmatprep.subr.bf16.mxu0 0
        %1022 = vmatpush1.bf16.xpose.msra.mxu0 0
        %1023 = vmatprep.subr.bf16.mxu0 0
        %1024 = vmatpush1.bf16.xpose.msra.mxu0 0
        %1025 = vmatprep.subr.bf16.mxu0 0
        %1026 = vmatpush1.bf16.xpose.msra.mxu0 0
        %1027 = vmatprep.subr.bf16.mxu0 0
        %1028 = vmatpush1.bf16.xpose.msra.mxu0 0
        %1029 = vmatprep.subr.bf16.mxu0 0
        %1030 = vmatpush1.bf16.xpose.msra.mxu0 0
        %1031 = vmatprep.subr.bf16.mxu0 0
        %1032 = vmatpush1.bf16.xpose.msra.mxu0 0
        %1033 = vmatprep.subr.bf16.mxu0 0
        %1034 = vmatpush1.bf16.xpose.msra.mxu0 0
        %1035 = vmatprep.mubr.bf16.mxu0 0
        %1036 = vmatmul.mubr.bf16.gmra.mrb[0].mxu0 %v775
        %v1037 = vpop.f32.mrb[0].mxu0
        %v1038 = vadd.f32 %v801, %v1037
        %v1039 = vpop.f32.mrb[0].mxu0
        %v1040 = vpop.f32.mrb[0].mxu0
        %v1041 = vadd.f32 %v802, %v1040
        %v1042 = vpop.f32.mrb[0].mxu0
        %1043 = vdwg.mxu0
        %v1046 = vunpack.c.l.b16 %v787
        %v1047 = vunpack.c.l.b16 %v788
        %v1048 = vpack.c.b16 %v1047, %v1046
        %1050 = vmatprep.subr.bf16.mxu0 0
        %1051 = vmatpush1.bf16.xpose.msra.mxu0 %v1048
        %1052 = vmatprep.subr.bf16.mxu0 0
        %1053 = vmatpush1.bf16.xpose.msra.mxu0 0
        %1054 = vmatprep.subr.bf16.mxu0 0
        %1055 = vmatpush1.bf16.xpose.msra.mxu0 0
        %1056 = vmatprep.subr.bf16.mxu0 0
        %1057 = vmatpush1.bf16.xpose.msra.mxu0 0
        %1058 = vmatprep.subr.bf16.mxu0 0
        %1059 = vmatpush1.bf16.xpose.msra.mxu0 0
        %1060 = vmatprep.subr.bf16.mxu0 0
        %1061 = vmatpush1.bf16.xpose.msra.mxu0 0
        %1062 = vmatprep.subr.bf16.mxu0 0
        %1063 = vmatpush1.bf16.xpose.msra.mxu0 0
        %1064 = vmatprep.subr.bf16.mxu0 0
        %1065 = vmatpush1.bf16.xpose.msra.mxu0 0
        %1066 = vmatprep.subr.bf16.mxu0 0
        %1067 = vmatpush1.bf16.xpose.msra.mxu0 0
        %1068 = vmatprep.subr.bf16.mxu0 0
        %1069 = vmatpush1.bf16.xpose.msra.mxu0 0
        %1070 = vmatprep.subr.bf16.mxu0 0
        %1071 = vmatpush1.bf16.xpose.msra.mxu0 0
        %1072 = vmatprep.subr.bf16.mxu0 0
        %1073 = vmatpush1.bf16.xpose.msra.mxu0 0
        %1074 = vmatprep.subr.bf16.mxu0 0
        %1075 = vmatpush1.bf16.xpose.msra.mxu0 0
        %1076 = vmatprep.subr.bf16.mxu0 0
        %1077 = vmatpush1.bf16.xpose.msra.mxu0 0
        %1078 = vmatprep.subr.bf16.mxu0 0
        %1079 = vmatpush1.bf16.xpose.msra.mxu0 0
        %1080 = vmatprep.subr.bf16.mxu0 0
        %1081 = vmatpush1.bf16.xpose.msra.mxu0 0
        %1082 = vmatprep.mubr.bf16.mxu0 0
        %1083 = vmatmul.mubr.bf16.gmra.mrb[0].mxu0 %v775
        %v1084 = vpop.f32.mrb[0].mxu0
        %v1085 = vadd.f32 %v803, %v1084
        %v1086 = vpop.f32.mrb[0].mxu0
        %v1087 = vpop.f32.mrb[0].mxu0
        %v1088 = vadd.f32 %v804, %v1087
        %v1089 = vpop.f32.mrb[0].mxu0
        %1090 = vdwg.mxu0
        %v1093 = vunpack.c.l.b16 %v789
        %v1094 = vunpack.c.l.b16 %v790
        %v1095 = vpack.c.b16 %v1094, %v1093
        %1097 = vmatprep.subr.bf16.mxu0 0
        %1098 = vmatpush1.bf16.xpose.msra.mxu0 %v1095
        %1099 = vmatprep.subr.bf16.mxu0 0
        %1100 = vmatpush1.bf16.xpose.msra.mxu0 0
        %1101 = vmatprep.subr.bf16.mxu0 0
        %1102 = vmatpush1.bf16.xpose.msra.mxu0 0
        %1103 = vmatprep.subr.bf16.mxu0 0
        %1104 = vmatpush1.bf16.xpose.msra.mxu0 0
        %1105 = vmatprep.subr.bf16.mxu0 0
        %1106 = vmatpush1.bf16.xpose.msra.mxu0 0
        %1107 = vmatprep.subr.bf16.mxu0 0
        %1108 = vmatpush1.bf16.xpose.msra.mxu0 0
        %1109 = vmatprep.subr.bf16.mxu0 0
        %1110 = vmatpush1.bf16.xpose.msra.mxu0 0
        %1111 = vmatprep.subr.bf16.mxu0 0
        %1112 = vmatpush1.bf16.xpose.msra.mxu0 0
        %1113 = vmatprep.subr.bf16.mxu0 0
        %1114 = vmatpush1.bf16.xpose.msra.mxu0 0
        %1115 = vmatprep.subr.bf16.mxu0 0
        %1116 = vmatpush1.bf16.xpose.msra.mxu0 0
        %1117 = vmatprep.subr.bf16.mxu0 0
        %1118 = vmatpush1.bf16.xpose.msra.mxu0 0
        %1119 = vmatprep.subr.bf16.mxu0 0
        %1120 = vmatpush1.bf16.xpose.msra.mxu0 0
        %1121 = vmatprep.subr.bf16.mxu0 0
        %1122 = vmatpush1.bf16.xpose.msra.mxu0 0
        %1123 = vmatprep.subr.bf16.mxu0 0
        %1124 = vmatpush1.bf16.xpose.msra.mxu0 0
        %1125 = vmatprep.subr.bf16.mxu0 0
        %1126 = vmatpush1.bf16.xpose.msra.mxu0 0
        %1127 = vmatprep.subr.bf16.mxu0 0
        %1128 = vmatpush1.bf16.xpose.msra.mxu0 0
        %1129 = vmatprep.mubr.bf16.mxu0 0
        %1130 = vmatmul.mubr.bf16.gmra.mrb[0].mxu0 %v775
        %v1131 = vpop.f32.mrb[0].mxu0
        %v1132 = vadd.f32 %v805, %v1131
        %v1133 = vpop.f32.mrb[0].mxu0
        %v1134 = vpop.f32.mrb[0].mxu0
        %v1135 = vadd.f32 %v806, %v1134
        %v1136 = vpop.f32.mrb[0].mxu0
        %1137 = vdwg.mxu0
        %v1140 = vunpack.c.l.b16 %v791
        %v1141 = vunpack.c.l.b16 %v792
        %v1142 = vpack.c.b16 %v1141, %v1140
        %1144 = vmatprep.subr.bf16.mxu0 0
        %1145 = vmatpush1.bf16.xpose.msra.mxu0 %v1142
        %1146 = vmatprep.subr.bf16.mxu0 0
        %1147 = vmatpush1.bf16.xpose.msra.mxu0 0
        %1148 = vmatprep.subr.bf16.mxu0 0
        %1149 = vmatpush1.bf16.xpose.msra.mxu0 0
        %1150 = vmatprep.subr.bf16.mxu0 0
        %1151 = vmatpush1.bf16.xpose.msra.mxu0 0
        %1152 = vmatprep.subr.bf16.mxu0 0
        %1153 = vmatpush1.bf16.xpose.msra.mxu0 0
        %1154 = vmatprep.subr.bf16.mxu0 0
        %1155 = vmatpush1.bf16.xpose.msra.mxu0 0
        %1156 = vmatprep.subr.bf16.mxu0 0
        %1157 = vmatpush1.bf16.xpose.msra.mxu0 0
        %1158 = vmatprep.subr.bf16.mxu0 0
        %1159 = vmatpush1.bf16.xpose.msra.mxu0 0
        %1160 = vmatprep.subr.bf16.mxu0 0
        %1161 = vmatpush1.bf16.xpose.msra.mxu0 0
        %1162 = vmatprep.subr.bf16.mxu0 0
        %1163 = vmatpush1.bf16.xpose.msra.mxu0 0
        %1164 = vmatprep.subr.bf16.mxu0 0
        %1165 = vmatpush1.bf16.xpose.msra.mxu0 0
        %1166 = vmatprep.subr.bf16.mxu0 0
        %1167 = vmatpush1.bf16.xpose.msra.mxu0 0
        %1168 = vmatprep.subr.bf16.mxu0 0
        %1169 = vmatpush1.bf16.xpose.msra.mxu0 0
        %1170 = vmatprep.subr.bf16.mxu0 0
        %1171 = vmatpush1.bf16.xpose.msra.mxu0 0
        %1172 = vmatprep.subr.bf16.mxu0 0
        %1173 = vmatpush1.bf16.xpose.msra.mxu0 0
        %1174 = vmatprep.subr.bf16.mxu0 0
        %1175 = vmatpush1.bf16.xpose.msra.mxu0 0
        %1176 = vmatprep.mubr.bf16.mxu0 0
        %1177 = vmatmul.mubr.bf16.gmra.mrb[0].mxu0 %v775
        %v1178 = vpop.f32.mrb[0].mxu0
        %v1179 = vadd.f32 %v807, %v1178
        %v1180 = vpop.f32.mrb[0].mxu0
        %v1181 = vpop.f32.mrb[0].mxu0
        %v1182 = vadd.f32 %v808, %v1181
        %v1183 = vpop.f32.mrb[0].mxu0
        %1184 = vdwg.mxu0
        %v1185 = vld [vmem:[%s650] sm:$0xf]
        %v1186 = vld [vmem:[%s650 + $0x4] sm:$0xf]
        %v1187 = vld [vmem:[%s650 + $0x8] sm:$0xf]
        %v1188 = vld [vmem:[%s650 + $0xc] sm:$0xf]
        %v1189 = vld [vmem:[%s650 + $0x10] sm:$0xf]
        %v1190 = vld [vmem:[%s650 + $0x14] sm:$0xf]
        %v1191 = vld [vmem:[%s650 + $0x18] sm:$0xf]
        %v1192 = vld [vmem:[%s650 + $0x1c] sm:$0xf]
        %v1193 = vld [vmem:[%s650 + $0x20] sm:$0xf]
        %v1194 = vld [vmem:[%s650 + $0x24] sm:$0xf]
        %v1195 = vld [vmem:[%s650 + $0x28] sm:$0xf]
        %v1196 = vld [vmem:[%s650 + $0x2c] sm:$0xf]
        %v1197 = vld [vmem:[%s650 + $0x30] sm:$0xf]
        %v1198 = vld [vmem:[%s650 + $0x34] sm:$0xf]
        %v1199 = vld [vmem:[%s650 + $0x38] sm:$0xf]
        %v1200 = vld [vmem:[%s650 + $0x3c] sm:$0xf]
        %v1203 = vunpack.c.l.b16 %v1185
        %v1204 = vunpack.c.l.b16 %v1186
        %v1205 = vpack.c.b16 %v1204, %v1203
        %1207 = vmatprep.subr.bf16.mxu0 0
        %1208 = vmatpush1.bf16.xpose.msra.mxu0 %v1205
        %1209 = vmatprep.subr.bf16.mxu0 0
        %1210 = vmatpush1.bf16.xpose.msra.mxu0 0
        %1211 = vmatprep.subr.bf16.mxu0 0
        %1212 = vmatpush1.bf16.xpose.msra.mxu0 0
        %1213 = vmatprep.subr.bf16.mxu0 0
        %1214 = vmatpush1.bf16.xpose.msra.mxu0 0
        %1215 = vmatprep.subr.bf16.mxu0 0
        %1216 = vmatpush1.bf16.xpose.msra.mxu0 0
        %1217 = vmatprep.subr.bf16.mxu0 0
        %1218 = vmatpush1.bf16.xpose.msra.mxu0 0
        %1219 = vmatprep.subr.bf16.mxu0 0
        %1220 = vmatpush1.bf16.xpose.msra.mxu0 0
        %1221 = vmatprep.subr.bf16.mxu0 0
        %1222 = vmatpush1.bf16.xpose.msra.mxu0 0
        %1223 = vmatprep.subr.bf16.mxu0 0
        %1224 = vmatpush1.bf16.xpose.msra.mxu0 0
        %1225 = vmatprep.subr.bf16.mxu0 0
        %1226 = vmatpush1.bf16.xpose.msra.mxu0 0
        %1227 = vmatprep.subr.bf16.mxu0 0
        %1228 = vmatpush1.bf16.xpose.msra.mxu0 0
        %1229 = vmatprep.subr.bf16.mxu0 0
        %1230 = vmatpush1.bf16.xpose.msra.mxu0 0
        %1231 = vmatprep.subr.bf16.mxu0 0
        %1232 = vmatpush1.bf16.xpose.msra.mxu0 0
        %1233 = vmatprep.subr.bf16.mxu0 0
        %1234 = vmatpush1.bf16.xpose.msra.mxu0 0
        %1235 = vmatprep.subr.bf16.mxu0 0
        %1236 = vmatpush1.bf16.xpose.msra.mxu0 0
        %1237 = vmatprep.subr.bf16.mxu0 0
        %1238 = vmatpush1.bf16.xpose.msra.mxu0 0
        %1239 = vmatprep.mubr.bf16.mxu0 0
        %1240 = vmatmul.mubr.bf16.gmra.mrb[0].mxu0 %v775
        %v1241 = vpop.f32.mrb[0].mxu0
        %v1242 = vadd.f32 0.0, %v1241
        %v1243 = vpop.f32.mrb[0].mxu0
        %v1244 = vpop.f32.mrb[0].mxu0
        %v1245 = vadd.f32 0.0, %v1244
        %v1246 = vpop.f32.mrb[0].mxu0
        %1247 = vdwg.mxu0
        %v1250 = vunpack.c.l.b16 %v1187
        %v1251 = vunpack.c.l.b16 %v1188
        %v1252 = vpack.c.b16 %v1251, %v1250
        %1254 = vmatprep.subr.bf16.mxu0 0
        %1255 = vmatpush1.bf16.xpose.msra.mxu0 %v1252
        %1256 = vmatprep.subr.bf16.mxu0 0
        %1257 = vmatpush1.bf16.xpose.msra.mxu0 0
        %1258 = vmatprep.subr.bf16.mxu0 0
        %1259 = vmatpush1.bf16.xpose.msra.mxu0 0
        %1260 = vmatprep.subr.bf16.mxu0 0
        %1261 = vmatpush1.bf16.xpose.msra.mxu0 0
        %1262 = vmatprep.subr.bf16.mxu0 0
        %1263 = vmatpush1.bf16.xpose.msra.mxu0 0
        %1264 = vmatprep.subr.bf16.mxu0 0
        %1265 = vmatpush1.bf16.xpose.msra.mxu0 0
        %1266 = vmatprep.subr.bf16.mxu0 0
        %1267 = vmatpush1.bf16.xpose.msra.mxu0 0
        %1268 = vmatprep.subr.bf16.mxu0 0
        %1269 = vmatpush1.bf16.xpose.msra.mxu0 0
        %1270 = vmatprep.subr.bf16.mxu0 0
        %1271 = vmatpush1.bf16.xpose.msra.mxu0 0
        %1272 = vmatprep.subr.bf16.mxu0 0
        %1273 = vmatpush1.bf16.xpose.msra.mxu0 0
        %1274 = vmatprep.subr.bf16.mxu0 0
        %1275 = vmatpush1.bf16.xpose.msra.mxu0 0
        %1276 = vmatprep.subr.bf16.mxu0 0
        %1277 = vmatpush1.bf16.xpose.msra.mxu0 0
        %1278 = vmatprep.subr.bf16.mxu0 0
        %1279 = vmatpush1.bf16.xpose.msra.mxu0 0
        %1280 = vmatprep.subr.bf16.mxu0 0
        %1281 = vmatpush1.bf16.xpose.msra.mxu0 0
        %1282 = vmatprep.subr.bf16.mxu0 0
        %1283 = vmatpush1.bf16.xpose.msra.mxu0 0
        %1284 = vmatprep.subr.bf16.mxu0 0
        %1285 = vmatpush1.bf16.xpose.msra.mxu0 0
        %1286 = vmatprep.mubr.bf16.mxu0 0
        %1287 = vmatmul.mubr.bf16.gmra.mrb[0].mxu0 %v775
        %v1288 = vpop.f32.mrb[0].mxu0
        %v1289 = vadd.f32 0.0, %v1288
        %v1290 = vpop.f32.mrb[0].mxu0
        %v1291 = vpop.f32.mrb[0].mxu0
        %v1292 = vadd.f32 0.0, %v1291
        %v1293 = vpop.f32.mrb[0].mxu0
        %1294 = vdwg.mxu0
        %v1297 = vunpack.c.l.b16 %v1189
        %v1298 = vunpack.c.l.b16 %v1190
        %v1299 = vpack.c.b16 %v1298, %v1297
        %1301 = vmatprep.subr.bf16.mxu0 0
        %1302 = vmatpush1.bf16.xpose.msra.mxu0 %v1299
        %1303 = vmatprep.subr.bf16.mxu0 0
        %1304 = vmatpush1.bf16.xpose.msra.mxu0 0
        %1305 = vmatprep.subr.bf16.mxu0 0
        %1306 = vmatpush1.bf16.xpose.msra.mxu0 0
        %1307 = vmatprep.subr.bf16.mxu0 0
        %1308 = vmatpush1.bf16.xpose.msra.mxu0 0
        %1309 = vmatprep.subr.bf16.mxu0 0
        %1310 = vmatpush1.bf16.xpose.msra.mxu0 0
        %1311 = vmatprep.subr.bf16.mxu0 0
        %1312 = vmatpush1.bf16.xpose.msra.mxu0 0
        %1313 = vmatprep.subr.bf16.mxu0 0
        %1314 = vmatpush1.bf16.xpose.msra.mxu0 0
        %1315 = vmatprep.subr.bf16.mxu0 0
        %1316 = vmatpush1.bf16.xpose.msra.mxu0 0
        %1317 = vmatprep.subr.bf16.mxu0 0
        %1318 = vmatpush1.bf16.xpose.msra.mxu0 0
        %1319 = vmatprep.subr.bf16.mxu0 0
        %1320 = vmatpush1.bf16.xpose.msra.mxu0 0
        %1321 = vmatprep.subr.bf16.mxu0 0
        %1322 = vmatpush1.bf16.xpose.msra.mxu0 0
        %1323 = vmatprep.subr.bf16.mxu0 0
        %1324 = vmatpush1.bf16.xpose.msra.mxu0 0
        %1325 = vmatprep.subr.bf16.mxu0 0
        %1326 = vmatpush1.bf16.xpose.msra.mxu0 0
        %1327 = vmatprep.subr.bf16.mxu0 0
        %1328 = vmatpush1.bf16.xpose.msra.mxu0 0
        %1329 = vmatprep.subr.bf16.mxu0 0
        %1330 = vmatpush1.bf16.xpose.msra.mxu0 0
        %1331 = vmatprep.subr.bf16.mxu0 0
        %1332 = vmatpush1.bf16.xpose.msra.mxu0 0
        %1333 = vmatprep.mubr.bf16.mxu0 0
        %1334 = vmatmul.mubr.bf16.gmra.mrb[0].mxu0 %v775
        %v1335 = vpop.f32.mrb[0].mxu0
        %v1336 = vadd.f32 0.0, %v1335
        %v1337 = vpop.f32.mrb[0].mxu0
        %v1338 = vpop.f32.mrb[0].mxu0
        %v1339 = vadd.f32 0.0, %v1338
        %v1340 = vpop.f32.mrb[0].mxu0
        %1341 = vdwg.mxu0
        %v1344 = vunpack.c.l.b16 %v1191
        %v1345 = vunpack.c.l.b16 %v1192
        %v1346 = vpack.c.b16 %v1345, %v1344
        %1348 = vmatprep.subr.bf16.mxu0 0
        %1349 = vmatpush1.bf16.xpose.msra.mxu0 %v1346
        %1350 = vmatprep.subr.bf16.mxu0 0
        %1351 = vmatpush1.bf16.xpose.msra.mxu0 0
        %1352 = vmatprep.subr.bf16.mxu0 0
        %1353 = vmatpush1.bf16.xpose.msra.mxu0 0
        %1354 = vmatprep.subr.bf16.mxu0 0
        %1355 = vmatpush1.bf16.xpose.msra.mxu0 0
        %1356 = vmatprep.subr.bf16.mxu0 0
        %1357 = vmatpush1.bf16.xpose.msra.mxu0 0
        %1358 = vmatprep.subr.bf16.mxu0 0
        %1359 = vmatpush1.bf16.xpose.msra.mxu0 0
        %1360 = vmatprep.subr.bf16.mxu0 0
        %1361 = vmatpush1.bf16.xpose.msra.mxu0 0
        %1362 = vmatprep.subr.bf16.mxu0 0
        %1363 = vmatpush1.bf16.xpose.msra.mxu0 0
        %1364 = vmatprep.subr.bf16.mxu0 0
        %1365 = vmatpush1.bf16.xpose.msra.mxu0 0
        %1366 = vmatprep.subr.bf16.mxu0 0
        %1367 = vmatpush1.bf16.xpose.msra.mxu0 0
        %1368 = vmatprep.subr.bf16.mxu0 0
        %1369 = vmatpush1.bf16.xpose.msra.mxu0 0
        %1370 = vmatprep.subr.bf16.mxu0 0
        %1371 = vmatpush1.bf16.xpose.msra.mxu0 0
        %1372 = vmatprep.subr.bf16.mxu0 0
        %1373 = vmatpush1.bf16.xpose.msra.mxu0 0
        %1374 = vmatprep.subr.bf16.mxu0 0
        %1375 = vmatpush1.bf16.xpose.msra.mxu0 0
        %1376 = vmatprep.subr.bf16.mxu0 0
        %1377 = vmatpush1.bf16.xpose.msra.mxu0 0
        %1378 = vmatprep.subr.bf16.mxu0 0
        %1379 = vmatpush1.bf16.xpose.msra.mxu0 0
        %1380 = vmatprep.mubr.bf16.mxu0 0
        %1381 = vmatmul.mubr.bf16.gmra.mrb[0].mxu0 %v775
        %v1382 = vpop.f32.mrb[0].mxu0
        %v1383 = vadd.f32 0.0, %v1382
        %v1384 = vpop.f32.mrb[0].mxu0
        %v1385 = vpop.f32.mrb[0].mxu0
        %v1386 = vadd.f32 0.0, %v1385
        %v1387 = vpop.f32.mrb[0].mxu0
        %1388 = vdwg.mxu0
        %v1391 = vunpack.c.l.b16 %v1193
        %v1392 = vunpack.c.l.b16 %v1194
        %v1393 = vpack.c.b16 %v1392, %v1391
        %1395 = vmatprep.subr.bf16.mxu0 0
        %1396 = vmatpush1.bf16.xpose.msra.mxu0 %v1393
        %1397 = vmatprep.subr.bf16.mxu0 0
        %1398 = vmatpush1.bf16.xpose.msra.mxu0 0
        %1399 = vmatprep.subr.bf16.mxu0 0
        %1400 = vmatpush1.bf16.xpose.msra.mxu0 0
        %1401 = vmatprep.subr.bf16.mxu0 0
        %1402 = vmatpush1.bf16.xpose.msra.mxu0 0
        %1403 = vmatprep.subr.bf16.mxu0 0
        %1404 = vmatpush1.bf16.xpose.msra.mxu0 0
        %1405 = vmatprep.subr.bf16.mxu0 0
        %1406 = vmatpush1.bf16.xpose.msra.mxu0 0
        %1407 = vmatprep.subr.bf16.mxu0 0
        %1408 = vmatpush1.bf16.xpose.msra.mxu0 0
        %1409 = vmatprep.subr.bf16.mxu0 0
        %1410 = vmatpush1.bf16.xpose.msra.mxu0 0
        %1411 = vmatprep.subr.bf16.mxu0 0
        %1412 = vmatpush1.bf16.xpose.msra.mxu0 0
        %1413 = vmatprep.subr.bf16.mxu0 0
        %1414 = vmatpush1.bf16.xpose.msra.mxu0 0
        %1415 = vmatprep.subr.bf16.mxu0 0
        %1416 = vmatpush1.bf16.xpose.msra.mxu0 0
        %1417 = vmatprep.subr.bf16.mxu0 0
        %1418 = vmatpush1.bf16.xpose.msra.mxu0 0
        %1419 = vmatprep.subr.bf16.mxu0 0
        %1420 = vmatpush1.bf16.xpose.msra.mxu0 0
        %1421 = vmatprep.subr.bf16.mxu0 0
        %1422 = vmatpush1.bf16.xpose.msra.mxu0 0
        %1423 = vmatprep.subr.bf16.mxu0 0
        %1424 = vmatpush1.bf16.xpose.msra.mxu0 0
        %1425 = vmatprep.subr.bf16.mxu0 0
        %1426 = vmatpush1.bf16.xpose.msra.mxu0 0
        %1427 = vmatprep.mubr.bf16.mxu0 0
        %1428 = vmatmul.mubr.bf16.gmra.mrb[0].mxu0 %v775
        %v1429 = vpop.f32.mrb[0].mxu0
        %v1430 = vadd.f32 0.0, %v1429
        %v1431 = vpop.f32.mrb[0].mxu0
        %v1432 = vpop.f32.mrb[0].mxu0
        %v1433 = vadd.f32 0.0, %v1432
        %v1434 = vpop.f32.mrb[0].mxu0
        %1435 = vdwg.mxu0
        %v1438 = vunpack.c.l.b16 %v1195
        %v1439 = vunpack.c.l.b16 %v1196
        %v1440 = vpack.c.b16 %v1439, %v1438
        %1442 = vmatprep.subr.bf16.mxu0 0
        %1443 = vmatpush1.bf16.xpose.msra.mxu0 %v1440
        %1444 = vmatprep.subr.bf16.mxu0 0
        %1445 = vmatpush1.bf16.xpose.msra.mxu0 0
        %1446 = vmatprep.subr.bf16.mxu0 0
        %1447 = vmatpush1.bf16.xpose.msra.mxu0 0
        %1448 = vmatprep.subr.bf16.mxu0 0
        %1449 = vmatpush1.bf16.xpose.msra.mxu0 0
        %1450 = vmatprep.subr.bf16.mxu0 0
        %1451 = vmatpush1.bf16.xpose.msra.mxu0 0
        %1452 = vmatprep.subr.bf16.mxu0 0
        %1453 = vmatpush1.bf16.xpose.msra.mxu0 0
        %1454 = vmatprep.subr.bf16.mxu0 0
        %1455 = vmatpush1.bf16.xpose.msra.mxu0 0
        %1456 = vmatprep.subr.bf16.mxu0 0
        %1457 = vmatpush1.bf16.xpose.msra.mxu0 0
        %1458 = vmatprep.subr.bf16.mxu0 0
        %1459 = vmatpush1.bf16.xpose.msra.mxu0 0
        %1460 = vmatprep.subr.bf16.mxu0 0
        %1461 = vmatpush1.bf16.xpose.msra.mxu0 0
        %1462 = vmatprep.subr.bf16.mxu0 0
        %1463 = vmatpush1.bf16.xpose.msra.mxu0 0
        %1464 = vmatprep.subr.bf16.mxu0 0
        %1465 = vmatpush1.bf16.xpose.msra.mxu0 0
        %1466 = vmatprep.subr.bf16.mxu0 0
        %1467 = vmatpush1.bf16.xpose.msra.mxu0 0
        %1468 = vmatprep.subr.bf16.mxu0 0
        %1469 = vmatpush1.bf16.xpose.msra.mxu0 0
        %1470 = vmatprep.subr.bf16.mxu0 0
        %1471 = vmatpush1.bf16.xpose.msra.mxu0 0
        %1472 = vmatprep.subr.bf16.mxu0 0
        %1473 = vmatpush1.bf16.xpose.msra.mxu0 0
        %1474 = vmatprep.mubr.bf16.mxu0 0
        %1475 = vmatmul.mubr.bf16.gmra.mrb[0].mxu0 %v775
        %v1476 = vpop.f32.mrb[0].mxu0
        %v1477 = vadd.f32 0.0, %v1476
        %v1478 = vpop.f32.mrb[0].mxu0
        %v1479 = vpop.f32.mrb[0].mxu0
        %v1480 = vadd.f32 0.0, %v1479
        %v1481 = vpop.f32.mrb[0].mxu0
        %1482 = vdwg.mxu0
        %v1485 = vunpack.c.l.b16 %v1197
        %v1486 = vunpack.c.l.b16 %v1198
        %v1487 = vpack.c.b16 %v1486, %v1485
        %1489 = vmatprep.subr.bf16.mxu0 0
        %1490 = vmatpush1.bf16.xpose.msra.mxu0 %v1487
        %1491 = vmatprep.subr.bf16.mxu0 0
        %1492 = vmatpush1.bf16.xpose.msra.mxu0 0
        %1493 = vmatprep.subr.bf16.mxu0 0
        %1494 = vmatpush1.bf16.xpose.msra.mxu0 0
        %1495 = vmatprep.subr.bf16.mxu0 0
        %1496 = vmatpush1.bf16.xpose.msra.mxu0 0
        %1497 = vmatprep.subr.bf16.mxu0 0
        %1498 = vmatpush1.bf16.xpose.msra.mxu0 0
        %1499 = vmatprep.subr.bf16.mxu0 0
        %1500 = vmatpush1.bf16.xpose.msra.mxu0 0
        %1501 = vmatprep.subr.bf16.mxu0 0
        %1502 = vmatpush1.bf16.xpose.msra.mxu0 0
        %1503 = vmatprep.subr.bf16.mxu0 0
        %1504 = vmatpush1.bf16.xpose.msra.mxu0 0
        %1505 = vmatprep.subr.bf16.mxu0 0
        %1506 = vmatpush1.bf16.xpose.msra.mxu0 0
        %1507 = vmatprep.subr.bf16.mxu0 0
        %1508 = vmatpush1.bf16.xpose.msra.mxu0 0
        %1509 = vmatprep.subr.bf16.mxu0 0
        %1510 = vmatpush1.bf16.xpose.msra.mxu0 0
        %1511 = vmatprep.subr.bf16.mxu0 0
        %1512 = vmatpush1.bf16.xpose.msra.mxu0 0
        %1513 = vmatprep.subr.bf16.mxu0 0
        %1514 = vmatpush1.bf16.xpose.msra.mxu0 0
        %1515 = vmatprep.subr.bf16.mxu0 0
        %1516 = vmatpush1.bf16.xpose.msra.mxu0 0
        %1517 = vmatprep.subr.bf16.mxu0 0
        %1518 = vmatpush1.bf16.xpose.msra.mxu0 0
        %1519 = vmatprep.subr.bf16.mxu0 0
        %1520 = vmatpush1.bf16.xpose.msra.mxu0 0
        %1521 = vmatprep.mubr.bf16.mxu0 0
        %1522 = vmatmul.mubr.bf16.gmra.mrb[0].mxu0 %v775
        %v1523 = vpop.f32.mrb[0].mxu0
        %v1524 = vadd.f32 0.0, %v1523
        %v1525 = vpop.f32.mrb[0].mxu0
        %v1526 = vpop.f32.mrb[0].mxu0
        %v1527 = vadd.f32 0.0, %v1526
        %v1528 = vpop.f32.mrb[0].mxu0
        %1529 = vdwg.mxu0
        %v1532 = vunpack.c.l.b16 %v1199
        %v1533 = vunpack.c.l.b16 %v1200
        %v1534 = vpack.c.b16 %v1533, %v1532
        %1536 = vmatprep.subr.bf16.mxu0 0
        %1537 = vmatpush1.bf16.xpose.msra.mxu0 %v1534
        %1538 = vmatprep.subr.bf16.mxu0 0
        %1539 = vmatpush1.bf16.xpose.msra.mxu0 0
        %1540 = vmatprep.subr.bf16.mxu0 0
        %1541 = vmatpush1.bf16.xpose.msra.mxu0 0
        %1542 = vmatprep.subr.bf16.mxu0 0
        %1543 = vmatpush1.bf16.xpose.msra.mxu0 0
        %1544 = vmatprep.subr.bf16.mxu0 0
        %1545 = vmatpush1.bf16.xpose.msra.mxu0 0
        %1546 = vmatprep.subr.bf16.mxu0 0
        %1547 = vmatpush1.bf16.xpose.msra.mxu0 0
        %1548 = vmatprep.subr.bf16.mxu0 0
        %1549 = vmatpush1.bf16.xpose.msra.mxu0 0
        %1550 = vmatprep.subr.bf16.mxu0 0
        %1551 = vmatpush1.bf16.xpose.msra.mxu0 0
        %1552 = vmatprep.subr.bf16.mxu0 0
        %1553 = vmatpush1.bf16.xpose.msra.mxu0 0
        %1554 = vmatprep.subr.bf16.mxu0 0
        %1555 = vmatpush1.bf16.xpose.msra.mxu0 0
        %1556 = vmatprep.subr.bf16.mxu0 0
        %1557 = vmatpush1.bf16.xpose.msra.mxu0 0
        %1558 = vmatprep.subr.bf16.mxu0 0
        %1559 = vmatpush1.bf16.xpose.msra.mxu0 0
        %1560 = vmatprep.subr.bf16.mxu0 0
        %1561 = vmatpush1.bf16.xpose.msra.mxu0 0
        %1562 = vmatprep.subr.bf16.mxu0 0
        %1563 = vmatpush1.bf16.xpose.msra.mxu0 0
        %1564 = vmatprep.subr.bf16.mxu0 0
        %1565 = vmatpush1.bf16.xpose.msra.mxu0 0
        %1566 = vmatprep.subr.bf16.mxu0 0
        %1567 = vmatpush1.bf16.xpose.msra.mxu0 0
        %1568 = vmatprep.mubr.bf16.mxu0 0
        %1569 = vmatmul.mubr.bf16.gmra.mrb[0].mxu0 %v775
        %v1570 = vpop.f32.mrb[0].mxu0
        %v1571 = vadd.f32 0.0, %v1570
        %v1572 = vpop.f32.mrb[0].mxu0
        %v1573 = vpop.f32.mrb[0].mxu0
        %v1574 = vadd.f32 0.0, %v1573
        %v1575 = vpop.f32.mrb[0].mxu0
        %1576 = vdwg.mxu0
        %v1577 = vld [vmem:[%s655] sm:$0xf]
        %v1578 = vld [vmem:[%s655 + $0x4] sm:$0xf]
        %v1579 = vld [vmem:[%s655 + $0x8] sm:$0xf]
        %v1580 = vld [vmem:[%s655 + $0xc] sm:$0xf]
        %v1581 = vld [vmem:[%s655 + $0x10] sm:$0xf]
        %v1582 = vld [vmem:[%s655 + $0x14] sm:$0xf]
        %v1583 = vld [vmem:[%s655 + $0x18] sm:$0xf]
        %v1584 = vld [vmem:[%s655 + $0x1c] sm:$0xf]
        %v1585 = vld [vmem:[%s655 + $0x20] sm:$0xf]
        %v1586 = vld [vmem:[%s655 + $0x24] sm:$0xf]
        %v1587 = vld [vmem:[%s655 + $0x28] sm:$0xf]
        %v1588 = vld [vmem:[%s655 + $0x2c] sm:$0xf]
        %v1589 = vld [vmem:[%s655 + $0x30] sm:$0xf]
        %v1590 = vld [vmem:[%s655 + $0x34] sm:$0xf]
        %v1591 = vld [vmem:[%s655 + $0x38] sm:$0xf]
        %v1592 = vld [vmem:[%s655 + $0x3c] sm:$0xf]
        %v1595 = vunpack.c.l.b16 %v1577
        %v1596 = vunpack.c.l.b16 %v1578
        %v1597 = vpack.c.b16 %v1596, %v1595
        %1599 = vmatprep.subr.bf16.mxu0 0
        %1600 = vmatpush1.bf16.xpose.msra.mxu0 %v1597
        %1601 = vmatprep.subr.bf16.mxu0 0
        %1602 = vmatpush1.bf16.xpose.msra.mxu0 0
        %1603 = vmatprep.subr.bf16.mxu0 0
        %1604 = vmatpush1.bf16.xpose.msra.mxu0 0
        %1605 = vmatprep.subr.bf16.mxu0 0
        %1606 = vmatpush1.bf16.xpose.msra.mxu0 0
        %1607 = vmatprep.subr.bf16.mxu0 0
        %1608 = vmatpush1.bf16.xpose.msra.mxu0 0
        %1609 = vmatprep.subr.bf16.mxu0 0
        %1610 = vmatpush1.bf16.xpose.msra.mxu0 0
        %1611 = vmatprep.subr.bf16.mxu0 0
        %1612 = vmatpush1.bf16.xpose.msra.mxu0 0
        %1613 = vmatprep.subr.bf16.mxu0 0
        %1614 = vmatpush1.bf16.xpose.msra.mxu0 0
        %1615 = vmatprep.subr.bf16.mxu0 0
        %1616 = vmatpush1.bf16.xpose.msra.mxu0 0
        %1617 = vmatprep.subr.bf16.mxu0 0
        %1618 = vmatpush1.bf16.xpose.msra.mxu0 0
        %1619 = vmatprep.subr.bf16.mxu0 0
        %1620 = vmatpush1.bf16.xpose.msra.mxu0 0
        %1621 = vmatprep.subr.bf16.mxu0 0
        %1622 = vmatpush1.bf16.xpose.msra.mxu0 0
        %1623 = vmatprep.subr.bf16.mxu0 0
        %1624 = vmatpush1.bf16.xpose.msra.mxu0 0
        %1625 = vmatprep.subr.bf16.mxu0 0
        %1626 = vmatpush1.bf16.xpose.msra.mxu0 0
        %1627 = vmatprep.subr.bf16.mxu0 0
        %1628 = vmatpush1.bf16.xpose.msra.mxu0 0
        %1629 = vmatprep.subr.bf16.mxu0 0
        %1630 = vmatpush1.bf16.xpose.msra.mxu0 0
        %1631 = vmatprep.mubr.bf16.mxu0 0
        %1632 = vmatmul.mubr.bf16.gmra.mrb[0].mxu0 %v775
        %v1633 = vpop.f32.mrb[0].mxu0
        %v1634 = vadd.f32 0.0, %v1633
        %v1635 = vpop.f32.mrb[0].mxu0
        %v1636 = vpop.f32.mrb[0].mxu0
        %v1637 = vadd.f32 0.0, %v1636
        %v1638 = vpop.f32.mrb[0].mxu0
        %1639 = vdwg.mxu0
        %v1642 = vunpack.c.l.b16 %v1579
        %v1643 = vunpack.c.l.b16 %v1580
        %v1644 = vpack.c.b16 %v1643, %v1642
        %1646 = vmatprep.subr.bf16.mxu0 0
        %1647 = vmatpush1.bf16.xpose.msra.mxu0 %v1644
        %1648 = vmatprep.subr.bf16.mxu0 0
        %1649 = vmatpush1.bf16.xpose.msra.mxu0 0
        %1650 = vmatprep.subr.bf16.mxu0 0
        %1651 = vmatpush1.bf16.xpose.msra.mxu0 0
        %1652 = vmatprep.subr.bf16.mxu0 0
        %1653 = vmatpush1.bf16.xpose.msra.mxu0 0
        %1654 = vmatprep.subr.bf16.mxu0 0
        %1655 = vmatpush1.bf16.xpose.msra.mxu0 0
        %1656 = vmatprep.subr.bf16.mxu0 0
        %1657 = vmatpush1.bf16.xpose.msra.mxu0 0
        %1658 = vmatprep.subr.bf16.mxu0 0
        %1659 = vmatpush1.bf16.xpose.msra.mxu0 0
        %1660 = vmatprep.subr.bf16.mxu0 0
        %1661 = vmatpush1.bf16.xpose.msra.mxu0 0
        %1662 = vmatprep.subr.bf16.mxu0 0
        %1663 = vmatpush1.bf16.xpose.msra.mxu0 0
        %1664 = vmatprep.subr.bf16.mxu0 0
        %1665 = vmatpush1.bf16.xpose.msra.mxu0 0
        %1666 = vmatprep.subr.bf16.mxu0 0
        %1667 = vmatpush1.bf16.xpose.msra.mxu0 0
        %1668 = vmatprep.subr.bf16.mxu0 0
        %1669 = vmatpush1.bf16.xpose.msra.mxu0 0
        %1670 = vmatprep.subr.bf16.mxu0 0
        %1671 = vmatpush1.bf16.xpose.msra.mxu0 0
        %1672 = vmatprep.subr.bf16.mxu0 0
        %1673 = vmatpush1.bf16.xpose.msra.mxu0 0
        %1674 = vmatprep.subr.bf16.mxu0 0
        %1675 = vmatpush1.bf16.xpose.msra.mxu0 0
        %1676 = vmatprep.subr.bf16.mxu0 0
        %1677 = vmatpush1.bf16.xpose.msra.mxu0 0
        %1678 = vmatprep.mubr.bf16.mxu0 0
        %1679 = vmatmul.mubr.bf16.gmra.mrb[0].mxu0 %v775
        %v1680 = vpop.f32.mrb[0].mxu0
        %v1681 = vadd.f32 0.0, %v1680
        %v1682 = vpop.f32.mrb[0].mxu0
        %v1683 = vpop.f32.mrb[0].mxu0
        %v1684 = vadd.f32 0.0, %v1683
        %v1685 = vpop.f32.mrb[0].mxu0
        %1686 = vdwg.mxu0
        %v1689 = vunpack.c.l.b16 %v1581
        %v1690 = vunpack.c.l.b16 %v1582
        %v1691 = vpack.c.b16 %v1690, %v1689
        %1693 = vmatprep.subr.bf16.mxu0 0
        %1694 = vmatpush1.bf16.xpose.msra.mxu0 %v1691
        %1695 = vmatprep.subr.bf16.mxu0 0
        %1696 = vmatpush1.bf16.xpose.msra.mxu0 0
        %1697 = vmatprep.subr.bf16.mxu0 0
        %1698 = vmatpush1.bf16.xpose.msra.mxu0 0
        %1699 = vmatprep.subr.bf16.mxu0 0
        %1700 = vmatpush1.bf16.xpose.msra.mxu0 0
        %1701 = vmatprep.subr.bf16.mxu0 0
        %1702 = vmatpush1.bf16.xpose.msra.mxu0 0
        %1703 = vmatprep.subr.bf16.mxu0 0
        %1704 = vmatpush1.bf16.xpose.msra.mxu0 0
        %1705 = vmatprep.subr.bf16.mxu0 0
        %1706 = vmatpush1.bf16.xpose.msra.mxu0 0
        %1707 = vmatprep.subr.bf16.mxu0 0
        %1708 = vmatpush1.bf16.xpose.msra.mxu0 0
        %1709 = vmatprep.subr.bf16.mxu0 0
        %1710 = vmatpush1.bf16.xpose.msra.mxu0 0
        %1711 = vmatprep.subr.bf16.mxu0 0
        %1712 = vmatpush1.bf16.xpose.msra.mxu0 0
        %1713 = vmatprep.subr.bf16.mxu0 0
        %1714 = vmatpush1.bf16.xpose.msra.mxu0 0
        %1715 = vmatprep.subr.bf16.mxu0 0
        %1716 = vmatpush1.bf16.xpose.msra.mxu0 0
        %1717 = vmatprep.subr.bf16.mxu0 0
        %1718 = vmatpush1.bf16.xpose.msra.mxu0 0
        %1719 = vmatprep.subr.bf16.mxu0 0
        %1720 = vmatpush1.bf16.xpose.msra.mxu0 0
        %1721 = vmatprep.subr.bf16.mxu0 0
        %1722 = vmatpush1.bf16.xpose.msra.mxu0 0
        %1723 = vmatprep.subr.bf16.mxu0 0
        %1724 = vmatpush1.bf16.xpose.msra.mxu0 0
        %1725 = vmatprep.mubr.bf16.mxu0 0
        %1726 = vmatmul.mubr.bf16.gmra.mrb[0].mxu0 %v775
        %v1727 = vpop.f32.mrb[0].mxu0
        %v1728 = vadd.f32 0.0, %v1727
        %v1729 = vpop.f32.mrb[0].mxu0
        %v1730 = vpop.f32.mrb[0].mxu0
        %v1731 = vadd.f32 0.0, %v1730
        %v1732 = vpop.f32.mrb[0].mxu0
        %1733 = vdwg.mxu0
        %v1736 = vunpack.c.l.b16 %v1583
        %v1737 = vunpack.c.l.b16 %v1584
        %v1738 = vpack.c.b16 %v1737, %v1736
        %1740 = vmatprep.subr.bf16.mxu0 0
        %1741 = vmatpush1.bf16.xpose.msra.mxu0 %v1738
        %1742 = vmatprep.subr.bf16.mxu0 0
        %1743 = vmatpush1.bf16.xpose.msra.mxu0 0
        %1744 = vmatprep.subr.bf16.mxu0 0
        %1745 = vmatpush1.bf16.xpose.msra.mxu0 0
        %1746 = vmatprep.subr.bf16.mxu0 0
        %1747 = vmatpush1.bf16.xpose.msra.mxu0 0
        %1748 = vmatprep.subr.bf16.mxu0 0
        %1749 = vmatpush1.bf16.xpose.msra.mxu0 0
        %1750 = vmatprep.subr.bf16.mxu0 0
        %1751 = vmatpush1.bf16.xpose.msra.mxu0 0
        %1752 = vmatprep.subr.bf16.mxu0 0
        %1753 = vmatpush1.bf16.xpose.msra.mxu0 0
        %1754 = vmatprep.subr.bf16.mxu0 0
        %1755 = vmatpush1.bf16.xpose.msra.mxu0 0
        %1756 = vmatprep.subr.bf16.mxu0 0
        %1757 = vmatpush1.bf16.xpose.msra.mxu0 0
        %1758 = vmatprep.subr.bf16.mxu0 0
        %1759 = vmatpush1.bf16.xpose.msra.mxu0 0
        %1760 = vmatprep.subr.bf16.mxu0 0
        %1761 = vmatpush1.bf16.xpose.msra.mxu0 0
        %1762 = vmatprep.subr.bf16.mxu0 0
        %1763 = vmatpush1.bf16.xpose.msra.mxu0 0
        %1764 = vmatprep.subr.bf16.mxu0 0
        %1765 = vmatpush1.bf16.xpose.msra.mxu0 0
        %1766 = vmatprep.subr.bf16.mxu0 0
        %1767 = vmatpush1.bf16.xpose.msra.mxu0 0
        %1768 = vmatprep.subr.bf16.mxu0 0
        %1769 = vmatpush1.bf16.xpose.msra.mxu0 0
        %1770 = vmatprep.subr.bf16.mxu0 0
        %1771 = vmatpush1.bf16.xpose.msra.mxu0 0
        %1772 = vmatprep.mubr.bf16.mxu0 0
        %1773 = vmatmul.mubr.bf16.gmra.mrb[0].mxu0 %v775
        %v1774 = vpop.f32.mrb[0].mxu0
        %v1775 = vadd.f32 0.0, %v1774
        %v1776 = vpop.f32.mrb[0].mxu0
        %v1777 = vpop.f32.mrb[0].mxu0
        %v1778 = vadd.f32 0.0, %v1777
        %v1779 = vpop.f32.mrb[0].mxu0
        %1780 = vdwg.mxu0
        %v1783 = vunpack.c.l.b16 %v1585
        %v1784 = vunpack.c.l.b16 %v1586
        %v1785 = vpack.c.b16 %v1784, %v1783
        %1787 = vmatprep.subr.bf16.mxu0 0
        %1788 = vmatpush1.bf16.xpose.msra.mxu0 %v1785
        %1789 = vmatprep.subr.bf16.mxu0 0
        %1790 = vmatpush1.bf16.xpose.msra.mxu0 0
        %1791 = vmatprep.subr.bf16.mxu0 0
        %1792 = vmatpush1.bf16.xpose.msra.mxu0 0
        %1793 = vmatprep.subr.bf16.mxu0 0
        %1794 = vmatpush1.bf16.xpose.msra.mxu0 0
        %1795 = vmatprep.subr.bf16.mxu0 0
        %1796 = vmatpush1.bf16.xpose.msra.mxu0 0
        %1797 = vmatprep.subr.bf16.mxu0 0
        %1798 = vmatpush1.bf16.xpose.msra.mxu0 0
        %1799 = vmatprep.subr.bf16.mxu0 0
        %1800 = vmatpush1.bf16.xpose.msra.mxu0 0
        %1801 = vmatprep.subr.bf16.mxu0 0
        %1802 = vmatpush1.bf16.xpose.msra.mxu0 0
        %1803 = vmatprep.subr.bf16.mxu0 0
        %1804 = vmatpush1.bf16.xpose.msra.mxu0 0
        %1805 = vmatprep.subr.bf16.mxu0 0
        %1806 = vmatpush1.bf16.xpose.msra.mxu0 0
        %1807 = vmatprep.subr.bf16.mxu0 0
        %1808 = vmatpush1.bf16.xpose.msra.mxu0 0
        %1809 = vmatprep.subr.bf16.mxu0 0
        %1810 = vmatpush1.bf16.xpose.msra.mxu0 0
        %1811 = vmatprep.subr.bf16.mxu0 0
        %1812 = vmatpush1.bf16.xpose.msra.mxu0 0
        %1813 = vmatprep.subr.bf16.mxu0 0
        %1814 = vmatpush1.bf16.xpose.msra.mxu0 0
        %1815 = vmatprep.subr.bf16.mxu0 0
        %1816 = vmatpush1.bf16.xpose.msra.mxu0 0
        %1817 = vmatprep.subr.bf16.mxu0 0
        %1818 = vmatpush1.bf16.xpose.msra.mxu0 0
        %1819 = vmatprep.mubr.bf16.mxu0 0
        %1820 = vmatmul.mubr.bf16.gmra.mrb[0].mxu0 %v775
        %v1821 = vpop.f32.mrb[0].mxu0
        %v1822 = vadd.f32 0.0, %v1821
        %v1823 = vpop.f32.mrb[0].mxu0
        %v1824 = vpop.f32.mrb[0].mxu0
        %v1825 = vadd.f32 0.0, %v1824
        %v1826 = vpop.f32.mrb[0].mxu0
        %1827 = vdwg.mxu0
        %v1830 = vunpack.c.l.b16 %v1587
        %v1831 = vunpack.c.l.b16 %v1588
        %v1832 = vpack.c.b16 %v1831, %v1830
        %1834 = vmatprep.subr.bf16.mxu0 0
        %1835 = vmatpush1.bf16.xpose.msra.mxu0 %v1832
        %1836 = vmatprep.subr.bf16.mxu0 0
        %1837 = vmatpush1.bf16.xpose.msra.mxu0 0
        %1838 = vmatprep.subr.bf16.mxu0 0
        %1839 = vmatpush1.bf16.xpose.msra.mxu0 0
        %1840 = vmatprep.subr.bf16.mxu0 0
        %1841 = vmatpush1.bf16.xpose.msra.mxu0 0
        %1842 = vmatprep.subr.bf16.mxu0 0
        %1843 = vmatpush1.bf16.xpose.msra.mxu0 0
        %1844 = vmatprep.subr.bf16.mxu0 0
        %1845 = vmatpush1.bf16.xpose.msra.mxu0 0
        %1846 = vmatprep.subr.bf16.mxu0 0
        %1847 = vmatpush1.bf16.xpose.msra.mxu0 0
        %1848 = vmatprep.subr.bf16.mxu0 0
        %1849 = vmatpush1.bf16.xpose.msra.mxu0 0
        %1850 = vmatprep.subr.bf16.mxu0 0
        %1851 = vmatpush1.bf16.xpose.msra.mxu0 0
        %1852 = vmatprep.subr.bf16.mxu0 0
        %1853 = vmatpush1.bf16.xpose.msra.mxu0 0
        %1854 = vmatprep.subr.bf16.mxu0 0
        %1855 = vmatpush1.bf16.xpose.msra.mxu0 0
        %1856 = vmatprep.subr.bf16.mxu0 0
        %1857 = vmatpush1.bf16.xpose.msra.mxu0 0
        %1858 = vmatprep.subr.bf16.mxu0 0
        %1859 = vmatpush1.bf16.xpose.msra.mxu0 0
        %1860 = vmatprep.subr.bf16.mxu0 0
        %1861 = vmatpush1.bf16.xpose.msra.mxu0 0
        %1862 = vmatprep.subr.bf16.mxu0 0
        %1863 = vmatpush1.bf16.xpose.msra.mxu0 0
        %1864 = vmatprep.subr.bf16.mxu0 0
        %1865 = vmatpush1.bf16.xpose.msra.mxu0 0
        %1866 = vmatprep.mubr.bf16.mxu0 0
        %1867 = vmatmul.mubr.bf16.gmra.mrb[0].mxu0 %v775
        %v1868 = vpop.f32.mrb[0].mxu0
        %v1869 = vadd.f32 0.0, %v1868
        %v1870 = vpop.f32.mrb[0].mxu0
        %v1871 = vpop.f32.mrb[0].mxu0
        %v1872 = vadd.f32 0.0, %v1871
        %v1873 = vpop.f32.mrb[0].mxu0
        %1874 = vdwg.mxu0
        %v1877 = vunpack.c.l.b16 %v1589
        %v1878 = vunpack.c.l.b16 %v1590
        %v1879 = vpack.c.b16 %v1878, %v1877
        %1881 = vmatprep.subr.bf16.mxu0 0
        %1882 = vmatpush1.bf16.xpose.msra.mxu0 %v1879
        %1883 = vmatprep.subr.bf16.mxu0 0
        %1884 = vmatpush1.bf16.xpose.msra.mxu0 0
        %1885 = vmatprep.subr.bf16.mxu0 0
        %1886 = vmatpush1.bf16.xpose.msra.mxu0 0
        %1887 = vmatprep.subr.bf16.mxu0 0
        %1888 = vmatpush1.bf16.xpose.msra.mxu0 0
        %1889 = vmatprep.subr.bf16.mxu0 0
        %1890 = vmatpush1.bf16.xpose.msra.mxu0 0
        %1891 = vmatprep.subr.bf16.mxu0 0
        %1892 = vmatpush1.bf16.xpose.msra.mxu0 0
        %1893 = vmatprep.subr.bf16.mxu0 0
        %1894 = vmatpush1.bf16.xpose.msra.mxu0 0
        %1895 = vmatprep.subr.bf16.mxu0 0
        %1896 = vmatpush1.bf16.xpose.msra.mxu0 0
        %1897 = vmatprep.subr.bf16.mxu0 0
        %1898 = vmatpush1.bf16.xpose.msra.mxu0 0
        %1899 = vmatprep.subr.bf16.mxu0 0
        %1900 = vmatpush1.bf16.xpose.msra.mxu0 0
        %1901 = vmatprep.subr.bf16.mxu0 0
        %1902 = vmatpush1.bf16.xpose.msra.mxu0 0
        %1903 = vmatprep.subr.bf16.mxu0 0
        %1904 = vmatpush1.bf16.xpose.msra.mxu0 0
        %1905 = vmatprep.subr.bf16.mxu0 0
        %1906 = vmatpush1.bf16.xpose.msra.mxu0 0
        %1907 = vmatprep.subr.bf16.mxu0 0
        %1908 = vmatpush1.bf16.xpose.msra.mxu0 0
        %1909 = vmatprep.subr.bf16.mxu0 0
        %1910 = vmatpush1.bf16.xpose.msra.mxu0 0
        %1911 = vmatprep.subr.bf16.mxu0 0
        %1912 = vmatpush1.bf16.xpose.msra.mxu0 0
        %1913 = vmatprep.mubr.bf16.mxu0 0
        %1914 = vmatmul.mubr.bf16.gmra.mrb[0].mxu0 %v775
        %v1915 = vpop.f32.mrb[0].mxu0
        %v1916 = vadd.f32 0.0, %v1915
        %v1917 = vpop.f32.mrb[0].mxu0
        %v1918 = vpop.f32.mrb[0].mxu0
        %v1919 = vadd.f32 0.0, %v1918
        %v1920 = vpop.f32.mrb[0].mxu0
        %1921 = vdwg.mxu0
        %v1924 = vunpack.c.l.b16 %v1591
        %v1925 = vunpack.c.l.b16 %v1592
        %v1926 = vpack.c.b16 %v1925, %v1924
        %1928 = vmatprep.subr.bf16.mxu0 0
        %1929 = vmatpush1.bf16.xpose.msra.mxu0 %v1926
        %1930 = vmatprep.subr.bf16.mxu0 0
        %1931 = vmatpush1.bf16.xpose.msra.mxu0 0
        %1932 = vmatprep.subr.bf16.mxu0 0
        %1933 = vmatpush1.bf16.xpose.msra.mxu0 0
        %1934 = vmatprep.subr.bf16.mxu0 0
        %1935 = vmatpush1.bf16.xpose.msra.mxu0 0
        %1936 = vmatprep.subr.bf16.mxu0 0
        %1937 = vmatpush1.bf16.xpose.msra.mxu0 0
        %1938 = vmatprep.subr.bf16.mxu0 0
        %1939 = vmatpush1.bf16.xpose.msra.mxu0 0
        %1940 = vmatprep.subr.bf16.mxu0 0
        %1941 = vmatpush1.bf16.xpose.msra.mxu0 0
        %1942 = vmatprep.subr.bf16.mxu0 0
        %1943 = vmatpush1.bf16.xpose.msra.mxu0 0
        %1944 = vmatprep.subr.bf16.mxu0 0
        %1945 = vmatpush1.bf16.xpose.msra.mxu0 0
        %1946 = vmatprep.subr.bf16.mxu0 0
        %1947 = vmatpush1.bf16.xpose.msra.mxu0 0
        %1948 = vmatprep.subr.bf16.mxu0 0
        %1949 = vmatpush1.bf16.xpose.msra.mxu0 0
        %1950 = vmatprep.subr.bf16.mxu0 0
        %1951 = vmatpush1.bf16.xpose.msra.mxu0 0
        %1952 = vmatprep.subr.bf16.mxu0 0
        %1953 = vmatpush1.bf16.xpose.msra.mxu0 0
        %1954 = vmatprep.subr.bf16.mxu0 0
        %1955 = vmatpush1.bf16.xpose.msra.mxu0 0
        %1956 = vmatprep.subr.bf16.mxu0 0
        %1957 = vmatpush1.bf16.xpose.msra.mxu0 0
        %1958 = vmatprep.subr.bf16.mxu0 0
        %1959 = vmatpush1.bf16.xpose.msra.mxu0 0
        %1960 = vmatprep.mubr.bf16.mxu0 0
        %1961 = vmatmul.mubr.bf16.gmra.mrb[0].mxu0 %v775
        %v1962 = vpop.f32.mrb[0].mxu0
        %v1963 = vadd.f32 0.0, %v1962
        %v1964 = vpop.f32.mrb[0].mxu0
        %v1965 = vpop.f32.mrb[0].mxu0
        %v1966 = vadd.f32 0.0, %v1965
        %v1967 = vpop.f32.mrb[0].mxu0
        %1968 = vdwg.mxu0
        %v1969 = vld [vmem:[%s3] sm:$0xff]
        %v1970 = vld [vmem:[%s3 + $0x8] sm:$0xff]
        %vm1971 = vcmask 130048
        %v1973 = vsel %vm1971, %v850, 0
        %v1976 = vsel %vm1971, %v853, 0
        %v1979 = vsel %vm1971, %v1242, 0
        %v1982 = vsel %vm1971, %v1245, 0
        %1984 = vmatprep.subr.mxu0 0.0
        %1985 = vmatpush1.xpose.msra.mxu0 %v1979
        %1986 = vmatprep.subr.mxu0 0.0
        %1987 = vmatpush1.xpose.msra.mxu0 %v1982
        %1988 = vmatprep.subr.mxu0 0.0
        %1989 = vmatpush1.xpose.msra.mxu0 0.0
        %1990 = vmatprep.subr.mxu0 0.0
        %1991 = vmatpush1.xpose.msra.mxu0 0.0
        %1992 = vmatprep.subr.mxu0 0.0
        %1993 = vmatpush1.xpose.msra.mxu0 0.0
        %1994 = vmatprep.subr.mxu0 0.0
        %1995 = vmatpush1.xpose.msra.mxu0 0.0
        %1996 = vmatprep.subr.mxu0 0.0
        %1997 = vmatpush1.xpose.msra.mxu0 0.0
        %1998 = vmatprep.subr.mxu0 0.0
        %1999 = vmatpush1.xpose.msra.mxu0 0.0
        %2000 = vmatprep.subr.mxu0 0.0
        %2001 = vmatpush1.xpose.msra.mxu0 0.0
        %2002 = vmatprep.subr.mxu0 0.0
        %2003 = vmatpush1.xpose.msra.mxu0 0.0
        %2004 = vmatprep.subr.mxu0 0.0
        %2005 = vmatpush1.xpose.msra.mxu0 0.0
        %2006 = vmatprep.subr.mxu0 0.0
        %2007 = vmatpush1.xpose.msra.mxu0 0.0
        %2008 = vmatprep.subr.mxu0 0.0
        %2009 = vmatpush1.xpose.msra.mxu0 0.0
        %2010 = vmatprep.subr.mxu0 0.0
        %2011 = vmatpush1.xpose.msra.mxu0 0.0
        %2012 = vmatprep.subr.mxu0 0.0
        %2013 = vmatpush1.xpose.msra.mxu0 0.0
        %2014 = vmatprep.subr.mxu0 0.0
        %2015 = vmatpush1.xpose.msra.mxu0 0.0
        %2016 = vmatprep.subr.mxu0 0.0
        %2017 = vmatpush1.xpose.msra.mxu0 0.0
        %2018 = vmatprep.subr.mxu0 0.0
        %2019 = vmatpush1.xpose.msra.mxu0 0.0
        %2020 = vmatprep.subr.mxu0 0.0
        %2021 = vmatpush1.xpose.msra.mxu0 0.0
        %2022 = vmatprep.subr.mxu0 0.0
        %2023 = vmatpush1.xpose.msra.mxu0 0.0
        %2024 = vmatprep.subr.mxu0 0.0
        %2025 = vmatpush1.xpose.msra.mxu0 0.0
        %2026 = vmatprep.subr.mxu0 0.0
        %2027 = vmatpush1.xpose.msra.mxu0 0.0
        %2028 = vmatprep.subr.mxu0 0.0
        %2029 = vmatpush1.xpose.msra.mxu0 0.0
        %2030 = vmatprep.subr.mxu0 0.0
        %2031 = vmatpush1.xpose.msra.mxu0 0.0
        %2032 = vmatprep.subr.mxu0 0.0
        %2033 = vmatpush1.xpose.msra.mxu0 0.0
        %2034 = vmatprep.subr.mxu0 0.0
        %2035 = vmatpush1.xpose.msra.mxu0 0.0
        %2036 = vmatprep.subr.mxu0 0.0
        %2037 = vmatpush1.xpose.msra.mxu0 0.0
        %2038 = vmatprep.subr.mxu0 0.0
        %2039 = vmatpush1.xpose.msra.mxu0 0.0
        %2040 = vmatprep.subr.mxu0 0.0
        %2041 = vmatpush1.xpose.msra.mxu0 0.0
        %2042 = vmatprep.subr.mxu0 0.0
        %2043 = vmatpush1.xpose.msra.mxu0 0.0
        %2044 = vmatprep.subr.mxu0 0.0
        %2045 = vmatpush1.xpose.msra.mxu0 0.0
        %2046 = vmatprep.subr.mxu0 0.0
        %2047 = vmatpush1.xpose.msra.mxu0 0.0
        %2048 = vmatprep.mubr.f32.mxu0 0.0
        %2049 = vmatmul.mubr.f32.gmra.mrb[0].mxu0 %v1973
        %v2050 = vpop.f32.mrb[0].mxu0
        %v2051 = vadd.f32 %v1969, %v2050
        %v2052 = vpop.f32.mrb[0].mxu0
        %2053 = vmatprep.mubr.f32.mxu0 0.0
        %2054 = vmatmul.mubr.f32.gmra.mrb[0].mxu0 %v1976
        %v2055 = vpop.f32.mrb[0].mxu0
        %v2056 = vadd.f32 %v1970, %v2055
        %v2057 = vpop.f32.mrb[0].mxu0
        %2058 = vdwg.mxu0
        %v2060 = vsel %vm1971, %v897, 0
        %v2063 = vsel %vm1971, %v900, 0
        %v2066 = vsel %vm1971, %v1289, 0
        %v2069 = vsel %vm1971, %v1292, 0
        %2071 = vmatprep.subr.mxu0 0.0
        %2072 = vmatpush1.xpose.msra.mxu0 %v2066
        %2073 = vmatprep.subr.mxu0 0.0
        %2074 = vmatpush1.xpose.msra.mxu0 %v2069
        %2075 = vmatprep.subr.mxu0 0.0
        %2076 = vmatpush1.xpose.msra.mxu0 0.0
        %2077 = vmatprep.subr.mxu0 0.0
        %2078 = vmatpush1.xpose.msra.mxu0 0.0
        %2079 = vmatprep.subr.mxu0 0.0
        %2080 = vmatpush1.xpose.msra.mxu0 0.0
        %2081 = vmatprep.subr.mxu0 0.0
        %2082 = vmatpush1.xpose.msra.mxu0 0.0
        %2083 = vmatprep.subr.mxu0 0.0
        %2084 = vmatpush1.xpose.msra.mxu0 0.0
        %2085 = vmatprep.subr.mxu0 0.0
        %2086 = vmatpush1.xpose.msra.mxu0 0.0
        %2087 = vmatprep.subr.mxu0 0.0
        %2088 = vmatpush1.xpose.msra.mxu0 0.0
        %2089 = vmatprep.subr.mxu0 0.0
        %2090 = vmatpush1.xpose.msra.mxu0 0.0
        %2091 = vmatprep.subr.mxu0 0.0
        %2092 = vmatpush1.xpose.msra.mxu0 0.0
        %2093 = vmatprep.subr.mxu0 0.0
        %2094 = vmatpush1.xpose.msra.mxu0 0.0
        %2095 = vmatprep.subr.mxu0 0.0
        %2096 = vmatpush1.xpose.msra.mxu0 0.0
        %2097 = vmatprep.subr.mxu0 0.0
        %2098 = vmatpush1.xpose.msra.mxu0 0.0
        %2099 = vmatprep.subr.mxu0 0.0
        %2100 = vmatpush1.xpose.msra.mxu0 0.0
        %2101 = vmatprep.subr.mxu0 0.0
        %2102 = vmatpush1.xpose.msra.mxu0 0.0
        %2103 = vmatprep.subr.mxu0 0.0
        %2104 = vmatpush1.xpose.msra.mxu0 0.0
        %2105 = vmatprep.subr.mxu0 0.0
        %2106 = vmatpush1.xpose.msra.mxu0 0.0
        %2107 = vmatprep.subr.mxu0 0.0
        %2108 = vmatpush1.xpose.msra.mxu0 0.0
        %2109 = vmatprep.subr.mxu0 0.0
        %2110 = vmatpush1.xpose.msra.mxu0 0.0
        %2111 = vmatprep.subr.mxu0 0.0
        %2112 = vmatpush1.xpose.msra.mxu0 0.0
        %2113 = vmatprep.subr.mxu0 0.0
        %2114 = vmatpush1.xpose.msra.mxu0 0.0
        %2115 = vmatprep.subr.mxu0 0.0
        %2116 = vmatpush1.xpose.msra.mxu0 0.0
        %2117 = vmatprep.subr.mxu0 0.0
        %2118 = vmatpush1.xpose.msra.mxu0 0.0
        %2119 = vmatprep.subr.mxu0 0.0
        %2120 = vmatpush1.xpose.msra.mxu0 0.0
        %2121 = vmatprep.subr.mxu0 0.0
        %2122 = vmatpush1.xpose.msra.mxu0 0.0
        %2123 = vmatprep.subr.mxu0 0.0
        %2124 = vmatpush1.xpose.msra.mxu0 0.0
        %2125 = vmatprep.subr.mxu0 0.0
        %2126 = vmatpush1.xpose.msra.mxu0 0.0
        %2127 = vmatprep.subr.mxu0 0.0
        %2128 = vmatpush1.xpose.msra.mxu0 0.0
        %2129 = vmatprep.subr.mxu0 0.0
        %2130 = vmatpush1.xpose.msra.mxu0 0.0
        %2131 = vmatprep.subr.mxu0 0.0
        %2132 = vmatpush1.xpose.msra.mxu0 0.0
        %2133 = vmatprep.subr.mxu0 0.0
        %2134 = vmatpush1.xpose.msra.mxu0 0.0
        %2135 = vmatprep.mubr.f32.mxu0 0.0
        %2136 = vmatmul.mubr.f32.gmra.mrb[0].mxu0 %v2060
        %v2137 = vpop.f32.mrb[0].mxu0
        %v2138 = vadd.f32 %v1969, %v2137
        %v2139 = vpop.f32.mrb[0].mxu0
        %2140 = vmatprep.mubr.f32.mxu0 0.0
        %2141 = vmatmul.mubr.f32.gmra.mrb[0].mxu0 %v2063
        %v2142 = vpop.f32.mrb[0].mxu0
        %v2143 = vadd.f32 %v1970, %v2142
        %v2144 = vpop.f32.mrb[0].mxu0
        %2145 = vdwg.mxu0
        %v2147 = vsel %vm1971, %v944, 0
        %v2150 = vsel %vm1971, %v947, 0
        %v2153 = vsel %vm1971, %v1336, 0
        %v2156 = vsel %vm1971, %v1339, 0
        %2158 = vmatprep.subr.mxu0 0.0
        %2159 = vmatpush1.xpose.msra.mxu0 %v2153
        %2160 = vmatprep.subr.mxu0 0.0
        %2161 = vmatpush1.xpose.msra.mxu0 %v2156
        %2162 = vmatprep.subr.mxu0 0.0
        %2163 = vmatpush1.xpose.msra.mxu0 0.0
        %2164 = vmatprep.subr.mxu0 0.0
        %2165 = vmatpush1.xpose.msra.mxu0 0.0
        %2166 = vmatprep.subr.mxu0 0.0
        %2167 = vmatpush1.xpose.msra.mxu0 0.0
        %2168 = vmatprep.subr.mxu0 0.0
        %2169 = vmatpush1.xpose.msra.mxu0 0.0
        %2170 = vmatprep.subr.mxu0 0.0
        %2171 = vmatpush1.xpose.msra.mxu0 0.0
        %2172 = vmatprep.subr.mxu0 0.0
        %2173 = vmatpush1.xpose.msra.mxu0 0.0
        %2174 = vmatprep.subr.mxu0 0.0
        %2175 = vmatpush1.xpose.msra.mxu0 0.0
        %2176 = vmatprep.subr.mxu0 0.0
        %2177 = vmatpush1.xpose.msra.mxu0 0.0
        %2178 = vmatprep.subr.mxu0 0.0
        %2179 = vmatpush1.xpose.msra.mxu0 0.0
        %2180 = vmatprep.subr.mxu0 0.0
        %2181 = vmatpush1.xpose.msra.mxu0 0.0
        %2182 = vmatprep.subr.mxu0 0.0
        %2183 = vmatpush1.xpose.msra.mxu0 0.0
        %2184 = vmatprep.subr.mxu0 0.0
        %2185 = vmatpush1.xpose.msra.mxu0 0.0
        %2186 = vmatprep.subr.mxu0 0.0
        %2187 = vmatpush1.xpose.msra.mxu0 0.0
        %2188 = vmatprep.subr.mxu0 0.0
        %2189 = vmatpush1.xpose.msra.mxu0 0.0
        %2190 = vmatprep.subr.mxu0 0.0
        %2191 = vmatpush1.xpose.msra.mxu0 0.0
        %2192 = vmatprep.subr.mxu0 0.0
        %2193 = vmatpush1.xpose.msra.mxu0 0.0
        %2194 = vmatprep.subr.mxu0 0.0
        %2195 = vmatpush1.xpose.msra.mxu0 0.0
        %2196 = vmatprep.subr.mxu0 0.0
        %2197 = vmatpush1.xpose.msra.mxu0 0.0
        %2198 = vmatprep.subr.mxu0 0.0
        %2199 = vmatpush1.xpose.msra.mxu0 0.0
        %2200 = vmatprep.subr.mxu0 0.0
        %2201 = vmatpush1.xpose.msra.mxu0 0.0
        %2202 = vmatprep.subr.mxu0 0.0
        %2203 = vmatpush1.xpose.msra.mxu0 0.0
        %2204 = vmatprep.subr.mxu0 0.0
        %2205 = vmatpush1.xpose.msra.mxu0 0.0
        %2206 = vmatprep.subr.mxu0 0.0
        %2207 = vmatpush1.xpose.msra.mxu0 0.0
        %2208 = vmatprep.subr.mxu0 0.0
        %2209 = vmatpush1.xpose.msra.mxu0 0.0
        %2210 = vmatprep.subr.mxu0 0.0
        %2211 = vmatpush1.xpose.msra.mxu0 0.0
        %2212 = vmatprep.subr.mxu0 0.0
        %2213 = vmatpush1.xpose.msra.mxu0 0.0
        %2214 = vmatprep.subr.mxu0 0.0
        %2215 = vmatpush1.xpose.msra.mxu0 0.0
        %2216 = vmatprep.subr.mxu0 0.0
        %2217 = vmatpush1.xpose.msra.mxu0 0.0
        %2218 = vmatprep.subr.mxu0 0.0
        %2219 = vmatpush1.xpose.msra.mxu0 0.0
        %2220 = vmatprep.subr.mxu0 0.0
        %2221 = vmatpush1.xpose.msra.mxu0 0.0
        %2222 = vmatprep.mubr.f32.mxu0 0.0
        %2223 = vmatmul.mubr.f32.gmra.mrb[0].mxu0 %v2147
        %v2224 = vpop.f32.mrb[0].mxu0
        %v2225 = vadd.f32 %v1969, %v2224
        %v2226 = vpop.f32.mrb[0].mxu0
        %2227 = vmatprep.mubr.f32.mxu0 0.0
        %2228 = vmatmul.mubr.f32.gmra.mrb[0].mxu0 %v2150
        %v2229 = vpop.f32.mrb[0].mxu0
        %v2230 = vadd.f32 %v1970, %v2229
        %v2231 = vpop.f32.mrb[0].mxu0
        %2232 = vdwg.mxu0
        %v2234 = vsel %vm1971, %v991, 0
        %v2237 = vsel %vm1971, %v994, 0
        %v2240 = vsel %vm1971, %v1383, 0
        %v2243 = vsel %vm1971, %v1386, 0
        %2245 = vmatprep.subr.mxu0 0.0
        %2246 = vmatpush1.xpose.msra.mxu0 %v2240
        %2247 = vmatprep.subr.mxu0 0.0
        %2248 = vmatpush1.xpose.msra.mxu0 %v2243
        %2249 = vmatprep.subr.mxu0 0.0
        %2250 = vmatpush1.xpose.msra.mxu0 0.0
        %2251 = vmatprep.subr.mxu0 0.0
        %2252 = vmatpush1.xpose.msra.mxu0 0.0
        %2253 = vmatprep.subr.mxu0 0.0
        %2254 = vmatpush1.xpose.msra.mxu0 0.0
        %2255 = vmatprep.subr.mxu0 0.0
        %2256 = vmatpush1.xpose.msra.mxu0 0.0
        %2257 = vmatprep.subr.mxu0 0.0
        %2258 = vmatpush1.xpose.msra.mxu0 0.0
        %2259 = vmatprep.subr.mxu0 0.0
        %2260 = vmatpush1.xpose.msra.mxu0 0.0
        %2261 = vmatprep.subr.mxu0 0.0
        %2262 = vmatpush1.xpose.msra.mxu0 0.0
        %2263 = vmatprep.subr.mxu0 0.0
        %2264 = vmatpush1.xpose.msra.mxu0 0.0
        %2265 = vmatprep.subr.mxu0 0.0
        %2266 = vmatpush1.xpose.msra.mxu0 0.0
        %2267 = vmatprep.subr.mxu0 0.0
        %2268 = vmatpush1.xpose.msra.mxu0 0.0
        %2269 = vmatprep.subr.mxu0 0.0
        %2270 = vmatpush1.xpose.msra.mxu0 0.0
        %2271 = vmatprep.subr.mxu0 0.0
        %2272 = vmatpush1.xpose.msra.mxu0 0.0
        %2273 = vmatprep.subr.mxu0 0.0
        %2274 = vmatpush1.xpose.msra.mxu0 0.0
        %2275 = vmatprep.subr.mxu0 0.0
        %2276 = vmatpush1.xpose.msra.mxu0 0.0
        %2277 = vmatprep.subr.mxu0 0.0
        %2278 = vmatpush1.xpose.msra.mxu0 0.0
        %2279 = vmatprep.subr.mxu0 0.0
        %2280 = vmatpush1.xpose.msra.mxu0 0.0
        %2281 = vmatprep.subr.mxu0 0.0
        %2282 = vmatpush1.xpose.msra.mxu0 0.0
        %2283 = vmatprep.subr.mxu0 0.0
        %2284 = vmatpush1.xpose.msra.mxu0 0.0
        %2285 = vmatprep.subr.mxu0 0.0
        %2286 = vmatpush1.xpose.msra.mxu0 0.0
        %2287 = vmatprep.subr.mxu0 0.0
        %2288 = vmatpush1.xpose.msra.mxu0 0.0
        %2289 = vmatprep.subr.mxu0 0.0
        %2290 = vmatpush1.xpose.msra.mxu0 0.0
        %2291 = vmatprep.subr.mxu0 0.0
        %2292 = vmatpush1.xpose.msra.mxu0 0.0
        %2293 = vmatprep.subr.mxu0 0.0
        %2294 = vmatpush1.xpose.msra.mxu0 0.0
        %2295 = vmatprep.subr.mxu0 0.0
        %2296 = vmatpush1.xpose.msra.mxu0 0.0
        %2297 = vmatprep.subr.mxu0 0.0
        %2298 = vmatpush1.xpose.msra.mxu0 0.0
        %2299 = vmatprep.subr.mxu0 0.0
        %2300 = vmatpush1.xpose.msra.mxu0 0.0
        %2301 = vmatprep.subr.mxu0 0.0
        %2302 = vmatpush1.xpose.msra.mxu0 0.0
        %2303 = vmatprep.subr.mxu0 0.0
        %2304 = vmatpush1.xpose.msra.mxu0 0.0
        %2305 = vmatprep.subr.mxu0 0.0
        %2306 = vmatpush1.xpose.msra.mxu0 0.0
        %2307 = vmatprep.subr.mxu0 0.0
        %2308 = vmatpush1.xpose.msra.mxu0 0.0
        %2309 = vmatprep.mubr.f32.mxu0 0.0
        %2310 = vmatmul.mubr.f32.gmra.mrb[0].mxu0 %v2234
        %v2311 = vpop.f32.mrb[0].mxu0
        %v2312 = vadd.f32 %v1969, %v2311
        %v2313 = vpop.f32.mrb[0].mxu0
        %2314 = vmatprep.mubr.f32.mxu0 0.0
        %2315 = vmatmul.mubr.f32.gmra.mrb[0].mxu0 %v2237
        %v2316 = vpop.f32.mrb[0].mxu0
        %v2317 = vadd.f32 %v1970, %v2316
        %v2318 = vpop.f32.mrb[0].mxu0
        %2319 = vdwg.mxu0
        %v2321 = vsel %vm1971, %v1038, 0
        %v2324 = vsel %vm1971, %v1041, 0
        %v2327 = vsel %vm1971, %v1430, 0
        %v2330 = vsel %vm1971, %v1433, 0
        %2332 = vmatprep.subr.mxu0 0.0
        %2333 = vmatpush1.xpose.msra.mxu0 %v2327
        %2334 = vmatprep.subr.mxu0 0.0
        %2335 = vmatpush1.xpose.msra.mxu0 %v2330
        %2336 = vmatprep.subr.mxu0 0.0
        %2337 = vmatpush1.xpose.msra.mxu0 0.0
        %2338 = vmatprep.subr.mxu0 0.0
        %2339 = vmatpush1.xpose.msra.mxu0 0.0
        %2340 = vmatprep.subr.mxu0 0.0
        %2341 = vmatpush1.xpose.msra.mxu0 0.0
        %2342 = vmatprep.subr.mxu0 0.0
        %2343 = vmatpush1.xpose.msra.mxu0 0.0
        %2344 = vmatprep.subr.mxu0 0.0
        %2345 = vmatpush1.xpose.msra.mxu0 0.0
        %2346 = vmatprep.subr.mxu0 0.0
        %2347 = vmatpush1.xpose.msra.mxu0 0.0
        %2348 = vmatprep.subr.mxu0 0.0
        %2349 = vmatpush1.xpose.msra.mxu0 0.0
        %2350 = vmatprep.subr.mxu0 0.0
        %2351 = vmatpush1.xpose.msra.mxu0 0.0
        %2352 = vmatprep.subr.mxu0 0.0
        %2353 = vmatpush1.xpose.msra.mxu0 0.0
        %2354 = vmatprep.subr.mxu0 0.0
        %2355 = vmatpush1.xpose.msra.mxu0 0.0
        %2356 = vmatprep.subr.mxu0 0.0
        %2357 = vmatpush1.xpose.msra.mxu0 0.0
        %2358 = vmatprep.subr.mxu0 0.0
        %2359 = vmatpush1.xpose.msra.mxu0 0.0
        %2360 = vmatprep.subr.mxu0 0.0
        %2361 = vmatpush1.xpose.msra.mxu0 0.0
        %2362 = vmatprep.subr.mxu0 0.0
        %2363 = vmatpush1.xpose.msra.mxu0 0.0
        %2364 = vmatprep.subr.mxu0 0.0
        %2365 = vmatpush1.xpose.msra.mxu0 0.0
        %2366 = vmatprep.subr.mxu0 0.0
        %2367 = vmatpush1.xpose.msra.mxu0 0.0
        %2368 = vmatprep.subr.mxu0 0.0
        %2369 = vmatpush1.xpose.msra.mxu0 0.0
        %2370 = vmatprep.subr.mxu0 0.0
        %2371 = vmatpush1.xpose.msra.mxu0 0.0
        %2372 = vmatprep.subr.mxu0 0.0
        %2373 = vmatpush1.xpose.msra.mxu0 0.0
        %2374 = vmatprep.subr.mxu0 0.0
        %2375 = vmatpush1.xpose.msra.mxu0 0.0
        %2376 = vmatprep.subr.mxu0 0.0
        %2377 = vmatpush1.xpose.msra.mxu0 0.0
        %2378 = vmatprep.subr.mxu0 0.0
        %2379 = vmatpush1.xpose.msra.mxu0 0.0
        %2380 = vmatprep.subr.mxu0 0.0
        %2381 = vmatpush1.xpose.msra.mxu0 0.0
        %2382 = vmatprep.subr.mxu0 0.0
        %2383 = vmatpush1.xpose.msra.mxu0 0.0
        %2384 = vmatprep.subr.mxu0 0.0
        %2385 = vmatpush1.xpose.msra.mxu0 0.0
        %2386 = vmatprep.subr.mxu0 0.0
        %2387 = vmatpush1.xpose.msra.mxu0 0.0
        %2388 = vmatprep.subr.mxu0 0.0
        %2389 = vmatpush1.xpose.msra.mxu0 0.0
        %2390 = vmatprep.subr.mxu0 0.0
        %2391 = vmatpush1.xpose.msra.mxu0 0.0
        %2392 = vmatprep.subr.mxu0 0.0
        %2393 = vmatpush1.xpose.msra.mxu0 0.0
        %2394 = vmatprep.subr.mxu0 0.0
        %2395 = vmatpush1.xpose.msra.mxu0 0.0
        %2396 = vmatprep.mubr.f32.mxu0 0.0
        %2397 = vmatmul.mubr.f32.gmra.mrb[0].mxu0 %v2321
        %v2398 = vpop.f32.mrb[0].mxu0
        %v2399 = vadd.f32 %v1969, %v2398
        %v2400 = vpop.f32.mrb[0].mxu0
        %2401 = vmatprep.mubr.f32.mxu0 0.0
        %2402 = vmatmul.mubr.f32.gmra.mrb[0].mxu0 %v2324
        %v2403 = vpop.f32.mrb[0].mxu0
        %v2404 = vadd.f32 %v1970, %v2403
        %v2405 = vpop.f32.mrb[0].mxu0
        %2406 = vdwg.mxu0
        %v2408 = vsel %vm1971, %v1085, 0
        %v2411 = vsel %vm1971, %v1088, 0
        %v2414 = vsel %vm1971, %v1477, 0
        %v2417 = vsel %vm1971, %v1480, 0
        %2419 = vmatprep.subr.mxu0 0.0
        %2420 = vmatpush1.xpose.msra.mxu0 %v2414
        %2421 = vmatprep.subr.mxu0 0.0
        %2422 = vmatpush1.xpose.msra.mxu0 %v2417
        %2423 = vmatprep.subr.mxu0 0.0
        %2424 = vmatpush1.xpose.msra.mxu0 0.0
        %2425 = vmatprep.subr.mxu0 0.0
        %2426 = vmatpush1.xpose.msra.mxu0 0.0
        %2427 = vmatprep.subr.mxu0 0.0
        %2428 = vmatpush1.xpose.msra.mxu0 0.0
        %2429 = vmatprep.subr.mxu0 0.0
        %2430 = vmatpush1.xpose.msra.mxu0 0.0
        %2431 = vmatprep.subr.mxu0 0.0
        %2432 = vmatpush1.xpose.msra.mxu0 0.0
        %2433 = vmatprep.subr.mxu0 0.0
        %2434 = vmatpush1.xpose.msra.mxu0 0.0
        %2435 = vmatprep.subr.mxu0 0.0
        %2436 = vmatpush1.xpose.msra.mxu0 0.0
        %2437 = vmatprep.subr.mxu0 0.0
        %2438 = vmatpush1.xpose.msra.mxu0 0.0
        %2439 = vmatprep.subr.mxu0 0.0
        %2440 = vmatpush1.xpose.msra.mxu0 0.0
        %2441 = vmatprep.subr.mxu0 0.0
        %2442 = vmatpush1.xpose.msra.mxu0 0.0
        %2443 = vmatprep.subr.mxu0 0.0
        %2444 = vmatpush1.xpose.msra.mxu0 0.0
        %2445 = vmatprep.subr.mxu0 0.0
        %2446 = vmatpush1.xpose.msra.mxu0 0.0
        %2447 = vmatprep.subr.mxu0 0.0
        %2448 = vmatpush1.xpose.msra.mxu0 0.0
        %2449 = vmatprep.subr.mxu0 0.0
        %2450 = vmatpush1.xpose.msra.mxu0 0.0
        %2451 = vmatprep.subr.mxu0 0.0
        %2452 = vmatpush1.xpose.msra.mxu0 0.0
        %2453 = vmatprep.subr.mxu0 0.0
        %2454 = vmatpush1.xpose.msra.mxu0 0.0
        %2455 = vmatprep.subr.mxu0 0.0
        %2456 = vmatpush1.xpose.msra.mxu0 0.0
        %2457 = vmatprep.subr.mxu0 0.0
        %2458 = vmatpush1.xpose.msra.mxu0 0.0
        %2459 = vmatprep.subr.mxu0 0.0
        %2460 = vmatpush1.xpose.msra.mxu0 0.0
        %2461 = vmatprep.subr.mxu0 0.0
        %2462 = vmatpush1.xpose.msra.mxu0 0.0
        %2463 = vmatprep.subr.mxu0 0.0
        %2464 = vmatpush1.xpose.msra.mxu0 0.0
        %2465 = vmatprep.subr.mxu0 0.0
        %2466 = vmatpush1.xpose.msra.mxu0 0.0
        %2467 = vmatprep.subr.mxu0 0.0
        %2468 = vmatpush1.xpose.msra.mxu0 0.0
        %2469 = vmatprep.subr.mxu0 0.0
        %2470 = vmatpush1.xpose.msra.mxu0 0.0
        %2471 = vmatprep.subr.mxu0 0.0
        %2472 = vmatpush1.xpose.msra.mxu0 0.0
        %2473 = vmatprep.subr.mxu0 0.0
        %2474 = vmatpush1.xpose.msra.mxu0 0.0
        %2475 = vmatprep.subr.mxu0 0.0
        %2476 = vmatpush1.xpose.msra.mxu0 0.0
        %2477 = vmatprep.subr.mxu0 0.0
        %2478 = vmatpush1.xpose.msra.mxu0 0.0
        %2479 = vmatprep.subr.mxu0 0.0
        %2480 = vmatpush1.xpose.msra.mxu0 0.0
        %2481 = vmatprep.subr.mxu0 0.0
        %2482 = vmatpush1.xpose.msra.mxu0 0.0
        %2483 = vmatprep.mubr.f32.mxu0 0.0
        %2484 = vmatmul.mubr.f32.gmra.mrb[0].mxu0 %v2408
        %v2485 = vpop.f32.mrb[0].mxu0
        %v2486 = vadd.f32 %v1969, %v2485
        %v2487 = vpop.f32.mrb[0].mxu0
        %2488 = vmatprep.mubr.f32.mxu0 0.0
        %2489 = vmatmul.mubr.f32.gmra.mrb[0].mxu0 %v2411
        %v2490 = vpop.f32.mrb[0].mxu0
        %v2491 = vadd.f32 %v1970, %v2490
        %v2492 = vpop.f32.mrb[0].mxu0
        %2493 = vdwg.mxu0
        %v2495 = vsel %vm1971, %v1132, 0
        %v2498 = vsel %vm1971, %v1135, 0
        %v2501 = vsel %vm1971, %v1524, 0
        %v2504 = vsel %vm1971, %v1527, 0
        %2506 = vmatprep.subr.mxu0 0.0
        %2507 = vmatpush1.xpose.msra.mxu0 %v2501
        %2508 = vmatprep.subr.mxu0 0.0
        %2509 = vmatpush1.xpose.msra.mxu0 %v2504
        %2510 = vmatprep.subr.mxu0 0.0
        %2511 = vmatpush1.xpose.msra.mxu0 0.0
        %2512 = vmatprep.subr.mxu0 0.0
        %2513 = vmatpush1.xpose.msra.mxu0 0.0
        %2514 = vmatprep.subr.mxu0 0.0
        %2515 = vmatpush1.xpose.msra.mxu0 0.0
        %2516 = vmatprep.subr.mxu0 0.0
        %2517 = vmatpush1.xpose.msra.mxu0 0.0
        %2518 = vmatprep.subr.mxu0 0.0
        %2519 = vmatpush1.xpose.msra.mxu0 0.0
        %2520 = vmatprep.subr.mxu0 0.0
        %2521 = vmatpush1.xpose.msra.mxu0 0.0
        %2522 = vmatprep.subr.mxu0 0.0
        %2523 = vmatpush1.xpose.msra.mxu0 0.0
        %2524 = vmatprep.subr.mxu0 0.0
        %2525 = vmatpush1.xpose.msra.mxu0 0.0
        %2526 = vmatprep.subr.mxu0 0.0
        %2527 = vmatpush1.xpose.msra.mxu0 0.0
        %2528 = vmatprep.subr.mxu0 0.0
        %2529 = vmatpush1.xpose.msra.mxu0 0.0
        %2530 = vmatprep.subr.mxu0 0.0
        %2531 = vmatpush1.xpose.msra.mxu0 0.0
        %2532 = vmatprep.subr.mxu0 0.0
        %2533 = vmatpush1.xpose.msra.mxu0 0.0
        %2534 = vmatprep.subr.mxu0 0.0
        %2535 = vmatpush1.xpose.msra.mxu0 0.0
        %2536 = vmatprep.subr.mxu0 0.0
        %2537 = vmatpush1.xpose.msra.mxu0 0.0
        %2538 = vmatprep.subr.mxu0 0.0
        %2539 = vmatpush1.xpose.msra.mxu0 0.0
        %2540 = vmatprep.subr.mxu0 0.0
        %2541 = vmatpush1.xpose.msra.mxu0 0.0
        %2542 = vmatprep.subr.mxu0 0.0
        %2543 = vmatpush1.xpose.msra.mxu0 0.0
        %2544 = vmatprep.subr.mxu0 0.0
        %2545 = vmatpush1.xpose.msra.mxu0 0.0
        %2546 = vmatprep.subr.mxu0 0.0
        %2547 = vmatpush1.xpose.msra.mxu0 0.0
        %2548 = vmatprep.subr.mxu0 0.0
        %2549 = vmatpush1.xpose.msra.mxu0 0.0
        %2550 = vmatprep.subr.mxu0 0.0
        %2551 = vmatpush1.xpose.msra.mxu0 0.0
        %2552 = vmatprep.subr.mxu0 0.0
        %2553 = vmatpush1.xpose.msra.mxu0 0.0
        %2554 = vmatprep.subr.mxu0 0.0
        %2555 = vmatpush1.xpose.msra.mxu0 0.0
        %2556 = vmatprep.subr.mxu0 0.0
        %2557 = vmatpush1.xpose.msra.mxu0 0.0
        %2558 = vmatprep.subr.mxu0 0.0
        %2559 = vmatpush1.xpose.msra.mxu0 0.0
        %2560 = vmatprep.subr.mxu0 0.0
        %2561 = vmatpush1.xpose.msra.mxu0 0.0
        %2562 = vmatprep.subr.mxu0 0.0
        %2563 = vmatpush1.xpose.msra.mxu0 0.0
        %2564 = vmatprep.subr.mxu0 0.0
        %2565 = vmatpush1.xpose.msra.mxu0 0.0
        %2566 = vmatprep.subr.mxu0 0.0
        %2567 = vmatpush1.xpose.msra.mxu0 0.0
        %2568 = vmatprep.subr.mxu0 0.0
        %2569 = vmatpush1.xpose.msra.mxu0 0.0
        %2570 = vmatprep.mubr.f32.mxu0 0.0
        %2571 = vmatmul.mubr.f32.gmra.mrb[0].mxu0 %v2495
        %v2572 = vpop.f32.mrb[0].mxu0
        %v2573 = vadd.f32 %v1969, %v2572
        %v2574 = vpop.f32.mrb[0].mxu0
        %2575 = vmatprep.mubr.f32.mxu0 0.0
        %2576 = vmatmul.mubr.f32.gmra.mrb[0].mxu0 %v2498
        %v2577 = vpop.f32.mrb[0].mxu0
        %v2578 = vadd.f32 %v1970, %v2577
        %v2579 = vpop.f32.mrb[0].mxu0
        %2580 = vdwg.mxu0
        %v2582 = vsel %vm1971, %v1179, 0
        %v2585 = vsel %vm1971, %v1182, 0
        %v2588 = vsel %vm1971, %v1571, 0
        %v2591 = vsel %vm1971, %v1574, 0
        %2593 = vmatprep.subr.mxu0 0.0
        %2594 = vmatpush1.xpose.msra.mxu0 %v2588
        %2595 = vmatprep.subr.mxu0 0.0
        %2596 = vmatpush1.xpose.msra.mxu0 %v2591
        %2597 = vmatprep.subr.mxu0 0.0
        %2598 = vmatpush1.xpose.msra.mxu0 0.0
        %2599 = vmatprep.subr.mxu0 0.0
        %2600 = vmatpush1.xpose.msra.mxu0 0.0
        %2601 = vmatprep.subr.mxu0 0.0
        %2602 = vmatpush1.xpose.msra.mxu0 0.0
        %2603 = vmatprep.subr.mxu0 0.0
        %2604 = vmatpush1.xpose.msra.mxu0 0.0
        %2605 = vmatprep.subr.mxu0 0.0
        %2606 = vmatpush1.xpose.msra.mxu0 0.0
        %2607 = vmatprep.subr.mxu0 0.0
        %2608 = vmatpush1.xpose.msra.mxu0 0.0
        %2609 = vmatprep.subr.mxu0 0.0
        %2610 = vmatpush1.xpose.msra.mxu0 0.0
        %2611 = vmatprep.subr.mxu0 0.0
        %2612 = vmatpush1.xpose.msra.mxu0 0.0
        %2613 = vmatprep.subr.mxu0 0.0
        %2614 = vmatpush1.xpose.msra.mxu0 0.0
        %2615 = vmatprep.subr.mxu0 0.0
        %2616 = vmatpush1.xpose.msra.mxu0 0.0
        %2617 = vmatprep.subr.mxu0 0.0
        %2618 = vmatpush1.xpose.msra.mxu0 0.0
        %2619 = vmatprep.subr.mxu0 0.0
        %2620 = vmatpush1.xpose.msra.mxu0 0.0
        %2621 = vmatprep.subr.mxu0 0.0
        %2622 = vmatpush1.xpose.msra.mxu0 0.0
        %2623 = vmatprep.subr.mxu0 0.0
        %2624 = vmatpush1.xpose.msra.mxu0 0.0
        %2625 = vmatprep.subr.mxu0 0.0
        %2626 = vmatpush1.xpose.msra.mxu0 0.0
        %2627 = vmatprep.subr.mxu0 0.0
        %2628 = vmatpush1.xpose.msra.mxu0 0.0
        %2629 = vmatprep.subr.mxu0 0.0
        %2630 = vmatpush1.xpose.msra.mxu0 0.0
        %2631 = vmatprep.subr.mxu0 0.0
        %2632 = vmatpush1.xpose.msra.mxu0 0.0
        %2633 = vmatprep.subr.mxu0 0.0
        %2634 = vmatpush1.xpose.msra.mxu0 0.0
        %2635 = vmatprep.subr.mxu0 0.0
        %2636 = vmatpush1.xpose.msra.mxu0 0.0
        %2637 = vmatprep.subr.mxu0 0.0
        %2638 = vmatpush1.xpose.msra.mxu0 0.0
        %2639 = vmatprep.subr.mxu0 0.0
        %2640 = vmatpush1.xpose.msra.mxu0 0.0
        %2641 = vmatprep.subr.mxu0 0.0
        %2642 = vmatpush1.xpose.msra.mxu0 0.0
        %2643 = vmatprep.subr.mxu0 0.0
        %2644 = vmatpush1.xpose.msra.mxu0 0.0
        %2645 = vmatprep.subr.mxu0 0.0
        %2646 = vmatpush1.xpose.msra.mxu0 0.0
        %2647 = vmatprep.subr.mxu0 0.0
        %2648 = vmatpush1.xpose.msra.mxu0 0.0
        %2649 = vmatprep.subr.mxu0 0.0
        %2650 = vmatpush1.xpose.msra.mxu0 0.0
        %2651 = vmatprep.subr.mxu0 0.0
        %2652 = vmatpush1.xpose.msra.mxu0 0.0
        %2653 = vmatprep.subr.mxu0 0.0
        %2654 = vmatpush1.xpose.msra.mxu0 0.0
        %2655 = vmatprep.subr.mxu0 0.0
        %2656 = vmatpush1.xpose.msra.mxu0 0.0
        %2657 = vmatprep.mubr.f32.mxu0 0.0
        %2658 = vmatmul.mubr.f32.gmra.mrb[0].mxu0 %v2582
        %v2659 = vpop.f32.mrb[0].mxu0
        %v2660 = vadd.f32 %v1969, %v2659
        %v2661 = vpop.f32.mrb[0].mxu0
        %2662 = vmatprep.mubr.f32.mxu0 0.0
        %2663 = vmatmul.mubr.f32.gmra.mrb[0].mxu0 %v2585
        %v2664 = vpop.f32.mrb[0].mxu0
        %v2665 = vadd.f32 %v1970, %v2664
        %v2666 = vpop.f32.mrb[0].mxu0
        %2667 = vdwg.mxu0
        %v2668 = vsel %vm1971, %v2051, -inf
        %2669 = vmax.xlane.f32.xlu0 %v2668
        %v2670 = vpop.xlane.xlu0 %2669
        %v2671 = vsel %vm1971, %v2056, -inf
        %2672 = vmax.xlane.f32.xlu0 %v2671
        %v2673 = vpop.xlane.xlu0 %2672
        %v2674 = vsel %vm1971, %v2138, -inf
        %2675 = vmax.xlane.f32.xlu0 %v2674
        %v2676 = vpop.xlane.xlu0 %2675
        %v2677 = vsel %vm1971, %v2143, -inf
        %2678 = vmax.xlane.f32.xlu0 %v2677
        %v2679 = vpop.xlane.xlu0 %2678
        %v2680 = vsel %vm1971, %v2225, -inf
        %2681 = vmax.xlane.f32.xlu0 %v2680
        %v2682 = vpop.xlane.xlu0 %2681
        %v2683 = vsel %vm1971, %v2230, -inf
        %2684 = vmax.xlane.f32.xlu0 %v2683
        %v2685 = vpop.xlane.xlu0 %2684
        %v2686 = vsel %vm1971, %v2312, -inf
        %2687 = vmax.xlane.f32.xlu0 %v2686
        %v2688 = vpop.xlane.xlu0 %2687
        %v2689 = vsel %vm1971, %v2317, -inf
        %2690 = vmax.xlane.f32.xlu0 %v2689
        %v2691 = vpop.xlane.xlu0 %2690
        %v2692 = vsel %vm1971, %v2399, -inf
        %2693 = vmax.xlane.f32.xlu0 %v2692
        %v2694 = vpop.xlane.xlu0 %2693
        %v2695 = vsel %vm1971, %v2404, -inf
        %2696 = vmax.xlane.f32.xlu0 %v2695
        %v2697 = vpop.xlane.xlu0 %2696
        %v2698 = vsel %vm1971, %v2486, -inf
        %2699 = vmax.xlane.f32.xlu0 %v2698
        %v2700 = vpop.xlane.xlu0 %2699
        %v2701 = vsel %vm1971, %v2491, -inf
        %2702 = vmax.xlane.f32.xlu0 %v2701
        %v2703 = vpop.xlane.xlu0 %2702
        %v2704 = vsel %vm1971, %v2573, -inf
        %2705 = vmax.xlane.f32.xlu0 %v2704
        %v2706 = vpop.xlane.xlu0 %2705
        %v2707 = vsel %vm1971, %v2578, -inf
        %2708 = vmax.xlane.f32.xlu0 %v2707
        %v2709 = vpop.xlane.xlu0 %2708
        %v2710 = vsel %vm1971, %v2660, -inf
        %2711 = vmax.xlane.f32.xlu0 %v2710
        %v2712 = vpop.xlane.xlu0 %2711
        %v2713 = vsel %vm1971, %v2665, -inf
        %2714 = vmax.xlane.f32.xlu0 %v2713
        %v2715 = vpop.xlane.xlu0 %2714
        %v2716 = vsub.f32 %v2051, %v2670
        %v2717 = vsub.f32 %v2056, %v2673
        %v2718 = vsub.f32 %v2138, %v2676
        %v2719 = vsub.f32 %v2143, %v2679
        %v2720 = vsub.f32 %v2225, %v2682
        %v2721 = vsub.f32 %v2230, %v2685
        %v2722 = vsub.f32 %v2312, %v2688
        %v2723 = vsub.f32 %v2317, %v2691
        %v2724 = vsub.f32 %v2399, %v2694
        %v2725 = vsub.f32 %v2404, %v2697
        %v2726 = vsub.f32 %v2486, %v2700
        %v2727 = vsub.f32 %v2491, %v2703
        %v2728 = vsub.f32 %v2573, %v2706
        %v2729 = vsub.f32 %v2578, %v2709
        %v2730 = vsub.f32 %v2660, %v2712
        %v2731 = vsub.f32 %v2665, %v2715
        %v2732 = vmul.f32 %v2716, 1.442695
        %v2733 = vpow.pop %v2732
        %v2734 = vmul.f32 %v2717, 1.442695
        %v2735 = vpow.pop %v2734
        %v2736 = vmul.f32 %v2718, 1.442695
        %v2737 = vpow.pop %v2736
        %v2738 = vmul.f32 %v2719, 1.442695
        %v2739 = vpow.pop %v2738
        %v2740 = vmul.f32 %v2720, 1.442695
        %v2741 = vpow.pop %v2740
        %v2742 = vmul.f32 %v2721, 1.442695
        %v2743 = vpow.pop %v2742
        %v2744 = vmul.f32 %v2722, 1.442695
        %v2745 = vpow.pop %v2744
        %v2746 = vmul.f32 %v2723, 1.442695
        %v2747 = vpow.pop %v2746
        %v2748 = vmul.f32 %v2724, 1.442695
        %v2749 = vpow.pop %v2748
        %v2750 = vmul.f32 %v2725, 1.442695
        %v2751 = vpow.pop %v2750
        %v2752 = vmul.f32 %v2726, 1.442695
        %v2753 = vpow.pop %v2752
        %v2754 = vmul.f32 %v2727, 1.442695
        %v2755 = vpow.pop %v2754
        %v2756 = vmul.f32 %v2728, 1.442695
        %v2757 = vpow.pop %v2756
        %v2758 = vmul.f32 %v2729, 1.442695
        %v2759 = vpow.pop %v2758
        %v2760 = vmul.f32 %v2730, 1.442695
        %v2761 = vpow.pop %v2760
        %v2762 = vmul.f32 %v2731, 1.442695
        %v2763 = vpow.pop %v2762
        %v2764 = vsel %vm1971, %v2733, 0.0
        %2765 = vadd.xlane.f32.xlu0 %v2764
        %v2766 = vpop.xlane.xlu0 %2765
        %v2767 = vsel %vm1971, %v2735, 0.0
        %2768 = vadd.xlane.f32.xlu0 %v2767
        %v2769 = vpop.xlane.xlu0 %2768
        %v2770 = vsel %vm1971, %v2737, 0.0
        %2771 = vadd.xlane.f32.xlu0 %v2770
        %v2772 = vpop.xlane.xlu0 %2771
        %v2773 = vsel %vm1971, %v2739, 0.0
        %2774 = vadd.xlane.f32.xlu0 %v2773
        %v2775 = vpop.xlane.xlu0 %2774
        %v2776 = vsel %vm1971, %v2741, 0.0
        %2777 = vadd.xlane.f32.xlu0 %v2776
        %v2778 = vpop.xlane.xlu0 %2777
        %v2779 = vsel %vm1971, %v2743, 0.0
        %2780 = vadd.xlane.f32.xlu0 %v2779
        %v2781 = vpop.xlane.xlu0 %2780
        %v2782 = vsel %vm1971, %v2745, 0.0
        %2783 = vadd.xlane.f32.xlu0 %v2782
        %v2784 = vpop.xlane.xlu0 %2783
        %v2785 = vsel %vm1971, %v2747, 0.0
        %2786 = vadd.xlane.f32.xlu0 %v2785
        %v2787 = vpop.xlane.xlu0 %2786
        %v2788 = vsel %vm1971, %v2749, 0.0
        %2789 = vadd.xlane.f32.xlu0 %v2788
        %v2790 = vpop.xlane.xlu0 %2789
        %v2791 = vsel %vm1971, %v2751, 0.0
        %2792 = vadd.xlane.f32.xlu0 %v2791
        %v2793 = vpop.xlane.xlu0 %2792
        %v2794 = vsel %vm1971, %v2753, 0.0
        %2795 = vadd.xlane.f32.xlu0 %v2794
        %v2796 = vpop.xlane.xlu0 %2795
        %v2797 = vsel %vm1971, %v2755, 0.0
        %2798 = vadd.xlane.f32.xlu0 %v2797
        %v2799 = vpop.xlane.xlu0 %2798
        %v2800 = vsel %vm1971, %v2757, 0.0
        %2801 = vadd.xlane.f32.xlu0 %v2800
        %v2802 = vpop.xlane.xlu0 %2801
        %v2803 = vsel %vm1971, %v2759, 0.0
        %2804 = vadd.xlane.f32.xlu0 %v2803
        %v2805 = vpop.xlane.xlu0 %2804
        %v2806 = vsel %vm1971, %v2761, 0.0
        %2807 = vadd.xlane.f32.xlu0 %v2806
        %v2808 = vpop.xlane.xlu0 %2807
        %v2809 = vsel %vm1971, %v2763, 0.0
        %2810 = vadd.xlane.f32.xlu0 %v2809
        %v2811 = vpop.xlane.xlu0 %2810
        %v2812 = vrcp.pop %v2766
        %v2813 = vrcp.pop %v2769
        %v2814 = vrcp.pop %v2772
        %v2815 = vrcp.pop %v2775
        %v2816 = vrcp.pop %v2778
        %v2817 = vrcp.pop %v2781
        %v2818 = vrcp.pop %v2784
        %v2819 = vrcp.pop %v2787
        %v2820 = vrcp.pop %v2790
        %v2821 = vrcp.pop %v2793
        %v2822 = vrcp.pop %v2796
        %v2823 = vrcp.pop %v2799
        %v2824 = vrcp.pop %v2802
        %v2825 = vrcp.pop %v2805
        %v2826 = vrcp.pop %v2808
        %v2827 = vrcp.pop %v2811
        %v2828 = vmul.f32 %v2733, %v2812
        %v2829 = vmul.f32 %v2735, %v2813
        %v2830 = vmul.f32 %v2737, %v2814
        %v2831 = vmul.f32 %v2739, %v2815
        %v2832 = vmul.f32 %v2741, %v2816
        %v2833 = vmul.f32 %v2743, %v2817
        %v2834 = vmul.f32 %v2745, %v2818
        %v2835 = vmul.f32 %v2747, %v2819
        %v2836 = vmul.f32 %v2749, %v2820
        %v2837 = vmul.f32 %v2751, %v2821
        %v2838 = vmul.f32 %v2753, %v2822
        %v2839 = vmul.f32 %v2755, %v2823
        %v2840 = vmul.f32 %v2757, %v2824
        %v2841 = vmul.f32 %v2759, %v2825
        %v2842 = vmul.f32 %v2761, %v2826
        %v2843 = vmul.f32 %v2763, %v2827
        %v2845 = vsel %vm1971, %v2828, 0
        %v2848 = vsel %vm1971, %v2829, 0
        %2850 = vmatprep.subr.mxu0 0.0
        %2851 = vmatpush1.msra.mxu0 %v1634
        %2852 = vmatprep.subr.mxu0 0.0
        %2853 = vmatpush1.msra.mxu0 %v1637
        %2854 = vmatprep.subr.mxu0 0.0
        %2855 = vmatpush1.msra.mxu0 0.0
        %2856 = vmatprep.subr.mxu0 0.0
        %2857 = vmatpush1.msra.mxu0 0.0
        %2858 = vmatprep.subr.mxu0 0.0
        %2859 = vmatpush1.msra.mxu0 0.0
        %2860 = vmatprep.subr.mxu0 0.0
        %2861 = vmatpush1.msra.mxu0 0.0
        %2862 = vmatprep.subr.mxu0 0.0
        %2863 = vmatpush1.msra.mxu0 0.0
        %2864 = vmatprep.subr.mxu0 0.0
        %2865 = vmatpush1.msra.mxu0 0.0
        %2866 = vmatprep.subr.mxu0 0.0
        %2867 = vmatpush1.msra.mxu0 0.0
        %2868 = vmatprep.subr.mxu0 0.0
        %2869 = vmatpush1.msra.mxu0 0.0
        %2870 = vmatprep.subr.mxu0 0.0
        %2871 = vmatpush1.msra.mxu0 0.0
        %2872 = vmatprep.subr.mxu0 0.0
        %2873 = vmatpush1.msra.mxu0 0.0
        %2874 = vmatprep.subr.mxu0 0.0
        %2875 = vmatpush1.msra.mxu0 0.0
        %2876 = vmatprep.subr.mxu0 0.0
        %2877 = vmatpush1.msra.mxu0 0.0
        %2878 = vmatprep.subr.mxu0 0.0
        %2879 = vmatpush1.msra.mxu0 0.0
        %2880 = vmatprep.subr.mxu0 0.0
        %2881 = vmatpush1.msra.mxu0 0.0
        %2882 = vmatprep.subr.mxu0 0.0
        %2883 = vmatpush1.msra.mxu0 0.0
        %2884 = vmatprep.subr.mxu0 0.0
        %2885 = vmatpush1.msra.mxu0 0.0
        %2886 = vmatprep.subr.mxu0 0.0
        %2887 = vmatpush1.msra.mxu0 0.0
        %2888 = vmatprep.subr.mxu0 0.0
        %2889 = vmatpush1.msra.mxu0 0.0
        %2890 = vmatprep.subr.mxu0 0.0
        %2891 = vmatpush1.msra.mxu0 0.0
        %2892 = vmatprep.subr.mxu0 0.0
        %2893 = vmatpush1.msra.mxu0 0.0
        %2894 = vmatprep.subr.mxu0 0.0
        %2895 = vmatpush1.msra.mxu0 0.0
        %2896 = vmatprep.subr.mxu0 0.0
        %2897 = vmatpush1.msra.mxu0 0.0
        %2898 = vmatprep.subr.mxu0 0.0
        %2899 = vmatpush1.msra.mxu0 0.0
        %2900 = vmatprep.subr.mxu0 0.0
        %2901 = vmatpush1.msra.mxu0 0.0
        %2902 = vmatprep.subr.mxu0 0.0
        %2903 = vmatpush1.msra.mxu0 0.0
        %2904 = vmatprep.subr.mxu0 0.0
        %2905 = vmatpush1.msra.mxu0 0.0
        %2906 = vmatprep.subr.mxu0 0.0
        %2907 = vmatpush1.msra.mxu0 0.0
        %2908 = vmatprep.subr.mxu0 0.0
        %2909 = vmatpush1.msra.mxu0 0.0
        %2910 = vmatprep.subr.mxu0 0.0
        %2911 = vmatpush1.msra.mxu0 0.0
        %2912 = vmatprep.subr.mxu0 0.0
        %2913 = vmatpush1.msra.mxu0 0.0
        %2914 = vmatprep.mubr.f32.mxu0 0.0
        %2915 = vmatmul.mubr.f32.gmra.mrb[0].mxu0 %v2845
        %v2916 = vpop.f32.mrb[0].mxu0
        %v2917 = vadd.f32 0.0, %v2916
        %v2918 = vpop.f32.mrb[0].mxu0
        %2919 = vmatprep.mubr.f32.mxu0 0.0
        %2920 = vmatmul.mubr.f32.gmra.mrb[0].mxu0 %v2848
        %v2921 = vpop.f32.mrb[0].mxu0
        %v2922 = vadd.f32 0.0, %v2921
        %v2923 = vpop.f32.mrb[0].mxu0
        %2924 = vdwg.mxu0
        %v2926 = vsel %vm1971, %v2830, 0
        %v2929 = vsel %vm1971, %v2831, 0
        %2931 = vmatprep.subr.mxu0 0.0
        %2932 = vmatpush1.msra.mxu0 %v1681
        %2933 = vmatprep.subr.mxu0 0.0
        %2934 = vmatpush1.msra.mxu0 %v1684
        %2935 = vmatprep.subr.mxu0 0.0
        %2936 = vmatpush1.msra.mxu0 0.0
        %2937 = vmatprep.subr.mxu0 0.0
        %2938 = vmatpush1.msra.mxu0 0.0
        %2939 = vmatprep.subr.mxu0 0.0
        %2940 = vmatpush1.msra.mxu0 0.0
        %2941 = vmatprep.subr.mxu0 0.0
        %2942 = vmatpush1.msra.mxu0 0.0
        %2943 = vmatprep.subr.mxu0 0.0
        %2944 = vmatpush1.msra.mxu0 0.0
        %2945 = vmatprep.subr.mxu0 0.0
        %2946 = vmatpush1.msra.mxu0 0.0
        %2947 = vmatprep.subr.mxu0 0.0
        %2948 = vmatpush1.msra.mxu0 0.0
        %2949 = vmatprep.subr.mxu0 0.0
        %2950 = vmatpush1.msra.mxu0 0.0
        %2951 = vmatprep.subr.mxu0 0.0
        %2952 = vmatpush1.msra.mxu0 0.0
        %2953 = vmatprep.subr.mxu0 0.0
        %2954 = vmatpush1.msra.mxu0 0.0
        %2955 = vmatprep.subr.mxu0 0.0
        %2956 = vmatpush1.msra.mxu0 0.0
        %2957 = vmatprep.subr.mxu0 0.0
        %2958 = vmatpush1.msra.mxu0 0.0
        %2959 = vmatprep.subr.mxu0 0.0
        %2960 = vmatpush1.msra.mxu0 0.0
        %2961 = vmatprep.subr.mxu0 0.0
        %2962 = vmatpush1.msra.mxu0 0.0
        %2963 = vmatprep.subr.mxu0 0.0
        %2964 = vmatpush1.msra.mxu0 0.0
        %2965 = vmatprep.subr.mxu0 0.0
        %2966 = vmatpush1.msra.mxu0 0.0
        %2967 = vmatprep.subr.mxu0 0.0
        %2968 = vmatpush1.msra.mxu0 0.0
        %2969 = vmatprep.subr.mxu0 0.0
        %2970 = vmatpush1.msra.mxu0 0.0
        %2971 = vmatprep.subr.mxu0 0.0
        %2972 = vmatpush1.msra.mxu0 0.0
        %2973 = vmatprep.subr.mxu0 0.0
        %2974 = vmatpush1.msra.mxu0 0.0
        %2975 = vmatprep.subr.mxu0 0.0
        %2976 = vmatpush1.msra.mxu0 0.0
        %2977 = vmatprep.subr.mxu0 0.0
        %2978 = vmatpush1.msra.mxu0 0.0
        %2979 = vmatprep.subr.mxu0 0.0
        %2980 = vmatpush1.msra.mxu0 0.0
        %2981 = vmatprep.subr.mxu0 0.0
        %2982 = vmatpush1.msra.mxu0 0.0
        %2983 = vmatprep.subr.mxu0 0.0
        %2984 = vmatpush1.msra.mxu0 0.0
        %2985 = vmatprep.subr.mxu0 0.0
        %2986 = vmatpush1.msra.mxu0 0.0
        %2987 = vmatprep.subr.mxu0 0.0
        %2988 = vmatpush1.msra.mxu0 0.0
        %2989 = vmatprep.subr.mxu0 0.0
        %2990 = vmatpush1.msra.mxu0 0.0
        %2991 = vmatprep.subr.mxu0 0.0
        %2992 = vmatpush1.msra.mxu0 0.0
        %2993 = vmatprep.subr.mxu0 0.0
        %2994 = vmatpush1.msra.mxu0 0.0
        %2995 = vmatprep.mubr.f32.mxu0 0.0
        %2996 = vmatmul.mubr.f32.gmra.mrb[0].mxu0 %v2926
        %v2997 = vpop.f32.mrb[0].mxu0
        %v2998 = vadd.f32 0.0, %v2997
        %v2999 = vpop.f32.mrb[0].mxu0
        %3000 = vmatprep.mubr.f32.mxu0 0.0
        %3001 = vmatmul.mubr.f32.gmra.mrb[0].mxu0 %v2929
        %v3002 = vpop.f32.mrb[0].mxu0
        %v3003 = vadd.f32 0.0, %v3002
        %v3004 = vpop.f32.mrb[0].mxu0
        %3005 = vdwg.mxu0
        %v3007 = vsel %vm1971, %v2832, 0
        %v3010 = vsel %vm1971, %v2833, 0
        %3012 = vmatprep.subr.mxu0 0.0
        %3013 = vmatpush1.msra.mxu0 %v1728
        %3014 = vmatprep.subr.mxu0 0.0
        %3015 = vmatpush1.msra.mxu0 %v1731
        %3016 = vmatprep.subr.mxu0 0.0
        %3017 = vmatpush1.msra.mxu0 0.0
        %3018 = vmatprep.subr.mxu0 0.0
        %3019 = vmatpush1.msra.mxu0 0.0
        %3020 = vmatprep.subr.mxu0 0.0
        %3021 = vmatpush1.msra.mxu0 0.0
        %3022 = vmatprep.subr.mxu0 0.0
        %3023 = vmatpush1.msra.mxu0 0.0
        %3024 = vmatprep.subr.mxu0 0.0
        %3025 = vmatpush1.msra.mxu0 0.0
        %3026 = vmatprep.subr.mxu0 0.0
        %3027 = vmatpush1.msra.mxu0 0.0
        %3028 = vmatprep.subr.mxu0 0.0
        %3029 = vmatpush1.msra.mxu0 0.0
        %3030 = vmatprep.subr.mxu0 0.0
        %3031 = vmatpush1.msra.mxu0 0.0
        %3032 = vmatprep.subr.mxu0 0.0
        %3033 = vmatpush1.msra.mxu0 0.0
        %3034 = vmatprep.subr.mxu0 0.0
        %3035 = vmatpush1.msra.mxu0 0.0
        %3036 = vmatprep.subr.mxu0 0.0
        %3037 = vmatpush1.msra.mxu0 0.0
        %3038 = vmatprep.subr.mxu0 0.0
        %3039 = vmatpush1.msra.mxu0 0.0
        %3040 = vmatprep.subr.mxu0 0.0
        %3041 = vmatpush1.msra.mxu0 0.0
        %3042 = vmatprep.subr.mxu0 0.0
        %3043 = vmatpush1.msra.mxu0 0.0
        %3044 = vmatprep.subr.mxu0 0.0
        %3045 = vmatpush1.msra.mxu0 0.0
        %3046 = vmatprep.subr.mxu0 0.0
        %3047 = vmatpush1.msra.mxu0 0.0
        %3048 = vmatprep.subr.mxu0 0.0
        %3049 = vmatpush1.msra.mxu0 0.0
        %3050 = vmatprep.subr.mxu0 0.0
        %3051 = vmatpush1.msra.mxu0 0.0
        %3052 = vmatprep.subr.mxu0 0.0
        %3053 = vmatpush1.msra.mxu0 0.0
        %3054 = vmatprep.subr.mxu0 0.0
        %3055 = vmatpush1.msra.mxu0 0.0
        %3056 = vmatprep.subr.mxu0 0.0
        %3057 = vmatpush1.msra.mxu0 0.0
        %3058 = vmatprep.subr.mxu0 0.0
        %3059 = vmatpush1.msra.mxu0 0.0
        %3060 = vmatprep.subr.mxu0 0.0
        %3061 = vmatpush1.msra.mxu0 0.0
        %3062 = vmatprep.subr.mxu0 0.0
        %3063 = vmatpush1.msra.mxu0 0.0
        %3064 = vmatprep.subr.mxu0 0.0
        %3065 = vmatpush1.msra.mxu0 0.0
        %3066 = vmatprep.subr.mxu0 0.0
        %3067 = vmatpush1.msra.mxu0 0.0
        %3068 = vmatprep.subr.mxu0 0.0
        %3069 = vmatpush1.msra.mxu0 0.0
        %3070 = vmatprep.subr.mxu0 0.0
        %3071 = vmatpush1.msra.mxu0 0.0
        %3072 = vmatprep.subr.mxu0 0.0
        %3073 = vmatpush1.msra.mxu0 0.0
        %3074 = vmatprep.subr.mxu0 0.0
        %3075 = vmatpush1.msra.mxu0 0.0
        %3076 = vmatprep.mubr.f32.mxu0 0.0
        %3077 = vmatmul.mubr.f32.gmra.mrb[0].mxu0 %v3007
        %v3078 = vpop.f32.mrb[0].mxu0
        %v3079 = vadd.f32 0.0, %v3078
        %v3080 = vpop.f32.mrb[0].mxu0
        %3081 = vmatprep.mubr.f32.mxu0 0.0
        %3082 = vmatmul.mubr.f32.gmra.mrb[0].mxu0 %v3010
        %v3083 = vpop.f32.mrb[0].mxu0
        %v3084 = vadd.f32 0.0, %v3083
        %v3085 = vpop.f32.mrb[0].mxu0
        %3086 = vdwg.mxu0
        %v3088 = vsel %vm1971, %v2834, 0
        %v3091 = vsel %vm1971, %v2835, 0
        %3093 = vmatprep.subr.mxu0 0.0
        %3094 = vmatpush1.msra.mxu0 %v1775
        %3095 = vmatprep.subr.mxu0 0.0
        %3096 = vmatpush1.msra.mxu0 %v1778
        %3097 = vmatprep.subr.mxu0 0.0
        %3098 = vmatpush1.msra.mxu0 0.0
        %3099 = vmatprep.subr.mxu0 0.0
        %3100 = vmatpush1.msra.mxu0 0.0
        %3101 = vmatprep.subr.mxu0 0.0
        %3102 = vmatpush1.msra.mxu0 0.0
        %3103 = vmatprep.subr.mxu0 0.0
        %3104 = vmatpush1.msra.mxu0 0.0
        %3105 = vmatprep.subr.mxu0 0.0
        %3106 = vmatpush1.msra.mxu0 0.0
        %3107 = vmatprep.subr.mxu0 0.0
        %3108 = vmatpush1.msra.mxu0 0.0
        %3109 = vmatprep.subr.mxu0 0.0
        %3110 = vmatpush1.msra.mxu0 0.0
        %3111 = vmatprep.subr.mxu0 0.0
        %3112 = vmatpush1.msra.mxu0 0.0
        %3113 = vmatprep.subr.mxu0 0.0
        %3114 = vmatpush1.msra.mxu0 0.0
        %3115 = vmatprep.subr.mxu0 0.0
        %3116 = vmatpush1.msra.mxu0 0.0
        %3117 = vmatprep.subr.mxu0 0.0
        %3118 = vmatpush1.msra.mxu0 0.0
        %3119 = vmatprep.subr.mxu0 0.0
        %3120 = vmatpush1.msra.mxu0 0.0
        %3121 = vmatprep.subr.mxu0 0.0
        %3122 = vmatpush1.msra.mxu0 0.0
        %3123 = vmatprep.subr.mxu0 0.0
        %3124 = vmatpush1.msra.mxu0 0.0
        %3125 = vmatprep.subr.mxu0 0.0
        %3126 = vmatpush1.msra.mxu0 0.0
        %3127 = vmatprep.subr.mxu0 0.0
        %3128 = vmatpush1.msra.mxu0 0.0
        %3129 = vmatprep.subr.mxu0 0.0
        %3130 = vmatpush1.msra.mxu0 0.0
        %3131 = vmatprep.subr.mxu0 0.0
        %3132 = vmatpush1.msra.mxu0 0.0
        %3133 = vmatprep.subr.mxu0 0.0
        %3134 = vmatpush1.msra.mxu0 0.0
        %3135 = vmatprep.subr.mxu0 0.0
        %3136 = vmatpush1.msra.mxu0 0.0
        %3137 = vmatprep.subr.mxu0 0.0
        %3138 = vmatpush1.msra.mxu0 0.0
        %3139 = vmatprep.subr.mxu0 0.0
        %3140 = vmatpush1.msra.mxu0 0.0
        %3141 = vmatprep.subr.mxu0 0.0
        %3142 = vmatpush1.msra.mxu0 0.0
        %3143 = vmatprep.subr.mxu0 0.0
        %3144 = vmatpush1.msra.mxu0 0.0
        %3145 = vmatprep.subr.mxu0 0.0
        %3146 = vmatpush1.msra.mxu0 0.0
        %3147 = vmatprep.subr.mxu0 0.0
        %3148 = vmatpush1.msra.mxu0 0.0
        %3149 = vmatprep.subr.mxu0 0.0
        %3150 = vmatpush1.msra.mxu0 0.0
        %3151 = vmatprep.subr.mxu0 0.0
        %3152 = vmatpush1.msra.mxu0 0.0
        %3153 = vmatprep.subr.mxu0 0.0
        %3154 = vmatpush1.msra.mxu0 0.0
        %3155 = vmatprep.subr.mxu0 0.0
        %3156 = vmatpush1.msra.mxu0 0.0
        %3157 = vmatprep.mubr.f32.mxu0 0.0
        %3158 = vmatmul.mubr.f32.gmra.mrb[0].mxu0 %v3088
        %v3159 = vpop.f32.mrb[0].mxu0
        %v3160 = vadd.f32 0.0, %v3159
        %v3161 = vpop.f32.mrb[0].mxu0
        %3162 = vmatprep.mubr.f32.mxu0 0.0
        %3163 = vmatmul.mubr.f32.gmra.mrb[0].mxu0 %v3091
        %v3164 = vpop.f32.mrb[0].mxu0
        %v3165 = vadd.f32 0.0, %v3164
        %v3166 = vpop.f32.mrb[0].mxu0
        %3167 = vdwg.mxu0
        %v3169 = vsel %vm1971, %v2836, 0
        %v3172 = vsel %vm1971, %v2837, 0
        %3174 = vmatprep.subr.mxu0 0.0
        %3175 = vmatpush1.msra.mxu0 %v1822
        %3176 = vmatprep.subr.mxu0 0.0
        %3177 = vmatpush1.msra.mxu0 %v1825
        %3178 = vmatprep.subr.mxu0 0.0
        %3179 = vmatpush1.msra.mxu0 0.0
        %3180 = vmatprep.subr.mxu0 0.0
        %3181 = vmatpush1.msra.mxu0 0.0
        %3182 = vmatprep.subr.mxu0 0.0
        %3183 = vmatpush1.msra.mxu0 0.0
        %3184 = vmatprep.subr.mxu0 0.0
        %3185 = vmatpush1.msra.mxu0 0.0
        %3186 = vmatprep.subr.mxu0 0.0
        %3187 = vmatpush1.msra.mxu0 0.0
        %3188 = vmatprep.subr.mxu0 0.0
        %3189 = vmatpush1.msra.mxu0 0.0
        %3190 = vmatprep.subr.mxu0 0.0
        %3191 = vmatpush1.msra.mxu0 0.0
        %3192 = vmatprep.subr.mxu0 0.0
        %3193 = vmatpush1.msra.mxu0 0.0
        %3194 = vmatprep.subr.mxu0 0.0
        %3195 = vmatpush1.msra.mxu0 0.0
        %3196 = vmatprep.subr.mxu0 0.0
        %3197 = vmatpush1.msra.mxu0 0.0
        %3198 = vmatprep.subr.mxu0 0.0
        %3199 = vmatpush1.msra.mxu0 0.0
        %3200 = vmatprep.subr.mxu0 0.0
        %3201 = vmatpush1.msra.mxu0 0.0
        %3202 = vmatprep.subr.mxu0 0.0
        %3203 = vmatpush1.msra.mxu0 0.0
        %3204 = vmatprep.subr.mxu0 0.0
        %3205 = vmatpush1.msra.mxu0 0.0
        %3206 = vmatprep.subr.mxu0 0.0
        %3207 = vmatpush1.msra.mxu0 0.0
        %3208 = vmatprep.subr.mxu0 0.0
        %3209 = vmatpush1.msra.mxu0 0.0
        %3210 = vmatprep.subr.mxu0 0.0
        %3211 = vmatpush1.msra.mxu0 0.0
        %3212 = vmatprep.subr.mxu0 0.0
        %3213 = vmatpush1.msra.mxu0 0.0
        %3214 = vmatprep.subr.mxu0 0.0
        %3215 = vmatpush1.msra.mxu0 0.0
        %3216 = vmatprep.subr.mxu0 0.0
        %3217 = vmatpush1.msra.mxu0 0.0
        %3218 = vmatprep.subr.mxu0 0.0
        %3219 = vmatpush1.msra.mxu0 0.0
        %3220 = vmatprep.subr.mxu0 0.0
        %3221 = vmatpush1.msra.mxu0 0.0
        %3222 = vmatprep.subr.mxu0 0.0
        %3223 = vmatpush1.msra.mxu0 0.0
        %3224 = vmatprep.subr.mxu0 0.0
        %3225 = vmatpush1.msra.mxu0 0.0
        %3226 = vmatprep.subr.mxu0 0.0
        %3227 = vmatpush1.msra.mxu0 0.0
        %3228 = vmatprep.subr.mxu0 0.0
        %3229 = vmatpush1.msra.mxu0 0.0
        %3230 = vmatprep.subr.mxu0 0.0
        %3231 = vmatpush1.msra.mxu0 0.0
        %3232 = vmatprep.subr.mxu0 0.0
        %3233 = vmatpush1.msra.mxu0 0.0
        %3234 = vmatprep.subr.mxu0 0.0
        %3235 = vmatpush1.msra.mxu0 0.0
        %3236 = vmatprep.subr.mxu0 0.0
        %3237 = vmatpush1.msra.mxu0 0.0
        %3238 = vmatprep.mubr.f32.mxu0 0.0
        %3239 = vmatmul.mubr.f32.gmra.mrb[0].mxu0 %v3169
        %v3240 = vpop.f32.mrb[0].mxu0
        %v3241 = vadd.f32 0.0, %v3240
        %v3242 = vpop.f32.mrb[0].mxu0
        %3243 = vmatprep.mubr.f32.mxu0 0.0
        %3244 = vmatmul.mubr.f32.gmra.mrb[0].mxu0 %v3172
        %v3245 = vpop.f32.mrb[0].mxu0
        %v3246 = vadd.f32 0.0, %v3245
        %v3247 = vpop.f32.mrb[0].mxu0
        %3248 = vdwg.mxu0
        %v3250 = vsel %vm1971, %v2838, 0
        %v3253 = vsel %vm1971, %v2839, 0
        %3255 = vmatprep.subr.mxu0 0.0
        %3256 = vmatpush1.msra.mxu0 %v1869
        %3257 = vmatprep.subr.mxu0 0.0
        %3258 = vmatpush1.msra.mxu0 %v1872
        %3259 = vmatprep.subr.mxu0 0.0
        %3260 = vmatpush1.msra.mxu0 0.0
        %3261 = vmatprep.subr.mxu0 0.0
        %3262 = vmatpush1.msra.mxu0 0.0
        %3263 = vmatprep.subr.mxu0 0.0
        %3264 = vmatpush1.msra.mxu0 0.0
        %3265 = vmatprep.subr.mxu0 0.0
        %3266 = vmatpush1.msra.mxu0 0.0
        %3267 = vmatprep.subr.mxu0 0.0
        %3268 = vmatpush1.msra.mxu0 0.0
        %3269 = vmatprep.subr.mxu0 0.0
        %3270 = vmatpush1.msra.mxu0 0.0
        %3271 = vmatprep.subr.mxu0 0.0
        %3272 = vmatpush1.msra.mxu0 0.0
        %3273 = vmatprep.subr.mxu0 0.0
        %3274 = vmatpush1.msra.mxu0 0.0
        %3275 = vmatprep.subr.mxu0 0.0
        %3276 = vmatpush1.msra.mxu0 0.0
        %3277 = vmatprep.subr.mxu0 0.0
        %3278 = vmatpush1.msra.mxu0 0.0
        %3279 = vmatprep.subr.mxu0 0.0
        %3280 = vmatpush1.msra.mxu0 0.0
        %3281 = vmatprep.subr.mxu0 0.0
        %3282 = vmatpush1.msra.mxu0 0.0
        %3283 = vmatprep.subr.mxu0 0.0
        %3284 = vmatpush1.msra.mxu0 0.0
        %3285 = vmatprep.subr.mxu0 0.0
        %3286 = vmatpush1.msra.mxu0 0.0
        %3287 = vmatprep.subr.mxu0 0.0
        %3288 = vmatpush1.msra.mxu0 0.0
        %3289 = vmatprep.subr.mxu0 0.0
        %3290 = vmatpush1.msra.mxu0 0.0
        %3291 = vmatprep.subr.mxu0 0.0
        %3292 = vmatpush1.msra.mxu0 0.0
        %3293 = vmatprep.subr.mxu0 0.0
        %3294 = vmatpush1.msra.mxu0 0.0
        %3295 = vmatprep.subr.mxu0 0.0
        %3296 = vmatpush1.msra.mxu0 0.0
        %3297 = vmatprep.subr.mxu0 0.0
        %3298 = vmatpush1.msra.mxu0 0.0
        %3299 = vmatprep.subr.mxu0 0.0
        %3300 = vmatpush1.msra.mxu0 0.0
        %3301 = vmatprep.subr.mxu0 0.0
        %3302 = vmatpush1.msra.mxu0 0.0
        %3303 = vmatprep.subr.mxu0 0.0
        %3304 = vmatpush1.msra.mxu0 0.0
        %3305 = vmatprep.subr.mxu0 0.0
        %3306 = vmatpush1.msra.mxu0 0.0
        %3307 = vmatprep.subr.mxu0 0.0
        %3308 = vmatpush1.msra.mxu0 0.0
        %3309 = vmatprep.subr.mxu0 0.0
        %3310 = vmatpush1.msra.mxu0 0.0
        %3311 = vmatprep.subr.mxu0 0.0
        %3312 = vmatpush1.msra.mxu0 0.0
        %3313 = vmatprep.subr.mxu0 0.0
        %3314 = vmatpush1.msra.mxu0 0.0
        %3315 = vmatprep.subr.mxu0 0.0
        %3316 = vmatpush1.msra.mxu0 0.0
        %3317 = vmatprep.subr.mxu0 0.0
        %3318 = vmatpush1.msra.mxu0 0.0
        %3319 = vmatprep.mubr.f32.mxu0 0.0
        %3320 = vmatmul.mubr.f32.gmra.mrb[0].mxu0 %v3250
        %v3321 = vpop.f32.mrb[0].mxu0
        %v3322 = vadd.f32 0.0, %v3321
        %v3323 = vpop.f32.mrb[0].mxu0
        %3324 = vmatprep.mubr.f32.mxu0 0.0
        %3325 = vmatmul.mubr.f32.gmra.mrb[0].mxu0 %v3253
        %v3326 = vpop.f32.mrb[0].mxu0
        %v3327 = vadd.f32 0.0, %v3326
        %v3328 = vpop.f32.mrb[0].mxu0
        %3329 = vdwg.mxu0
        %v3331 = vsel %vm1971, %v2840, 0
        %v3334 = vsel %vm1971, %v2841, 0
        %3336 = vmatprep.subr.mxu0 0.0
        %3337 = vmatpush1.msra.mxu0 %v1916
        %3338 = vmatprep.subr.mxu0 0.0
        %3339 = vmatpush1.msra.mxu0 %v1919
        %3340 = vmatprep.subr.mxu0 0.0
        %3341 = vmatpush1.msra.mxu0 0.0
        %3342 = vmatprep.subr.mxu0 0.0
        %3343 = vmatpush1.msra.mxu0 0.0
        %3344 = vmatprep.subr.mxu0 0.0
        %3345 = vmatpush1.msra.mxu0 0.0
        %3346 = vmatprep.subr.mxu0 0.0
        %3347 = vmatpush1.msra.mxu0 0.0
        %3348 = vmatprep.subr.mxu0 0.0
        %3349 = vmatpush1.msra.mxu0 0.0
        %3350 = vmatprep.subr.mxu0 0.0
        %3351 = vmatpush1.msra.mxu0 0.0
        %3352 = vmatprep.subr.mxu0 0.0
        %3353 = vmatpush1.msra.mxu0 0.0
        %3354 = vmatprep.subr.mxu0 0.0
        %3355 = vmatpush1.msra.mxu0 0.0
        %3356 = vmatprep.subr.mxu0 0.0
        %3357 = vmatpush1.msra.mxu0 0.0
        %3358 = vmatprep.subr.mxu0 0.0
        %3359 = vmatpush1.msra.mxu0 0.0
        %3360 = vmatprep.subr.mxu0 0.0
        %3361 = vmatpush1.msra.mxu0 0.0
        %3362 = vmatprep.subr.mxu0 0.0
        %3363 = vmatpush1.msra.mxu0 0.0
        %3364 = vmatprep.subr.mxu0 0.0
        %3365 = vmatpush1.msra.mxu0 0.0
        %3366 = vmatprep.subr.mxu0 0.0
        %3367 = vmatpush1.msra.mxu0 0.0
        %3368 = vmatprep.subr.mxu0 0.0
        %3369 = vmatpush1.msra.mxu0 0.0
        %3370 = vmatprep.subr.mxu0 0.0
        %3371 = vmatpush1.msra.mxu0 0.0
        %3372 = vmatprep.subr.mxu0 0.0
        %3373 = vmatpush1.msra.mxu0 0.0
        %3374 = vmatprep.subr.mxu0 0.0
        %3375 = vmatpush1.msra.mxu0 0.0
        %3376 = vmatprep.subr.mxu0 0.0
        %3377 = vmatpush1.msra.mxu0 0.0
        %3378 = vmatprep.subr.mxu0 0.0
        %3379 = vmatpush1.msra.mxu0 0.0
        %3380 = vmatprep.subr.mxu0 0.0
        %3381 = vmatpush1.msra.mxu0 0.0
        %3382 = vmatprep.subr.mxu0 0.0
        %3383 = vmatpush1.msra.mxu0 0.0
        %3384 = vmatprep.subr.mxu0 0.0
        %3385 = vmatpush1.msra.mxu0 0.0
        %3386 = vmatprep.subr.mxu0 0.0
        %3387 = vmatpush1.msra.mxu0 0.0
        %3388 = vmatprep.subr.mxu0 0.0
        %3389 = vmatpush1.msra.mxu0 0.0
        %3390 = vmatprep.subr.mxu0 0.0
        %3391 = vmatpush1.msra.mxu0 0.0
        %3392 = vmatprep.subr.mxu0 0.0
        %3393 = vmatpush1.msra.mxu0 0.0
        %3394 = vmatprep.subr.mxu0 0.0
        %3395 = vmatpush1.msra.mxu0 0.0
        %3396 = vmatprep.subr.mxu0 0.0
        %3397 = vmatpush1.msra.mxu0 0.0
        %3398 = vmatprep.subr.mxu0 0.0
        %3399 = vmatpush1.msra.mxu0 0.0
        %3400 = vmatprep.mubr.f32.mxu0 0.0
        %3401 = vmatmul.mubr.f32.gmra.mrb[0].mxu0 %v3331
        %v3402 = vpop.f32.mrb[0].mxu0
        %v3403 = vadd.f32 0.0, %v3402
        %v3404 = vpop.f32.mrb[0].mxu0
        %3405 = vmatprep.mubr.f32.mxu0 0.0
        %3406 = vmatmul.mubr.f32.gmra.mrb[0].mxu0 %v3334
        %v3407 = vpop.f32.mrb[0].mxu0
        %v3408 = vadd.f32 0.0, %v3407
        %v3409 = vpop.f32.mrb[0].mxu0
        %3410 = vdwg.mxu0
        %v3412 = vsel %vm1971, %v2842, 0
        %v3415 = vsel %vm1971, %v2843, 0
        %3417 = vmatprep.subr.mxu0 0.0
        %3418 = vmatpush1.msra.mxu0 %v1963
        %3419 = vmatprep.subr.mxu0 0.0
        %3420 = vmatpush1.msra.mxu0 %v1966
        %3421 = vmatprep.subr.mxu0 0.0
        %3422 = vmatpush1.msra.mxu0 0.0
        %3423 = vmatprep.subr.mxu0 0.0
        %3424 = vmatpush1.msra.mxu0 0.0
        %3425 = vmatprep.subr.mxu0 0.0
        %3426 = vmatpush1.msra.mxu0 0.0
        %3427 = vmatprep.subr.mxu0 0.0
        %3428 = vmatpush1.msra.mxu0 0.0
        %3429 = vmatprep.subr.mxu0 0.0
        %3430 = vmatpush1.msra.mxu0 0.0
        %3431 = vmatprep.subr.mxu0 0.0
        %3432 = vmatpush1.msra.mxu0 0.0
        %3433 = vmatprep.subr.mxu0 0.0
        %3434 = vmatpush1.msra.mxu0 0.0
        %3435 = vmatprep.subr.mxu0 0.0
        %3436 = vmatpush1.msra.mxu0 0.0
        %3437 = vmatprep.subr.mxu0 0.0
        %3438 = vmatpush1.msra.mxu0 0.0
        %3439 = vmatprep.subr.mxu0 0.0
        %3440 = vmatpush1.msra.mxu0 0.0
        %3441 = vmatprep.subr.mxu0 0.0
        %3442 = vmatpush1.msra.mxu0 0.0
        %3443 = vmatprep.subr.mxu0 0.0
        %3444 = vmatpush1.msra.mxu0 0.0
        %3445 = vmatprep.subr.mxu0 0.0
        %3446 = vmatpush1.msra.mxu0 0.0
        %3447 = vmatprep.subr.mxu0 0.0
        %3448 = vmatpush1.msra.mxu0 0.0
        %3449 = vmatprep.subr.mxu0 0.0
        %3450 = vmatpush1.msra.mxu0 0.0
        %3451 = vmatprep.subr.mxu0 0.0
        %3452 = vmatpush1.msra.mxu0 0.0
        %3453 = vmatprep.subr.mxu0 0.0
        %3454 = vmatpush1.msra.mxu0 0.0
        %3455 = vmatprep.subr.mxu0 0.0
        %3456 = vmatpush1.msra.mxu0 0.0
        %3457 = vmatprep.subr.mxu0 0.0
        %3458 = vmatpush1.msra.mxu0 0.0
        %3459 = vmatprep.subr.mxu0 0.0
        %3460 = vmatpush1.msra.mxu0 0.0
        %3461 = vmatprep.subr.mxu0 0.0
        %3462 = vmatpush1.msra.mxu0 0.0
        %3463 = vmatprep.subr.mxu0 0.0
        %3464 = vmatpush1.msra.mxu0 0.0
        %3465 = vmatprep.subr.mxu0 0.0
        %3466 = vmatpush1.msra.mxu0 0.0
        %3467 = vmatprep.subr.mxu0 0.0
        %3468 = vmatpush1.msra.mxu0 0.0
        %3469 = vmatprep.subr.mxu0 0.0
        %3470 = vmatpush1.msra.mxu0 0.0
        %3471 = vmatprep.subr.mxu0 0.0
        %3472 = vmatpush1.msra.mxu0 0.0
        %3473 = vmatprep.subr.mxu0 0.0
        %3474 = vmatpush1.msra.mxu0 0.0
        %3475 = vmatprep.subr.mxu0 0.0
        %3476 = vmatpush1.msra.mxu0 0.0
        %3477 = vmatprep.subr.mxu0 0.0
        %3478 = vmatpush1.msra.mxu0 0.0
        %3479 = vmatprep.subr.mxu0 0.0
        %3480 = vmatpush1.msra.mxu0 0.0
        %3481 = vmatprep.mubr.f32.mxu0 0.0
        %3482 = vmatmul.mubr.f32.gmra.mrb[0].mxu0 %v3412
        %v3483 = vpop.f32.mrb[0].mxu0
        %v3484 = vadd.f32 0.0, %v3483
        %v3485 = vpop.f32.mrb[0].mxu0
        %3486 = vmatprep.mubr.f32.mxu0 0.0
        %3487 = vmatmul.mubr.f32.gmra.mrb[0].mxu0 %v3415
        %v3488 = vpop.f32.mrb[0].mxu0
        %v3489 = vadd.f32 0.0, %v3488
        %v3490 = vpop.f32.mrb[0].mxu0
        %3491 = vdwg.mxu0
        %v3492 = vpack.c.bf16 %v2922, %v2917
        %v3493 = vpack.c.bf16 %v3003, %v2998
        %v3494 = vpack.c.bf16 %v3084, %v3079
        %v3495 = vpack.c.bf16 %v3165, %v3160
        %v3496 = vpack.c.bf16 %v3246, %v3241
        %v3497 = vpack.c.bf16 %v3327, %v3322
        %v3498 = vpack.c.bf16 %v3408, %v3403
        %v3499 = vpack.c.bf16 %v3489, %v3484
        %v3500 = vld [vmem:[%s665] sm:$0xf]
        %v3501 = vld [vmem:[%s665 + $0x4] sm:$0xf]
        %v3502 = vld [vmem:[%s665 + $0x8] sm:$0xf]
        %v3503 = vld [vmem:[%s665 + $0xc] sm:$0xf]
        %v3504 = vld [vmem:[%s665 + $0x10] sm:$0xf]
        %v3505 = vld [vmem:[%s665 + $0x14] sm:$0xf]
        %v3506 = vld [vmem:[%s665 + $0x18] sm:$0xf]
        %v3507 = vld [vmem:[%s665 + $0x1c] sm:$0xf]
        %v3508 = vld [vmem:[%s665 + $0x20] sm:$0xf]
        %v3509 = vld [vmem:[%s665 + $0x24] sm:$0xf]
        %v3510 = vld [vmem:[%s665 + $0x28] sm:$0xf]
        %v3511 = vld [vmem:[%s665 + $0x2c] sm:$0xf]
        %v3512 = vld [vmem:[%s665 + $0x30] sm:$0xf]
        %v3513 = vld [vmem:[%s665 + $0x34] sm:$0xf]
        %v3514 = vld [vmem:[%s665 + $0x38] sm:$0xf]
        %v3515 = vld [vmem:[%s665 + $0x3c] sm:$0xf]
        %v3518 = vunpack.c.l.b16 %v3500
        %v3519 = vunpack.c.l.b16 %v3501
        %v3520 = vpack.c.b16 %v3519, %v3518
        %v3523 = vsel %vm1971, %v3492, 0
        %3525 = vmatprep.subr.bf16.mxu0 0
        %3526 = vmatpush1.bf16.msra.mxu0 %v3520
        %3527 = vmatprep.subr.bf16.mxu0 0
        %3528 = vmatpush1.bf16.msra.mxu0 0
        %3529 = vmatprep.subr.bf16.mxu0 0
        %3530 = vmatpush1.bf16.msra.mxu0 0
        %3531 = vmatprep.subr.bf16.mxu0 0
        %3532 = vmatpush1.bf16.msra.mxu0 0
        %3533 = vmatprep.subr.bf16.mxu0 0
        %3534 = vmatpush1.bf16.msra.mxu0 0
        %3535 = vmatprep.subr.bf16.mxu0 0
        %3536 = vmatpush1.bf16.msra.mxu0 0
        %3537 = vmatprep.subr.bf16.mxu0 0
        %3538 = vmatpush1.bf16.msra.mxu0 0
        %3539 = vmatprep.subr.bf16.mxu0 0
        %3540 = vmatpush1.bf16.msra.mxu0 0
        %3541 = vmatprep.subr.bf16.mxu0 0
        %3542 = vmatpush1.bf16.msra.mxu0 0
        %3543 = vmatprep.subr.bf16.mxu0 0
        %3544 = vmatpush1.bf16.msra.mxu0 0
        %3545 = vmatprep.subr.bf16.mxu0 0
        %3546 = vmatpush1.bf16.msra.mxu0 0
        %3547 = vmatprep.subr.bf16.mxu0 0
        %3548 = vmatpush1.bf16.msra.mxu0 0
        %3549 = vmatprep.subr.bf16.mxu0 0
        %3550 = vmatpush1.bf16.msra.mxu0 0
        %3551 = vmatprep.subr.bf16.mxu0 0
        %3552 = vmatpush1.bf16.msra.mxu0 0
        %3553 = vmatprep.subr.bf16.mxu0 0
        %3554 = vmatpush1.bf16.msra.mxu0 0
        %3555 = vmatprep.subr.bf16.mxu0 0
        %3556 = vmatpush1.bf16.msra.mxu0 0
        %3557 = vmatprep.mubr.bf16.mxu0 0
        %3558 = vmatmul.mubr.bf16.gmra.mrb[0].mxu0 %v3523
        %v3559 = vpop.f32.mrb[0].mxu0
        %v3560 = vadd.f32 0.0, %v3559
        %v3561 = vpop.f32.mrb[0].mxu0
        %v3562 = vpop.f32.mrb[0].mxu0
        %v3563 = vadd.f32 0.0, %v3562
        %v3564 = vpop.f32.mrb[0].mxu0
        %3565 = vdwg.mxu0
        %v3568 = vunpack.c.l.b16 %v3502
        %v3569 = vunpack.c.l.b16 %v3503
        %v3570 = vpack.c.b16 %v3569, %v3568
        %v3573 = vsel %vm1971, %v3493, 0
        %3575 = vmatprep.subr.bf16.mxu0 0
        %3576 = vmatpush1.bf16.msra.mxu0 %v3570
        %3577 = vmatprep.subr.bf16.mxu0 0
        %3578 = vmatpush1.bf16.msra.mxu0 0
        %3579 = vmatprep.subr.bf16.mxu0 0
        %3580 = vmatpush1.bf16.msra.mxu0 0
        %3581 = vmatprep.subr.bf16.mxu0 0
        %3582 = vmatpush1.bf16.msra.mxu0 0
        %3583 = vmatprep.subr.bf16.mxu0 0
        %3584 = vmatpush1.bf16.msra.mxu0 0
        %3585 = vmatprep.subr.bf16.mxu0 0
        %3586 = vmatpush1.bf16.msra.mxu0 0
        %3587 = vmatprep.subr.bf16.mxu0 0
        %3588 = vmatpush1.bf16.msra.mxu0 0
        %3589 = vmatprep.subr.bf16.mxu0 0
        %3590 = vmatpush1.bf16.msra.mxu0 0
        %3591 = vmatprep.subr.bf16.mxu0 0
        %3592 = vmatpush1.bf16.msra.mxu0 0
        %3593 = vmatprep.subr.bf16.mxu0 0
        %3594 = vmatpush1.bf16.msra.mxu0 0
        %3595 = vmatprep.subr.bf16.mxu0 0
        %3596 = vmatpush1.bf16.msra.mxu0 0
        %3597 = vmatprep.subr.bf16.mxu0 0
        %3598 = vmatpush1.bf16.msra.mxu0 0
        %3599 = vmatprep.subr.bf16.mxu0 0
        %3600 = vmatpush1.bf16.msra.mxu0 0
        %3601 = vmatprep.subr.bf16.mxu0 0
        %3602 = vmatpush1.bf16.msra.mxu0 0
        %3603 = vmatprep.subr.bf16.mxu0 0
        %3604 = vmatpush1.bf16.msra.mxu0 0
        %3605 = vmatprep.subr.bf16.mxu0 0
        %3606 = vmatpush1.bf16.msra.mxu0 0
        %3607 = vmatprep.mubr.bf16.mxu0 0
        %3608 = vmatmul.mubr.bf16.gmra.mrb[0].mxu0 %v3573
        %v3609 = vpop.f32.mrb[0].mxu0
        %v3610 = vadd.f32 0.0, %v3609
        %v3611 = vpop.f32.mrb[0].mxu0
        %v3612 = vpop.f32.mrb[0].mxu0
        %v3613 = vadd.f32 0.0, %v3612
        %v3614 = vpop.f32.mrb[0].mxu0
        %3615 = vdwg.mxu0
        %v3618 = vunpack.c.l.b16 %v3504
        %v3619 = vunpack.c.l.b16 %v3505
        %v3620 = vpack.c.b16 %v3619, %v3618
        %v3623 = vsel %vm1971, %v3494, 0
        %3625 = vmatprep.subr.bf16.mxu0 0
        %3626 = vmatpush1.bf16.msra.mxu0 %v3620
        %3627 = vmatprep.subr.bf16.mxu0 0
        %3628 = vmatpush1.bf16.msra.mxu0 0
        %3629 = vmatprep.subr.bf16.mxu0 0
        %3630 = vmatpush1.bf16.msra.mxu0 0
        %3631 = vmatprep.subr.bf16.mxu0 0
        %3632 = vmatpush1.bf16.msra.mxu0 0
        %3633 = vmatprep.subr.bf16.mxu0 0
        %3634 = vmatpush1.bf16.msra.mxu0 0
        %3635 = vmatprep.subr.bf16.mxu0 0
        %3636 = vmatpush1.bf16.msra.mxu0 0
        %3637 = vmatprep.subr.bf16.mxu0 0
        %3638 = vmatpush1.bf16.msra.mxu0 0
        %3639 = vmatprep.subr.bf16.mxu0 0
        %3640 = vmatpush1.bf16.msra.mxu0 0
        %3641 = vmatprep.subr.bf16.mxu0 0
        %3642 = vmatpush1.bf16.msra.mxu0 0
        %3643 = vmatprep.subr.bf16.mxu0 0
        %3644 = vmatpush1.bf16.msra.mxu0 0
        %3645 = vmatprep.subr.bf16.mxu0 0
        %3646 = vmatpush1.bf16.msra.mxu0 0
        %3647 = vmatprep.subr.bf16.mxu0 0
        %3648 = vmatpush1.bf16.msra.mxu0 0
        %3649 = vmatprep.subr.bf16.mxu0 0
        %3650 = vmatpush1.bf16.msra.mxu0 0
        %3651 = vmatprep.subr.bf16.mxu0 0
        %3652 = vmatpush1.bf16.msra.mxu0 0
        %3653 = vmatprep.subr.bf16.mxu0 0
        %3654 = vmatpush1.bf16.msra.mxu0 0
        %3655 = vmatprep.subr.bf16.mxu0 0
        %3656 = vmatpush1.bf16.msra.mxu0 0
        %3657 = vmatprep.mubr.bf16.mxu0 0
        %3658 = vmatmul.mubr.bf16.gmra.mrb[0].mxu0 %v3623
        %v3659 = vpop.f32.mrb[0].mxu0
        %v3660 = vadd.f32 0.0, %v3659
        %v3661 = vpop.f32.mrb[0].mxu0
        %v3662 = vpop.f32.mrb[0].mxu0
        %v3663 = vadd.f32 0.0, %v3662
        %v3664 = vpop.f32.mrb[0].mxu0
        %3665 = vdwg.mxu0
        %v3668 = vunpack.c.l.b16 %v3506
        %v3669 = vunpack.c.l.b16 %v3507
        %v3670 = vpack.c.b16 %v3669, %v3668
        %v3673 = vsel %vm1971, %v3495, 0
        %3675 = vmatprep.subr.bf16.mxu0 0
        %3676 = vmatpush1.bf16.msra.mxu0 %v3670
        %3677 = vmatprep.subr.bf16.mxu0 0
        %3678 = vmatpush1.bf16.msra.mxu0 0
        %3679 = vmatprep.subr.bf16.mxu0 0
        %3680 = vmatpush1.bf16.msra.mxu0 0
        %3681 = vmatprep.subr.bf16.mxu0 0
        %3682 = vmatpush1.bf16.msra.mxu0 0
        %3683 = vmatprep.subr.bf16.mxu0 0
        %3684 = vmatpush1.bf16.msra.mxu0 0
        %3685 = vmatprep.subr.bf16.mxu0 0
        %3686 = vmatpush1.bf16.msra.mxu0 0
        %3687 = vmatprep.subr.bf16.mxu0 0
        %3688 = vmatpush1.bf16.msra.mxu0 0
        %3689 = vmatprep.subr.bf16.mxu0 0
        %3690 = vmatpush1.bf16.msra.mxu0 0
        %3691 = vmatprep.subr.bf16.mxu0 0
        %3692 = vmatpush1.bf16.msra.mxu0 0
        %3693 = vmatprep.subr.bf16.mxu0 0
        %3694 = vmatpush1.bf16.msra.mxu0 0
        %3695 = vmatprep.subr.bf16.mxu0 0
        %3696 = vmatpush1.bf16.msra.mxu0 0
        %3697 = vmatprep.subr.bf16.mxu0 0
        %3698 = vmatpush1.bf16.msra.mxu0 0
        %3699 = vmatprep.subr.bf16.mxu0 0
        %3700 = vmatpush1.bf16.msra.mxu0 0
        %3701 = vmatprep.subr.bf16.mxu0 0
        %3702 = vmatpush1.bf16.msra.mxu0 0
        %3703 = vmatprep.subr.bf16.mxu0 0
        %3704 = vmatpush1.bf16.msra.mxu0 0
        %3705 = vmatprep.subr.bf16.mxu0 0
        %3706 = vmatpush1.bf16.msra.mxu0 0
        %3707 = vmatprep.mubr.bf16.mxu0 0
        %3708 = vmatmul.mubr.bf16.gmra.mrb[0].mxu0 %v3673
        %v3709 = vpop.f32.mrb[0].mxu0
        %v3710 = vadd.f32 0.0, %v3709
        %v3711 = vpop.f32.mrb[0].mxu0
        %v3712 = vpop.f32.mrb[0].mxu0
        %v3713 = vadd.f32 0.0, %v3712
        %v3714 = vpop.f32.mrb[0].mxu0
        %3715 = vdwg.mxu0
        %v3718 = vunpack.c.l.b16 %v3508
        %v3719 = vunpack.c.l.b16 %v3509
        %v3720 = vpack.c.b16 %v3719, %v3718
        %v3723 = vsel %vm1971, %v3496, 0
        %3725 = vmatprep.subr.bf16.mxu0 0
        %3726 = vmatpush1.bf16.msra.mxu0 %v3720
        %3727 = vmatprep.subr.bf16.mxu0 0
        %3728 = vmatpush1.bf16.msra.mxu0 0
        %3729 = vmatprep.subr.bf16.mxu0 0
        %3730 = vmatpush1.bf16.msra.mxu0 0
        %3731 = vmatprep.subr.bf16.mxu0 0
        %3732 = vmatpush1.bf16.msra.mxu0 0
        %3733 = vmatprep.subr.bf16.mxu0 0
        %3734 = vmatpush1.bf16.msra.mxu0 0
        %3735 = vmatprep.subr.bf16.mxu0 0
        %3736 = vmatpush1.bf16.msra.mxu0 0
        %3737 = vmatprep.subr.bf16.mxu0 0
        %3738 = vmatpush1.bf16.msra.mxu0 0
        %3739 = vmatprep.subr.bf16.mxu0 0
        %3740 = vmatpush1.bf16.msra.mxu0 0
        %3741 = vmatprep.subr.bf16.mxu0 0
        %3742 = vmatpush1.bf16.msra.mxu0 0
        %3743 = vmatprep.subr.bf16.mxu0 0
        %3744 = vmatpush1.bf16.msra.mxu0 0
        %3745 = vmatprep.subr.bf16.mxu0 0
        %3746 = vmatpush1.bf16.msra.mxu0 0
        %3747 = vmatprep.subr.bf16.mxu0 0
        %3748 = vmatpush1.bf16.msra.mxu0 0
        %3749 = vmatprep.subr.bf16.mxu0 0
        %3750 = vmatpush1.bf16.msra.mxu0 0
        %3751 = vmatprep.subr.bf16.mxu0 0
        %3752 = vmatpush1.bf16.msra.mxu0 0
        %3753 = vmatprep.subr.bf16.mxu0 0
        %3754 = vmatpush1.bf16.msra.mxu0 0
        %3755 = vmatprep.subr.bf16.mxu0 0
        %3756 = vmatpush1.bf16.msra.mxu0 0
        %3757 = vmatprep.mubr.bf16.mxu0 0
        %3758 = vmatmul.mubr.bf16.gmra.mrb[0].mxu0 %v3723
        %v3759 = vpop.f32.mrb[0].mxu0
        %v3760 = vadd.f32 0.0, %v3759
        %v3761 = vpop.f32.mrb[0].mxu0
        %v3762 = vpop.f32.mrb[0].mxu0
        %v3763 = vadd.f32 0.0, %v3762
        %v3764 = vpop.f32.mrb[0].mxu0
        %3765 = vdwg.mxu0
        %v3768 = vunpack.c.l.b16 %v3510
        %v3769 = vunpack.c.l.b16 %v3511
        %v3770 = vpack.c.b16 %v3769, %v3768
        %v3773 = vsel %vm1971, %v3497, 0
        %3775 = vmatprep.subr.bf16.mxu0 0
        %3776 = vmatpush1.bf16.msra.mxu0 %v3770
        %3777 = vmatprep.subr.bf16.mxu0 0
        %3778 = vmatpush1.bf16.msra.mxu0 0
        %3779 = vmatprep.subr.bf16.mxu0 0
        %3780 = vmatpush1.bf16.msra.mxu0 0
        %3781 = vmatprep.subr.bf16.mxu0 0
        %3782 = vmatpush1.bf16.msra.mxu0 0
        %3783 = vmatprep.subr.bf16.mxu0 0
        %3784 = vmatpush1.bf16.msra.mxu0 0
        %3785 = vmatprep.subr.bf16.mxu0 0
        %3786 = vmatpush1.bf16.msra.mxu0 0
        %3787 = vmatprep.subr.bf16.mxu0 0
        %3788 = vmatpush1.bf16.msra.mxu0 0
        %3789 = vmatprep.subr.bf16.mxu0 0
        %3790 = vmatpush1.bf16.msra.mxu0 0
        %3791 = vmatprep.subr.bf16.mxu0 0
        %3792 = vmatpush1.bf16.msra.mxu0 0
        %3793 = vmatprep.subr.bf16.mxu0 0
        %3794 = vmatpush1.bf16.msra.mxu0 0
        %3795 = vmatprep.subr.bf16.mxu0 0
        %3796 = vmatpush1.bf16.msra.mxu0 0
        %3797 = vmatprep.subr.bf16.mxu0 0
        %3798 = vmatpush1.bf16.msra.mxu0 0
        %3799 = vmatprep.subr.bf16.mxu0 0
        %3800 = vmatpush1.bf16.msra.mxu0 0
        %3801 = vmatprep.subr.bf16.mxu0 0
        %3802 = vmatpush1.bf16.msra.mxu0 0
        %3803 = vmatprep.subr.bf16.mxu0 0
        %3804 = vmatpush1.bf16.msra.mxu0 0
        %3805 = vmatprep.subr.bf16.mxu0 0
        %3806 = vmatpush1.bf16.msra.mxu0 0
        %3807 = vmatprep.mubr.bf16.mxu0 0
        %3808 = vmatmul.mubr.bf16.gmra.mrb[0].mxu0 %v3773
        %v3809 = vpop.f32.mrb[0].mxu0
        %v3810 = vadd.f32 0.0, %v3809
        %v3811 = vpop.f32.mrb[0].mxu0
        %v3812 = vpop.f32.mrb[0].mxu0
        %v3813 = vadd.f32 0.0, %v3812
        %v3814 = vpop.f32.mrb[0].mxu0
        %3815 = vdwg.mxu0
        %v3818 = vunpack.c.l.b16 %v3512
        %v3819 = vunpack.c.l.b16 %v3513
        %v3820 = vpack.c.b16 %v3819, %v3818
        %v3823 = vsel %vm1971, %v3498, 0
        %3825 = vmatprep.subr.bf16.mxu0 0
        %3826 = vmatpush1.bf16.msra.mxu0 %v3820
        %3827 = vmatprep.subr.bf16.mxu0 0
        %3828 = vmatpush1.bf16.msra.mxu0 0
        %3829 = vmatprep.subr.bf16.mxu0 0
        %3830 = vmatpush1.bf16.msra.mxu0 0
        %3831 = vmatprep.subr.bf16.mxu0 0
        %3832 = vmatpush1.bf16.msra.mxu0 0
        %3833 = vmatprep.subr.bf16.mxu0 0
        %3834 = vmatpush1.bf16.msra.mxu0 0
        %3835 = vmatprep.subr.bf16.mxu0 0
        %3836 = vmatpush1.bf16.msra.mxu0 0
        %3837 = vmatprep.subr.bf16.mxu0 0
        %3838 = vmatpush1.bf16.msra.mxu0 0
        %3839 = vmatprep.subr.bf16.mxu0 0
        %3840 = vmatpush1.bf16.msra.mxu0 0
        %3841 = vmatprep.subr.bf16.mxu0 0
        %3842 = vmatpush1.bf16.msra.mxu0 0
        %3843 = vmatprep.subr.bf16.mxu0 0
        %3844 = vmatpush1.bf16.msra.mxu0 0
        %3845 = vmatprep.subr.bf16.mxu0 0
        %3846 = vmatpush1.bf16.msra.mxu0 0
        %3847 = vmatprep.subr.bf16.mxu0 0
        %3848 = vmatpush1.bf16.msra.mxu0 0
        %3849 = vmatprep.subr.bf16.mxu0 0
        %3850 = vmatpush1.bf16.msra.mxu0 0
        %3851 = vmatprep.subr.bf16.mxu0 0
        %3852 = vmatpush1.bf16.msra.mxu0 0
        %3853 = vmatprep.subr.bf16.mxu0 0
        %3854 = vmatpush1.bf16.msra.mxu0 0
        %3855 = vmatprep.subr.bf16.mxu0 0
        %3856 = vmatpush1.bf16.msra.mxu0 0
        %3857 = vmatprep.mubr.bf16.mxu0 0
        %3858 = vmatmul.mubr.bf16.gmra.mrb[0].mxu0 %v3823
        %v3859 = vpop.f32.mrb[0].mxu0
        %v3860 = vadd.f32 0.0, %v3859
        %v3861 = vpop.f32.mrb[0].mxu0
        %v3862 = vpop.f32.mrb[0].mxu0
        %v3863 = vadd.f32 0.0, %v3862
        %v3864 = vpop.f32.mrb[0].mxu0
        %3865 = vdwg.mxu0
        %v3868 = vunpack.c.l.b16 %v3514
        %v3869 = vunpack.c.l.b16 %v3515
        %v3870 = vpack.c.b16 %v3869, %v3868
        %v3873 = vsel %vm1971, %v3499, 0
        %3875 = vmatprep.subr.bf16.mxu0 0
        %3876 = vmatpush1.bf16.msra.mxu0 %v3870
        %3877 = vmatprep.subr.bf16.mxu0 0
        %3878 = vmatpush1.bf16.msra.mxu0 0
        %3879 = vmatprep.subr.bf16.mxu0 0
        %3880 = vmatpush1.bf16.msra.mxu0 0
        %3881 = vmatprep.subr.bf16.mxu0 0
        %3882 = vmatpush1.bf16.msra.mxu0 0
        %3883 = vmatprep.subr.bf16.mxu0 0
        %3884 = vmatpush1.bf16.msra.mxu0 0
        %3885 = vmatprep.subr.bf16.mxu0 0
        %3886 = vmatpush1.bf16.msra.mxu0 0
        %3887 = vmatprep.subr.bf16.mxu0 0
        %3888 = vmatpush1.bf16.msra.mxu0 0
        %3889 = vmatprep.subr.bf16.mxu0 0
        %3890 = vmatpush1.bf16.msra.mxu0 0
        %3891 = vmatprep.subr.bf16.mxu0 0
        %3892 = vmatpush1.bf16.msra.mxu0 0
        %3893 = vmatprep.subr.bf16.mxu0 0
        %3894 = vmatpush1.bf16.msra.mxu0 0
        %3895 = vmatprep.subr.bf16.mxu0 0
        %3896 = vmatpush1.bf16.msra.mxu0 0
        %3897 = vmatprep.subr.bf16.mxu0 0
        %3898 = vmatpush1.bf16.msra.mxu0 0
        %3899 = vmatprep.subr.bf16.mxu0 0
        %3900 = vmatpush1.bf16.msra.mxu0 0
        %3901 = vmatprep.subr.bf16.mxu0 0
        %3902 = vmatpush1.bf16.msra.mxu0 0
        %3903 = vmatprep.subr.bf16.mxu0 0
        %3904 = vmatpush1.bf16.msra.mxu0 0
        %3905 = vmatprep.subr.bf16.mxu0 0
        %3906 = vmatpush1.bf16.msra.mxu0 0
        %3907 = vmatprep.mubr.bf16.mxu0 0
        %3908 = vmatmul.mubr.bf16.gmra.mrb[0].mxu0 %v3873
        %v3909 = vpop.f32.mrb[0].mxu0
        %v3910 = vadd.f32 0.0, %v3909
        %v3911 = vpop.f32.mrb[0].mxu0
        %v3912 = vpop.f32.mrb[0].mxu0
        %v3913 = vadd.f32 0.0, %v3912
        %v3914 = vpop.f32.mrb[0].mxu0
        %3915 = vdwg.mxu0
        %v3916 = vadd.f32 %v3560, %v3610
        %v3917 = vadd.f32 %v3916, %v3660
        %v3918 = vadd.f32 %v3917, %v3710
        %v3919 = vadd.f32 %v3918, %v3760
        %v3920 = vadd.f32 %v3919, %v3810
        %v3921 = vadd.f32 %v3920, %v3860
        %v3922 = vadd.f32 %v3921, %v3910
        %v3923 = vadd.f32 %v3563, %v3613
        %v3924 = vadd.f32 %v3923, %v3663
        %v3925 = vadd.f32 %v3924, %v3713
        %v3926 = vadd.f32 %v3925, %v3763
        %v3927 = vadd.f32 %v3926, %v3813
        %v3928 = vadd.f32 %v3927, %v3863
        %v3929 = vadd.f32 %v3928, %v3913
        %v3930 = vlaneseq
        %v3931 = vshrl.u32 %v3930, 7
        %v3932 = vsub.s32 0, %v3931
        %v3933 = vrot.slane %v776, %v3932
        %v3934 = vadd.f32 %v3922, %v3933
        %v3935 = vadd.f32 %v3929, %v3933
        %v3936 = vadd.f32 %v773, %v3934
        %v3937 = vadd.f32 %v774, %v3935
        %3938 = vadd.xlane.f32.xlu0 %v3936
        %v3939 = vpop.xlane.xlu0 %3938
        %3940 = vadd.xlane.f32.xlu0 %v3937
        %v3941 = vpop.xlane.xlu0 %3940
        %v3942 = vrcp.pop 128.0
        %v3943 = vmul.f32 %v3939, %v3942
        %v3944 = vmul.f32 %v3941, %v3942
        %v3945 = vsub.f32 %v3936, %v3943
        %v3946 = vsub.f32 %v3937, %v3944
        %v3947 = vmul.f32 %v3945, %v3945
        %v3948 = vmul.f32 %v3946, %v3946
        %3949 = vadd.xlane.f32.xlu0 %v3947
        %v3950 = vpop.xlane.xlu0 %3949
        %3951 = vadd.xlane.f32.xlu0 %v3948
        %v3952 = vpop.xlane.xlu0 %3951
        %v3953 = vmul.f32 %v3950, %v3942
        %v3954 = vmul.f32 %v3952, %v3942
        %v3955 = vadd.f32 %v3953, 1e-05
        %v3956 = vadd.f32 %v3954, 1e-05
        %v3957 = vrsqrt.pop %v3955
        %v3958 = vrsqrt.pop %v3956
        %v3959 = vmul.f32 %v3945, %v3957
        %v3960 = vmul.f32 %v3946, %v3958
        %v3961 = vlaneseq
        %v3962 = vshrl.u32 %v3961, 7
        %v3963 = vsub.s32 1, %v3962
        %v3964 = vrot.slane %v776, %v3963
        %v3965 = vmul.f32 %v3959, %v3964
        %v3966 = vmul.f32 %v3960, %v3964
        %v3967 = vlaneseq
        %v3968 = vshrl.u32 %v3967, 7
        %v3969 = vsub.s32 2, %v3968
        %v3970 = vrot.slane %v776, %v3969
        %v3971 = vadd.f32 %v3965, %v3970
        %v3972 = vadd.f32 %v3966, %v3970
        %v3973 = vpack.c.bf16 %v3972, %v3971
        %v3974 = vld [vmem:[%s552] sm:$0xff]
        %v3975 = vld [vmem:[%s552 + $0x8] sm:$0xff]
        %v3976 = vld [vmem:[%s552 + $0x10] sm:$0xff]
        %v3977 = vld [vmem:[%s552 + $0x18] sm:$0xff]
        %v3978 = vld [vmem:[%s552 + $0x20] sm:$0xff]
        %v3979 = vld [vmem:[%s552 + $0x28] sm:$0xff]
        %v3980 = vld [vmem:[%s552 + $0x30] sm:$0xff]
        %v3981 = vld [vmem:[%s552 + $0x38] sm:$0xff]
        %v3982 = vld [vmem:[%s552 + $0x40] sm:$0xff]
        %v3983 = vld [vmem:[%s552 + $0x48] sm:$0xff]
        %v3984 = vld [vmem:[%s552 + $0x50] sm:$0xff]
        %v3985 = vld [vmem:[%s552 + $0x58] sm:$0xff]
        %v3986 = vld [vmem:[%s552 + $0x60] sm:$0xff]
        %v3987 = vld [vmem:[%s552 + $0x68] sm:$0xff]
        %v3988 = vld [vmem:[%s552 + $0x70] sm:$0xff]
        %v3989 = vld [vmem:[%s552 + $0x78] sm:$0xff]
        %v3990 = vld [vmem:[%s552 + $0x80] sm:$0xff]
        %v3991 = vld [vmem:[%s552 + $0x88] sm:$0xff]
        %v3992 = vld [vmem:[%s552 + $0x90] sm:$0xff]
        %v3993 = vld [vmem:[%s552 + $0x98] sm:$0xff]
        %v3994 = vld [vmem:[%s552 + $0xa0] sm:$0xff]
        %v3995 = vld [vmem:[%s552 + $0xa8] sm:$0xff]
        %v3996 = vld [vmem:[%s552 + $0xb0] sm:$0xff]
        %v3997 = vld [vmem:[%s552 + $0xb8] sm:$0xff]
        %v3998 = vld [vmem:[%s552 + $0xc0] sm:$0xff]
        %v3999 = vld [vmem:[%s552 + $0xc8] sm:$0xff]
        %v4000 = vld [vmem:[%s552 + $0xd0] sm:$0xff]
        %v4001 = vld [vmem:[%s552 + $0xd8] sm:$0xff]
        %v4002 = vld [vmem:[%s552 + $0xe0] sm:$0xff]
        %v4003 = vld [vmem:[%s552 + $0xe8] sm:$0xff]
        %v4004 = vld [vmem:[%s552 + $0xf0] sm:$0xff]
        %v4005 = vld [vmem:[%s552 + $0xf8] sm:$0xff]
        %v4006 = vld [vmem:[%s552 + $0x100] sm:$0xff]
        %v4007 = vld [vmem:[%s552 + $0x108] sm:$0xff]
        %v4008 = vld [vmem:[%s552 + $0x110] sm:$0xff]
        %v4009 = vld [vmem:[%s552 + $0x118] sm:$0xff]
        %v4010 = vld [vmem:[%s552 + $0x120] sm:$0xff]
        %v4011 = vld [vmem:[%s552 + $0x128] sm:$0xff]
        %v4012 = vld [vmem:[%s552 + $0x130] sm:$0xff]
        %v4013 = vld [vmem:[%s552 + $0x138] sm:$0xff]
        %v4014 = vld [vmem:[%s552 + $0x140] sm:$0xff]
        %v4015 = vld [vmem:[%s552 + $0x148] sm:$0xff]
        %v4016 = vld [vmem:[%s552 + $0x150] sm:$0xff]
        %v4017 = vld [vmem:[%s552 + $0x158] sm:$0xff]
        %v4018 = vld [vmem:[%s552 + $0x160] sm:$0xff]
        %v4019 = vld [vmem:[%s552 + $0x168] sm:$0xff]
        %v4020 = vld [vmem:[%s552 + $0x170] sm:$0xff]
        %v4021 = vld [vmem:[%s552 + $0x178] sm:$0xff]
        %v4022 = vld [vmem:[%s552 + $0x180] sm:$0xff]
        %v4023 = vld [vmem:[%s552 + $0x188] sm:$0xff]
        %v4024 = vld [vmem:[%s552 + $0x190] sm:$0xff]
        %v4025 = vld [vmem:[%s552 + $0x198] sm:$0xff]
        %v4026 = vld [vmem:[%s552 + $0x1a0] sm:$0xff]
        %v4027 = vld [vmem:[%s552 + $0x1a8] sm:$0xff]
        %v4028 = vld [vmem:[%s552 + $0x1b0] sm:$0xff]
        %v4029 = vld [vmem:[%s552 + $0x1b8] sm:$0xff]
        %v4030 = vld [vmem:[%s552 + $0x1c0] sm:$0xff]
        %v4031 = vld [vmem:[%s552 + $0x1c8] sm:$0xff]
        %v4032 = vld [vmem:[%s552 + $0x1d0] sm:$0xff]
        %v4033 = vld [vmem:[%s552 + $0x1d8] sm:$0xff]
        %v4034 = vld [vmem:[%s552 + $0x1e0] sm:$0xff]
        %v4035 = vld [vmem:[%s552 + $0x1e8] sm:$0xff]
        %v4036 = vld [vmem:[%s552 + $0x1f0] sm:$0xff]
        %v4037 = vld [vmem:[%s552 + $0x1f8] sm:$0xff]
        %v4038 = vld [vmem:[%s552 + $0x200] sm:$0xff]
        %v4039 = vld [vmem:[%s552 + $0x208] sm:$0xff]
        %v4040 = vld [vmem:[%s552 + $0x210] sm:$0xff]
        %v4041 = vld [vmem:[%s552 + $0x218] sm:$0xff]
        %v4042 = vld [vmem:[%s552 + $0x220] sm:$0xff]
        %v4043 = vld [vmem:[%s552 + $0x228] sm:$0xff]
        %v4044 = vld [vmem:[%s552 + $0x230] sm:$0xff]
        %v4045 = vld [vmem:[%s552 + $0x238] sm:$0xff]
        %v4046 = vld [vmem:[%s552 + $0x240] sm:$0xff]
        %v4047 = vld [vmem:[%s552 + $0x248] sm:$0xff]
        %v4048 = vld [vmem:[%s552 + $0x250] sm:$0xff]
        %v4049 = vld [vmem:[%s552 + $0x258] sm:$0xff]
        %v4050 = vld [vmem:[%s552 + $0x260] sm:$0xff]
        %v4051 = vld [vmem:[%s552 + $0x268] sm:$0xff]
        %v4052 = vld [vmem:[%s552 + $0x270] sm:$0xff]
        %v4053 = vld [vmem:[%s552 + $0x278] sm:$0xff]
        %v4054 = vld [vmem:[%s552 + $0x280] sm:$0xff]
        %v4055 = vld [vmem:[%s552 + $0x288] sm:$0xff]
        %v4056 = vld [vmem:[%s552 + $0x290] sm:$0xff]
        %v4057 = vld [vmem:[%s552 + $0x298] sm:$0xff]
        %v4058 = vld [vmem:[%s552 + $0x2a0] sm:$0xff]
        %v4059 = vld [vmem:[%s552 + $0x2a8] sm:$0xff]
        %v4060 = vld [vmem:[%s552 + $0x2b0] sm:$0xff]
        %v4061 = vld [vmem:[%s552 + $0x2b8] sm:$0xff]
        %v4062 = vld [vmem:[%s552 + $0x2c0] sm:$0xff]
        %v4063 = vld [vmem:[%s552 + $0x2c8] sm:$0xff]
        %v4064 = vld [vmem:[%s552 + $0x2d0] sm:$0xff]
        %v4065 = vld [vmem:[%s552 + $0x2d8] sm:$0xff]
        %v4066 = vld [vmem:[%s552 + $0x2e0] sm:$0xff]
        %v4067 = vld [vmem:[%s552 + $0x2e8] sm:$0xff]
        %v4068 = vld [vmem:[%s552 + $0x2f0] sm:$0xff]
        %v4069 = vld [vmem:[%s552 + $0x2f8] sm:$0xff]
        %v4070 = vld [vmem:[%s552 + $0x300] sm:$0xff]
        %v4071 = vld [vmem:[%s552 + $0x308] sm:$0xff]
        %v4072 = vld [vmem:[%s552 + $0x310] sm:$0xff]
        %v4073 = vld [vmem:[%s552 + $0x318] sm:$0xff]
        %v4074 = vld [vmem:[%s552 + $0x320] sm:$0xff]
        %v4075 = vld [vmem:[%s552 + $0x328] sm:$0xff]
        %v4076 = vld [vmem:[%s552 + $0x330] sm:$0xff]
        %v4077 = vld [vmem:[%s552 + $0x338] sm:$0xff]
        %v4078 = vld [vmem:[%s552 + $0x340] sm:$0xff]
        %v4079 = vld [vmem:[%s552 + $0x348] sm:$0xff]
        %v4080 = vld [vmem:[%s552 + $0x350] sm:$0xff]
        %v4081 = vld [vmem:[%s552 + $0x358] sm:$0xff]
        %v4082 = vld [vmem:[%s552 + $0x360] sm:$0xff]
        %v4083 = vld [vmem:[%s552 + $0x368] sm:$0xff]
        %v4084 = vld [vmem:[%s552 + $0x370] sm:$0xff]
        %v4085 = vld [vmem:[%s552 + $0x378] sm:$0xff]
        %v4086 = vld [vmem:[%s552 + $0x380] sm:$0xff]
        %v4087 = vld [vmem:[%s552 + $0x388] sm:$0xff]
        %v4088 = vld [vmem:[%s552 + $0x390] sm:$0xff]
        %v4089 = vld [vmem:[%s552 + $0x398] sm:$0xff]
        %v4090 = vld [vmem:[%s552 + $0x3a0] sm:$0xff]
        %v4091 = vld [vmem:[%s552 + $0x3a8] sm:$0xff]
        %v4092 = vld [vmem:[%s552 + $0x3b0] sm:$0xff]
        %v4093 = vld [vmem:[%s552 + $0x3b8] sm:$0xff]
        %v4094 = vld [vmem:[%s552 + $0x3c0] sm:$0xff]
        %v4095 = vld [vmem:[%s552 + $0x3c8] sm:$0xff]
        %v4096 = vld [vmem:[%s552 + $0x3d0] sm:$0xff]
        %v4097 = vld [vmem:[%s552 + $0x3d8] sm:$0xff]
        %v4098 = vld [vmem:[%s552 + $0x3e0] sm:$0xff]
        %v4099 = vld [vmem:[%s552 + $0x3e8] sm:$0xff]
        %v4100 = vld [vmem:[%s552 + $0x3f0] sm:$0xff]
        %v4101 = vld [vmem:[%s552 + $0x3f8] sm:$0xff]
        %v4102 = vld [vmem:[%s673] sm:$0xff]
        %v4103 = vld [vmem:[%s673 + $0x8] sm:$0xff]
        %v4106 = vlaneseq
        %v4107 = vshrl.u32 %v4106, 7
        %v4108 = vsub.s32 0, %v4107
        %v4109 = vrot.slane %v4102, %v4108
        %v4110 = vlaneseq
        %v4111 = vshrl.u32 %v4110, 7
        %v4112 = vsub.s32 1, %v4111
        %v4113 = vrot.slane %v4102, %v4112
        %v4114 = vlaneseq
        %v4115 = vshrl.u32 %v4114, 7
        %v4116 = vsub.s32 2, %v4115
        %v4117 = vrot.slane %v4102, %v4116
        %v4118 = vlaneseq
        %v4119 = vshrl.u32 %v4118, 7
        %v4120 = vsub.s32 3, %v4119
        %v4121 = vrot.slane %v4102, %v4120
        %v4122 = vlaneseq
        %v4123 = vshrl.u32 %v4122, 7
        %v4124 = vsub.s32 4, %v4123
        %v4125 = vrot.slane %v4102, %v4124
        %v4126 = vlaneseq
        %v4127 = vshrl.u32 %v4126, 7
        %v4128 = vsub.s32 5, %v4127
        %v4129 = vrot.slane %v4102, %v4128
        %v4130 = vlaneseq
        %v4131 = vshrl.u32 %v4130, 7
        %v4132 = vsub.s32 6, %v4131
        %v4133 = vrot.slane %v4102, %v4132
        %v4134 = vlaneseq
        %v4135 = vshrl.u32 %v4134, 7
        %v4136 = vsub.s32 7, %v4135
        %v4137 = vrot.slane %v4102, %v4136
        %v4138 = vlaneseq
        %v4139 = vshrl.u32 %v4138, 7
        %v4140 = vsub.s32 0, %v4139
        %v4141 = vrot.slane %v4103, %v4140
        %v4142 = vlaneseq
        %v4143 = vshrl.u32 %v4142, 7
        %v4144 = vsub.s32 1, %v4143
        %v4145 = vrot.slane %v4103, %v4144
        %v4146 = vlaneseq
        %v4147 = vshrl.u32 %v4146, 7
        %v4148 = vsub.s32 2, %v4147
        %v4149 = vrot.slane %v4103, %v4148
        %v4150 = vlaneseq
        %v4151 = vshrl.u32 %v4150, 7
        %v4152 = vsub.s32 3, %v4151
        %v4153 = vrot.slane %v4103, %v4152
        %v4154 = vlaneseq
        %v4155 = vshrl.u32 %v4154, 7
        %v4156 = vsub.s32 4, %v4155
        %v4157 = vrot.slane %v4103, %v4156
        %v4158 = vlaneseq
        %v4159 = vshrl.u32 %v4158, 7
        %v4160 = vsub.s32 5, %v4159
        %v4161 = vrot.slane %v4103, %v4160
        %v4162 = vlaneseq
        %v4163 = vshrl.u32 %v4162, 7
        %v4164 = vsub.s32 6, %v4163
        %v4165 = vrot.slane %v4103, %v4164
        %v4166 = vlaneseq
        %v4167 = vshrl.u32 %v4166, 7
        %v4168 = vsub.s32 7, %v4167
        %v4169 = vrot.slane %v4103, %v4168
        %v4314 = vunpack.c.l.b16 %v3974
        %v4315 = vunpack.c.h.b16 %v3974
        %v4316 = vunpack.c.l.b16 %v3975
        %v4317 = vunpack.c.h.b16 %v3975
        %v4318 = vunpack.c.l.b16 %v3976
        %v4319 = vunpack.c.h.b16 %v3976
        %v4320 = vunpack.c.l.b16 %v3977
        %v4321 = vunpack.c.h.b16 %v3977
        %v4322 = vunpack.c.l.b16 %v3978
        %v4323 = vunpack.c.h.b16 %v3978
        %v4324 = vunpack.c.l.b16 %v3979
        %v4325 = vunpack.c.h.b16 %v3979
        %v4326 = vunpack.c.l.b16 %v3980
        %v4327 = vunpack.c.h.b16 %v3980
        %v4328 = vunpack.c.l.b16 %v3981
        %v4329 = vunpack.c.h.b16 %v3981
        %v4330 = vunpack.c.l.b16 %v3982
        %v4331 = vunpack.c.h.b16 %v3982
        %v4332 = vunpack.c.l.b16 %v3983
        %v4333 = vunpack.c.h.b16 %v3983
        %v4334 = vunpack.c.l.b16 %v3984
        %v4335 = vunpack.c.h.b16 %v3984
        %v4336 = vunpack.c.l.b16 %v3985
        %v4337 = vunpack.c.h.b16 %v3985
        %v4338 = vunpack.c.l.b16 %v3986
        %v4339 = vunpack.c.h.b16 %v3986
        %v4340 = vunpack.c.l.b16 %v3987
        %v4341 = vunpack.c.h.b16 %v3987
        %v4342 = vunpack.c.l.b16 %v3988
        %v4343 = vunpack.c.h.b16 %v3988
        %v4344 = vunpack.c.l.b16 %v3989
        %v4345 = vunpack.c.h.b16 %v3989
        %v4346 = vunpack.c.l.b16 %v3990
        %v4347 = vunpack.c.h.b16 %v3990
        %v4348 = vunpack.c.l.b16 %v3991
        %v4349 = vunpack.c.h.b16 %v3991
        %v4350 = vunpack.c.l.b16 %v3992
        %v4351 = vunpack.c.h.b16 %v3992
        %v4352 = vunpack.c.l.b16 %v3993
        %v4353 = vunpack.c.h.b16 %v3993
        %v4354 = vunpack.c.l.b16 %v3994
        %v4355 = vunpack.c.h.b16 %v3994
        %v4356 = vunpack.c.l.b16 %v3995
        %v4357 = vunpack.c.h.b16 %v3995
        %v4358 = vunpack.c.l.b16 %v3996
        %v4359 = vunpack.c.h.b16 %v3996
        %v4360 = vunpack.c.l.b16 %v3997
        %v4361 = vunpack.c.h.b16 %v3997
        %v4362 = vunpack.c.l.b16 %v3998
        %v4363 = vunpack.c.h.b16 %v3998
        %v4364 = vunpack.c.l.b16 %v3999
        %v4365 = vunpack.c.h.b16 %v3999
        %v4366 = vunpack.c.l.b16 %v4000
        %v4367 = vunpack.c.h.b16 %v4000
        %v4368 = vunpack.c.l.b16 %v4001
        %v4369 = vunpack.c.h.b16 %v4001
        %v4370 = vunpack.c.l.b16 %v4002
        %v4371 = vunpack.c.h.b16 %v4002
        %v4372 = vunpack.c.l.b16 %v4003
        %v4373 = vunpack.c.h.b16 %v4003
        %v4374 = vunpack.c.l.b16 %v4004
        %v4375 = vunpack.c.h.b16 %v4004
        %v4376 = vunpack.c.l.b16 %v4005
        %v4377 = vunpack.c.h.b16 %v4005
        %v4378 = vunpack.c.l.b16 %v4006
        %v4379 = vunpack.c.h.b16 %v4006
        %v4380 = vunpack.c.l.b16 %v4007
        %v4381 = vunpack.c.h.b16 %v4007
        %v4382 = vunpack.c.l.b16 %v4008
        %v4383 = vunpack.c.h.b16 %v4008
        %v4384 = vunpack.c.l.b16 %v4009
        %v4385 = vunpack.c.h.b16 %v4009
        %v4386 = vunpack.c.l.b16 %v4010
        %v4387 = vunpack.c.h.b16 %v4010
        %v4388 = vunpack.c.l.b16 %v4011
        %v4389 = vunpack.c.h.b16 %v4011
        %v4390 = vunpack.c.l.b16 %v4012
        %v4391 = vunpack.c.h.b16 %v4012
        %v4392 = vunpack.c.l.b16 %v4013
        %v4393 = vunpack.c.h.b16 %v4013
        %v4394 = vunpack.c.l.b16 %v4014
        %v4395 = vunpack.c.h.b16 %v4014
        %v4396 = vunpack.c.l.b16 %v4015
        %v4397 = vunpack.c.h.b16 %v4015
        %v4398 = vunpack.c.l.b16 %v4016
        %v4399 = vunpack.c.h.b16 %v4016
        %v4400 = vunpack.c.l.b16 %v4017
        %v4401 = vunpack.c.h.b16 %v4017
        %v4402 = vunpack.c.l.b16 %v4018
        %v4403 = vunpack.c.h.b16 %v4018
        %v4404 = vunpack.c.l.b16 %v4019
        %v4405 = vunpack.c.h.b16 %v4019
        %v4406 = vunpack.c.l.b16 %v4020
        %v4407 = vunpack.c.h.b16 %v4020
        %v4408 = vunpack.c.l.b16 %v4021
        %v4409 = vunpack.c.h.b16 %v4021
        %v4410 = vunpack.c.l.b16 %v4022
        %v4411 = vunpack.c.h.b16 %v4022
        %v4412 = vunpack.c.l.b16 %v4023
        %v4413 = vunpack.c.h.b16 %v4023
        %v4414 = vunpack.c.l.b16 %v4024
        %v4415 = vunpack.c.h.b16 %v4024
        %v4416 = vunpack.c.l.b16 %v4025
        %v4417 = vunpack.c.h.b16 %v4025
        %v4418 = vunpack.c.l.b16 %v4026
        %v4419 = vunpack.c.h.b16 %v4026
        %v4420 = vunpack.c.l.b16 %v4027
        %v4421 = vunpack.c.h.b16 %v4027
        %v4422 = vunpack.c.l.b16 %v4028
        %v4423 = vunpack.c.h.b16 %v4028
        %v4424 = vunpack.c.l.b16 %v4029
        %v4425 = vunpack.c.h.b16 %v4029
        %v4426 = vunpack.c.l.b16 %v4030
        %v4427 = vunpack.c.h.b16 %v4030
        %v4428 = vunpack.c.l.b16 %v4031
        %v4429 = vunpack.c.h.b16 %v4031
        %v4430 = vunpack.c.l.b16 %v4032
        %v4431 = vunpack.c.h.b16 %v4032
        %v4432 = vunpack.c.l.b16 %v4033
        %v4433 = vunpack.c.h.b16 %v4033
        %v4434 = vunpack.c.l.b16 %v4034
        %v4435 = vunpack.c.h.b16 %v4034
        %v4436 = vunpack.c.l.b16 %v4035
        %v4437 = vunpack.c.h.b16 %v4035
        %v4438 = vunpack.c.l.b16 %v4036
        %v4439 = vunpack.c.h.b16 %v4036
        %v4440 = vunpack.c.l.b16 %v4037
        %v4441 = vunpack.c.h.b16 %v4037
        %v4442 = vunpack.c.l.b16 %v4038
        %v4443 = vunpack.c.h.b16 %v4038
        %v4444 = vunpack.c.l.b16 %v4039
        %v4445 = vunpack.c.h.b16 %v4039
        %v4446 = vunpack.c.l.b16 %v4040
        %v4447 = vunpack.c.h.b16 %v4040
        %v4448 = vunpack.c.l.b16 %v4041
        %v4449 = vunpack.c.h.b16 %v4041
        %v4450 = vunpack.c.l.b16 %v4042
        %v4451 = vunpack.c.h.b16 %v4042
        %v4452 = vunpack.c.l.b16 %v4043
        %v4453 = vunpack.c.h.b16 %v4043
        %v4454 = vunpack.c.l.b16 %v4044
        %v4455 = vunpack.c.h.b16 %v4044
        %v4456 = vunpack.c.l.b16 %v4045
        %v4457 = vunpack.c.h.b16 %v4045
        %v4458 = vunpack.c.l.b16 %v4046
        %v4459 = vunpack.c.h.b16 %v4046
        %v4460 = vunpack.c.l.b16 %v4047
        %v4461 = vunpack.c.h.b16 %v4047
        %v4462 = vunpack.c.l.b16 %v4048
        %v4463 = vunpack.c.h.b16 %v4048
        %v4464 = vunpack.c.l.b16 %v4049
        %v4465 = vunpack.c.h.b16 %v4049
        %v4466 = vunpack.c.l.b16 %v4050
        %v4467 = vunpack.c.h.b16 %v4050
        %v4468 = vunpack.c.l.b16 %v4051
        %v4469 = vunpack.c.h.b16 %v4051
        %v4470 = vunpack.c.l.b16 %v4052
        %v4471 = vunpack.c.h.b16 %v4052
        %v4472 = vunpack.c.l.b16 %v4053
        %v4473 = vunpack.c.h.b16 %v4053
        %v4474 = vunpack.c.l.b16 %v4054
        %v4475 = vunpack.c.h.b16 %v4054
        %v4476 = vunpack.c.l.b16 %v4055
        %v4477 = vunpack.c.h.b16 %v4055
        %v4478 = vunpack.c.l.b16 %v4056
        %v4479 = vunpack.c.h.b16 %v4056
        %v4480 = vunpack.c.l.b16 %v4057
        %v4481 = vunpack.c.h.b16 %v4057
        %v4482 = vunpack.c.l.b16 %v4058
        %v4483 = vunpack.c.h.b16 %v4058
        %v4484 = vunpack.c.l.b16 %v4059
        %v4485 = vunpack.c.h.b16 %v4059
        %v4486 = vunpack.c.l.b16 %v4060
        %v4487 = vunpack.c.h.b16 %v4060
        %v4488 = vunpack.c.l.b16 %v4061
        %v4489 = vunpack.c.h.b16 %v4061
        %v4490 = vunpack.c.l.b16 %v4062
        %v4491 = vunpack.c.h.b16 %v4062
        %v4492 = vunpack.c.l.b16 %v4063
        %v4493 = vunpack.c.h.b16 %v4063
        %v4494 = vunpack.c.l.b16 %v4064
        %v4495 = vunpack.c.h.b16 %v4064
        %v4496 = vunpack.c.l.b16 %v4065
        %v4497 = vunpack.c.h.b16 %v4065
        %v4498 = vunpack.c.l.b16 %v4066
        %v4499 = vunpack.c.h.b16 %v4066
        %v4500 = vunpack.c.l.b16 %v4067
        %v4501 = vunpack.c.h.b16 %v4067
        %v4502 = vunpack.c.l.b16 %v4068
        %v4503 = vunpack.c.h.b16 %v4068
        %v4504 = vunpack.c.l.b16 %v4069
        %v4505 = vunpack.c.h.b16 %v4069
        %v4506 = vunpack.c.l.b16 %v4070
        %v4507 = vunpack.c.h.b16 %v4070
        %v4508 = vunpack.c.l.b16 %v4071
        %v4509 = vunpack.c.h.b16 %v4071
        %v4510 = vunpack.c.l.b16 %v4072
        %v4511 = vunpack.c.h.b16 %v4072
        %v4512 = vunpack.c.l.b16 %v4073
        %v4513 = vunpack.c.h.b16 %v4073
        %v4514 = vunpack.c.l.b16 %v4074
        %v4515 = vunpack.c.h.b16 %v4074
        %v4516 = vunpack.c.l.b16 %v4075
        %v4517 = vunpack.c.h.b16 %v4075
        %v4518 = vunpack.c.l.b16 %v4076
        %v4519 = vunpack.c.h.b16 %v4076
        %v4520 = vunpack.c.l.b16 %v4077
        %v4521 = vunpack.c.h.b16 %v4077
        %v4522 = vunpack.c.l.b16 %v4078
        %v4523 = vunpack.c.h.b16 %v4078
        %v4524 = vunpack.c.l.b16 %v4079
        %v4525 = vunpack.c.h.b16 %v4079
        %v4526 = vunpack.c.l.b16 %v4080
        %v4527 = vunpack.c.h.b16 %v4080
        %v4528 = vunpack.c.l.b16 %v4081
        %v4529 = vunpack.c.h.b16 %v4081
        %v4530 = vunpack.c.l.b16 %v4082
        %v4531 = vunpack.c.h.b16 %v4082
        %v4532 = vunpack.c.l.b16 %v4083
        %v4533 = vunpack.c.h.b16 %v4083
        %v4534 = vunpack.c.l.b16 %v4084
        %v4535 = vunpack.c.h.b16 %v4084
        %v4536 = vunpack.c.l.b16 %v4085
        %v4537 = vunpack.c.h.b16 %v4085
        %v4538 = vunpack.c.l.b16 %v4086
        %v4539 = vunpack.c.h.b16 %v4086
        %v4540 = vunpack.c.l.b16 %v4087
        %v4541 = vunpack.c.h.b16 %v4087
        %v4542 = vunpack.c.l.b16 %v4088
        %v4543 = vunpack.c.h.b16 %v4088
        %v4544 = vunpack.c.l.b16 %v4089
        %v4545 = vunpack.c.h.b16 %v4089
        %v4546 = vunpack.c.l.b16 %v4090
        %v4547 = vunpack.c.h.b16 %v4090
        %v4548 = vunpack.c.l.b16 %v4091
        %v4549 = vunpack.c.h.b16 %v4091
        %v4550 = vunpack.c.l.b16 %v4092
        %v4551 = vunpack.c.h.b16 %v4092
        %v4552 = vunpack.c.l.b16 %v4093
        %v4553 = vunpack.c.h.b16 %v4093
        %v4554 = vunpack.c.l.b16 %v4094
        %v4555 = vunpack.c.h.b16 %v4094
        %v4556 = vunpack.c.l.b16 %v4095
        %v4557 = vunpack.c.h.b16 %v4095
        %v4558 = vunpack.c.l.b16 %v4096
        %v4559 = vunpack.c.h.b16 %v4096
        %v4560 = vunpack.c.l.b16 %v4097
        %v4561 = vunpack.c.h.b16 %v4097
        %v4562 = vunpack.c.l.b16 %v4098
        %v4563 = vunpack.c.h.b16 %v4098
        %v4564 = vunpack.c.l.b16 %v4099
        %v4565 = vunpack.c.h.b16 %v4099
        %v4566 = vunpack.c.l.b16 %v4100
        %v4567 = vunpack.c.h.b16 %v4100
        %v4568 = vunpack.c.l.b16 %v4101
        %v4569 = vunpack.c.h.b16 %v4101
        %v4570 = vpack.c.b16 %v4330, %v4314
        %v4571 = vpack.c.b16 %v4331, %v4315
        %v4572 = vpack.c.b16 %v4332, %v4316
        %v4573 = vpack.c.b16 %v4333, %v4317
        %v4574 = vpack.c.b16 %v4334, %v4318
        %v4575 = vpack.c.b16 %v4335, %v4319
        %v4576 = vpack.c.b16 %v4336, %v4320
        %v4577 = vpack.c.b16 %v4337, %v4321
        %v4578 = vpack.c.b16 %v4338, %v4322
        %v4579 = vpack.c.b16 %v4339, %v4323
        %v4580 = vpack.c.b16 %v4340, %v4324
        %v4581 = vpack.c.b16 %v4341, %v4325
        %v4582 = vpack.c.b16 %v4342, %v4326
        %v4583 = vpack.c.b16 %v4343, %v4327
        %v4584 = vpack.c.b16 %v4344, %v4328
        %v4585 = vpack.c.b16 %v4345, %v4329
        %v4586 = vpack.c.b16 %v4362, %v4346
        %v4587 = vpack.c.b16 %v4363, %v4347
        %v4588 = vpack.c.b16 %v4364, %v4348
        %v4589 = vpack.c.b16 %v4365, %v4349
        %v4590 = vpack.c.b16 %v4366, %v4350
        %v4591 = vpack.c.b16 %v4367, %v4351
        %v4592 = vpack.c.b16 %v4368, %v4352
        %v4593 = vpack.c.b16 %v4369, %v4353
        %v4594 = vpack.c.b16 %v4370, %v4354
        %v4595 = vpack.c.b16 %v4371, %v4355
        %v4596 = vpack.c.b16 %v4372, %v4356
        %v4597 = vpack.c.b16 %v4373, %v4357
        %v4598 = vpack.c.b16 %v4374, %v4358
        %v4599 = vpack.c.b16 %v4375, %v4359
        %v4600 = vpack.c.b16 %v4376, %v4360
        %v4601 = vpack.c.b16 %v4377, %v4361
        %v4602 = vpack.c.b16 %v4394, %v4378
        %v4603 = vpack.c.b16 %v4395, %v4379
        %v4604 = vpack.c.b16 %v4396, %v4380
        %v4605 = vpack.c.b16 %v4397, %v4381
        %v4606 = vpack.c.b16 %v4398, %v4382
        %v4607 = vpack.c.b16 %v4399, %v4383
        %v4608 = vpack.c.b16 %v4400, %v4384
        %v4609 = vpack.c.b16 %v4401, %v4385
        %v4610 = vpack.c.b16 %v4402, %v4386
        %v4611 = vpack.c.b16 %v4403, %v4387
        %v4612 = vpack.c.b16 %v4404, %v4388
        %v4613 = vpack.c.b16 %v4405, %v4389
        %v4614 = vpack.c.b16 %v4406, %v4390
        %v4615 = vpack.c.b16 %v4407, %v4391
        %v4616 = vpack.c.b16 %v4408, %v4392
        %v4617 = vpack.c.b16 %v4409, %v4393
        %v4618 = vpack.c.b16 %v4426, %v4410
        %v4619 = vpack.c.b16 %v4427, %v4411
        %v4620 = vpack.c.b16 %v4428, %v4412
        %v4621 = vpack.c.b16 %v4429, %v4413
        %v4622 = vpack.c.b16 %v4430, %v4414
        %v4623 = vpack.c.b16 %v4431, %v4415
        %v4624 = vpack.c.b16 %v4432, %v4416
        %v4625 = vpack.c.b16 %v4433, %v4417
        %v4626 = vpack.c.b16 %v4434, %v4418
        %v4627 = vpack.c.b16 %v4435, %v4419
        %v4628 = vpack.c.b16 %v4436, %v4420
        %v4629 = vpack.c.b16 %v4437, %v4421
        %v4630 = vpack.c.b16 %v4438, %v4422
        %v4631 = vpack.c.b16 %v4439, %v4423
        %v4632 = vpack.c.b16 %v4440, %v4424
        %v4633 = vpack.c.b16 %v4441, %v4425
        %v4634 = vpack.c.b16 %v4458, %v4442
        %v4635 = vpack.c.b16 %v4459, %v4443
        %v4636 = vpack.c.b16 %v4460, %v4444
        %v4637 = vpack.c.b16 %v4461, %v4445
        %v4638 = vpack.c.b16 %v4462, %v4446
        %v4639 = vpack.c.b16 %v4463, %v4447
        %v4640 = vpack.c.b16 %v4464, %v4448
        %v4641 = vpack.c.b16 %v4465, %v4449
        %v4642 = vpack.c.b16 %v4466, %v4450
        %v4643 = vpack.c.b16 %v4467, %v4451
        %v4644 = vpack.c.b16 %v4468, %v4452
        %v4645 = vpack.c.b16 %v4469, %v4453
        %v4646 = vpack.c.b16 %v4470, %v4454
        %v4647 = vpack.c.b16 %v4471, %v4455
        %v4648 = vpack.c.b16 %v4472, %v4456
        %v4649 = vpack.c.b16 %v4473, %v4457
        %v4650 = vpack.c.b16 %v4490, %v4474
        %v4651 = vpack.c.b16 %v4491, %v4475
        %v4652 = vpack.c.b16 %v4492, %v4476
        %v4653 = vpack.c.b16 %v4493, %v4477
        %v4654 = vpack.c.b16 %v4494, %v4478
        %v4655 = vpack.c.b16 %v4495, %v4479
        %v4656 = vpack.c.b16 %v4496, %v4480
        %v4657 = vpack.c.b16 %v4497, %v4481
        %v4658 = vpack.c.b16 %v4498, %v4482
        %v4659 = vpack.c.b16 %v4499, %v4483
        %v4660 = vpack.c.b16 %v4500, %v4484
        %v4661 = vpack.c.b16 %v4501, %v4485
        %v4662 = vpack.c.b16 %v4502, %v4486
        %v4663 = vpack.c.b16 %v4503, %v4487
        %v4664 = vpack.c.b16 %v4504, %v4488
        %v4665 = vpack.c.b16 %v4505, %v4489
        %v4666 = vpack.c.b16 %v4522, %v4506
        %v4667 = vpack.c.b16 %v4523, %v4507
        %v4668 = vpack.c.b16 %v4524, %v4508
        %v4669 = vpack.c.b16 %v4525, %v4509
        %v4670 = vpack.c.b16 %v4526, %v4510
        %v4671 = vpack.c.b16 %v4527, %v4511
        %v4672 = vpack.c.b16 %v4528, %v4512
        %v4673 = vpack.c.b16 %v4529, %v4513
        %v4674 = vpack.c.b16 %v4530, %v4514
        %v4675 = vpack.c.b16 %v4531, %v4515
        %v4676 = vpack.c.b16 %v4532, %v4516
        %v4677 = vpack.c.b16 %v4533, %v4517
        %v4678 = vpack.c.b16 %v4534, %v4518
        %v4679 = vpack.c.b16 %v4535, %v4519
        %v4680 = vpack.c.b16 %v4536, %v4520
        %v4681 = vpack.c.b16 %v4537, %v4521
        %v4682 = vpack.c.b16 %v4554, %v4538
        %v4683 = vpack.c.b16 %v4555, %v4539
        %v4684 = vpack.c.b16 %v4556, %v4540
        %v4685 = vpack.c.b16 %v4557, %v4541
        %v4686 = vpack.c.b16 %v4558, %v4542
        %v4687 = vpack.c.b16 %v4559, %v4543
        %v4688 = vpack.c.b16 %v4560, %v4544
        %v4689 = vpack.c.b16 %v4561, %v4545
        %v4690 = vpack.c.b16 %v4562, %v4546
        %v4691 = vpack.c.b16 %v4563, %v4547
        %v4692 = vpack.c.b16 %v4564, %v4548
        %v4693 = vpack.c.b16 %v4565, %v4549
        %v4694 = vpack.c.b16 %v4566, %v4550
        %v4695 = vpack.c.b16 %v4567, %v4551
        %v4696 = vpack.c.b16 %v4568, %v4552
        %v4697 = vpack.c.b16 %v4569, %v4553
        %4826 = vmatprep.subr.bf16.mxu0 %v4571
        %4827 = vmatpush1.bf16.msra.mxu0 %v4570
        %4828 = vmatprep.subr.bf16.mxu0 %v4587
        %4829 = vmatpush1.bf16.msra.mxu0 %v4586
        %4830 = vmatprep.subr.bf16.mxu0 %v4603
        %4831 = vmatpush1.bf16.msra.mxu0 %v4602
        %4832 = vmatprep.subr.bf16.mxu0 %v4619
        %4833 = vmatpush1.bf16.msra.mxu0 %v4618
        %4834 = vmatprep.subr.bf16.mxu0 %v4635
        %4835 = vmatpush1.bf16.msra.mxu0 %v4634
        %4836 = vmatprep.subr.bf16.mxu0 %v4651
        %4837 = vmatpush1.bf16.msra.mxu0 %v4650
        %4838 = vmatprep.subr.bf16.mxu0 %v4667
        %4839 = vmatpush1.bf16.msra.mxu0 %v4666
        %4840 = vmatprep.subr.bf16.mxu0 %v4683
        %4841 = vmatpush1.bf16.msra.mxu0 %v4682
        %4842 = vmatprep.subr.bf16.mxu0 0
        %4843 = vmatpush1.bf16.msra.mxu0 0
        %4844 = vmatprep.subr.bf16.mxu0 0
        %4845 = vmatpush1.bf16.msra.mxu0 0
        %4846 = vmatprep.subr.bf16.mxu0 0
        %4847 = vmatpush1.bf16.msra.mxu0 0
        %4848 = vmatprep.subr.bf16.mxu0 0
        %4849 = vmatpush1.bf16.msra.mxu0 0
        %4850 = vmatprep.subr.bf16.mxu0 0
        %4851 = vmatpush1.bf16.msra.mxu0 0
        %4852 = vmatprep.subr.bf16.mxu0 0
        %4853 = vmatpush1.bf16.msra.mxu0 0
        %4854 = vmatprep.subr.bf16.mxu0 0
        %4855 = vmatpush1.bf16.msra.mxu0 0
        %4856 = vmatprep.subr.bf16.mxu0 0
        %4857 = vmatpush1.bf16.msra.mxu0 0
        %4858 = vmatprep.mubr.bf16.mxu0 0
        %4859 = vmatmul.mubr.bf16.gmra.mrb[0].mxu0 %v3973
        %v4860 = vpop.f32.mrb[0].mxu0
        %v4861 = vadd.f32 %v4109, %v4860
        %v4862 = vpop.f32.mrb[0].mxu0
        %v4863 = vadd.f32 %v4113, %v4862
        %v4864 = vpop.f32.mrb[0].mxu0
        %v4865 = vadd.f32 %v4109, %v4864
        %v4866 = vpop.f32.mrb[0].mxu0
        %v4867 = vadd.f32 %v4113, %v4866
        %4868 = vdwg.mxu0
        %4869 = vmatprep.subr.bf16.mxu0 %v4573
        %4870 = vmatpush1.bf16.msra.mxu0 %v4572
        %4871 = vmatprep.subr.bf16.mxu0 %v4589
        %4872 = vmatpush1.bf16.msra.mxu0 %v4588
        %4873 = vmatprep.subr.bf16.mxu0 %v4605
        %4874 = vmatpush1.bf16.msra.mxu0 %v4604
        %4875 = vmatprep.subr.bf16.mxu0 %v4621
        %4876 = vmatpush1.bf16.msra.mxu0 %v4620
        %4877 = vmatprep.subr.bf16.mxu0 %v4637
        %4878 = vmatpush1.bf16.msra.mxu0 %v4636
        %4879 = vmatprep.subr.bf16.mxu0 %v4653
        %4880 = vmatpush1.bf16.msra.mxu0 %v4652
        %4881 = vmatprep.subr.bf16.mxu0 %v4669
        %4882 = vmatpush1.bf16.msra.mxu0 %v4668
        %4883 = vmatprep.subr.bf16.mxu0 %v4685
        %4884 = vmatpush1.bf16.msra.mxu0 %v4684
        %4885 = vmatprep.subr.bf16.mxu0 0
        %4886 = vmatpush1.bf16.msra.mxu0 0
        %4887 = vmatprep.subr.bf16.mxu0 0
        %4888 = vmatpush1.bf16.msra.mxu0 0
        %4889 = vmatprep.subr.bf16.mxu0 0
        %4890 = vmatpush1.bf16.msra.mxu0 0
        %4891 = vmatprep.subr.bf16.mxu0 0
        %4892 = vmatpush1.bf16.msra.mxu0 0
        %4893 = vmatprep.subr.bf16.mxu0 0
        %4894 = vmatpush1.bf16.msra.mxu0 0
        %4895 = vmatprep.subr.bf16.mxu0 0
        %4896 = vmatpush1.bf16.msra.mxu0 0
        %4897 = vmatprep.subr.bf16.mxu0 0
        %4898 = vmatpush1.bf16.msra.mxu0 0
        %4899 = vmatprep.subr.bf16.mxu0 0
        %4900 = vmatpush1.bf16.msra.mxu0 0
        %4901 = vmatprep.mubr.bf16.mxu0 0
        %4902 = vmatmul.mubr.bf16.gmra.mrb[0].mxu0 %v3973
        %v4903 = vpop.f32.mrb[0].mxu0
        %v4904 = vadd.f32 %v4117, %v4903
        %v4905 = vpop.f32.mrb[0].mxu0
        %v4906 = vadd.f32 %v4121, %v4905
        %v4907 = vpop.f32.mrb[0].mxu0
        %v4908 = vadd.f32 %v4117, %v4907
        %v4909 = vpop.f32.mrb[0].mxu0
        %v4910 = vadd.f32 %v4121, %v4909
        %4911 = vdwg.mxu0
        %4912 = vmatprep.subr.bf16.mxu0 %v4575
        %4913 = vmatpush1.bf16.msra.mxu0 %v4574
        %4914 = vmatprep.subr.bf16.mxu0 %v4591
        %4915 = vmatpush1.bf16.msra.mxu0 %v4590
        %4916 = vmatprep.subr.bf16.mxu0 %v4607
        %4917 = vmatpush1.bf16.msra.mxu0 %v4606
        %4918 = vmatprep.subr.bf16.mxu0 %v4623
        %4919 = vmatpush1.bf16.msra.mxu0 %v4622
        %4920 = vmatprep.subr.bf16.mxu0 %v4639
        %4921 = vmatpush1.bf16.msra.mxu0 %v4638
        %4922 = vmatprep.subr.bf16.mxu0 %v4655
        %4923 = vmatpush1.bf16.msra.mxu0 %v4654
        %4924 = vmatprep.subr.bf16.mxu0 %v4671
        %4925 = vmatpush1.bf16.msra.mxu0 %v4670
        %4926 = vmatprep.subr.bf16.mxu0 %v4687
        %4927 = vmatpush1.bf16.msra.mxu0 %v4686
        %4928 = vmatprep.subr.bf16.mxu0 0
        %4929 = vmatpush1.bf16.msra.mxu0 0
        %4930 = vmatprep.subr.bf16.mxu0 0
        %4931 = vmatpush1.bf16.msra.mxu0 0
        %4932 = vmatprep.subr.bf16.mxu0 0
        %4933 = vmatpush1.bf16.msra.mxu0 0
        %4934 = vmatprep.subr.bf16.mxu0 0
        %4935 = vmatpush1.bf16.msra.mxu0 0
        %4936 = vmatprep.subr.bf16.mxu0 0
        %4937 = vmatpush1.bf16.msra.mxu0 0
        %4938 = vmatprep.subr.bf16.mxu0 0
        %4939 = vmatpush1.bf16.msra.mxu0 0
        %4940 = vmatprep.subr.bf16.mxu0 0
        %4941 = vmatpush1.bf16.msra.mxu0 0
        %4942 = vmatprep.subr.bf16.mxu0 0
        %4943 = vmatpush1.bf16.msra.mxu0 0
        %4944 = vmatprep.mubr.bf16.mxu0 0
        %4945 = vmatmul.mubr.bf16.gmra.mrb[0].mxu0 %v3973
        %v4946 = vpop.f32.mrb[0].mxu0
        %v4947 = vadd.f32 %v4125, %v4946
        %v4948 = vpop.f32.mrb[0].mxu0
        %v4949 = vadd.f32 %v4129, %v4948
        %v4950 = vpop.f32.mrb[0].mxu0
        %v4951 = vadd.f32 %v4125, %v4950
        %v4952 = vpop.f32.mrb[0].mxu0
        %v4953 = vadd.f32 %v4129, %v4952
        %4954 = vdwg.mxu0
        %4955 = vmatprep.subr.bf16.mxu0 %v4577
        %4956 = vmatpush1.bf16.msra.mxu0 %v4576
        %4957 = vmatprep.subr.bf16.mxu0 %v4593
        %4958 = vmatpush1.bf16.msra.mxu0 %v4592
        %4959 = vmatprep.subr.bf16.mxu0 %v4609
        %4960 = vmatpush1.bf16.msra.mxu0 %v4608
        %4961 = vmatprep.subr.bf16.mxu0 %v4625
        %4962 = vmatpush1.bf16.msra.mxu0 %v4624
        %4963 = vmatprep.subr.bf16.mxu0 %v4641
        %4964 = vmatpush1.bf16.msra.mxu0 %v4640
        %4965 = vmatprep.subr.bf16.mxu0 %v4657
        %4966 = vmatpush1.bf16.msra.mxu0 %v4656
        %4967 = vmatprep.subr.bf16.mxu0 %v4673
        %4968 = vmatpush1.bf16.msra.mxu0 %v4672
        %4969 = vmatprep.subr.bf16.mxu0 %v4689
        %4970 = vmatpush1.bf16.msra.mxu0 %v4688
        %4971 = vmatprep.subr.bf16.mxu0 0
        %4972 = vmatpush1.bf16.msra.mxu0 0
        %4973 = vmatprep.subr.bf16.mxu0 0
        %4974 = vmatpush1.bf16.msra.mxu0 0
        %4975 = vmatprep.subr.bf16.mxu0 0
        %4976 = vmatpush1.bf16.msra.mxu0 0
        %4977 = vmatprep.subr.bf16.mxu0 0
        %4978 = vmatpush1.bf16.msra.mxu0 0
        %4979 = vmatprep.subr.bf16.mxu0 0
        %4980 = vmatpush1.bf16.msra.mxu0 0
        %4981 = vmatprep.subr.bf16.mxu0 0
        %4982 = vmatpush1.bf16.msra.mxu0 0
        %4983 = vmatprep.subr.bf16.mxu0 0
        %4984 = vmatpush1.bf16.msra.mxu0 0
        %4985 = vmatprep.subr.bf16.mxu0 0
        %4986 = vmatpush1.bf16.msra.mxu0 0
        %4987 = vmatprep.mubr.bf16.mxu0 0
        %4988 = vmatmul.mubr.bf16.gmra.mrb[0].mxu0 %v3973
        %v4989 = vpop.f32.mrb[0].mxu0
        %v4990 = vadd.f32 %v4133, %v4989
        %v4991 = vpop.f32.mrb[0].mxu0
        %v4992 = vadd.f32 %v4137, %v4991
        %v4993 = vpop.f32.mrb[0].mxu0
        %v4994 = vadd.f32 %v4133, %v4993
        %v4995 = vpop.f32.mrb[0].mxu0
        %v4996 = vadd.f32 %v4137, %v4995
        %4997 = vdwg.mxu0
        %4998 = vmatprep.subr.bf16.mxu0 %v4579
        %4999 = vmatpush1.bf16.msra.mxu0 %v4578
        %5000 = vmatprep.subr.bf16.mxu0 %v4595
        %5001 = vmatpush1.bf16.msra.mxu0 %v4594
        %5002 = vmatprep.subr.bf16.mxu0 %v4611
        %5003 = vmatpush1.bf16.msra.mxu0 %v4610
        %5004 = vmatprep.subr.bf16.mxu0 %v4627
        %5005 = vmatpush1.bf16.msra.mxu0 %v4626
        %5006 = vmatprep.subr.bf16.mxu0 %v4643
        %5007 = vmatpush1.bf16.msra.mxu0 %v4642
        %5008 = vmatprep.subr.bf16.mxu0 %v4659
        %5009 = vmatpush1.bf16.msra.mxu0 %v4658
        %5010 = vmatprep.subr.bf16.mxu0 %v4675
        %5011 = vmatpush1.bf16.msra.mxu0 %v4674
        %5012 = vmatprep.subr.bf16.mxu0 %v4691
        %5013 = vmatpush1.bf16.msra.mxu0 %v4690
        %5014 = vmatprep.subr.bf16.mxu0 0
        %5015 = vmatpush1.bf16.msra.mxu0 0
        %5016 = vmatprep.subr.bf16.mxu0 0
        %5017 = vmatpush1.bf16.msra.mxu0 0
        %5018 = vmatprep.subr.bf16.mxu0 0
        %5019 = vmatpush1.bf16.msra.mxu0 0
        %5020 = vmatprep.subr.bf16.mxu0 0
        %5021 = vmatpush1.bf16.msra.mxu0 0
        %5022 = vmatprep.subr.bf16.mxu0 0
        %5023 = vmatpush1.bf16.msra.mxu0 0
        %5024 = vmatprep.subr.bf16.mxu0 0
        %5025 = vmatpush1.bf16.msra.mxu0 0
        %5026 = vmatprep.subr.bf16.mxu0 0
        %5027 = vmatpush1.bf16.msra.mxu0 0
        %5028 = vmatprep.subr.bf16.mxu0 0
        %5029 = vmatpush1.bf16.msra.mxu0 0
        %5030 = vmatprep.mubr.bf16.mxu0 0
        %5031 = vmatmul.mubr.bf16.gmra.mrb[0].mxu0 %v3973
        %v5032 = vpop.f32.mrb[0].mxu0
        %v5033 = vadd.f32 %v4141, %v5032
        %v5034 = vpop.f32.mrb[0].mxu0
        %v5035 = vadd.f32 %v4145, %v5034
        %v5036 = vpop.f32.mrb[0].mxu0
        %v5037 = vadd.f32 %v4141, %v5036
        %v5038 = vpop.f32.mrb[0].mxu0
        %v5039 = vadd.f32 %v4145, %v5038
        %5040 = vdwg.mxu0
        %5041 = vmatprep.subr.bf16.mxu0 %v4581
        %5042 = vmatpush1.bf16.msra.mxu0 %v4580
        %5043 = vmatprep.subr.bf16.mxu0 %v4597
        %5044 = vmatpush1.bf16.msra.mxu0 %v4596
        %5045 = vmatprep.subr.bf16.mxu0 %v4613
        %5046 = vmatpush1.bf16.msra.mxu0 %v4612
        %5047 = vmatprep.subr.bf16.mxu0 %v4629
        %5048 = vmatpush1.bf16.msra.mxu0 %v4628
        %5049 = vmatprep.subr.bf16.mxu0 %v4645
        %5050 = vmatpush1.bf16.msra.mxu0 %v4644
        %5051 = vmatprep.subr.bf16.mxu0 %v4661
        %5052 = vmatpush1.bf16.msra.mxu0 %v4660
        %5053 = vmatprep.subr.bf16.mxu0 %v4677
        %5054 = vmatpush1.bf16.msra.mxu0 %v4676
        %5055 = vmatprep.subr.bf16.mxu0 %v4693
        %5056 = vmatpush1.bf16.msra.mxu0 %v4692
        %5057 = vmatprep.subr.bf16.mxu0 0
        %5058 = vmatpush1.bf16.msra.mxu0 0
        %5059 = vmatprep.subr.bf16.mxu0 0
        %5060 = vmatpush1.bf16.msra.mxu0 0
        %5061 = vmatprep.subr.bf16.mxu0 0
        %5062 = vmatpush1.bf16.msra.mxu0 0
        %5063 = vmatprep.subr.bf16.mxu0 0
        %5064 = vmatpush1.bf16.msra.mxu0 0
        %5065 = vmatprep.subr.bf16.mxu0 0
        %5066 = vmatpush1.bf16.msra.mxu0 0
        %5067 = vmatprep.subr.bf16.mxu0 0
        %5068 = vmatpush1.bf16.msra.mxu0 0
        %5069 = vmatprep.subr.bf16.mxu0 0
        %5070 = vmatpush1.bf16.msra.mxu0 0
        %5071 = vmatprep.subr.bf16.mxu0 0
        %5072 = vmatpush1.bf16.msra.mxu0 0
        %5073 = vmatprep.mubr.bf16.mxu0 0
        %5074 = vmatmul.mubr.bf16.gmra.mrb[0].mxu0 %v3973
        %v5075 = vpop.f32.mrb[0].mxu0
        %v5076 = vadd.f32 %v4149, %v5075
        %v5077 = vpop.f32.mrb[0].mxu0
        %v5078 = vadd.f32 %v4153, %v5077
        %v5079 = vpop.f32.mrb[0].mxu0
        %v5080 = vadd.f32 %v4149, %v5079
        %v5081 = vpop.f32.mrb[0].mxu0
        %v5082 = vadd.f32 %v4153, %v5081
        %5083 = vdwg.mxu0
        %5084 = vmatprep.subr.bf16.mxu0 %v4583
        %5085 = vmatpush1.bf16.msra.mxu0 %v4582
        %5086 = vmatprep.subr.bf16.mxu0 %v4599
        %5087 = vmatpush1.bf16.msra.mxu0 %v4598
        %5088 = vmatprep.subr.bf16.mxu0 %v4615
        %5089 = vmatpush1.bf16.msra.mxu0 %v4614
        %5090 = vmatprep.subr.bf16.mxu0 %v4631
        %5091 = vmatpush1.bf16.msra.mxu0 %v4630
        %5092 = vmatprep.subr.bf16.mxu0 %v4647
        %5093 = vmatpush1.bf16.msra.mxu0 %v4646
        %5094 = vmatprep.subr.bf16.mxu0 %v4663
        %5095 = vmatpush1.bf16.msra.mxu0 %v4662
        %5096 = vmatprep.subr.bf16.mxu0 %v4679
        %5097 = vmatpush1.bf16.msra.mxu0 %v4678
        %5098 = vmatprep.subr.bf16.mxu0 %v4695
        %5099 = vmatpush1.bf16.msra.mxu0 %v4694
        %5100 = vmatprep.subr.bf16.mxu0 0
        %5101 = vmatpush1.bf16.msra.mxu0 0
        %5102 = vmatprep.subr.bf16.mxu0 0
        %5103 = vmatpush1.bf16.msra.mxu0 0
        %5104 = vmatprep.subr.bf16.mxu0 0
        %5105 = vmatpush1.bf16.msra.mxu0 0
        %5106 = vmatprep.subr.bf16.mxu0 0
        %5107 = vmatpush1.bf16.msra.mxu0 0
        %5108 = vmatprep.subr.bf16.mxu0 0
        %5109 = vmatpush1.bf16.msra.mxu0 0
        %5110 = vmatprep.subr.bf16.mxu0 0
        %5111 = vmatpush1.bf16.msra.mxu0 0
        %5112 = vmatprep.subr.bf16.mxu0 0
        %5113 = vmatpush1.bf16.msra.mxu0 0
        %5114 = vmatprep.subr.bf16.mxu0 0
        %5115 = vmatpush1.bf16.msra.mxu0 0
        %5116 = vmatprep.mubr.bf16.mxu0 0
        %5117 = vmatmul.mubr.bf16.gmra.mrb[0].mxu0 %v3973
        %v5118 = vpop.f32.mrb[0].mxu0
        %v5119 = vadd.f32 %v4157, %v5118
        %v5120 = vpop.f32.mrb[0].mxu0
        %v5121 = vadd.f32 %v4161, %v5120
        %v5122 = vpop.f32.mrb[0].mxu0
        %v5123 = vadd.f32 %v4157, %v5122
        %v5124 = vpop.f32.mrb[0].mxu0
        %v5125 = vadd.f32 %v4161, %v5124
        %5126 = vdwg.mxu0
        %5127 = vmatprep.subr.bf16.mxu0 %v4585
        %5128 = vmatpush1.bf16.msra.mxu0 %v4584
        %5129 = vmatprep.subr.bf16.mxu0 %v4601
        %5130 = vmatpush1.bf16.msra.mxu0 %v4600
        %5131 = vmatprep.subr.bf16.mxu0 %v4617
        %5132 = vmatpush1.bf16.msra.mxu0 %v4616
        %5133 = vmatprep.subr.bf16.mxu0 %v4633
        %5134 = vmatpush1.bf16.msra.mxu0 %v4632
        %5135 = vmatprep.subr.bf16.mxu0 %v4649
        %5136 = vmatpush1.bf16.msra.mxu0 %v4648
        %5137 = vmatprep.subr.bf16.mxu0 %v4665
        %5138 = vmatpush1.bf16.msra.mxu0 %v4664
        %5139 = vmatprep.subr.bf16.mxu0 %v4681
        %5140 = vmatpush1.bf16.msra.mxu0 %v4680
        %5141 = vmatprep.subr.bf16.mxu0 %v4697
        %5142 = vmatpush1.bf16.msra.mxu0 %v4696
        %5143 = vmatprep.subr.bf16.mxu0 0
        %5144 = vmatpush1.bf16.msra.mxu0 0
        %5145 = vmatprep.subr.bf16.mxu0 0
        %5146 = vmatpush1.bf16.msra.mxu0 0
        %5147 = vmatprep.subr.bf16.mxu0 0
        %5148 = vmatpush1.bf16.msra.mxu0 0
        %5149 = vmatprep.subr.bf16.mxu0 0
        %5150 = vmatpush1.bf16.msra.mxu0 0
        %5151 = vmatprep.subr.bf16.mxu0 0
        %5152 = vmatpush1.bf16.msra.mxu0 0
        %5153 = vmatprep.subr.bf16.mxu0 0
        %5154 = vmatpush1.bf16.msra.mxu0 0
        %5155 = vmatprep.subr.bf16.mxu0 0
        %5156 = vmatpush1.bf16.msra.mxu0 0
        %5157 = vmatprep.subr.bf16.mxu0 0
        %5158 = vmatpush1.bf16.msra.mxu0 0
        %5159 = vmatprep.mubr.bf16.mxu0 0
        %5160 = vmatmul.mubr.bf16.gmra.mrb[0].mxu0 %v3973
        %v5161 = vpop.f32.mrb[0].mxu0
        %v5162 = vadd.f32 %v4165, %v5161
        %v5163 = vpop.f32.mrb[0].mxu0
        %v5164 = vadd.f32 %v4169, %v5163
        %v5165 = vpop.f32.mrb[0].mxu0
        %v5166 = vadd.f32 %v4165, %v5165
        %v5167 = vpop.f32.mrb[0].mxu0
        %v5168 = vadd.f32 %v4169, %v5167
        %5169 = vdwg.mxu0
        %v5170 = vmax.f32 %v4861, 0.0
        %v5171 = vmax.f32 %v4863, 0.0
        %v5172 = vmax.f32 %v4904, 0.0
        %v5173 = vmax.f32 %v4906, 0.0
        %v5174 = vmax.f32 %v4947, 0.0
        %v5175 = vmax.f32 %v4949, 0.0
        %v5176 = vmax.f32 %v4990, 0.0
        %v5177 = vmax.f32 %v4992, 0.0
        %v5178 = vmax.f32 %v5033, 0.0
        %v5179 = vmax.f32 %v5035, 0.0
        %v5180 = vmax.f32 %v5076, 0.0
        %v5181 = vmax.f32 %v5078, 0.0
        %v5182 = vmax.f32 %v5119, 0.0
        %v5183 = vmax.f32 %v5121, 0.0
        %v5184 = vmax.f32 %v5162, 0.0
        %v5185 = vmax.f32 %v5164, 0.0
        %v5186 = vmax.f32 %v4865, 0.0
        %v5187 = vmax.f32 %v4867, 0.0
        %v5188 = vmax.f32 %v4908, 0.0
        %v5189 = vmax.f32 %v4910, 0.0
        %v5190 = vmax.f32 %v4951, 0.0
        %v5191 = vmax.f32 %v4953, 0.0
        %v5192 = vmax.f32 %v4994, 0.0
        %v5193 = vmax.f32 %v4996, 0.0
        %v5194 = vmax.f32 %v5037, 0.0
        %v5195 = vmax.f32 %v5039, 0.0
        %v5196 = vmax.f32 %v5080, 0.0
        %v5197 = vmax.f32 %v5082, 0.0
        %v5198 = vmax.f32 %v5123, 0.0
        %v5199 = vmax.f32 %v5125, 0.0
        %v5200 = vmax.f32 %v5166, 0.0
        %v5201 = vmax.f32 %v5168, 0.0
        %v5202 = vpack.c.bf16 %v5186, %v5170
        %v5203 = vpack.c.bf16 %v5187, %v5171
        %v5204 = vpack.c.bf16 %v5188, %v5172
        %v5205 = vpack.c.bf16 %v5189, %v5173
        %v5206 = vpack.c.bf16 %v5190, %v5174
        %v5207 = vpack.c.bf16 %v5191, %v5175
        %v5208 = vpack.c.bf16 %v5192, %v5176
        %v5209 = vpack.c.bf16 %v5193, %v5177
        %v5210 = vpack.c.bf16 %v5194, %v5178
        %v5211 = vpack.c.bf16 %v5195, %v5179
        %v5212 = vpack.c.bf16 %v5196, %v5180
        %v5213 = vpack.c.bf16 %v5197, %v5181
        %v5214 = vpack.c.bf16 %v5198, %v5182
        %v5215 = vpack.c.bf16 %v5199, %v5183
        %v5216 = vpack.c.bf16 %v5200, %v5184
        %v5217 = vpack.c.bf16 %v5201, %v5185
        %v5218 = vld [vmem:[%s561] sm:$0xf]
        %v5219 = vld [vmem:[%s561 + $0x4] sm:$0xf]
        %v5220 = vld [vmem:[%s561 + $0x8] sm:$0xf]
        %v5221 = vld [vmem:[%s561 + $0xc] sm:$0xf]
        %v5222 = vld [vmem:[%s561 + $0x10] sm:$0xf]
        %v5223 = vld [vmem:[%s561 + $0x14] sm:$0xf]
        %v5224 = vld [vmem:[%s561 + $0x18] sm:$0xf]
        %v5225 = vld [vmem:[%s561 + $0x1c] sm:$0xf]
        %v5226 = vld [vmem:[%s561 + $0x20] sm:$0xf]
        %v5227 = vld [vmem:[%s561 + $0x24] sm:$0xf]
        %v5228 = vld [vmem:[%s561 + $0x28] sm:$0xf]
        %v5229 = vld [vmem:[%s561 + $0x2c] sm:$0xf]
        %v5230 = vld [vmem:[%s561 + $0x30] sm:$0xf]
        %v5231 = vld [vmem:[%s561 + $0x34] sm:$0xf]
        %v5232 = vld [vmem:[%s561 + $0x38] sm:$0xf]
        %v5233 = vld [vmem:[%s561 + $0x3c] sm:$0xf]
        %v5234 = vld [vmem:[%s561 + $0x40] sm:$0xf]
        %v5235 = vld [vmem:[%s561 + $0x44] sm:$0xf]
        %v5236 = vld [vmem:[%s561 + $0x48] sm:$0xf]
        %v5237 = vld [vmem:[%s561 + $0x4c] sm:$0xf]
        %v5238 = vld [vmem:[%s561 + $0x50] sm:$0xf]
        %v5239 = vld [vmem:[%s561 + $0x54] sm:$0xf]
        %v5240 = vld [vmem:[%s561 + $0x58] sm:$0xf]
        %v5241 = vld [vmem:[%s561 + $0x5c] sm:$0xf]
        %v5242 = vld [vmem:[%s561 + $0x60] sm:$0xf]
        %v5243 = vld [vmem:[%s561 + $0x64] sm:$0xf]
        %v5244 = vld [vmem:[%s561 + $0x68] sm:$0xf]
        %v5245 = vld [vmem:[%s561 + $0x6c] sm:$0xf]
        %v5246 = vld [vmem:[%s561 + $0x70] sm:$0xf]
        %v5247 = vld [vmem:[%s561 + $0x74] sm:$0xf]
        %v5248 = vld [vmem:[%s561 + $0x78] sm:$0xf]
        %v5249 = vld [vmem:[%s561 + $0x7c] sm:$0xf]
        %v5250 = vld [vmem:[%s561 + $0x80] sm:$0xf]
        %v5251 = vld [vmem:[%s561 + $0x84] sm:$0xf]
        %v5252 = vld [vmem:[%s561 + $0x88] sm:$0xf]
        %v5253 = vld [vmem:[%s561 + $0x8c] sm:$0xf]
        %v5254 = vld [vmem:[%s561 + $0x90] sm:$0xf]
        %v5255 = vld [vmem:[%s561 + $0x94] sm:$0xf]
        %v5256 = vld [vmem:[%s561 + $0x98] sm:$0xf]
        %v5257 = vld [vmem:[%s561 + $0x9c] sm:$0xf]
        %v5258 = vld [vmem:[%s561 + $0xa0] sm:$0xf]
        %v5259 = vld [vmem:[%s561 + $0xa4] sm:$0xf]
        %v5260 = vld [vmem:[%s561 + $0xa8] sm:$0xf]
        %v5261 = vld [vmem:[%s561 + $0xac] sm:$0xf]
        %v5262 = vld [vmem:[%s561 + $0xb0] sm:$0xf]
        %v5263 = vld [vmem:[%s561 + $0xb4] sm:$0xf]
        %v5264 = vld [vmem:[%s561 + $0xb8] sm:$0xf]
        %v5265 = vld [vmem:[%s561 + $0xbc] sm:$0xf]
        %v5266 = vld [vmem:[%s561 + $0xc0] sm:$0xf]
        %v5267 = vld [vmem:[%s561 + $0xc4] sm:$0xf]
        %v5268 = vld [vmem:[%s561 + $0xc8] sm:$0xf]
        %v5269 = vld [vmem:[%s561 + $0xcc] sm:$0xf]
        %v5270 = vld [vmem:[%s561 + $0xd0] sm:$0xf]
        %v5271 = vld [vmem:[%s561 + $0xd4] sm:$0xf]
        %v5272 = vld [vmem:[%s561 + $0xd8] sm:$0xf]
        %v5273 = vld [vmem:[%s561 + $0xdc] sm:$0xf]
        %v5274 = vld [vmem:[%s561 + $0xe0] sm:$0xf]
        %v5275 = vld [vmem:[%s561 + $0xe4] sm:$0xf]
        %v5276 = vld [vmem:[%s561 + $0xe8] sm:$0xf]
        %v5277 = vld [vmem:[%s561 + $0xec] sm:$0xf]
        %v5278 = vld [vmem:[%s561 + $0xf0] sm:$0xf]
        %v5279 = vld [vmem:[%s561 + $0xf4] sm:$0xf]
        %v5280 = vld [vmem:[%s561 + $0xf8] sm:$0xf]
        %v5281 = vld [vmem:[%s561 + $0xfc] sm:$0xf]
        %v5282 = vld [vmem:[%s561 + $0x100] sm:$0xf]
        %v5283 = vld [vmem:[%s561 + $0x104] sm:$0xf]
        %v5284 = vld [vmem:[%s561 + $0x108] sm:$0xf]
        %v5285 = vld [vmem:[%s561 + $0x10c] sm:$0xf]
        %v5286 = vld [vmem:[%s561 + $0x110] sm:$0xf]
        %v5287 = vld [vmem:[%s561 + $0x114] sm:$0xf]
        %v5288 = vld [vmem:[%s561 + $0x118] sm:$0xf]
        %v5289 = vld [vmem:[%s561 + $0x11c] sm:$0xf]
        %v5290 = vld [vmem:[%s561 + $0x120] sm:$0xf]
        %v5291 = vld [vmem:[%s561 + $0x124] sm:$0xf]
        %v5292 = vld [vmem:[%s561 + $0x128] sm:$0xf]
        %v5293 = vld [vmem:[%s561 + $0x12c] sm:$0xf]
        %v5294 = vld [vmem:[%s561 + $0x130] sm:$0xf]
        %v5295 = vld [vmem:[%s561 + $0x134] sm:$0xf]
        %v5296 = vld [vmem:[%s561 + $0x138] sm:$0xf]
        %v5297 = vld [vmem:[%s561 + $0x13c] sm:$0xf]
        %v5298 = vld [vmem:[%s561 + $0x140] sm:$0xf]
        %v5299 = vld [vmem:[%s561 + $0x144] sm:$0xf]
        %v5300 = vld [vmem:[%s561 + $0x148] sm:$0xf]
        %v5301 = vld [vmem:[%s561 + $0x14c] sm:$0xf]
        %v5302 = vld [vmem:[%s561 + $0x150] sm:$0xf]
        %v5303 = vld [vmem:[%s561 + $0x154] sm:$0xf]
        %v5304 = vld [vmem:[%s561 + $0x158] sm:$0xf]
        %v5305 = vld [vmem:[%s561 + $0x15c] sm:$0xf]
        %v5306 = vld [vmem:[%s561 + $0x160] sm:$0xf]
        %v5307 = vld [vmem:[%s561 + $0x164] sm:$0xf]
        %v5308 = vld [vmem:[%s561 + $0x168] sm:$0xf]
        %v5309 = vld [vmem:[%s561 + $0x16c] sm:$0xf]
        %v5310 = vld [vmem:[%s561 + $0x170] sm:$0xf]
        %v5311 = vld [vmem:[%s561 + $0x174] sm:$0xf]
        %v5312 = vld [vmem:[%s561 + $0x178] sm:$0xf]
        %v5313 = vld [vmem:[%s561 + $0x17c] sm:$0xf]
        %v5314 = vld [vmem:[%s561 + $0x180] sm:$0xf]
        %v5315 = vld [vmem:[%s561 + $0x184] sm:$0xf]
        %v5316 = vld [vmem:[%s561 + $0x188] sm:$0xf]
        %v5317 = vld [vmem:[%s561 + $0x18c] sm:$0xf]
        %v5318 = vld [vmem:[%s561 + $0x190] sm:$0xf]
        %v5319 = vld [vmem:[%s561 + $0x194] sm:$0xf]
        %v5320 = vld [vmem:[%s561 + $0x198] sm:$0xf]
        %v5321 = vld [vmem:[%s561 + $0x19c] sm:$0xf]
        %v5322 = vld [vmem:[%s561 + $0x1a0] sm:$0xf]
        %v5323 = vld [vmem:[%s561 + $0x1a4] sm:$0xf]
        %v5324 = vld [vmem:[%s561 + $0x1a8] sm:$0xf]
        %v5325 = vld [vmem:[%s561 + $0x1ac] sm:$0xf]
        %v5326 = vld [vmem:[%s561 + $0x1b0] sm:$0xf]
        %v5327 = vld [vmem:[%s561 + $0x1b4] sm:$0xf]
        %v5328 = vld [vmem:[%s561 + $0x1b8] sm:$0xf]
        %v5329 = vld [vmem:[%s561 + $0x1bc] sm:$0xf]
        %v5330 = vld [vmem:[%s561 + $0x1c0] sm:$0xf]
        %v5331 = vld [vmem:[%s561 + $0x1c4] sm:$0xf]
        %v5332 = vld [vmem:[%s561 + $0x1c8] sm:$0xf]
        %v5333 = vld [vmem:[%s561 + $0x1cc] sm:$0xf]
        %v5334 = vld [vmem:[%s561 + $0x1d0] sm:$0xf]
        %v5335 = vld [vmem:[%s561 + $0x1d4] sm:$0xf]
        %v5336 = vld [vmem:[%s561 + $0x1d8] sm:$0xf]
        %v5337 = vld [vmem:[%s561 + $0x1dc] sm:$0xf]
        %v5338 = vld [vmem:[%s561 + $0x1e0] sm:$0xf]
        %v5339 = vld [vmem:[%s561 + $0x1e4] sm:$0xf]
        %v5340 = vld [vmem:[%s561 + $0x1e8] sm:$0xf]
        %v5341 = vld [vmem:[%s561 + $0x1ec] sm:$0xf]
        %v5342 = vld [vmem:[%s561 + $0x1f0] sm:$0xf]
        %v5343 = vld [vmem:[%s561 + $0x1f4] sm:$0xf]
        %v5344 = vld [vmem:[%s561 + $0x1f8] sm:$0xf]
        %v5345 = vld [vmem:[%s561 + $0x1fc] sm:$0xf]
        %v5346 = vld [vmem:[%s561 + $0x200] sm:$0xf]
        %v5347 = vld [vmem:[%s561 + $0x204] sm:$0xf]
        %v5348 = vld [vmem:[%s561 + $0x208] sm:$0xf]
        %v5349 = vld [vmem:[%s561 + $0x20c] sm:$0xf]
        %v5350 = vld [vmem:[%s561 + $0x210] sm:$0xf]
        %v5351 = vld [vmem:[%s561 + $0x214] sm:$0xf]
        %v5352 = vld [vmem:[%s561 + $0x218] sm:$0xf]
        %v5353 = vld [vmem:[%s561 + $0x21c] sm:$0xf]
        %v5354 = vld [vmem:[%s561 + $0x220] sm:$0xf]
        %v5355 = vld [vmem:[%s561 + $0x224] sm:$0xf]
        %v5356 = vld [vmem:[%s561 + $0x228] sm:$0xf]
        %v5357 = vld [vmem:[%s561 + $0x22c] sm:$0xf]
        %v5358 = vld [vmem:[%s561 + $0x230] sm:$0xf]
        %v5359 = vld [vmem:[%s561 + $0x234] sm:$0xf]
        %v5360 = vld [vmem:[%s561 + $0x238] sm:$0xf]
        %v5361 = vld [vmem:[%s561 + $0x23c] sm:$0xf]
        %v5362 = vld [vmem:[%s561 + $0x240] sm:$0xf]
        %v5363 = vld [vmem:[%s561 + $0x244] sm:$0xf]
        %v5364 = vld [vmem:[%s561 + $0x248] sm:$0xf]
        %v5365 = vld [vmem:[%s561 + $0x24c] sm:$0xf]
        %v5366 = vld [vmem:[%s561 + $0x250] sm:$0xf]
        %v5367 = vld [vmem:[%s561 + $0x254] sm:$0xf]
        %v5368 = vld [vmem:[%s561 + $0x258] sm:$0xf]
        %v5369 = vld [vmem:[%s561 + $0x25c] sm:$0xf]
        %v5370 = vld [vmem:[%s561 + $0x260] sm:$0xf]
        %v5371 = vld [vmem:[%s561 + $0x264] sm:$0xf]
        %v5372 = vld [vmem:[%s561 + $0x268] sm:$0xf]
        %v5373 = vld [vmem:[%s561 + $0x26c] sm:$0xf]
        %v5374 = vld [vmem:[%s561 + $0x270] sm:$0xf]
        %v5375 = vld [vmem:[%s561 + $0x274] sm:$0xf]
        %v5376 = vld [vmem:[%s561 + $0x278] sm:$0xf]
        %v5377 = vld [vmem:[%s561 + $0x27c] sm:$0xf]
        %v5378 = vld [vmem:[%s561 + $0x280] sm:$0xf]
        %v5379 = vld [vmem:[%s561 + $0x284] sm:$0xf]
        %v5380 = vld [vmem:[%s561 + $0x288] sm:$0xf]
        %v5381 = vld [vmem:[%s561 + $0x28c] sm:$0xf]
        %v5382 = vld [vmem:[%s561 + $0x290] sm:$0xf]
        %v5383 = vld [vmem:[%s561 + $0x294] sm:$0xf]
        %v5384 = vld [vmem:[%s561 + $0x298] sm:$0xf]
        %v5385 = vld [vmem:[%s561 + $0x29c] sm:$0xf]
        %v5386 = vld [vmem:[%s561 + $0x2a0] sm:$0xf]
        %v5387 = vld [vmem:[%s561 + $0x2a4] sm:$0xf]
        %v5388 = vld [vmem:[%s561 + $0x2a8] sm:$0xf]
        %v5389 = vld [vmem:[%s561 + $0x2ac] sm:$0xf]
        %v5390 = vld [vmem:[%s561 + $0x2b0] sm:$0xf]
        %v5391 = vld [vmem:[%s561 + $0x2b4] sm:$0xf]
        %v5392 = vld [vmem:[%s561 + $0x2b8] sm:$0xf]
        %v5393 = vld [vmem:[%s561 + $0x2bc] sm:$0xf]
        %v5394 = vld [vmem:[%s561 + $0x2c0] sm:$0xf]
        %v5395 = vld [vmem:[%s561 + $0x2c4] sm:$0xf]
        %v5396 = vld [vmem:[%s561 + $0x2c8] sm:$0xf]
        %v5397 = vld [vmem:[%s561 + $0x2cc] sm:$0xf]
        %v5398 = vld [vmem:[%s561 + $0x2d0] sm:$0xf]
        %v5399 = vld [vmem:[%s561 + $0x2d4] sm:$0xf]
        %v5400 = vld [vmem:[%s561 + $0x2d8] sm:$0xf]
        %v5401 = vld [vmem:[%s561 + $0x2dc] sm:$0xf]
        %v5402 = vld [vmem:[%s561 + $0x2e0] sm:$0xf]
        %v5403 = vld [vmem:[%s561 + $0x2e4] sm:$0xf]
        %v5404 = vld [vmem:[%s561 + $0x2e8] sm:$0xf]
        %v5405 = vld [vmem:[%s561 + $0x2ec] sm:$0xf]
        %v5406 = vld [vmem:[%s561 + $0x2f0] sm:$0xf]
        %v5407 = vld [vmem:[%s561 + $0x2f4] sm:$0xf]
        %v5408 = vld [vmem:[%s561 + $0x2f8] sm:$0xf]
        %v5409 = vld [vmem:[%s561 + $0x2fc] sm:$0xf]
        %v5410 = vld [vmem:[%s561 + $0x300] sm:$0xf]
        %v5411 = vld [vmem:[%s561 + $0x304] sm:$0xf]
        %v5412 = vld [vmem:[%s561 + $0x308] sm:$0xf]
        %v5413 = vld [vmem:[%s561 + $0x30c] sm:$0xf]
        %v5414 = vld [vmem:[%s561 + $0x310] sm:$0xf]
        %v5415 = vld [vmem:[%s561 + $0x314] sm:$0xf]
        %v5416 = vld [vmem:[%s561 + $0x318] sm:$0xf]
        %v5417 = vld [vmem:[%s561 + $0x31c] sm:$0xf]
        %v5418 = vld [vmem:[%s561 + $0x320] sm:$0xf]
        %v5419 = vld [vmem:[%s561 + $0x324] sm:$0xf]
        %v5420 = vld [vmem:[%s561 + $0x328] sm:$0xf]
        %v5421 = vld [vmem:[%s561 + $0x32c] sm:$0xf]
        %v5422 = vld [vmem:[%s561 + $0x330] sm:$0xf]
        %v5423 = vld [vmem:[%s561 + $0x334] sm:$0xf]
        %v5424 = vld [vmem:[%s561 + $0x338] sm:$0xf]
        %v5425 = vld [vmem:[%s561 + $0x33c] sm:$0xf]
        %v5426 = vld [vmem:[%s561 + $0x340] sm:$0xf]
        %v5427 = vld [vmem:[%s561 + $0x344] sm:$0xf]
        %v5428 = vld [vmem:[%s561 + $0x348] sm:$0xf]
        %v5429 = vld [vmem:[%s561 + $0x34c] sm:$0xf]
        %v5430 = vld [vmem:[%s561 + $0x350] sm:$0xf]
        %v5431 = vld [vmem:[%s561 + $0x354] sm:$0xf]
        %v5432 = vld [vmem:[%s561 + $0x358] sm:$0xf]
        %v5433 = vld [vmem:[%s561 + $0x35c] sm:$0xf]
        %v5434 = vld [vmem:[%s561 + $0x360] sm:$0xf]
        %v5435 = vld [vmem:[%s561 + $0x364] sm:$0xf]
        %v5436 = vld [vmem:[%s561 + $0x368] sm:$0xf]
        %v5437 = vld [vmem:[%s561 + $0x36c] sm:$0xf]
        %v5438 = vld [vmem:[%s561 + $0x370] sm:$0xf]
        %v5439 = vld [vmem:[%s561 + $0x374] sm:$0xf]
        %v5440 = vld [vmem:[%s561 + $0x378] sm:$0xf]
        %v5441 = vld [vmem:[%s561 + $0x37c] sm:$0xf]
        %v5442 = vld [vmem:[%s561 + $0x380] sm:$0xf]
        %v5443 = vld [vmem:[%s561 + $0x384] sm:$0xf]
        %v5444 = vld [vmem:[%s561 + $0x388] sm:$0xf]
        %v5445 = vld [vmem:[%s561 + $0x38c] sm:$0xf]
        %v5446 = vld [vmem:[%s561 + $0x390] sm:$0xf]
        %v5447 = vld [vmem:[%s561 + $0x394] sm:$0xf]
        %v5448 = vld [vmem:[%s561 + $0x398] sm:$0xf]
        %v5449 = vld [vmem:[%s561 + $0x39c] sm:$0xf]
        %v5450 = vld [vmem:[%s561 + $0x3a0] sm:$0xf]
        %v5451 = vld [vmem:[%s561 + $0x3a4] sm:$0xf]
        %v5452 = vld [vmem:[%s561 + $0x3a8] sm:$0xf]
        %v5453 = vld [vmem:[%s561 + $0x3ac] sm:$0xf]
        %v5454 = vld [vmem:[%s561 + $0x3b0] sm:$0xf]
        %v5455 = vld [vmem:[%s561 + $0x3b4] sm:$0xf]
        %v5456 = vld [vmem:[%s561 + $0x3b8] sm:$0xf]
        %v5457 = vld [vmem:[%s561 + $0x3bc] sm:$0xf]
        %v5458 = vld [vmem:[%s561 + $0x3c0] sm:$0xf]
        %v5459 = vld [vmem:[%s561 + $0x3c4] sm:$0xf]
        %v5460 = vld [vmem:[%s561 + $0x3c8] sm:$0xf]
        %v5461 = vld [vmem:[%s561 + $0x3cc] sm:$0xf]
        %v5462 = vld [vmem:[%s561 + $0x3d0] sm:$0xf]
        %v5463 = vld [vmem:[%s561 + $0x3d4] sm:$0xf]
        %v5464 = vld [vmem:[%s561 + $0x3d8] sm:$0xf]
        %v5465 = vld [vmem:[%s561 + $0x3dc] sm:$0xf]
        %v5466 = vld [vmem:[%s561 + $0x3e0] sm:$0xf]
        %v5467 = vld [vmem:[%s561 + $0x3e4] sm:$0xf]
        %v5468 = vld [vmem:[%s561 + $0x3e8] sm:$0xf]
        %v5469 = vld [vmem:[%s561 + $0x3ec] sm:$0xf]
        %v5470 = vld [vmem:[%s561 + $0x3f0] sm:$0xf]
        %v5471 = vld [vmem:[%s561 + $0x3f4] sm:$0xf]
        %v5472 = vld [vmem:[%s561 + $0x3f8] sm:$0xf]
        %v5473 = vld [vmem:[%s561 + $0x3fc] sm:$0xf]
        %v5474 = vlaneseq
        %v5475 = vshrl.u32 %v5474, 7
        %v5476 = vsub.s32 3, %v5475
        %v5477 = vrot.slane %v776, %v5476
        %v5734 = vunpack.c.l.b16 %v5218
        %v5735 = vunpack.c.l.b16 %v5219
        %v5736 = vunpack.c.l.b16 %v5220
        %v5737 = vunpack.c.l.b16 %v5221
        %v5738 = vunpack.c.l.b16 %v5222
        %v5739 = vunpack.c.l.b16 %v5223
        %v5740 = vunpack.c.l.b16 %v5224
        %v5741 = vunpack.c.l.b16 %v5225
        %v5742 = vunpack.c.l.b16 %v5226
        %v5743 = vunpack.c.l.b16 %v5227
        %v5744 = vunpack.c.l.b16 %v5228
        %v5745 = vunpack.c.l.b16 %v5229
        %v5746 = vunpack.c.l.b16 %v5230
        %v5747 = vunpack.c.l.b16 %v5231
        %v5748 = vunpack.c.l.b16 %v5232
        %v5749 = vunpack.c.l.b16 %v5233
        %v5750 = vunpack.c.l.b16 %v5234
        %v5751 = vunpack.c.l.b16 %v5235
        %v5752 = vunpack.c.l.b16 %v5236
        %v5753 = vunpack.c.l.b16 %v5237
        %v5754 = vunpack.c.l.b16 %v5238
        %v5755 = vunpack.c.l.b16 %v5239
        %v5756 = vunpack.c.l.b16 %v5240
        %v5757 = vunpack.c.l.b16 %v5241
        %v5758 = vunpack.c.l.b16 %v5242
        %v5759 = vunpack.c.l.b16 %v5243
        %v5760 = vunpack.c.l.b16 %v5244
        %v5761 = vunpack.c.l.b16 %v5245
        %v5762 = vunpack.c.l.b16 %v5246
        %v5763 = vunpack.c.l.b16 %v5247
        %v5764 = vunpack.c.l.b16 %v5248
        %v5765 = vunpack.c.l.b16 %v5249
        %v5766 = vunpack.c.l.b16 %v5250
        %v5767 = vunpack.c.l.b16 %v5251
        %v5768 = vunpack.c.l.b16 %v5252
        %v5769 = vunpack.c.l.b16 %v5253
        %v5770 = vunpack.c.l.b16 %v5254
        %v5771 = vunpack.c.l.b16 %v5255
        %v5772 = vunpack.c.l.b16 %v5256
        %v5773 = vunpack.c.l.b16 %v5257
        %v5774 = vunpack.c.l.b16 %v5258
        %v5775 = vunpack.c.l.b16 %v5259
        %v5776 = vunpack.c.l.b16 %v5260
        %v5777 = vunpack.c.l.b16 %v5261
        %v5778 = vunpack.c.l.b16 %v5262
        %v5779 = vunpack.c.l.b16 %v5263
        %v5780 = vunpack.c.l.b16 %v5264
        %v5781 = vunpack.c.l.b16 %v5265
        %v5782 = vunpack.c.l.b16 %v5266
        %v5783 = vunpack.c.l.b16 %v5267
        %v5784 = vunpack.c.l.b16 %v5268
        %v5785 = vunpack.c.l.b16 %v5269
        %v5786 = vunpack.c.l.b16 %v5270
        %v5787 = vunpack.c.l.b16 %v5271
        %v5788 = vunpack.c.l.b16 %v5272
        %v5789 = vunpack.c.l.b16 %v5273
        %v5790 = vunpack.c.l.b16 %v5274
        %v5791 = vunpack.c.l.b16 %v5275
        %v5792 = vunpack.c.l.b16 %v5276
        %v5793 = vunpack.c.l.b16 %v5277
        %v5794 = vunpack.c.l.b16 %v5278
        %v5795 = vunpack.c.l.b16 %v5279
        %v5796 = vunpack.c.l.b16 %v5280
        %v5797 = vunpack.c.l.b16 %v5281
        %v5798 = vunpack.c.l.b16 %v5282
        %v5799 = vunpack.c.l.b16 %v5283
        %v5800 = vunpack.c.l.b16 %v5284
        %v5801 = vunpack.c.l.b16 %v5285
        %v5802 = vunpack.c.l.b16 %v5286
        %v5803 = vunpack.c.l.b16 %v5287
        %v5804 = vunpack.c.l.b16 %v5288
        %v5805 = vunpack.c.l.b16 %v5289
        %v5806 = vunpack.c.l.b16 %v5290
        %v5807 = vunpack.c.l.b16 %v5291
        %v5808 = vunpack.c.l.b16 %v5292
        %v5809 = vunpack.c.l.b16 %v5293
        %v5810 = vunpack.c.l.b16 %v5294
        %v5811 = vunpack.c.l.b16 %v5295
        %v5812 = vunpack.c.l.b16 %v5296
        %v5813 = vunpack.c.l.b16 %v5297
        %v5814 = vunpack.c.l.b16 %v5298
        %v5815 = vunpack.c.l.b16 %v5299
        %v5816 = vunpack.c.l.b16 %v5300
        %v5817 = vunpack.c.l.b16 %v5301
        %v5818 = vunpack.c.l.b16 %v5302
        %v5819 = vunpack.c.l.b16 %v5303
        %v5820 = vunpack.c.l.b16 %v5304
        %v5821 = vunpack.c.l.b16 %v5305
        %v5822 = vunpack.c.l.b16 %v5306
        %v5823 = vunpack.c.l.b16 %v5307
        %v5824 = vunpack.c.l.b16 %v5308
        %v5825 = vunpack.c.l.b16 %v5309
        %v5826 = vunpack.c.l.b16 %v5310
        %v5827 = vunpack.c.l.b16 %v5311
        %v5828 = vunpack.c.l.b16 %v5312
        %v5829 = vunpack.c.l.b16 %v5313
        %v5830 = vunpack.c.l.b16 %v5314
        %v5831 = vunpack.c.l.b16 %v5315
        %v5832 = vunpack.c.l.b16 %v5316
        %v5833 = vunpack.c.l.b16 %v5317
        %v5834 = vunpack.c.l.b16 %v5318
        %v5835 = vunpack.c.l.b16 %v5319
        %v5836 = vunpack.c.l.b16 %v5320
        %v5837 = vunpack.c.l.b16 %v5321
        %v5838 = vunpack.c.l.b16 %v5322
        %v5839 = vunpack.c.l.b16 %v5323
        %v5840 = vunpack.c.l.b16 %v5324
        %v5841 = vunpack.c.l.b16 %v5325
        %v5842 = vunpack.c.l.b16 %v5326
        %v5843 = vunpack.c.l.b16 %v5327
        %v5844 = vunpack.c.l.b16 %v5328
        %v5845 = vunpack.c.l.b16 %v5329
        %v5846 = vunpack.c.l.b16 %v5330
        %v5847 = vunpack.c.l.b16 %v5331
        %v5848 = vunpack.c.l.b16 %v5332
        %v5849 = vunpack.c.l.b16 %v5333
        %v5850 = vunpack.c.l.b16 %v5334
        %v5851 = vunpack.c.l.b16 %v5335
        %v5852 = vunpack.c.l.b16 %v5336
        %v5853 = vunpack.c.l.b16 %v5337
        %v5854 = vunpack.c.l.b16 %v5338
        %v5855 = vunpack.c.l.b16 %v5339
        %v5856 = vunpack.c.l.b16 %v5340
        %v5857 = vunpack.c.l.b16 %v5341
        %v5858 = vunpack.c.l.b16 %v5342
        %v5859 = vunpack.c.l.b16 %v5343
        %v5860 = vunpack.c.l.b16 %v5344
        %v5861 = vunpack.c.l.b16 %v5345
        %v5862 = vunpack.c.l.b16 %v5346
        %v5863 = vunpack.c.l.b16 %v5347
        %v5864 = vunpack.c.l.b16 %v5348
        %v5865 = vunpack.c.l.b16 %v5349
        %v5866 = vunpack.c.l.b16 %v5350
        %v5867 = vunpack.c.l.b16 %v5351
        %v5868 = vunpack.c.l.b16 %v5352
        %v5869 = vunpack.c.l.b16 %v5353
        %v5870 = vunpack.c.l.b16 %v5354
        %v5871 = vunpack.c.l.b16 %v5355
        %v5872 = vunpack.c.l.b16 %v5356
        %v5873 = vunpack.c.l.b16 %v5357
        %v5874 = vunpack.c.l.b16 %v5358
        %v5875 = vunpack.c.l.b16 %v5359
        %v5876 = vunpack.c.l.b16 %v5360
        %v5877 = vunpack.c.l.b16 %v5361
        %v5878 = vunpack.c.l.b16 %v5362
        %v5879 = vunpack.c.l.b16 %v5363
        %v5880 = vunpack.c.l.b16 %v5364
        %v5881 = vunpack.c.l.b16 %v5365
        %v5882 = vunpack.c.l.b16 %v5366
        %v5883 = vunpack.c.l.b16 %v5367
        %v5884 = vunpack.c.l.b16 %v5368
        %v5885 = vunpack.c.l.b16 %v5369
        %v5886 = vunpack.c.l.b16 %v5370
        %v5887 = vunpack.c.l.b16 %v5371
        %v5888 = vunpack.c.l.b16 %v5372
        %v5889 = vunpack.c.l.b16 %v5373
        %v5890 = vunpack.c.l.b16 %v5374
        %v5891 = vunpack.c.l.b16 %v5375
        %v5892 = vunpack.c.l.b16 %v5376
        %v5893 = vunpack.c.l.b16 %v5377
        %v5894 = vunpack.c.l.b16 %v5378
        %v5895 = vunpack.c.l.b16 %v5379
        %v5896 = vunpack.c.l.b16 %v5380
        %v5897 = vunpack.c.l.b16 %v5381
        %v5898 = vunpack.c.l.b16 %v5382
        %v5899 = vunpack.c.l.b16 %v5383
        %v5900 = vunpack.c.l.b16 %v5384
        %v5901 = vunpack.c.l.b16 %v5385
        %v5902 = vunpack.c.l.b16 %v5386
        %v5903 = vunpack.c.l.b16 %v5387
        %v5904 = vunpack.c.l.b16 %v5388
        %v5905 = vunpack.c.l.b16 %v5389
        %v5906 = vunpack.c.l.b16 %v5390
        %v5907 = vunpack.c.l.b16 %v5391
        %v5908 = vunpack.c.l.b16 %v5392
        %v5909 = vunpack.c.l.b16 %v5393
        %v5910 = vunpack.c.l.b16 %v5394
        %v5911 = vunpack.c.l.b16 %v5395
        %v5912 = vunpack.c.l.b16 %v5396
        %v5913 = vunpack.c.l.b16 %v5397
        %v5914 = vunpack.c.l.b16 %v5398
        %v5915 = vunpack.c.l.b16 %v5399
        %v5916 = vunpack.c.l.b16 %v5400
        %v5917 = vunpack.c.l.b16 %v5401
        %v5918 = vunpack.c.l.b16 %v5402
        %v5919 = vunpack.c.l.b16 %v5403
        %v5920 = vunpack.c.l.b16 %v5404
        %v5921 = vunpack.c.l.b16 %v5405
        %v5922 = vunpack.c.l.b16 %v5406
        %v5923 = vunpack.c.l.b16 %v5407
        %v5924 = vunpack.c.l.b16 %v5408
        %v5925 = vunpack.c.l.b16 %v5409
        %v5926 = vunpack.c.l.b16 %v5410
        %v5927 = vunpack.c.l.b16 %v5411
        %v5928 = vunpack.c.l.b16 %v5412
        %v5929 = vunpack.c.l.b16 %v5413
        %v5930 = vunpack.c.l.b16 %v5414
        %v5931 = vunpack.c.l.b16 %v5415
        %v5932 = vunpack.c.l.b16 %v5416
        %v5933 = vunpack.c.l.b16 %v5417
        %v5934 = vunpack.c.l.b16 %v5418
        %v5935 = vunpack.c.l.b16 %v5419
        %v5936 = vunpack.c.l.b16 %v5420
        %v5937 = vunpack.c.l.b16 %v5421
        %v5938 = vunpack.c.l.b16 %v5422
        %v5939 = vunpack.c.l.b16 %v5423
        %v5940 = vunpack.c.l.b16 %v5424
        %v5941 = vunpack.c.l.b16 %v5425
        %v5942 = vunpack.c.l.b16 %v5426
        %v5943 = vunpack.c.l.b16 %v5427
        %v5944 = vunpack.c.l.b16 %v5428
        %v5945 = vunpack.c.l.b16 %v5429
        %v5946 = vunpack.c.l.b16 %v5430
        %v5947 = vunpack.c.l.b16 %v5431
        %v5948 = vunpack.c.l.b16 %v5432
        %v5949 = vunpack.c.l.b16 %v5433
        %v5950 = vunpack.c.l.b16 %v5434
        %v5951 = vunpack.c.l.b16 %v5435
        %v5952 = vunpack.c.l.b16 %v5436
        %v5953 = vunpack.c.l.b16 %v5437
        %v5954 = vunpack.c.l.b16 %v5438
        %v5955 = vunpack.c.l.b16 %v5439
        %v5956 = vunpack.c.l.b16 %v5440
        %v5957 = vunpack.c.l.b16 %v5441
        %v5958 = vunpack.c.l.b16 %v5442
        %v5959 = vunpack.c.l.b16 %v5443
        %v5960 = vunpack.c.l.b16 %v5444
        %v5961 = vunpack.c.l.b16 %v5445
        %v5962 = vunpack.c.l.b16 %v5446
        %v5963 = vunpack.c.l.b16 %v5447
        %v5964 = vunpack.c.l.b16 %v5448
        %v5965 = vunpack.c.l.b16 %v5449
        %v5966 = vunpack.c.l.b16 %v5450
        %v5967 = vunpack.c.l.b16 %v5451
        %v5968 = vunpack.c.l.b16 %v5452
        %v5969 = vunpack.c.l.b16 %v5453
        %v5970 = vunpack.c.l.b16 %v5454
        %v5971 = vunpack.c.l.b16 %v5455
        %v5972 = vunpack.c.l.b16 %v5456
        %v5973 = vunpack.c.l.b16 %v5457
        %v5974 = vunpack.c.l.b16 %v5458
        %v5975 = vunpack.c.l.b16 %v5459
        %v5976 = vunpack.c.l.b16 %v5460
        %v5977 = vunpack.c.l.b16 %v5461
        %v5978 = vunpack.c.l.b16 %v5462
        %v5979 = vunpack.c.l.b16 %v5463
        %v5980 = vunpack.c.l.b16 %v5464
        %v5981 = vunpack.c.l.b16 %v5465
        %v5982 = vunpack.c.l.b16 %v5466
        %v5983 = vunpack.c.l.b16 %v5467
        %v5984 = vunpack.c.l.b16 %v5468
        %v5985 = vunpack.c.l.b16 %v5469
        %v5986 = vunpack.c.l.b16 %v5470
        %v5987 = vunpack.c.l.b16 %v5471
        %v5988 = vunpack.c.l.b16 %v5472
        %v5989 = vunpack.c.l.b16 %v5473
        %v5990 = vpack.c.b16 %v5735, %v5734
        %v5991 = vpack.c.b16 %v5737, %v5736
        %v5992 = vpack.c.b16 %v5739, %v5738
        %v5993 = vpack.c.b16 %v5741, %v5740
        %v5994 = vpack.c.b16 %v5743, %v5742
        %v5995 = vpack.c.b16 %v5745, %v5744
        %v5996 = vpack.c.b16 %v5747, %v5746
        %v5997 = vpack.c.b16 %v5749, %v5748
        %v5998 = vpack.c.b16 %v5751, %v5750
        %v5999 = vpack.c.b16 %v5753, %v5752
        %v6000 = vpack.c.b16 %v5755, %v5754
        %v6001 = vpack.c.b16 %v5757, %v5756
        %v6002 = vpack.c.b16 %v5759, %v5758
        %v6003 = vpack.c.b16 %v5761, %v5760
        %v6004 = vpack.c.b16 %v5763, %v5762
        %v6005 = vpack.c.b16 %v5765, %v5764
        %v6006 = vpack.c.b16 %v5767, %v5766
        %v6007 = vpack.c.b16 %v5769, %v5768
        %v6008 = vpack.c.b16 %v5771, %v5770
        %v6009 = vpack.c.b16 %v5773, %v5772
        %v6010 = vpack.c.b16 %v5775, %v5774
        %v6011 = vpack.c.b16 %v5777, %v5776
        %v6012 = vpack.c.b16 %v5779, %v5778
        %v6013 = vpack.c.b16 %v5781, %v5780
        %v6014 = vpack.c.b16 %v5783, %v5782
        %v6015 = vpack.c.b16 %v5785, %v5784
        %v6016 = vpack.c.b16 %v5787, %v5786
        %v6017 = vpack.c.b16 %v5789, %v5788
        %v6018 = vpack.c.b16 %v5791, %v5790
        %v6019 = vpack.c.b16 %v5793, %v5792
        %v6020 = vpack.c.b16 %v5795, %v5794
        %v6021 = vpack.c.b16 %v5797, %v5796
        %v6022 = vpack.c.b16 %v5799, %v5798
        %v6023 = vpack.c.b16 %v5801, %v5800
        %v6024 = vpack.c.b16 %v5803, %v5802
        %v6025 = vpack.c.b16 %v5805, %v5804
        %v6026 = vpack.c.b16 %v5807, %v5806
        %v6027 = vpack.c.b16 %v5809, %v5808
        %v6028 = vpack.c.b16 %v5811, %v5810
        %v6029 = vpack.c.b16 %v5813, %v5812
        %v6030 = vpack.c.b16 %v5815, %v5814
        %v6031 = vpack.c.b16 %v5817, %v5816
        %v6032 = vpack.c.b16 %v5819, %v5818
        %v6033 = vpack.c.b16 %v5821, %v5820
        %v6034 = vpack.c.b16 %v5823, %v5822
        %v6035 = vpack.c.b16 %v5825, %v5824
        %v6036 = vpack.c.b16 %v5827, %v5826
        %v6037 = vpack.c.b16 %v5829, %v5828
        %v6038 = vpack.c.b16 %v5831, %v5830
        %v6039 = vpack.c.b16 %v5833, %v5832
        %v6040 = vpack.c.b16 %v5835, %v5834
        %v6041 = vpack.c.b16 %v5837, %v5836
        %v6042 = vpack.c.b16 %v5839, %v5838
        %v6043 = vpack.c.b16 %v5841, %v5840
        %v6044 = vpack.c.b16 %v5843, %v5842
        %v6045 = vpack.c.b16 %v5845, %v5844
        %v6046 = vpack.c.b16 %v5847, %v5846
        %v6047 = vpack.c.b16 %v5849, %v5848
        %v6048 = vpack.c.b16 %v5851, %v5850
        %v6049 = vpack.c.b16 %v5853, %v5852
        %v6050 = vpack.c.b16 %v5855, %v5854
        %v6051 = vpack.c.b16 %v5857, %v5856
        %v6052 = vpack.c.b16 %v5859, %v5858
        %v6053 = vpack.c.b16 %v5861, %v5860
        %v6054 = vpack.c.b16 %v5863, %v5862
        %v6055 = vpack.c.b16 %v5865, %v5864
        %v6056 = vpack.c.b16 %v5867, %v5866
        %v6057 = vpack.c.b16 %v5869, %v5868
        %v6058 = vpack.c.b16 %v5871, %v5870
        %v6059 = vpack.c.b16 %v5873, %v5872
        %v6060 = vpack.c.b16 %v5875, %v5874
        %v6061 = vpack.c.b16 %v5877, %v5876
        %v6062 = vpack.c.b16 %v5879, %v5878
        %v6063 = vpack.c.b16 %v5881, %v5880
        %v6064 = vpack.c.b16 %v5883, %v5882
        %v6065 = vpack.c.b16 %v5885, %v5884
        %v6066 = vpack.c.b16 %v5887, %v5886
        %v6067 = vpack.c.b16 %v5889, %v5888
        %v6068 = vpack.c.b16 %v5891, %v5890
        %v6069 = vpack.c.b16 %v5893, %v5892
        %v6070 = vpack.c.b16 %v5895, %v5894
        %v6071 = vpack.c.b16 %v5897, %v5896
        %v6072 = vpack.c.b16 %v5899, %v5898
        %v6073 = vpack.c.b16 %v5901, %v5900
        %v6074 = vpack.c.b16 %v5903, %v5902
        %v6075 = vpack.c.b16 %v5905, %v5904
        %v6076 = vpack.c.b16 %v5907, %v5906
        %v6077 = vpack.c.b16 %v5909, %v5908
        %v6078 = vpack.c.b16 %v5911, %v5910
        %v6079 = vpack.c.b16 %v5913, %v5912
        %v6080 = vpack.c.b16 %v5915, %v5914
        %v6081 = vpack.c.b16 %v5917, %v5916
        %v6082 = vpack.c.b16 %v5919, %v5918
        %v6083 = vpack.c.b16 %v5921, %v5920
        %v6084 = vpack.c.b16 %v5923, %v5922
        %v6085 = vpack.c.b16 %v5925, %v5924
        %v6086 = vpack.c.b16 %v5927, %v5926
        %v6087 = vpack.c.b16 %v5929, %v5928
        %v6088 = vpack.c.b16 %v5931, %v5930
        %v6089 = vpack.c.b16 %v5933, %v5932
        %v6090 = vpack.c.b16 %v5935, %v5934
        %v6091 = vpack.c.b16 %v5937, %v5936
        %v6092 = vpack.c.b16 %v5939, %v5938
        %v6093 = vpack.c.b16 %v5941, %v5940
        %v6094 = vpack.c.b16 %v5943, %v5942
        %v6095 = vpack.c.b16 %v5945, %v5944
        %v6096 = vpack.c.b16 %v5947, %v5946
        %v6097 = vpack.c.b16 %v5949, %v5948
        %v6098 = vpack.c.b16 %v5951, %v5950
        %v6099 = vpack.c.b16 %v5953, %v5952
        %v6100 = vpack.c.b16 %v5955, %v5954
        %v6101 = vpack.c.b16 %v5957, %v5956
        %v6102 = vpack.c.b16 %v5959, %v5958
        %v6103 = vpack.c.b16 %v5961, %v5960
        %v6104 = vpack.c.b16 %v5963, %v5962
        %v6105 = vpack.c.b16 %v5965, %v5964
        %v6106 = vpack.c.b16 %v5967, %v5966
        %v6107 = vpack.c.b16 %v5969, %v5968
        %v6108 = vpack.c.b16 %v5971, %v5970
        %v6109 = vpack.c.b16 %v5973, %v5972
        %v6110 = vpack.c.b16 %v5975, %v5974
        %v6111 = vpack.c.b16 %v5977, %v5976
        %v6112 = vpack.c.b16 %v5979, %v5978
        %v6113 = vpack.c.b16 %v5981, %v5980
        %v6114 = vpack.c.b16 %v5983, %v5982
        %v6115 = vpack.c.b16 %v5985, %v5984
        %v6116 = vpack.c.b16 %v5987, %v5986
        %v6117 = vpack.c.b16 %v5989, %v5988
        %6246 = vmatprep.subr.bf16.mxu0 0
        %6247 = vmatpush1.bf16.msra.mxu0 %v5990
        %6248 = vmatprep.subr.bf16.mxu0 0
        %6249 = vmatpush1.bf16.msra.mxu0 %v5991
        %6250 = vmatprep.subr.bf16.mxu0 0
        %6251 = vmatpush1.bf16.msra.mxu0 %v5992
        %6252 = vmatprep.subr.bf16.mxu0 0
        %6253 = vmatpush1.bf16.msra.mxu0 %v5993
        %6254 = vmatprep.subr.bf16.mxu0 0
        %6255 = vmatpush1.bf16.msra.mxu0 %v5994
        %6256 = vmatprep.subr.bf16.mxu0 0
        %6257 = vmatpush1.bf16.msra.mxu0 %v5995
        %6258 = vmatprep.subr.bf16.mxu0 0
        %6259 = vmatpush1.bf16.msra.mxu0 %v5996
        %6260 = vmatprep.subr.bf16.mxu0 0
        %6261 = vmatpush1.bf16.msra.mxu0 %v5997
        %6262 = vmatprep.subr.bf16.mxu0 0
        %6263 = vmatpush1.bf16.msra.mxu0 %v5998
        %6264 = vmatprep.subr.bf16.mxu0 0
        %6265 = vmatpush1.bf16.msra.mxu0 %v5999
        %6266 = vmatprep.subr.bf16.mxu0 0
        %6267 = vmatpush1.bf16.msra.mxu0 %v6000
        %6268 = vmatprep.subr.bf16.mxu0 0
        %6269 = vmatpush1.bf16.msra.mxu0 %v6001
        %6270 = vmatprep.subr.bf16.mxu0 0
        %6271 = vmatpush1.bf16.msra.mxu0 %v6002
        %6272 = vmatprep.subr.bf16.mxu0 0
        %6273 = vmatpush1.bf16.msra.mxu0 %v6003
        %6274 = vmatprep.subr.bf16.mxu0 0
        %6275 = vmatpush1.bf16.msra.mxu0 %v6004
        %6276 = vmatprep.subr.bf16.mxu0 0
        %6277 = vmatpush1.bf16.msra.mxu0 %v6005
        %6278 = vmatprep.mubr.bf16.mxu0 %v5203
        %6279 = vmatmul.mubr.bf16.gmra.mrb[0].mxu0 %v5202
        %v6280 = vpop.f32.mrb[0].mxu0
        %v6281 = vadd.f32 %v5477, %v6280
        %v6282 = vpop.f32.mrb[0].mxu0
        %v6283 = vpop.f32.mrb[0].mxu0
        %v6284 = vadd.f32 %v5477, %v6283
        %v6285 = vpop.f32.mrb[0].mxu0
        %6286 = vdwg.mxu0
        %6287 = vmatprep.subr.bf16.mxu0 0
        %6288 = vmatpush1.bf16.msra.mxu0 %v6006
        %6289 = vmatprep.subr.bf16.mxu0 0
        %6290 = vmatpush1.bf16.msra.mxu0 %v6007
        %6291 = vmatprep.subr.bf16.mxu0 0
        %6292 = vmatpush1.bf16.msra.mxu0 %v6008
        %6293 = vmatprep.subr.bf16.mxu0 0
        %6294 = vmatpush1.bf16.msra.mxu0 %v6009
        %6295 = vmatprep.subr.bf16.mxu0 0
        %6296 = vmatpush1.bf16.msra.mxu0 %v6010
        %6297 = vmatprep.subr.bf16.mxu0 0
        %6298 = vmatpush1.bf16.msra.mxu0 %v6011
        %6299 = vmatprep.subr.bf16.mxu0 0
        %6300 = vmatpush1.bf16.msra.mxu0 %v6012
        %6301 = vmatprep.subr.bf16.mxu0 0
        %6302 = vmatpush1.bf16.msra.mxu0 %v6013
        %6303 = vmatprep.subr.bf16.mxu0 0
        %6304 = vmatpush1.bf16.msra.mxu0 %v6014
        %6305 = vmatprep.subr.bf16.mxu0 0
        %6306 = vmatpush1.bf16.msra.mxu0 %v6015
        %6307 = vmatprep.subr.bf16.mxu0 0
        %6308 = vmatpush1.bf16.msra.mxu0 %v6016
        %6309 = vmatprep.subr.bf16.mxu0 0
        %6310 = vmatpush1.bf16.msra.mxu0 %v6017
        %6311 = vmatprep.subr.bf16.mxu0 0
        %6312 = vmatpush1.bf16.msra.mxu0 %v6018
        %6313 = vmatprep.subr.bf16.mxu0 0
        %6314 = vmatpush1.bf16.msra.mxu0 %v6019
        %6315 = vmatprep.subr.bf16.mxu0 0
        %6316 = vmatpush1.bf16.msra.mxu0 %v6020
        %6317 = vmatprep.subr.bf16.mxu0 0
        %6318 = vmatpush1.bf16.msra.mxu0 %v6021
        %6319 = vmatprep.mubr.bf16.mxu0 %v5205
        %6320 = vmatmul.mubr.bf16.gmra.mrb[0].mxu0 %v5204
        %v6321 = vpop.f32.mrb[0].mxu0
        %v6322 = vadd.f32 %v6281, %v6321
        %v6323 = vpop.f32.mrb[0].mxu0
        %v6324 = vpop.f32.mrb[0].mxu0
        %v6325 = vadd.f32 %v6284, %v6324
        %v6326 = vpop.f32.mrb[0].mxu0
        %6327 = vdwg.mxu0
        %6328 = vmatprep.subr.bf16.mxu0 0
        %6329 = vmatpush1.bf16.msra.mxu0 %v6022
        %6330 = vmatprep.subr.bf16.mxu0 0
        %6331 = vmatpush1.bf16.msra.mxu0 %v6023
        %6332 = vmatprep.subr.bf16.mxu0 0
        %6333 = vmatpush1.bf16.msra.mxu0 %v6024
        %6334 = vmatprep.subr.bf16.mxu0 0
        %6335 = vmatpush1.bf16.msra.mxu0 %v6025
        %6336 = vmatprep.subr.bf16.mxu0 0
        %6337 = vmatpush1.bf16.msra.mxu0 %v6026
        %6338 = vmatprep.subr.bf16.mxu0 0
        %6339 = vmatpush1.bf16.msra.mxu0 %v6027
        %6340 = vmatprep.subr.bf16.mxu0 0
        %6341 = vmatpush1.bf16.msra.mxu0 %v6028
        %6342 = vmatprep.subr.bf16.mxu0 0
        %6343 = vmatpush1.bf16.msra.mxu0 %v6029
        %6344 = vmatprep.subr.bf16.mxu0 0
        %6345 = vmatpush1.bf16.msra.mxu0 %v6030
        %6346 = vmatprep.subr.bf16.mxu0 0
        %6347 = vmatpush1.bf16.msra.mxu0 %v6031
        %6348 = vmatprep.subr.bf16.mxu0 0
        %6349 = vmatpush1.bf16.msra.mxu0 %v6032
        %6350 = vmatprep.subr.bf16.mxu0 0
        %6351 = vmatpush1.bf16.msra.mxu0 %v6033
        %6352 = vmatprep.subr.bf16.mxu0 0
        %6353 = vmatpush1.bf16.msra.mxu0 %v6034
        %6354 = vmatprep.subr.bf16.mxu0 0
        %6355 = vmatpush1.bf16.msra.mxu0 %v6035
        %6356 = vmatprep.subr.bf16.mxu0 0
        %6357 = vmatpush1.bf16.msra.mxu0 %v6036
        %6358 = vmatprep.subr.bf16.mxu0 0
        %6359 = vmatpush1.bf16.msra.mxu0 %v6037
        %6360 = vmatprep.mubr.bf16.mxu0 %v5207
        %6361 = vmatmul.mubr.bf16.gmra.mrb[0].mxu0 %v5206
        %v6362 = vpop.f32.mrb[0].mxu0
        %v6363 = vadd.f32 %v6322, %v6362
        %v6364 = vpop.f32.mrb[0].mxu0
        %v6365 = vpop.f32.mrb[0].mxu0
        %v6366 = vadd.f32 %v6325, %v6365
        %v6367 = vpop.f32.mrb[0].mxu0
        %6368 = vdwg.mxu0
        %6369 = vmatprep.subr.bf16.mxu0 0
        %6370 = vmatpush1.bf16.msra.mxu0 %v6038
        %6371 = vmatprep.subr.bf16.mxu0 0
        %6372 = vmatpush1.bf16.msra.mxu0 %v6039
        %6373 = vmatprep.subr.bf16.mxu0 0
        %6374 = vmatpush1.bf16.msra.mxu0 %v6040
        %6375 = vmatprep.subr.bf16.mxu0 0
        %6376 = vmatpush1.bf16.msra.mxu0 %v6041
        %6377 = vmatprep.subr.bf16.mxu0 0
        %6378 = vmatpush1.bf16.msra.mxu0 %v6042
        %6379 = vmatprep.subr.bf16.mxu0 0
        %6380 = vmatpush1.bf16.msra.mxu0 %v6043
        %6381 = vmatprep.subr.bf16.mxu0 0
        %6382 = vmatpush1.bf16.msra.mxu0 %v6044
        %6383 = vmatprep.subr.bf16.mxu0 0
        %6384 = vmatpush1.bf16.msra.mxu0 %v6045
        %6385 = vmatprep.subr.bf16.mxu0 0
        %6386 = vmatpush1.bf16.msra.mxu0 %v6046
        %6387 = vmatprep.subr.bf16.mxu0 0
        %6388 = vmatpush1.bf16.msra.mxu0 %v6047
        %6389 = vmatprep.subr.bf16.mxu0 0
        %6390 = vmatpush1.bf16.msra.mxu0 %v6048
        %6391 = vmatprep.subr.bf16.mxu0 0
        %6392 = vmatpush1.bf16.msra.mxu0 %v6049
        %6393 = vmatprep.subr.bf16.mxu0 0
        %6394 = vmatpush1.bf16.msra.mxu0 %v6050
        %6395 = vmatprep.subr.bf16.mxu0 0
        %6396 = vmatpush1.bf16.msra.mxu0 %v6051
        %6397 = vmatprep.subr.bf16.mxu0 0
        %6398 = vmatpush1.bf16.msra.mxu0 %v6052
        %6399 = vmatprep.subr.bf16.mxu0 0
        %6400 = vmatpush1.bf16.msra.mxu0 %v6053
        %6401 = vmatprep.mubr.bf16.mxu0 %v5209
        %6402 = vmatmul.mubr.bf16.gmra.mrb[0].mxu0 %v5208
        %v6403 = vpop.f32.mrb[0].mxu0
        %v6404 = vadd.f32 %v6363, %v6403
        %v6405 = vpop.f32.mrb[0].mxu0
        %v6406 = vpop.f32.mrb[0].mxu0
        %v6407 = vadd.f32 %v6366, %v6406
        %v6408 = vpop.f32.mrb[0].mxu0
        %6409 = vdwg.mxu0
        %6410 = vmatprep.subr.bf16.mxu0 0
        %6411 = vmatpush1.bf16.msra.mxu0 %v6054
        %6412 = vmatprep.subr.bf16.mxu0 0
        %6413 = vmatpush1.bf16.msra.mxu0 %v6055
        %6414 = vmatprep.subr.bf16.mxu0 0
        %6415 = vmatpush1.bf16.msra.mxu0 %v6056
        %6416 = vmatprep.subr.bf16.mxu0 0
        %6417 = vmatpush1.bf16.msra.mxu0 %v6057
        %6418 = vmatprep.subr.bf16.mxu0 0
        %6419 = vmatpush1.bf16.msra.mxu0 %v6058
        %6420 = vmatprep.subr.bf16.mxu0 0
        %6421 = vmatpush1.bf16.msra.mxu0 %v6059
        %6422 = vmatprep.subr.bf16.mxu0 0
        %6423 = vmatpush1.bf16.msra.mxu0 %v6060
        %6424 = vmatprep.subr.bf16.mxu0 0
        %6425 = vmatpush1.bf16.msra.mxu0 %v6061
        %6426 = vmatprep.subr.bf16.mxu0 0
        %6427 = vmatpush1.bf16.msra.mxu0 %v6062
        %6428 = vmatprep.subr.bf16.mxu0 0
        %6429 = vmatpush1.bf16.msra.mxu0 %v6063
        %6430 = vmatprep.subr.bf16.mxu0 0
        %6431 = vmatpush1.bf16.msra.mxu0 %v6064
        %6432 = vmatprep.subr.bf16.mxu0 0
        %6433 = vmatpush1.bf16.msra.mxu0 %v6065
        %6434 = vmatprep.subr.bf16.mxu0 0
        %6435 = vmatpush1.bf16.msra.mxu0 %v6066
        %6436 = vmatprep.subr.bf16.mxu0 0
        %6437 = vmatpush1.bf16.msra.mxu0 %v6067
        %6438 = vmatprep.subr.bf16.mxu0 0
        %6439 = vmatpush1.bf16.msra.mxu0 %v6068
        %6440 = vmatprep.subr.bf16.mxu0 0
        %6441 = vmatpush1.bf16.msra.mxu0 %v6069
        %6442 = vmatprep.mubr.bf16.mxu0 %v5211
        %6443 = vmatmul.mubr.bf16.gmra.mrb[0].mxu0 %v5210
        %v6444 = vpop.f32.mrb[0].mxu0
        %v6445 = vadd.f32 %v6404, %v6444
        %v6446 = vpop.f32.mrb[0].mxu0
        %v6447 = vpop.f32.mrb[0].mxu0
        %v6448 = vadd.f32 %v6407, %v6447
        %v6449 = vpop.f32.mrb[0].mxu0
        %6450 = vdwg.mxu0
        %6451 = vmatprep.subr.bf16.mxu0 0
        %6452 = vmatpush1.bf16.msra.mxu0 %v6070
        %6453 = vmatprep.subr.bf16.mxu0 0
        %6454 = vmatpush1.bf16.msra.mxu0 %v6071
        %6455 = vmatprep.subr.bf16.mxu0 0
        %6456 = vmatpush1.bf16.msra.mxu0 %v6072
        %6457 = vmatprep.subr.bf16.mxu0 0
        %6458 = vmatpush1.bf16.msra.mxu0 %v6073
        %6459 = vmatprep.subr.bf16.mxu0 0
        %6460 = vmatpush1.bf16.msra.mxu0 %v6074
        %6461 = vmatprep.subr.bf16.mxu0 0
        %6462 = vmatpush1.bf16.msra.mxu0 %v6075
        %6463 = vmatprep.subr.bf16.mxu0 0
        %6464 = vmatpush1.bf16.msra.mxu0 %v6076
        %6465 = vmatprep.subr.bf16.mxu0 0
        %6466 = vmatpush1.bf16.msra.mxu0 %v6077
        %6467 = vmatprep.subr.bf16.mxu0 0
        %6468 = vmatpush1.bf16.msra.mxu0 %v6078
        %6469 = vmatprep.subr.bf16.mxu0 0
        %6470 = vmatpush1.bf16.msra.mxu0 %v6079
        %6471 = vmatprep.subr.bf16.mxu0 0
        %6472 = vmatpush1.bf16.msra.mxu0 %v6080
        %6473 = vmatprep.subr.bf16.mxu0 0
        %6474 = vmatpush1.bf16.msra.mxu0 %v6081
        %6475 = vmatprep.subr.bf16.mxu0 0
        %6476 = vmatpush1.bf16.msra.mxu0 %v6082
        %6477 = vmatprep.subr.bf16.mxu0 0
        %6478 = vmatpush1.bf16.msra.mxu0 %v6083
        %6479 = vmatprep.subr.bf16.mxu0 0
        %6480 = vmatpush1.bf16.msra.mxu0 %v6084
        %6481 = vmatprep.subr.bf16.mxu0 0
        %6482 = vmatpush1.bf16.msra.mxu0 %v6085
        %6483 = vmatprep.mubr.bf16.mxu0 %v5213
        %6484 = vmatmul.mubr.bf16.gmra.mrb[0].mxu0 %v5212
        %v6485 = vpop.f32.mrb[0].mxu0
        %v6486 = vadd.f32 %v6445, %v6485
        %v6487 = vpop.f32.mrb[0].mxu0
        %v6488 = vpop.f32.mrb[0].mxu0
        %v6489 = vadd.f32 %v6448, %v6488
        %v6490 = vpop.f32.mrb[0].mxu0
        %6491 = vdwg.mxu0
        %6492 = vmatprep.subr.bf16.mxu0 0
        %6493 = vmatpush1.bf16.msra.mxu0 %v6086
        %6494 = vmatprep.subr.bf16.mxu0 0
        %6495 = vmatpush1.bf16.msra.mxu0 %v6087
        %6496 = vmatprep.subr.bf16.mxu0 0
        %6497 = vmatpush1.bf16.msra.mxu0 %v6088
        %6498 = vmatprep.subr.bf16.mxu0 0
        %6499 = vmatpush1.bf16.msra.mxu0 %v6089
        %6500 = vmatprep.subr.bf16.mxu0 0
        %6501 = vmatpush1.bf16.msra.mxu0 %v6090
        %6502 = vmatprep.subr.bf16.mxu0 0
        %6503 = vmatpush1.bf16.msra.mxu0 %v6091
        %6504 = vmatprep.subr.bf16.mxu0 0
        %6505 = vmatpush1.bf16.msra.mxu0 %v6092
        %6506 = vmatprep.subr.bf16.mxu0 0
        %6507 = vmatpush1.bf16.msra.mxu0 %v6093
        %6508 = vmatprep.subr.bf16.mxu0 0
        %6509 = vmatpush1.bf16.msra.mxu0 %v6094
        %6510 = vmatprep.subr.bf16.mxu0 0
        %6511 = vmatpush1.bf16.msra.mxu0 %v6095
        %6512 = vmatprep.subr.bf16.mxu0 0
        %6513 = vmatpush1.bf16.msra.mxu0 %v6096
        %6514 = vmatprep.subr.bf16.mxu0 0
        %6515 = vmatpush1.bf16.msra.mxu0 %v6097
        %6516 = vmatprep.subr.bf16.mxu0 0
        %6517 = vmatpush1.bf16.msra.mxu0 %v6098
        %6518 = vmatprep.subr.bf16.mxu0 0
        %6519 = vmatpush1.bf16.msra.mxu0 %v6099
        %6520 = vmatprep.subr.bf16.mxu0 0
        %6521 = vmatpush1.bf16.msra.mxu0 %v6100
        %6522 = vmatprep.subr.bf16.mxu0 0
        %6523 = vmatpush1.bf16.msra.mxu0 %v6101
        %6524 = vmatprep.mubr.bf16.mxu0 %v5215
        %6525 = vmatmul.mubr.bf16.gmra.mrb[0].mxu0 %v5214
        %v6526 = vpop.f32.mrb[0].mxu0
        %v6527 = vadd.f32 %v6486, %v6526
        %v6528 = vpop.f32.mrb[0].mxu0
        %v6529 = vpop.f32.mrb[0].mxu0
        %v6530 = vadd.f32 %v6489, %v6529
        %v6531 = vpop.f32.mrb[0].mxu0
        %6532 = vdwg.mxu0
        %6533 = vmatprep.subr.bf16.mxu0 0
        %6534 = vmatpush1.bf16.msra.mxu0 %v6102
        %6535 = vmatprep.subr.bf16.mxu0 0
        %6536 = vmatpush1.bf16.msra.mxu0 %v6103
        %6537 = vmatprep.subr.bf16.mxu0 0
        %6538 = vmatpush1.bf16.msra.mxu0 %v6104
        %6539 = vmatprep.subr.bf16.mxu0 0
        %6540 = vmatpush1.bf16.msra.mxu0 %v6105
        %6541 = vmatprep.subr.bf16.mxu0 0
        %6542 = vmatpush1.bf16.msra.mxu0 %v6106
        %6543 = vmatprep.subr.bf16.mxu0 0
        %6544 = vmatpush1.bf16.msra.mxu0 %v6107
        %6545 = vmatprep.subr.bf16.mxu0 0
        %6546 = vmatpush1.bf16.msra.mxu0 %v6108
        %6547 = vmatprep.subr.bf16.mxu0 0
        %6548 = vmatpush1.bf16.msra.mxu0 %v6109
        %6549 = vmatprep.subr.bf16.mxu0 0
        %6550 = vmatpush1.bf16.msra.mxu0 %v6110
        %6551 = vmatprep.subr.bf16.mxu0 0
        %6552 = vmatpush1.bf16.msra.mxu0 %v6111
        %6553 = vmatprep.subr.bf16.mxu0 0
        %6554 = vmatpush1.bf16.msra.mxu0 %v6112
        %6555 = vmatprep.subr.bf16.mxu0 0
        %6556 = vmatpush1.bf16.msra.mxu0 %v6113
        %6557 = vmatprep.subr.bf16.mxu0 0
        %6558 = vmatpush1.bf16.msra.mxu0 %v6114
        %6559 = vmatprep.subr.bf16.mxu0 0
        %6560 = vmatpush1.bf16.msra.mxu0 %v6115
        %6561 = vmatprep.subr.bf16.mxu0 0
        %6562 = vmatpush1.bf16.msra.mxu0 %v6116
        %6563 = vmatprep.subr.bf16.mxu0 0
        %6564 = vmatpush1.bf16.msra.mxu0 %v6117
        %6565 = vmatprep.mubr.bf16.mxu0 %v5217
        %6566 = vmatmul.mubr.bf16.gmra.mrb[0].mxu0 %v5216
        %v6567 = vpop.f32.mrb[0].mxu0
        %v6568 = vadd.f32 %v6527, %v6567
        %v6569 = vpop.f32.mrb[0].mxu0
        %v6570 = vpop.f32.mrb[0].mxu0
        %v6571 = vadd.f32 %v6530, %v6570
        %v6572 = vpop.f32.mrb[0].mxu0
        %6573 = vdwg.mxu0
        %v6574 = vadd.f32 %v3971, %v6568
        %v6575 = vadd.f32 %v3972, %v6571
        %6576 = vadd.xlane.f32.xlu0 %v6574
        %v6577 = vpop.xlane.xlu0 %6576
        %6578 = vadd.xlane.f32.xlu0 %v6575
        %v6579 = vpop.xlane.xlu0 %6578
        %v6580 = vmul.f32 %v6577, %v3942
        %v6581 = vmul.f32 %v6579, %v3942
        %v6582 = vsub.f32 %v6574, %v6580
        %v6583 = vsub.f32 %v6575, %v6581
        %v6584 = vmul.f32 %v6582, %v6582
        %v6585 = vmul.f32 %v6583, %v6583
        %6586 = vadd.xlane.f32.xlu0 %v6584
        %v6587 = vpop.xlane.xlu0 %6586
        %6588 = vadd.xlane.f32.xlu0 %v6585
        %v6589 = vpop.xlane.xlu0 %6588
        %v6590 = vmul.f32 %v6587, %v3942
        %v6591 = vmul.f32 %v6589, %v3942
        %v6592 = vadd.f32 %v6590, 1e-05
        %v6593 = vadd.f32 %v6591, 1e-05
        %v6594 = vrsqrt.pop %v6592
        %v6595 = vrsqrt.pop %v6593
        %v6596 = vmul.f32 %v6582, %v6594
        %v6597 = vmul.f32 %v6583, %v6595
        %v6598 = vlaneseq
        %v6599 = vshrl.u32 %v6598, 7
        %v6600 = vsub.s32 4, %v6599
        %v6601 = vrot.slane %v776, %v6600
        %v6602 = vmul.f32 %v6596, %v6601
        %v6603 = vmul.f32 %v6597, %v6601
        %v6604 = vlaneseq
        %v6605 = vshrl.u32 %v6604, 7
        %v6606 = vsub.s32 5, %v6605
        %v6607 = vrot.slane %v776, %v6606
        %v6608 = vadd.f32 %v6602, %v6607
        %v6609 = vadd.f32 %v6603, %v6607
        %6610 = vst [vmem:[#allocation2] sm:$0xff] %v6608
        %6611 = vst [vmem:[#allocation2 + $0x8] sm:$0xff] %v6609
        %p6612 = scmp.eq.s32.totalorder %s32, 1
        // Predicated region
        $region93: #{transformer_forward.1} parent=79 // pred_check
          %p6613 = pneg %p6612
        $region94: #{transformer_forward.1} parent=79 // pred_check_branch
          %6615 = sbr.rel (%p6613) target = $region96
        $region95: #{transformer_forward.1} parent=79 // pred_region
          %v6616 = vpack.c.bf16 %v6609, %v6608
          %v6617 = vld [vmem:[%s13] sm:$0xf]
          %v6618 = vld [vmem:[%s13 + $0x4] sm:$0xf]
          %v6619 = vld [vmem:[%s13 + $0x8] sm:$0xf]
          %v6620 = vld [vmem:[%s13 + $0xc] sm:$0xf]
          %v6621 = vld [vmem:[%s13 + $0x10] sm:$0xf]
          %v6622 = vld [vmem:[%s13 + $0x14] sm:$0xf]
          %v6623 = vld [vmem:[%s13 + $0x18] sm:$0xf]
          %v6624 = vld [vmem:[%s13 + $0x1c] sm:$0xf]
          %v6625 = vld [vmem:[%s13 + $0x20] sm:$0xf]
          %v6626 = vld [vmem:[%s13 + $0x24] sm:$0xf]
          %v6627 = vld [vmem:[%s13 + $0x28] sm:$0xf]
          %v6628 = vld [vmem:[%s13 + $0x2c] sm:$0xf]
          %v6629 = vld [vmem:[%s13 + $0x30] sm:$0xf]
          %v6630 = vld [vmem:[%s13 + $0x34] sm:$0xf]
          %v6631 = vld [vmem:[%s13 + $0x38] sm:$0xf]
          %v6632 = vld [vmem:[%s13 + $0x3c] sm:$0xf]
          %v6633 = vld [vmem:[%s14] sm:$0x1]
          %v6635 = vlaneseq
          %v6636 = vshrl.u32 %v6635, 7
          %v6637 = vsub.s32 0, %v6636
          %v6638 = vrot.slane %v6633, %v6637
          %v6656 = vunpack.c.l.b16 %v6617
          %v6657 = vunpack.c.l.b16 %v6618
          %v6658 = vunpack.c.l.b16 %v6619
          %v6659 = vunpack.c.l.b16 %v6620
          %v6660 = vunpack.c.l.b16 %v6621
          %v6661 = vunpack.c.l.b16 %v6622
          %v6662 = vunpack.c.l.b16 %v6623
          %v6663 = vunpack.c.l.b16 %v6624
          %v6664 = vunpack.c.l.b16 %v6625
          %v6665 = vunpack.c.l.b16 %v6626
          %v6666 = vunpack.c.l.b16 %v6627
          %v6667 = vunpack.c.l.b16 %v6628
          %v6668 = vunpack.c.l.b16 %v6629
          %v6669 = vunpack.c.l.b16 %v6630
          %v6670 = vunpack.c.l.b16 %v6631
          %v6671 = vunpack.c.l.b16 %v6632
          %v6672 = vpack.c.b16 %v6657, %v6656
          %v6673 = vpack.c.b16 %v6659, %v6658
          %v6674 = vpack.c.b16 %v6661, %v6660
          %v6675 = vpack.c.b16 %v6663, %v6662
          %v6676 = vpack.c.b16 %v6665, %v6664
          %v6677 = vpack.c.b16 %v6667, %v6666
          %v6678 = vpack.c.b16 %v6669, %v6668
          %v6679 = vpack.c.b16 %v6671, %v6670
          %6688 = vmatprep.subr.bf16.mxu0 0
          %6689 = vmatpush1.bf16.msra.mxu0 %v6672
          %6690 = vmatprep.subr.bf16.mxu0 0
          %6691 = vmatpush1.bf16.msra.mxu0 %v6673
          %6692 = vmatprep.subr.bf16.mxu0 0
          %6693 = vmatpush1.bf16.msra.mxu0 %v6674
          %6694 = vmatprep.subr.bf16.mxu0 0
          %6695 = vmatpush1.bf16.msra.mxu0 %v6675
          %6696 = vmatprep.subr.bf16.mxu0 0
          %6697 = vmatpush1.bf16.msra.mxu0 %v6676
          %6698 = vmatprep.subr.bf16.mxu0 0
          %6699 = vmatpush1.bf16.msra.mxu0 %v6677
          %6700 = vmatprep.subr.bf16.mxu0 0
          %6701 = vmatpush1.bf16.msra.mxu0 %v6678
          %6702 = vmatprep.subr.bf16.mxu0 0
          %6703 = vmatpush1.bf16.msra.mxu0 %v6679
          %6704 = vmatprep.subr.bf16.mxu0 0
          %6705 = vmatpush1.bf16.msra.mxu0 0
          %6706 = vmatprep.subr.bf16.mxu0 0
          %6707 = vmatpush1.bf16.msra.mxu0 0
          %6708 = vmatprep.subr.bf16.mxu0 0
          %6709 = vmatpush1.bf16.msra.mxu0 0
          %6710 = vmatprep.subr.bf16.mxu0 0
          %6711 = vmatpush1.bf16.msra.mxu0 0
          %6712 = vmatprep.subr.bf16.mxu0 0
          %6713 = vmatpush1.bf16.msra.mxu0 0
          %6714 = vmatprep.subr.bf16.mxu0 0
          %6715 = vmatpush1.bf16.msra.mxu0 0
          %6716 = vmatprep.subr.bf16.mxu0 0
          %6717 = vmatpush1.bf16.msra.mxu0 0
          %6718 = vmatprep.subr.bf16.mxu0 0
          %6719 = vmatpush1.bf16.msra.mxu0 0
          %6720 = vmatprep.mubr.bf16.mxu0 0
          %6721 = vmatmul.mubr.bf16.gmra.mrb[0].mxu0 %v6616
          %v6722 = vpop.f32.mrb[0].mxu0
          %v6723 = vadd.f32 %v6638, %v6722
          %v6724 = vpop.f32.mrb[0].mxu0
          %v6725 = vpop.f32.mrb[0].mxu0
          %v6726 = vadd.f32 %v6638, %v6725
          %v6727 = vpop.f32.mrb[0].mxu0
          %6728 = vdwg.mxu0
          %6729 = vst [vmem:[%s15] sm:$0xff] %v6723
          %6730 = vst [vmem:[%s15 + $0x8] sm:$0xff] %v6726
        $region96: #{transformer_forward.1} parent=79 // pred_fallthru
          _
        // Predicated region
        $region97: #{transformer_forward.1} parent=79 // pred_check
          %p6731 = pneg %p405
        $region98: #{transformer_forward.1} parent=79 // pred_check_branch
          %6733 = sbr.rel (%p6731) target = $region100
        $region99: #{transformer_forward.1} parent=79 // pred_region
          _
        $region100: #{transformer_forward.1} parent=79 // pred_fallthru
          _
        // Predicated region
        $region101: #{transformer_forward.1} parent=79 // pred_check
          %p6734 = pneg %p405
        $region102: #{transformer_forward.1} parent=79 // pred_check_branch
          %6736 = sbr.rel (%p6734) target = $region104
        $region103: #{transformer_forward.1} parent=79 // pred_region
          _
        $region104: #{transformer_forward.1} parent=79 // pred_fallthru
          _
      $region80: #{transformer_forward.1} parent=5 // pred_fallthru
        _
      %p6737 = scmp.le.s32.totalorder 2, %s27
      // Predicated region
      $region105: #{transformer_forward.1} parent=5 // pred_check
        %p6738 = pneg %p6737
      $region106: #{transformer_forward.1} parent=5 // pred_check_branch
        %6740 = sbr.rel (%p6738) target = $region108
      $region107: #{transformer_forward.1} parent=5 // pred_region
        %s6741 = ssub.s32 %s27, 2
      $region108: #{transformer_forward.1} parent=5 // pred_fallthru
        _
    $region6: #{transformer_forward.1} parent=1 // loop_footer
      %s31 = sadd.s32 1, %s27
    $region7: #{transformer_forward.1} parent=1 // loop_footer_branch
      %26 = sbr.rel target = $region3
    $region8: #{transformer_forward.1} parent=1 // loop_exit
      _
    %6742 = vsyncpa [#allocation4], 1
    %s6743 = scalar_lea.sflag [#allocation4], 1
    %6744 = vsyncpa %s6743, 1
    %6745 = vsyncpa [#allocation6], 1
    %s6746 = scalar_lea.sflag [#allocation6], 1
    %6747 = vsyncpa %s6746, 1

</llo_original>
